<compile_context>
chip_gen: v7x
topology: tpu7x:2x2x1
jax: 0.10.0
libtpu: 0.0.40
codegen_flags: <defaults>
</compile_context>

<pallas_src>
import functools

import numpy as np

import jax
import jax.numpy as jnp
from jax.experimental import pallas as pl
from jax.experimental.pallas import tpu as pltpu


def _hessian_blob_kernel(*refs, img_h, img_w, wpad, widths, use_mxu, precision):
    """One packed tile (1, Hp, Wp) per grid step.

    Hp = kh*img_h images stacked along sublanes, Wp = kw*wpad images packed
    along lanes (each image in a wpad-wide, zero-padded slot).  Lane-direction
    differences come from x @ stencil on the MXU (or masked lane rolls in the
    fallback); sublane-direction differences are XLU rolls with thin f32
    boundary masks.
    """
    if use_mxu:
        x_ref, s_ref, o_ref = refs
    else:
        x_ref, o_ref = refs
        s_ref = None

    x = x_ref[0].astype(jnp.float32)          # (Hp, Wp) in f32
    hp, wp = x.shape

    # Thin per-image row index (Hp, 1): every row mask below broadcasts along
    # lanes inside a multiply (no full-tile mask temporaries).
    row = jax.lax.broadcasted_iota(jnp.int32, (hp, 1), 0)
    if hp != img_h:
        row = row % img_h
    if not use_mxu:
        col = jax.lax.broadcasted_iota(jnp.int32, (1, wp), 1)
        if wp != wpad:
            col = col % wpad

    def rshift(v, off, mask):
        # out[i, :] = v[i + off, :] inside the image, 0 outside (zero padded).
        return pltpu.roll(v, (-off) % hp, 0) * mask

    acc = jnp.zeros((hp, wp), jnp.float32)
    for wi, width in enumerate(widths):       # static ints -> fully unrolled
        p = width // 2
        p2 = 2 * p

        # Thin f32 boundary masks / center weight for this width.
        mh_pos_p = (row < (img_h - p)).astype(jnp.float32)
        mh_neg_p = (row >= p).astype(jnp.float32)
        mh_pos_2p = (row < (img_h - p2)).astype(jnp.float32)
        mh_neg_2p = (row >= p2).astype(jnp.float32)
        c_h = mh_pos_p + mh_neg_p             # 2 interior, 1 at the edges

        if use_mxu:
            # Lane-direction first/second differences on the (idle) MXU.  The
            # stencils already encode the zero-padded boundaries + center weight.
            dx = jnp.dot(x, s_ref[2 * wi],
                         preferred_element_type=jnp.float32, precision=precision)
            dxx = jnp.dot(x, s_ref[2 * wi + 1],
                          preferred_element_type=jnp.float32, precision=precision)
        else:
            # Fallback for very wide images: masked lane rolls (XLU) with thin
            # (1, Wp) masks, composed +/-2p form for dxx.
            mw_pos_p = (col < (img_w - p)).astype(jnp.float32)
            mw_neg_p = (col >= p).astype(jnp.float32)
            mw_pos_2p = (col < (img_w - p2)).astype(jnp.float32)
            mw_neg_2p = (col >= p2).astype(jnp.float32)
            c_w = mw_pos_p + mw_neg_p

            def cshift(v, off, mask):
                return pltpu.roll(v, (-off) % wp, 1) * mask

            dx = cshift(x, p, mw_pos_p) - cshift(x, -p, mw_neg_p)
            dxx = cshift(x, p2, mw_pos_2p) + cshift(x, -p2, mw_neg_2p) - c_w * x

        # Sublane (row) direction stays on the XLU; composed +/-2p form for dyy.
        dyy = rshift(x, p2, mh_pos_2p) + rshift(x, -p2, mh_neg_2p) - c_h * x
        dxy = rshift(dx, p, mh_pos_p) - rshift(dx, -p, mh_neg_p)

        # Fuse the per-width product straight into the accumulator.
        acc = acc + (dxx * dyy - dxy * dxy)

    o_ref[0] = acc.astype(o_ref.dtype)


def _build_stencils(widths, img_w, wpad, kw):
    """Block-diagonal lane-difference stencils: dx = x @ S[2i], dxx = x @ S[2i+1]."""
    wp = kw * wpad
    s = np.zeros((2 * len(widths), wp, wp), np.float32)
    for wi, width in enumerate(widths):
        p = width // 2
        s1 = np.zeros((wpad, wpad), np.float32)
        s2 = np.zeros((wpad, wpad), np.float32)
        for j in range(img_w):
            if j + p < img_w:
                s1[j + p, j] += 1.0
            if j - p >= 0:
                s1[j - p, j] -= 1.0
            if j + 2 * p < img_w:
                s2[j + 2 * p, j] += 1.0
            if j - 2 * p >= 0:
                s2[j - 2 * p, j] += 1.0
            s2[j, j] -= float(j >= p) + float(j < img_w - p)   # center weight c_w
        for g in range(kw):
            o = g * wpad
            s[2 * wi, o:o + wpad, o:o + wpad] = s1
            s[2 * wi + 1, o:o + wpad, o:o + wpad] = s2
    return jnp.asarray(s)


def hessian_blob(x, min_width: int = 3, max_width: int = 15):
    """x: (B, C, H, W). Sum of DoH over odd widths in [min_width, max_width)."""
    if min_width % 2 == 0:
        min_width += 1
    if max_width % 2 == 0:
        max_width += 1
    widths = tuple(range(min_width, max_width, 2))
    if not widths:
        return jnp.zeros_like(x)

    B, C, H, W = x.shape
    N = B * C

    # ---- lane geometry: packed last dim is always a multiple of 128 ----------
    if W >= 128:
        wpad = pl.cdiv(W, 128) * 128          # pad width up to a 128 multiple
        kw = 1
    else:
        wpad = 1 << max(W - 1, 0).bit_length()  # next pow2 >= W (divides 128)
        kw = 128 // wpad
    n_pad = (-N) % kw                         # pad B*C up to a kw multiple
    Wp = kw * wpad

    xf = x.reshape(N, H, W)
    if n_pad or wpad != W:
        xf = jnp.pad(xf, ((0, n_pad), (0, 0), (0, wpad - W)))
    G1 = (N + n_pad) // kw
    if kw > 1:
        xf = xf.reshape(G1, kw, H, wpad).transpose(0, 2, 1, 3).reshape(G1, H, Wp)
    else:
        xf = xf.reshape(G1, H, Wp)

    # ---- generation-aware tiling budget ---------------------------------------
    try:
        vmem_cap = getattr(pltpu.get_tpu_info(), "vmem_capacity_bytes",
                           64 * 1024 * 1024)
    except Exception:                         # unknown chip / interpret mode
        vmem_cap = 64 * 1024 * 1024
    if vmem_cap > 64 * 1024 * 1024:           # v5e / v6e: 128 MiB VMEM
        max_block_bytes = 1 * 1024 * 1024
        vmem_limit = 64 * 1024 * 1024
    else:                                     # v7x-class: 64 MiB VMEM per TC
        max_block_bytes = 512 * 1024
        vmem_limit = 32 * 1024 * 1024

    # ---- sublane packing: amortize per-step overhead, but prefer keeping the
    #      grid >= 2 (and even) so both v7x TensorCores get work ----------------
    divs = [d for d in range(1, G1 + 1)
            if G1 % d == 0 and d * H * Wp * 4 <= max_block_bytes] or [1]

    def _best(pred):
        ok = [d for d in divs if pred(G1 // d)]
        return max(ok) if ok else None

    kh = (_best(lambda g: g >= 2 and g % 2 == 0)
          or _best(lambda g: g >= 2)
          or max(divs))
    G = G1 // kh
    Hp = kh * H
    xf = xf.reshape(G, Hp, Wp)

    # ---- MXU offload of the lane direction (small packed widths only) --------
    use_mxu = Wp <= 256
    stencils = _build_stencils(widths, W, wpad, kw) if use_mxu else None

    def _run(precision):
        kernel = functools.partial(
            _hessian_blob_kernel, img_h=H, img_w=W, wpad=wpad,
            widths=widths, use_mxu=use_mxu, precision=precision)
        in_specs = [pl.BlockSpec((1, Hp, Wp), lambda i: (i, 0, 0))]
        operands = [xf]
        if use_mxu:
            # Broadcast input: constant block index -> fetched once, stays resident.
            in_specs.append(pl.BlockSpec(stencils.shape, lambda i: (0, 0, 0)))
            operands.append(stencils)
        return pl.pallas_call(
            kernel,
            out_shape=jax.ShapeDtypeStruct((G, Hp, Wp), x.dtype),
            grid_spec=pltpu.PrefetchScalarGridSpec(
                num_scalar_prefetch=0,
                grid=(G,),
                in_specs=in_specs,
                out_specs=pl.BlockSpec((1, Hp, Wp), lambda i: (i, 0, 0)),
            ),
            compiler_params=pltpu.CompilerParams(
                dimension_semantics=("parallel",),
                vmem_limit_bytes=vmem_limit,
            ),
        )(*operands)

    if use_mxu:
        try:
            # Exact fp32 MXU contraction (stencil entries are small exact ints).
            out = _run(jax.lax.Precision.HIGHEST)
        except Exception:
            # Mosaic builds without contract-precision support: the default
            # keeps f32 operands in f32 on the MXU, so numerics remain fine.
            out = _run(None)
    else:
        out = _run(None)

    # ---- unpack back to (B, C, H, W) ------------------------------------------
    out = out.reshape(G1, H, Wp)
    if kw > 1:
        out = out.reshape(G1, H, kw, wpad).transpose(0, 2, 1, 3)
    out = out.reshape(G1 * kw, H, wpad)[:N, :, :W]
    return out.reshape(B, C, H, W)


# ----- pure-JAX reference (direct translation of the PyTorch code) -----
def _doh_ref(t, width):
    pad = width // 2
    padded = jnp.pad(t, ((0, 0), (0, 0), (pad, pad), (pad, pad)))
    dx = padded[:, :, pad:-pad, width - 1:] - padded[:, :, pad:-pad, :-width + 1]
    dy = padded[:, :, width - 1:, pad:-pad] - padded[:, :, :-width + 1, pad:-pad]
    dx = jnp.pad(dx, ((0, 0), (0, 0), (pad, pad), (pad, pad)))
    dy = jnp.pad(dy, ((0, 0), (0, 0), (pad, pad), (pad, pad)))
    dxx = dx[:, :, pad:-pad, width - 1:] - dx[:, :, pad:-pad, :-width + 1]
    dyy = dy[:, :, width - 1:, pad:-pad] - dy[:, :, :-width + 1, pad:-pad]
    dxy = dx[:, :, width - 1:, pad:-pad] - dx[:, :, :-width + 1, pad:-pad]
    return dxx * dyy - dxy ** 2


def _hessian_blob_ref(x, min_width=3, max_width=15):
    if min_width % 2 == 0:
        min_width += 1
    if max_width % 2 == 0:
        max_width += 1
    acc = jnp.zeros_like(x)
    for width in range(min_width, max_width, 2):
        acc = acc + _doh_ref(x, width)
    return acc


if __name__ == "__main__":
    key = jax.random.PRNGKey(0)
    x = jax.random.normal(key, (2, 4, 16, 16), dtype=jnp.float32)

    out = hessian_blob(x, min_width=3, max_width=15)
    out = jax.block_until_ready(out)

    ref = _hessian_blob_ref(x, min_width=3, max_width=15)
    assert out.shape == x.shape and out.dtype == x.dtype
    assert jnp.allclose(out, ref, atol=1e-3, rtol=1e-3), (
        f"mismatch vs reference: max abs err {jnp.max(jnp.abs(out - ref)):.3e}")
    print("KERNEL_OK")
</pallas_src>

<mosaic_0001>
module attributes {stable_mosaic.version = 11 : i64} {
  func.func @_hessian_blob_kernel(%arg0: i32, %arg1: memref<1x16x128xf32, #tpu.memory_space<vmem>>, %arg2: memref<12x128x128xf32, #tpu.memory_space<vmem>>, %arg3: memref<1x16x128xf32, #tpu.memory_space<vmem>>) attributes {dimension_semantics = [#tpu.dimension_semantics<parallel>], iteration_bounds = array<i64: 1>, scalar_prefetch = 0 : i64, scratch_operands = 0 : i64, tpu.core_type = #tpu.core_type<tc>, window_params = [{transform_indices = @transform_0, window_bounds = array<i64: 1, 16, 128>}, {pipeline_mode = #tpu.pipeline_mode<synchronous>, transform_indices = @transform_1, window_bounds = array<i64: 12, 128, 128>}, {transform_indices = @transform_2, window_bounds = array<i64: 1, 16, 128>}]} {
    %c0 = arith.constant 0 : index
    %c0_0 = arith.constant 0 : index
    %c0_1 = arith.constant 0 : index
    %0 = vector.load %arg1[%c0, %c0_0, %c0_1] : memref<1x16x128xf32, #tpu.memory_space<vmem>>, vector<1x16x128xf32>
    %1 = vector.shape_cast %0 : vector<1x16x128xf32> to vector<16x128xf32>
    %2 = tpu.iota {dimensions = array<i32: 0>} : vector<16x1xi32>
    %cst = arith.constant 0.000000e+00 : f32
    %3 = vector.broadcast %cst : f32 to vector<16x128xf32>
    %c15_i32 = arith.constant 15 : i32
    %4 = vector.broadcast %c15_i32 : i32 to vector<16x1xi32>
    %5 = arith.cmpi slt, %2, %4 : vector<16x1xi32>
    %6 = arith.extui %5 : vector<16x1xi1> to vector<16x1xi32>
    %7 = arith.sitofp %6 : vector<16x1xi32> to vector<16x1xf32>
    %c1_i32 = arith.constant 1 : i32
    %8 = vector.broadcast %c1_i32 : i32 to vector<16x1xi32>
    %9 = arith.cmpi sge, %2, %8 : vector<16x1xi32>
    %10 = arith.extui %9 : vector<16x1xi1> to vector<16x1xi32>
    %11 = arith.sitofp %10 : vector<16x1xi32> to vector<16x1xf32>
    %c14_i32 = arith.constant 14 : i32
    %12 = vector.broadcast %c14_i32 : i32 to vector<16x1xi32>
    %13 = arith.cmpi slt, %2, %12 : vector<16x1xi32>
    %14 = arith.extui %13 : vector<16x1xi1> to vector<16x1xi32>
    %15 = arith.sitofp %14 : vector<16x1xi32> to vector<16x1xf32>
    %c2_i32 = arith.constant 2 : i32
    %16 = vector.broadcast %c2_i32 : i32 to vector<16x1xi32>
    %17 = arith.cmpi sge, %2, %16 : vector<16x1xi32>
    %18 = arith.extui %17 : vector<16x1xi1> to vector<16x1xi32>
    %19 = arith.sitofp %18 : vector<16x1xi32> to vector<16x1xf32>
    %20 = arith.addf %7, %11 : vector<16x1xf32>
    %c0_2 = arith.constant 0 : index
    %c0_3 = arith.constant 0 : index
    %c0_4 = arith.constant 0 : index
    %21 = vector.load %arg2[%c0_2, %c0_3, %c0_4] : memref<12x128x128xf32, #tpu.memory_space<vmem>>, vector<1x128x128xf32>
    %22 = vector.shape_cast %21 : vector<1x128x128xf32> to vector<128x128xf32>
    %cst_5 = arith.constant dense<0.000000e+00> : vector<16x128xf32>
    %23 = tpu.matmul %1, %22, %cst_5 {dimension_numbers = #tpu.dot_dimension_numbers<[1], [0], [0], [1], [0, 0, 1, 1], [], []>, precision = #tpu.contract_precision<fp32>} : vector<16x128xf32>, vector<128x128xf32>, vector<16x128xf32> -> vector<16x128xf32>
    %c1 = arith.constant 1 : index
    %c0_6 = arith.constant 0 : index
    %c0_7 = arith.constant 0 : index
    %24 = vector.load %arg2[%c1, %c0_6, %c0_7] : memref<12x128x128xf32, #tpu.memory_space<vmem>>, vector<1x128x128xf32>
    %25 = vector.shape_cast %24 : vector<1x128x128xf32> to vector<128x128xf32>
    %cst_8 = arith.constant dense<0.000000e+00> : vector<16x128xf32>
    %26 = tpu.matmul %1, %25, %cst_8 {dimension_numbers = #tpu.dot_dimension_numbers<[1], [0], [0], [1], [0, 0, 1, 1], [], []>, precision = #tpu.contract_precision<fp32>} : vector<16x128xf32>, vector<128x128xf32>, vector<16x128xf32> -> vector<16x128xf32>
    %c14_i32_9 = arith.constant 14 : i32
    %27 = tpu.dynamic_rotate %1 by %c14_i32_9 dim 0 : vector<16x128xf32>, i32 -> vector<16x128xf32>
    %28 = vector.broadcast %15 : vector<16x1xf32> to vector<16x128xf32>
    %29 = arith.mulf %27, %28 : vector<16x128xf32>
    %c2_i32_10 = arith.constant 2 : i32
    %30 = tpu.dynamic_rotate %1 by %c2_i32_10 dim 0 : vector<16x128xf32>, i32 -> vector<16x128xf32>
    %31 = vector.broadcast %19 : vector<16x1xf32> to vector<16x128xf32>
    %32 = arith.mulf %30, %31 : vector<16x128xf32>
    %33 = arith.addf %29, %32 : vector<16x128xf32>
    %34 = vector.broadcast %20 : vector<16x1xf32> to vector<16x128xf32>
    %35 = arith.mulf %34, %1 : vector<16x128xf32>
    %36 = arith.subf %33, %35 : vector<16x128xf32>
    %c15_i32_11 = arith.constant 15 : i32
    %37 = tpu.dynamic_rotate %23 by %c15_i32_11 dim 0 : vector<16x128xf32>, i32 -> vector<16x128xf32>
    %38 = vector.broadcast %7 : vector<16x1xf32> to vector<16x128xf32>
    %39 = arith.mulf %37, %38 : vector<16x128xf32>
    %c1_i32_12 = arith.constant 1 : i32
    %40 = tpu.dynamic_rotate %23 by %c1_i32_12 dim 0 : vector<16x128xf32>, i32 -> vector<16x128xf32>
    %41 = vector.broadcast %11 : vector<16x1xf32> to vector<16x128xf32>
    %42 = arith.mulf %40, %41 : vector<16x128xf32>
    %43 = arith.subf %39, %42 : vector<16x128xf32>
    %44 = arith.mulf %26, %36 : vector<16x128xf32>
    %45 = arith.mulf %43, %43 : vector<16x128xf32>
    %46 = arith.subf %44, %45 : vector<16x128xf32>
    %47 = arith.addf %3, %46 : vector<16x128xf32>
    %c14_i32_13 = arith.constant 14 : i32
    %48 = vector.broadcast %c14_i32_13 : i32 to vector<16x1xi32>
    %49 = arith.cmpi slt, %2, %48 : vector<16x1xi32>
    %50 = arith.extui %49 : vector<16x1xi1> to vector<16x1xi32>
    %51 = arith.sitofp %50 : vector<16x1xi32> to vector<16x1xf32>
    %c2_i32_14 = arith.constant 2 : i32
    %52 = vector.broadcast %c2_i32_14 : i32 to vector<16x1xi32>
    %53 = arith.cmpi sge, %2, %52 : vector<16x1xi32>
    %54 = arith.extui %53 : vector<16x1xi1> to vector<16x1xi32>
    %55 = arith.sitofp %54 : vector<16x1xi32> to vector<16x1xf32>
    %c12_i32 = arith.constant 12 : i32
    %56 = vector.broadcast %c12_i32 : i32 to vector<16x1xi32>
    %57 = arith.cmpi slt, %2, %56 : vector<16x1xi32>
    %58 = arith.extui %57 : vector<16x1xi1> to vector<16x1xi32>
    %59 = arith.sitofp %58 : vector<16x1xi32> to vector<16x1xf32>
    %c4_i32 = arith.constant 4 : i32
    %60 = vector.broadcast %c4_i32 : i32 to vector<16x1xi32>
    %61 = arith.cmpi sge, %2, %60 : vector<16x1xi32>
    %62 = arith.extui %61 : vector<16x1xi1> to vector<16x1xi32>
    %63 = arith.sitofp %62 : vector<16x1xi32> to vector<16x1xf32>
    %64 = arith.addf %51, %55 : vector<16x1xf32>
    %c2 = arith.constant 2 : index
    %c0_15 = arith.constant 0 : index
    %c0_16 = arith.constant 0 : index
    %65 = vector.load %arg2[%c2, %c0_15, %c0_16] : memref<12x128x128xf32, #tpu.memory_space<vmem>>, vector<1x128x128xf32>
    %66 = vector.shape_cast %65 : vector<1x128x128xf32> to vector<128x128xf32>
    %cst_17 = arith.constant dense<0.000000e+00> : vector<16x128xf32>
    %67 = tpu.matmul %1, %66, %cst_17 {dimension_numbers = #tpu.dot_dimension_numbers<[1], [0], [0], [1], [0, 0, 1, 1], [], []>, precision = #tpu.contract_precision<fp32>} : vector<16x128xf32>, vector<128x128xf32>, vector<16x128xf32> -> vector<16x128xf32>
    %c3 = arith.constant 3 : index
    %c0_18 = arith.constant 0 : index
    %c0_19 = arith.constant 0 : index
    %68 = vector.load %arg2[%c3, %c0_18, %c0_19] : memref<12x128x128xf32, #tpu.memory_space<vmem>>, vector<1x128x128xf32>
    %69 = vector.shape_cast %68 : vector<1x128x128xf32> to vector<128x128xf32>
    %cst_20 = arith.constant dense<0.000000e+00> : vector<16x128xf32>
    %70 = tpu.matmul %1, %69, %cst_20 {dimension_numbers = #tpu.dot_dimension_numbers<[1], [0], [0], [1], [0, 0, 1, 1], [], []>, precision = #tpu.contract_precision<fp32>} : vector<16x128xf32>, vector<128x128xf32>, vector<16x128xf32> -> vector<16x128xf32>
    %c12_i32_21 = arith.constant 12 : i32
    %71 = tpu.dynamic_rotate %1 by %c12_i32_21 dim 0 : vector<16x128xf32>, i32 -> vector<16x128xf32>
    %72 = vector.broadcast %59 : vector<16x1xf32> to vector<16x128xf32>
    %73 = arith.mulf %71, %72 : vector<16x128xf32>
    %c4_i32_22 = arith.constant 4 : i32
    %74 = tpu.dynamic_rotate %1 by %c4_i32_22 dim 0 : vector<16x128xf32>, i32 -> vector<16x128xf32>
    %75 = vector.broadcast %63 : vector<16x1xf32> to vector<16x128xf32>
    %76 = arith.mulf %74, %75 : vector<16x128xf32>
    %77 = arith.addf %73, %76 : vector<16x128xf32>
    %78 = vector.broadcast %64 : vector<16x1xf32> to vector<16x128xf32>
    %79 = arith.mulf %78, %1 : vector<16x128xf32>
    %80 = arith.subf %77, %79 : vector<16x128xf32>
    %c14_i32_23 = arith.constant 14 : i32
    %81 = tpu.dynamic_rotate %67 by %c14_i32_23 dim 0 : vector<16x128xf32>, i32 -> vector<16x128xf32>
    %82 = vector.broadcast %51 : vector<16x1xf32> to vector<16x128xf32>
    %83 = arith.mulf %81, %82 : vector<16x128xf32>
    %c2_i32_24 = arith.constant 2 : i32
    %84 = tpu.dynamic_rotate %67 by %c2_i32_24 dim 0 : vector<16x128xf32>, i32 -> vector<16x128xf32>
    %85 = vector.broadcast %55 : vector<16x1xf32> to vector<16x128xf32>
    %86 = arith.mulf %84, %85 : vector<16x128xf32>
    %87 = arith.subf %83, %86 : vector<16x128xf32>
    %88 = arith.mulf %70, %80 : vector<16x128xf32>
    %89 = arith.mulf %87, %87 : vector<16x128xf32>
    %90 = arith.subf %88, %89 : vector<16x128xf32>
    %91 = arith.addf %47, %90 : vector<16x128xf32>
    %c13_i32 = arith.constant 13 : i32
    %92 = vector.broadcast %c13_i32 : i32 to vector<16x1xi32>
    %93 = arith.cmpi slt, %2, %92 : vector<16x1xi32>
    %94 = arith.extui %93 : vector<16x1xi1> to vector<16x1xi32>
    %95 = arith.sitofp %94 : vector<16x1xi32> to vector<16x1xf32>
    %c3_i32 = arith.constant 3 : i32
    %96 = vector.broadcast %c3_i32 : i32 to vector<16x1xi32>
    %97 = arith.cmpi sge, %2, %96 : vector<16x1xi32>
    %98 = arith.extui %97 : vector<16x1xi1> to vector<16x1xi32>
    %99 = arith.sitofp %98 : vector<16x1xi32> to vector<16x1xf32>
    %c10_i32 = arith.constant 10 : i32
    %100 = vector.broadcast %c10_i32 : i32 to vector<16x1xi32>
    %101 = arith.cmpi slt, %2, %100 : vector<16x1xi32>
    %102 = arith.extui %101 : vector<16x1xi1> to vector<16x1xi32>
    %103 = arith.sitofp %102 : vector<16x1xi32> to vector<16x1xf32>
    %c6_i32 = arith.constant 6 : i32
    %104 = vector.broadcast %c6_i32 : i32 to vector<16x1xi32>
    %105 = arith.cmpi sge, %2, %104 : vector<16x1xi32>
    %106 = arith.extui %105 : vector<16x1xi1> to vector<16x1xi32>
    %107 = arith.sitofp %106 : vector<16x1xi32> to vector<16x1xf32>
    %108 = arith.addf %95, %99 : vector<16x1xf32>
    %c4 = arith.constant 4 : index
    %c0_25 = arith.constant 0 : index
    %c0_26 = arith.constant 0 : index
    %109 = vector.load %arg2[%c4, %c0_25, %c0_26] : memref<12x128x128xf32, #tpu.memory_space<vmem>>, vector<1x128x128xf32>
    %110 = vector.shape_cast %109 : vector<1x128x128xf32> to vector<128x128xf32>
    %cst_27 = arith.constant dense<0.000000e+00> : vector<16x128xf32>
    %111 = tpu.matmul %1, %110, %cst_27 {dimension_numbers = #tpu.dot_dimension_numbers<[1], [0], [0], [1], [0, 0, 1, 1], [], []>, precision = #tpu.contract_precision<fp32>} : vector<16x128xf32>, vector<128x128xf32>, vector<16x128xf32> -> vector<16x128xf32>
    %c5 = arith.constant 5 : index
    %c0_28 = arith.constant 0 : index
    %c0_29 = arith.constant 0 : index
    %112 = vector.load %arg2[%c5, %c0_28, %c0_29] : memref<12x128x128xf32, #tpu.memory_space<vmem>>, vector<1x128x128xf32>
    %113 = vector.shape_cast %112 : vector<1x128x128xf32> to vector<128x128xf32>
    %cst_30 = arith.constant dense<0.000000e+00> : vector<16x128xf32>
    %114 = tpu.matmul %1, %113, %cst_30 {dimension_numbers = #tpu.dot_dimension_numbers<[1], [0], [0], [1], [0, 0, 1, 1], [], []>, precision = #tpu.contract_precision<fp32>} : vector<16x128xf32>, vector<128x128xf32>, vector<16x128xf32> -> vector<16x128xf32>
    %c10_i32_31 = arith.constant 10 : i32
    %115 = tpu.dynamic_rotate %1 by %c10_i32_31 dim 0 : vector<16x128xf32>, i32 -> vector<16x128xf32>
    %116 = vector.broadcast %103 : vector<16x1xf32> to vector<16x128xf32>
    %117 = arith.mulf %115, %116 : vector<16x128xf32>
    %c6_i32_32 = arith.constant 6 : i32
    %118 = tpu.dynamic_rotate %1 by %c6_i32_32 dim 0 : vector<16x128xf32>, i32 -> vector<16x128xf32>
    %119 = vector.broadcast %107 : vector<16x1xf32> to vector<16x128xf32>
    %120 = arith.mulf %118, %119 : vector<16x128xf32>
    %121 = arith.addf %117, %120 : vector<16x128xf32>
    %122 = vector.broadcast %108 : vector<16x1xf32> to vector<16x128xf32>
    %123 = arith.mulf %122, %1 : vector<16x128xf32>
    %124 = arith.subf %121, %123 : vector<16x128xf32>
    %c13_i32_33 = arith.constant 13 : i32
    %125 = tpu.dynamic_rotate %111 by %c13_i32_33 dim 0 : vector<16x128xf32>, i32 -> vector<16x128xf32>
    %126 = vector.broadcast %95 : vector<16x1xf32> to vector<16x128xf32>
    %127 = arith.mulf %125, %126 : vector<16x128xf32>
    %c3_i32_34 = arith.constant 3 : i32
    %128 = tpu.dynamic_rotate %111 by %c3_i32_34 dim 0 : vector<16x128xf32>, i32 -> vector<16x128xf32>
    %129 = vector.broadcast %99 : vector<16x1xf32> to vector<16x128xf32>
    %130 = arith.mulf %128, %129 : vector<16x128xf32>
    %131 = arith.subf %127, %130 : vector<16x128xf32>
    %132 = arith.mulf %114, %124 : vector<16x128xf32>
    %133 = arith.mulf %131, %131 : vector<16x128xf32>
    %134 = arith.subf %132, %133 : vector<16x128xf32>
    %135 = arith.addf %91, %134 : vector<16x128xf32>
    %c12_i32_35 = arith.constant 12 : i32
    %136 = vector.broadcast %c12_i32_35 : i32 to vector<16x1xi32>
    %137 = arith.cmpi slt, %2, %136 : vector<16x1xi32>
    %138 = arith.extui %137 : vector<16x1xi1> to vector<16x1xi32>
    %139 = arith.sitofp %138 : vector<16x1xi32> to vector<16x1xf32>
    %c4_i32_36 = arith.constant 4 : i32
    %140 = vector.broadcast %c4_i32_36 : i32 to vector<16x1xi32>
    %141 = arith.cmpi sge, %2, %140 : vector<16x1xi32>
    %142 = arith.extui %141 : vector<16x1xi1> to vector<16x1xi32>
    %143 = arith.sitofp %142 : vector<16x1xi32> to vector<16x1xf32>
    %c8_i32 = arith.constant 8 : i32
    %144 = vector.broadcast %c8_i32 : i32 to vector<16x1xi32>
    %145 = arith.cmpi slt, %2, %144 : vector<16x1xi32>
    %146 = arith.extui %145 : vector<16x1xi1> to vector<16x1xi32>
    %147 = arith.sitofp %146 : vector<16x1xi32> to vector<16x1xf32>
    %c8_i32_37 = arith.constant 8 : i32
    %148 = vector.broadcast %c8_i32_37 : i32 to vector<16x1xi32>
    %149 = arith.cmpi sge, %2, %148 : vector<16x1xi32>
    %150 = arith.extui %149 : vector<16x1xi1> to vector<16x1xi32>
    %151 = arith.sitofp %150 : vector<16x1xi32> to vector<16x1xf32>
    %152 = arith.addf %139, %143 : vector<16x1xf32>
    %c6 = arith.constant 6 : index
    %c0_38 = arith.constant 0 : index
    %c0_39 = arith.constant 0 : index
    %153 = vector.load %arg2[%c6, %c0_38, %c0_39] : memref<12x128x128xf32, #tpu.memory_space<vmem>>, vector<1x128x128xf32>
    %154 = vector.shape_cast %153 : vector<1x128x128xf32> to vector<128x128xf32>
    %cst_40 = arith.constant dense<0.000000e+00> : vector<16x128xf32>
    %155 = tpu.matmul %1, %154, %cst_40 {dimension_numbers = #tpu.dot_dimension_numbers<[1], [0], [0], [1], [0, 0, 1, 1], [], []>, precision = #tpu.contract_precision<fp32>} : vector<16x128xf32>, vector<128x128xf32>, vector<16x128xf32> -> vector<16x128xf32>
    %c7 = arith.constant 7 : index
    %c0_41 = arith.constant 0 : index
    %c0_42 = arith.constant 0 : index
    %156 = vector.load %arg2[%c7, %c0_41, %c0_42] : memref<12x128x128xf32, #tpu.memory_space<vmem>>, vector<1x128x128xf32>
    %157 = vector.shape_cast %156 : vector<1x128x128xf32> to vector<128x128xf32>
    %cst_43 = arith.constant dense<0.000000e+00> : vector<16x128xf32>
    %158 = tpu.matmul %1, %157, %cst_43 {dimension_numbers = #tpu.dot_dimension_numbers<[1], [0], [0], [1], [0, 0, 1, 1], [], []>, precision = #tpu.contract_precision<fp32>} : vector<16x128xf32>, vector<128x128xf32>, vector<16x128xf32> -> vector<16x128xf32>
    %c8_i32_44 = arith.constant 8 : i32
    %159 = tpu.dynamic_rotate %1 by %c8_i32_44 dim 0 : vector<16x128xf32>, i32 -> vector<16x128xf32>
    %160 = vector.broadcast %147 : vector<16x1xf32> to vector<16x128xf32>
    %161 = arith.mulf %159, %160 : vector<16x128xf32>
    %c8_i32_45 = arith.constant 8 : i32
    %162 = tpu.dynamic_rotate %1 by %c8_i32_45 dim 0 : vector<16x128xf32>, i32 -> vector<16x128xf32>
    %163 = vector.broadcast %151 : vector<16x1xf32> to vector<16x128xf32>
    %164 = arith.mulf %162, %163 : vector<16x128xf32>
    %165 = arith.addf %161, %164 : vector<16x128xf32>
    %166 = vector.broadcast %152 : vector<16x1xf32> to vector<16x128xf32>
    %167 = arith.mulf %166, %1 : vector<16x128xf32>
    %168 = arith.subf %165, %167 : vector<16x128xf32>
    %c12_i32_46 = arith.constant 12 : i32
    %169 = tpu.dynamic_rotate %155 by %c12_i32_46 dim 0 : vector<16x128xf32>, i32 -> vector<16x128xf32>
    %170 = vector.broadcast %139 : vector<16x1xf32> to vector<16x128xf32>
    %171 = arith.mulf %169, %170 : vector<16x128xf32>
    %c4_i32_47 = arith.constant 4 : i32
    %172 = tpu.dynamic_rotate %155 by %c4_i32_47 dim 0 : vector<16x128xf32>, i32 -> vector<16x128xf32>
    %173 = vector.broadcast %143 : vector<16x1xf32> to vector<16x128xf32>
    %174 = arith.mulf %172, %173 : vector<16x128xf32>
    %175 = arith.subf %171, %174 : vector<16x128xf32>
    %176 = arith.mulf %158, %168 : vector<16x128xf32>
    %177 = arith.mulf %175, %175 : vector<16x128xf32>
    %178 = arith.subf %176, %177 : vector<16x128xf32>
    %179 = arith.addf %135, %178 : vector<16x128xf32>
    %c11_i32 = arith.constant 11 : i32
    %180 = vector.broadcast %c11_i32 : i32 to vector<16x1xi32>
    %181 = arith.cmpi slt, %2, %180 : vector<16x1xi32>
    %182 = arith.extui %181 : vector<16x1xi1> to vector<16x1xi32>
    %183 = arith.sitofp %182 : vector<16x1xi32> to vector<16x1xf32>
    %c5_i32 = arith.constant 5 : i32
    %184 = vector.broadcast %c5_i32 : i32 to vector<16x1xi32>
    %185 = arith.cmpi sge, %2, %184 : vector<16x1xi32>
    %186 = arith.extui %185 : vector<16x1xi1> to vector<16x1xi32>
    %187 = arith.sitofp %186 : vector<16x1xi32> to vector<16x1xf32>
    %c6_i32_48 = arith.constant 6 : i32
    %188 = vector.broadcast %c6_i32_48 : i32 to vector<16x1xi32>
    %189 = arith.cmpi slt, %2, %188 : vector<16x1xi32>
    %190 = arith.extui %189 : vector<16x1xi1> to vector<16x1xi32>
    %191 = arith.sitofp %190 : vector<16x1xi32> to vector<16x1xf32>
    %c10_i32_49 = arith.constant 10 : i32
    %192 = vector.broadcast %c10_i32_49 : i32 to vector<16x1xi32>
    %193 = arith.cmpi sge, %2, %192 : vector<16x1xi32>
    %194 = arith.extui %193 : vector<16x1xi1> to vector<16x1xi32>
    %195 = arith.sitofp %194 : vector<16x1xi32> to vector<16x1xf32>
    %196 = arith.addf %183, %187 : vector<16x1xf32>
    %c8 = arith.constant 8 : index
    %c0_50 = arith.constant 0 : index
    %c0_51 = arith.constant 0 : index
    %197 = vector.load %arg2[%c8, %c0_50, %c0_51] : memref<12x128x128xf32, #tpu.memory_space<vmem>>, vector<1x128x128xf32>
    %198 = vector.shape_cast %197 : vector<1x128x128xf32> to vector<128x128xf32>
    %cst_52 = arith.constant dense<0.000000e+00> : vector<16x128xf32>
    %199 = tpu.matmul %1, %198, %cst_52 {dimension_numbers = #tpu.dot_dimension_numbers<[1], [0], [0], [1], [0, 0, 1, 1], [], []>, precision = #tpu.contract_precision<fp32>} : vector<16x128xf32>, vector<128x128xf32>, vector<16x128xf32> -> vector<16x128xf32>
    %c9 = arith.constant 9 : index
    %c0_53 = arith.constant 0 : index
    %c0_54 = arith.constant 0 : index
    %200 = vector.load %arg2[%c9, %c0_53, %c0_54] : memref<12x128x128xf32, #tpu.memory_space<vmem>>, vector<1x128x128xf32>
    %201 = vector.shape_cast %200 : vector<1x128x128xf32> to vector<128x128xf32>
    %cst_55 = arith.constant dense<0.000000e+00> : vector<16x128xf32>
    %202 = tpu.matmul %1, %201, %cst_55 {dimension_numbers = #tpu.dot_dimension_numbers<[1], [0], [0], [1], [0, 0, 1, 1], [], []>, precision = #tpu.contract_precision<fp32>} : vector<16x128xf32>, vector<128x128xf32>, vector<16x128xf32> -> vector<16x128xf32>
    %c6_i32_56 = arith.constant 6 : i32
    %203 = tpu.dynamic_rotate %1 by %c6_i32_56 dim 0 : vector<16x128xf32>, i32 -> vector<16x128xf32>
    %204 = vector.broadcast %191 : vector<16x1xf32> to vector<16x128xf32>
    %205 = arith.mulf %203, %204 : vector<16x128xf32>
    %c10_i32_57 = arith.constant 10 : i32
    %206 = tpu.dynamic_rotate %1 by %c10_i32_57 dim 0 : vector<16x128xf32>, i32 -> vector<16x128xf32>
    %207 = vector.broadcast %195 : vector<16x1xf32> to vector<16x128xf32>
    %208 = arith.mulf %206, %207 : vector<16x128xf32>
    %209 = arith.addf %205, %208 : vector<16x128xf32>
    %210 = vector.broadcast %196 : vector<16x1xf32> to vector<16x128xf32>
    %211 = arith.mulf %210, %1 : vector<16x128xf32>
    %212 = arith.subf %209, %211 : vector<16x128xf32>
    %c11_i32_58 = arith.constant 11 : i32
    %213 = tpu.dynamic_rotate %199 by %c11_i32_58 dim 0 : vector<16x128xf32>, i32 -> vector<16x128xf32>
    %214 = vector.broadcast %183 : vector<16x1xf32> to vector<16x128xf32>
    %215 = arith.mulf %213, %214 : vector<16x128xf32>
    %c5_i32_59 = arith.constant 5 : i32
    %216 = tpu.dynamic_rotate %199 by %c5_i32_59 dim 0 : vector<16x128xf32>, i32 -> vector<16x128xf32>
    %217 = vector.broadcast %187 : vector<16x1xf32> to vector<16x128xf32>
    %218 = arith.mulf %216, %217 : vector<16x128xf32>
    %219 = arith.subf %215, %218 : vector<16x128xf32>
    %220 = arith.mulf %202, %212 : vector<16x128xf32>
    %221 = arith.mulf %219, %219 : vector<16x128xf32>
    %222 = arith.subf %220, %221 : vector<16x128xf32>
    %223 = arith.addf %179, %222 : vector<16x128xf32>
    %c10_i32_60 = arith.constant 10 : i32
    %224 = vector.broadcast %c10_i32_60 : i32 to vector<16x1xi32>
    %225 = arith.cmpi slt, %2, %224 : vector<16x1xi32>
    %226 = arith.extui %225 : vector<16x1xi1> to vector<16x1xi32>
    %227 = arith.sitofp %226 : vector<16x1xi32> to vector<16x1xf32>
    %c6_i32_61 = arith.constant 6 : i32
    %228 = vector.broadcast %c6_i32_61 : i32 to vector<16x1xi32>
    %229 = arith.cmpi sge, %2, %228 : vector<16x1xi32>
    %230 = arith.extui %229 : vector<16x1xi1> to vector<16x1xi32>
    %231 = arith.sitofp %230 : vector<16x1xi32> to vector<16x1xf32>
    %c4_i32_62 = arith.constant 4 : i32
    %232 = vector.broadcast %c4_i32_62 : i32 to vector<16x1xi32>
    %233 = arith.cmpi slt, %2, %232 : vector<16x1xi32>
    %234 = arith.extui %233 : vector<16x1xi1> to vector<16x1xi32>
    %235 = arith.sitofp %234 : vector<16x1xi32> to vector<16x1xf32>
    %c12_i32_63 = arith.constant 12 : i32
    %236 = vector.broadcast %c12_i32_63 : i32 to vector<16x1xi32>
    %237 = arith.cmpi sge, %2, %236 : vector<16x1xi32>
    %238 = arith.extui %237 : vector<16x1xi1> to vector<16x1xi32>
    %239 = arith.sitofp %238 : vector<16x1xi32> to vector<16x1xf32>
    %240 = arith.addf %227, %231 : vector<16x1xf32>
    %c10 = arith.constant 10 : index
    %c0_64 = arith.constant 0 : index
    %c0_65 = arith.constant 0 : index
    %241 = vector.load %arg2[%c10, %c0_64, %c0_65] : memref<12x128x128xf32, #tpu.memory_space<vmem>>, vector<1x128x128xf32>
    %242 = vector.shape_cast %241 : vector<1x128x128xf32> to vector<128x128xf32>
    %cst_66 = arith.constant dense<0.000000e+00> : vector<16x128xf32>
    %243 = tpu.matmul %1, %242, %cst_66 {dimension_numbers = #tpu.dot_dimension_numbers<[1], [0], [0], [1], [0, 0, 1, 1], [], []>, precision = #tpu.contract_precision<fp32>} : vector<16x128xf32>, vector<128x128xf32>, vector<16x128xf32> -> vector<16x128xf32>
    %c11 = arith.constant 11 : index
    %c0_67 = arith.constant 0 : index
    %c0_68 = arith.constant 0 : index
    %244 = vector.load %arg2[%c11, %c0_67, %c0_68] : memref<12x128x128xf32, #tpu.memory_space<vmem>>, vector<1x128x128xf32>
    %245 = vector.shape_cast %244 : vector<1x128x128xf32> to vector<128x128xf32>
    %cst_69 = arith.constant dense<0.000000e+00> : vector<16x128xf32>
    %246 = tpu.matmul %1, %245, %cst_69 {dimension_numbers = #tpu.dot_dimension_numbers<[1], [0], [0], [1], [0, 0, 1, 1], [], []>, precision = #tpu.contract_precision<fp32>} : vector<16x128xf32>, vector<128x128xf32>, vector<16x128xf32> -> vector<16x128xf32>
    %c4_i32_70 = arith.constant 4 : i32
    %247 = tpu.dynamic_rotate %1 by %c4_i32_70 dim 0 : vector<16x128xf32>, i32 -> vector<16x128xf32>
    %248 = vector.broadcast %235 : vector<16x1xf32> to vector<16x128xf32>
    %249 = arith.mulf %247, %248 : vector<16x128xf32>
    %c12_i32_71 = arith.constant 12 : i32
    %250 = tpu.dynamic_rotate %1 by %c12_i32_71 dim 0 : vector<16x128xf32>, i32 -> vector<16x128xf32>
    %251 = vector.broadcast %239 : vector<16x1xf32> to vector<16x128xf32>
    %252 = arith.mulf %250, %251 : vector<16x128xf32>
    %253 = arith.addf %249, %252 : vector<16x128xf32>
    %254 = vector.broadcast %240 : vector<16x1xf32> to vector<16x128xf32>
    %255 = arith.mulf %254, %1 : vector<16x128xf32>
    %256 = arith.subf %253, %255 : vector<16x128xf32>
    %c10_i32_72 = arith.constant 10 : i32
    %257 = tpu.dynamic_rotate %243 by %c10_i32_72 dim 0 : vector<16x128xf32>, i32 -> vector<16x128xf32>
    %258 = vector.broadcast %227 : vector<16x1xf32> to vector<16x128xf32>
    %259 = arith.mulf %257, %258 : vector<16x128xf32>
    %c6_i32_73 = arith.constant 6 : i32
    %260 = tpu.dynamic_rotate %243 by %c6_i32_73 dim 0 : vector<16x128xf32>, i32 -> vector<16x128xf32>
    %261 = vector.broadcast %231 : vector<16x1xf32> to vector<16x128xf32>
    %262 = arith.mulf %260, %261 : vector<16x128xf32>
    %263 = arith.subf %259, %262 : vector<16x128xf32>
    %264 = arith.mulf %246, %256 : vector<16x128xf32>
    %265 = arith.mulf %263, %263 : vector<16x128xf32>
    %266 = arith.subf %264, %265 : vector<16x128xf32>
    %267 = arith.addf %223, %266 : vector<16x128xf32>
    %c0_74 = arith.constant 0 : index
    %c0_75 = arith.constant 0 : index
    %c0_76 = arith.constant 0 : index
    %268 = vector.load %arg3[%c0_74, %c0_75, %c0_76] : memref<1x16x128xf32, #tpu.memory_space<vmem>>, vector<1x16x128xf32>
    %269 = vector.shape_cast %268 : vector<1x16x128xf32> to vector<16x128xf32>
    %270 = vector.shape_cast %267 : vector<16x128xf32> to vector<1x16x128xf32>
    tpu.vector_store %arg3[%c0_74, %c0_75, %c0_76], %270 {strides = array<i32>} : memref<1x16x128xf32, #tpu.memory_space<vmem>>, vector<1x16x128xf32>,
    return
  }
  func.func @transform_0(%arg0: i32) -> (i32, i32, i32) {
    %c0_i32 = arith.constant 0 : i32
    %c0_i32_0 = arith.constant 0 : i32
    %c0_i32_1 = arith.constant 0 : i32
    return %arg0, %c0_i32, %c0_i32_0 : i32, i32, i32
  }
  func.func @transform_1(%arg0: i32) -> (i32, i32, i32) {
    %c0_i32 = arith.constant 0 : i32
    %c0_i32_0 = arith.constant 0 : i32
    %c0_i32_1 = arith.constant 0 : i32
    %c0_i32_2 = arith.constant 0 : i32
    return %c0_i32, %c0_i32_0, %c0_i32_1 : i32, i32, i32
  }
  func.func @transform_2(%arg0: i32) -> (i32, i32, i32) {
    %c0_i32 = arith.constant 0 : i32
    %c0_i32_0 = arith.constant 0 : i32
    %c0_i32_1 = arith.constant 0 : i32
    return %arg0, %c0_i32, %c0_i32_0 : i32, i32, i32
  }
}

module attributes {stable_mosaic.version = 11 : i64} {
  func.func @_hessian_blob_kernel(%arg0: i32, %arg1: memref<1x16x128xf32, #tpu.memory_space<vmem>>, %arg2: memref<12x128x128xf32, #tpu.memory_space<vmem>>, %arg3: memref<1x16x128xf32, #tpu.memory_space<vmem>>) attributes {dimension_semantics = [#tpu.dimension_semantics<parallel>], iteration_bounds = array<i64: 1>, scalar_prefetch = 0 : i64, scratch_operands = 0 : i64, tpu.core_type = #tpu.core_type<tc>, window_params = [{transform_indices = @transform_0, window_bounds = array<i64: 1, 16, 128>}, {pipeline_mode = #tpu.pipeline_mode<synchronous>, transform_indices = @transform_1, window_bounds = array<i64: 12, 128, 128>}, {transform_indices = @transform_2, window_bounds = array<i64: 1, 16, 128>}]} {
    %c0 = arith.constant 0 : index
    %c0_0 = arith.constant 0 : index
    %c0_1 = arith.constant 0 : index
    %0 = vector.load %arg1[%c0, %c0_0, %c0_1] : memref<1x16x128xf32, #tpu.memory_space<vmem>>, vector<1x16x128xf32>
    %1 = vector.shape_cast %0 : vector<1x16x128xf32> to vector<16x128xf32>
    %2 = tpu.iota {dimensions = array<i32: 0>} : vector<16x1xi32>
    %cst = arith.constant 0.000000e+00 : f32
    %3 = vector.broadcast %cst : f32 to vector<16x128xf32>
    %c15_i32 = arith.constant 15 : i32
    %4 = vector.broadcast %c15_i32 : i32 to vector<16x1xi32>
    %5 = arith.cmpi slt, %2, %4 : vector<16x1xi32>
    %6 = arith.extui %5 : vector<16x1xi1> to vector<16x1xi32>
    %7 = arith.sitofp %6 : vector<16x1xi32> to vector<16x1xf32>
    %c1_i32 = arith.constant 1 : i32
    %8 = vector.broadcast %c1_i32 : i32 to vector<16x1xi32>
    %9 = arith.cmpi sge, %2, %8 : vector<16x1xi32>
    %10 = arith.extui %9 : vector<16x1xi1> to vector<16x1xi32>
    %11 = arith.sitofp %10 : vector<16x1xi32> to vector<16x1xf32>
    %c14_i32 = arith.constant 14 : i32
    %12 = vector.broadcast %c14_i32 : i32 to vector<16x1xi32>
    %13 = arith.cmpi slt, %2, %12 : vector<16x1xi32>
    %14 = arith.extui %13 : vector<16x1xi1> to vector<16x1xi32>
    %15 = arith.sitofp %14 : vector<16x1xi32> to vector<16x1xf32>
    %c2_i32 = arith.constant 2 : i32
    %16 = vector.broadcast %c2_i32 : i32 to vector<16x1xi32>
    %17 = arith.cmpi sge, %2, %16 : vector<16x1xi32>
    %18 = arith.extui %17 : vector<16x1xi1> to vector<16x1xi32>
    %19 = arith.sitofp %18 : vector<16x1xi32> to vector<16x1xf32>
    %20 = arith.addf %7, %11 : vector<16x1xf32>
    %c0_2 = arith.constant 0 : index
    %c0_3 = arith.constant 0 : index
    %c0_4 = arith.constant 0 : index
    %21 = vector.load %arg2[%c0_2, %c0_3, %c0_4] : memref<12x128x128xf32, #tpu.memory_space<vmem>>, vector<1x128x128xf32>
    %22 = vector.shape_cast %21 : vector<1x128x128xf32> to vector<128x128xf32>
    %cst_5 = arith.constant dense<0.000000e+00> : vector<16x128xf32>
    %23 = tpu.matmul %1, %22, %cst_5 {dimension_numbers = #tpu.dot_dimension_numbers<[1], [0], [0], [1], [0, 0, 1, 1], [], []>} : vector<16x128xf32>, vector<128x128xf32>, vector<16x128xf32> -> vector<16x128xf32>
    %c1 = arith.constant 1 : index
    %c0_6 = arith.constant 0 : index
    %c0_7 = arith.constant 0 : index
    %24 = vector.load %arg2[%c1, %c0_6, %c0_7] : memref<12x128x128xf32, #tpu.memory_space<vmem>>, vector<1x128x128xf32>
    %25 = vector.shape_cast %24 : vector<1x128x128xf32> to vector<128x128xf32>
    %cst_8 = arith.constant dense<0.000000e+00> : vector<16x128xf32>
    %26 = tpu.matmul %1, %25, %cst_8 {dimension_numbers = #tpu.dot_dimension_numbers<[1], [0], [0], [1], [0, 0, 1, 1], [], []>} : vector<16x128xf32>, vector<128x128xf32>, vector<16x128xf32> -> vector<16x128xf32>
    %c14_i32_9 = arith.constant 14 : i32
    %27 = tpu.dynamic_rotate %1 by %c14_i32_9 dim 0 : vector<16x128xf32>, i32 -> vector<16x128xf32>
    %28 = vector.broadcast %15 : vector<16x1xf32> to vector<16x128xf32>
    %29 = arith.mulf %27, %28 : vector<16x128xf32>
    %c2_i32_10 = arith.constant 2 : i32
    %30 = tpu.dynamic_rotate %1 by %c2_i32_10 dim 0 : vector<16x128xf32>, i32 -> vector<16x128xf32>
    %31 = vector.broadcast %19 : vector<16x1xf32> to vector<16x128xf32>
    %32 = arith.mulf %30, %31 : vector<16x128xf32>
    %33 = arith.addf %29, %32 : vector<16x128xf32>
    %34 = vector.broadcast %20 : vector<16x1xf32> to vector<16x128xf32>
    %35 = arith.mulf %34, %1 : vector<16x128xf32>
    %36 = arith.subf %33, %35 : vector<16x128xf32>
    %c15_i32_11 = arith.constant 15 : i32
    %37 = tpu.dynamic_rotate %23 by %c15_i32_11 dim 0 : vector<16x128xf32>, i32 -> vector<16x128xf32>
    %38 = vector.broadcast %7 : vector<16x1xf32> to vector<16x128xf32>
    %39 = arith.mulf %37, %38 : vector<16x128xf32>
    %c1_i32_12 = arith.constant 1 : i32
    %40 = tpu.dynamic_rotate %23 by %c1_i32_12 dim 0 : vector<16x128xf32>, i32 -> vector<16x128xf32>
    %41 = vector.broadcast %11 : vector<16x1xf32> to vector<16x128xf32>
    %42 = arith.mulf %40, %41 : vector<16x128xf32>
    %43 = arith.subf %39, %42 : vector<16x128xf32>
    %44 = arith.mulf %26, %36 : vector<16x128xf32>
    %45 = arith.mulf %43, %43 : vector<16x128xf32>
    %46 = arith.subf %44, %45 : vector<16x128xf32>
    %47 = arith.addf %3, %46 : vector<16x128xf32>
    %c14_i32_13 = arith.constant 14 : i32
    %48 = vector.broadcast %c14_i32_13 : i32 to vector<16x1xi32>
    %49 = arith.cmpi slt, %2, %48 : vector<16x1xi32>
    %50 = arith.extui %49 : vector<16x1xi1> to vector<16x1xi32>
    %51 = arith.sitofp %50 : vector<16x1xi32> to vector<16x1xf32>
    %c2_i32_14 = arith.constant 2 : i32
    %52 = vector.broadcast %c2_i32_14 : i32 to vector<16x1xi32>
    %53 = arith.cmpi sge, %2, %52 : vector<16x1xi32>
    %54 = arith.extui %53 : vector<16x1xi1> to vector<16x1xi32>
    %55 = arith.sitofp %54 : vector<16x1xi32> to vector<16x1xf32>
    %c12_i32 = arith.constant 12 : i32
    %56 = vector.broadcast %c12_i32 : i32 to vector<16x1xi32>
    %57 = arith.cmpi slt, %2, %56 : vector<16x1xi32>
    %58 = arith.extui %57 : vector<16x1xi1> to vector<16x1xi32>
    %59 = arith.sitofp %58 : vector<16x1xi32> to vector<16x1xf32>
    %c4_i32 = arith.constant 4 : i32
    %60 = vector.broadcast %c4_i32 : i32 to vector<16x1xi32>
    %61 = arith.cmpi sge, %2, %60 : vector<16x1xi32>
    %62 = arith.extui %61 : vector<16x1xi1> to vector<16x1xi32>
    %63 = arith.sitofp %62 : vector<16x1xi32> to vector<16x1xf32>
    %64 = arith.addf %51, %55 : vector<16x1xf32>
    %c2 = arith.constant 2 : index
    %c0_15 = arith.constant 0 : index
    %c0_16 = arith.constant 0 : index
    %65 = vector.load %arg2[%c2, %c0_15, %c0_16] : memref<12x128x128xf32, #tpu.memory_space<vmem>>, vector<1x128x128xf32>
    %66 = vector.shape_cast %65 : vector<1x128x128xf32> to vector<128x128xf32>
    %cst_17 = arith.constant dense<0.000000e+00> : vector<16x128xf32>
    %67 = tpu.matmul %1, %66, %cst_17 {dimension_numbers = #tpu.dot_dimension_numbers<[1], [0], [0], [1], [0, 0, 1, 1], [], []>} : vector<16x128xf32>, vector<128x128xf32>, vector<16x128xf32> -> vector<16x128xf32>
    %c3 = arith.constant 3 : index
    %c0_18 = arith.constant 0 : index
    %c0_19 = arith.constant 0 : index
    %68 = vector.load %arg2[%c3, %c0_18, %c0_19] : memref<12x128x128xf32, #tpu.memory_space<vmem>>, vector<1x128x128xf32>
    %69 = vector.shape_cast %68 : vector<1x128x128xf32> to vector<128x128xf32>
    %cst_20 = arith.constant dense<0.000000e+00> : vector<16x128xf32>
    %70 = tpu.matmul %1, %69, %cst_20 {dimension_numbers = #tpu.dot_dimension_numbers<[1], [0], [0], [1], [0, 0, 1, 1], [], []>} : vector<16x128xf32>, vector<128x128xf32>, vector<16x128xf32> -> vector<16x128xf32>
    %c12_i32_21 = arith.constant 12 : i32
    %71 = tpu.dynamic_rotate %1 by %c12_i32_21 dim 0 : vector<16x128xf32>, i32 -> vector<16x128xf32>
    %72 = vector.broadcast %59 : vector<16x1xf32> to vector<16x128xf32>
    %73 = arith.mulf %71, %72 : vector<16x128xf32>
    %c4_i32_22 = arith.constant 4 : i32
    %74 = tpu.dynamic_rotate %1 by %c4_i32_22 dim 0 : vector<16x128xf32>, i32 -> vector<16x128xf32>
    %75 = vector.broadcast %63 : vector<16x1xf32> to vector<16x128xf32>
    %76 = arith.mulf %74, %75 : vector<16x128xf32>
    %77 = arith.addf %73, %76 : vector<16x128xf32>
    %78 = vector.broadcast %64 : vector<16x1xf32> to vector<16x128xf32>
    %79 = arith.mulf %78, %1 : vector<16x128xf32>
    %80 = arith.subf %77, %79 : vector<16x128xf32>
    %c14_i32_23 = arith.constant 14 : i32
    %81 = tpu.dynamic_rotate %67 by %c14_i32_23 dim 0 : vector<16x128xf32>, i32 -> vector<16x128xf32>
    %82 = vector.broadcast %51 : vector<16x1xf32> to vector<16x128xf32>
    %83 = arith.mulf %81, %82 : vector<16x128xf32>
    %c2_i32_24 = arith.constant 2 : i32
    %84 = tpu.dynamic_rotate %67 by %c2_i32_24 dim 0 : vector<16x128xf32>, i32 -> vector<16x128xf32>
    %85 = vector.broadcast %55 : vector<16x1xf32> to vector<16x128xf32>
    %86 = arith.mulf %84, %85 : vector<16x128xf32>
    %87 = arith.subf %83, %86 : vector<16x128xf32>
    %88 = arith.mulf %70, %80 : vector<16x128xf32>
    %89 = arith.mulf %87, %87 : vector<16x128xf32>
    %90 = arith.subf %88, %89 : vector<16x128xf32>
    %91 = arith.addf %47, %90 : vector<16x128xf32>
    %c13_i32 = arith.constant 13 : i32
    %92 = vector.broadcast %c13_i32 : i32 to vector<16x1xi32>
    %93 = arith.cmpi slt, %2, %92 : vector<16x1xi32>
    %94 = arith.extui %93 : vector<16x1xi1> to vector<16x1xi32>
    %95 = arith.sitofp %94 : vector<16x1xi32> to vector<16x1xf32>
    %c3_i32 = arith.constant 3 : i32
    %96 = vector.broadcast %c3_i32 : i32 to vector<16x1xi32>
    %97 = arith.cmpi sge, %2, %96 : vector<16x1xi32>
    %98 = arith.extui %97 : vector<16x1xi1> to vector<16x1xi32>
    %99 = arith.sitofp %98 : vector<16x1xi32> to vector<16x1xf32>
    %c10_i32 = arith.constant 10 : i32
    %100 = vector.broadcast %c10_i32 : i32 to vector<16x1xi32>
    %101 = arith.cmpi slt, %2, %100 : vector<16x1xi32>
    %102 = arith.extui %101 : vector<16x1xi1> to vector<16x1xi32>
    %103 = arith.sitofp %102 : vector<16x1xi32> to vector<16x1xf32>
    %c6_i32 = arith.constant 6 : i32
    %104 = vector.broadcast %c6_i32 : i32 to vector<16x1xi32>
    %105 = arith.cmpi sge, %2, %104 : vector<16x1xi32>
    %106 = arith.extui %105 : vector<16x1xi1> to vector<16x1xi32>
    %107 = arith.sitofp %106 : vector<16x1xi32> to vector<16x1xf32>
    %108 = arith.addf %95, %99 : vector<16x1xf32>
    %c4 = arith.constant 4 : index
    %c0_25 = arith.constant 0 : index
    %c0_26 = arith.constant 0 : index
    %109 = vector.load %arg2[%c4, %c0_25, %c0_26] : memref<12x128x128xf32, #tpu.memory_space<vmem>>, vector<1x128x128xf32>
    %110 = vector.shape_cast %109 : vector<1x128x128xf32> to vector<128x128xf32>
    %cst_27 = arith.constant dense<0.000000e+00> : vector<16x128xf32>
    %111 = tpu.matmul %1, %110, %cst_27 {dimension_numbers = #tpu.dot_dimension_numbers<[1], [0], [0], [1], [0, 0, 1, 1], [], []>} : vector<16x128xf32>, vector<128x128xf32>, vector<16x128xf32> -> vector<16x128xf32>
    %c5 = arith.constant 5 : index
    %c0_28 = arith.constant 0 : index
    %c0_29 = arith.constant 0 : index
    %112 = vector.load %arg2[%c5, %c0_28, %c0_29] : memref<12x128x128xf32, #tpu.memory_space<vmem>>, vector<1x128x128xf32>
    %113 = vector.shape_cast %112 : vector<1x128x128xf32> to vector<128x128xf32>
    %cst_30 = arith.constant dense<0.000000e+00> : vector<16x128xf32>
    %114 = tpu.matmul %1, %113, %cst_30 {dimension_numbers = #tpu.dot_dimension_numbers<[1], [0], [0], [1], [0, 0, 1, 1], [], []>} : vector<16x128xf32>, vector<128x128xf32>, vector<16x128xf32> -> vector<16x128xf32>
    %c10_i32_31 = arith.constant 10 : i32
    %115 = tpu.dynamic_rotate %1 by %c10_i32_31 dim 0 : vector<16x128xf32>, i32 -> vector<16x128xf32>
    %116 = vector.broadcast %103 : vector<16x1xf32> to vector<16x128xf32>
    %117 = arith.mulf %115, %116 : vector<16x128xf32>
    %c6_i32_32 = arith.constant 6 : i32
    %118 = tpu.dynamic_rotate %1 by %c6_i32_32 dim 0 : vector<16x128xf32>, i32 -> vector<16x128xf32>
    %119 = vector.broadcast %107 : vector<16x1xf32> to vector<16x128xf32>
    %120 = arith.mulf %118, %119 : vector<16x128xf32>
    %121 = arith.addf %117, %120 : vector<16x128xf32>
    %122 = vector.broadcast %108 : vector<16x1xf32> to vector<16x128xf32>
    %123 = arith.mulf %122, %1 : vector<16x128xf32>
    %124 = arith.subf %121, %123 : vector<16x128xf32>
    %c13_i32_33 = arith.constant 13 : i32
    %125 = tpu.dynamic_rotate %111 by %c13_i32_33 dim 0 : vector<16x128xf32>, i32 -> vector<16x128xf32>
    %126 = vector.broadcast %95 : vector<16x1xf32> to vector<16x128xf32>
    %127 = arith.mulf %125, %126 : vector<16x128xf32>
    %c3_i32_34 = arith.constant 3 : i32
    %128 = tpu.dynamic_rotate %111 by %c3_i32_34 dim 0 : vector<16x128xf32>, i32 -> vector<16x128xf32>
    %129 = vector.broadcast %99 : vector<16x1xf32> to vector<16x128xf32>
    %130 = arith.mulf %128, %129 : vector<16x128xf32>
    %131 = arith.subf %127, %130 : vector<16x128xf32>
    %132 = arith.mulf %114, %124 : vector<16x128xf32>
    %133 = arith.mulf %131, %131 : vector<16x128xf32>
    %134 = arith.subf %132, %133 : vector<16x128xf32>
    %135 = arith.addf %91, %134 : vector<16x128xf32>
    %c12_i32_35 = arith.constant 12 : i32
    %136 = vector.broadcast %c12_i32_35 : i32 to vector<16x1xi32>
    %137 = arith.cmpi slt, %2, %136 : vector<16x1xi32>
    %138 = arith.extui %137 : vector<16x1xi1> to vector<16x1xi32>
    %139 = arith.sitofp %138 : vector<16x1xi32> to vector<16x1xf32>
    %c4_i32_36 = arith.constant 4 : i32
    %140 = vector.broadcast %c4_i32_36 : i32 to vector<16x1xi32>
    %141 = arith.cmpi sge, %2, %140 : vector<16x1xi32>
    %142 = arith.extui %141 : vector<16x1xi1> to vector<16x1xi32>
    %143 = arith.sitofp %142 : vector<16x1xi32> to vector<16x1xf32>
    %c8_i32 = arith.constant 8 : i32
    %144 = vector.broadcast %c8_i32 : i32 to vector<16x1xi32>
    %145 = arith.cmpi slt, %2, %144 : vector<16x1xi32>
    %146 = arith.extui %145 : vector<16x1xi1> to vector<16x1xi32>
    %147 = arith.sitofp %146 : vector<16x1xi32> to vector<16x1xf32>
    %c8_i32_37 = arith.constant 8 : i32
    %148 = vector.broadcast %c8_i32_37 : i32 to vector<16x1xi32>
    %149 = arith.cmpi sge, %2, %148 : vector<16x1xi32>
    %150 = arith.extui %149 : vector<16x1xi1> to vector<16x1xi32>
    %151 = arith.sitofp %150 : vector<16x1xi32> to vector<16x1xf32>
    %152 = arith.addf %139, %143 : vector<16x1xf32>
    %c6 = arith.constant 6 : index
    %c0_38 = arith.constant 0 : index
    %c0_39 = arith.constant 0 : index
    %153 = vector.load %arg2[%c6, %c0_38, %c0_39] : memref<12x128x128xf32, #tpu.memory_space<vmem>>, vector<1x128x128xf32>
    %154 = vector.shape_cast %153 : vector<1x128x128xf32> to vector<128x128xf32>
    %cst_40 = arith.constant dense<0.000000e+00> : vector<16x128xf32>
    %155 = tpu.matmul %1, %154, %cst_40 {dimension_numbers = #tpu.dot_dimension_numbers<[1], [0], [0], [1], [0, 0, 1, 1], [], []>} : vector<16x128xf32>, vector<128x128xf32>, vector<16x128xf32> -> vector<16x128xf32>
    %c7 = arith.constant 7 : index
    %c0_41 = arith.constant 0 : index
    %c0_42 = arith.constant 0 : index
    %156 = vector.load %arg2[%c7, %c0_41, %c0_42] : memref<12x128x128xf32, #tpu.memory_space<vmem>>, vector<1x128x128xf32>
    %157 = vector.shape_cast %156 : vector<1x128x128xf32> to vector<128x128xf32>
    %cst_43 = arith.constant dense<0.000000e+00> : vector<16x128xf32>
    %158 = tpu.matmul %1, %157, %cst_43 {dimension_numbers = #tpu.dot_dimension_numbers<[1], [0], [0], [1], [0, 0, 1, 1], [], []>} : vector<16x128xf32>, vector<128x128xf32>, vector<16x128xf32> -> vector<16x128xf32>
    %c8_i32_44 = arith.constant 8 : i32
    %159 = tpu.dynamic_rotate %1 by %c8_i32_44 dim 0 : vector<16x128xf32>, i32 -> vector<16x128xf32>
    %160 = vector.broadcast %147 : vector<16x1xf32> to vector<16x128xf32>
    %161 = arith.mulf %159, %160 : vector<16x128xf32>
    %c8_i32_45 = arith.constant 8 : i32
    %162 = tpu.dynamic_rotate %1 by %c8_i32_45 dim 0 : vector<16x128xf32>, i32 -> vector<16x128xf32>
    %163 = vector.broadcast %151 : vector<16x1xf32> to vector<16x128xf32>
    %164 = arith.mulf %162, %163 : vector<16x128xf32>
    %165 = arith.addf %161, %164 : vector<16x128xf32>
    %166 = vector.broadcast %152 : vector<16x1xf32> to vector<16x128xf32>
    %167 = arith.mulf %166, %1 : vector<16x128xf32>
    %168 = arith.subf %165, %167 : vector<16x128xf32>
    %c12_i32_46 = arith.constant 12 : i32
    %169 = tpu.dynamic_rotate %155 by %c12_i32_46 dim 0 : vector<16x128xf32>, i32 -> vector<16x128xf32>
    %170 = vector.broadcast %139 : vector<16x1xf32> to vector<16x128xf32>
    %171 = arith.mulf %169, %170 : vector<16x128xf32>
    %c4_i32_47 = arith.constant 4 : i32
    %172 = tpu.dynamic_rotate %155 by %c4_i32_47 dim 0 : vector<16x128xf32>, i32 -> vector<16x128xf32>
    %173 = vector.broadcast %143 : vector<16x1xf32> to vector<16x128xf32>
    %174 = arith.mulf %172, %173 : vector<16x128xf32>
    %175 = arith.subf %171, %174 : vector<16x128xf32>
    %176 = arith.mulf %158, %168 : vector<16x128xf32>
    %177 = arith.mulf %175, %175 : vector<16x128xf32>
    %178 = arith.subf %176, %177 : vector<16x128xf32>
    %179 = arith.addf %135, %178 : vector<16x128xf32>
    %c11_i32 = arith.constant 11 : i32
    %180 = vector.broadcast %c11_i32 : i32 to vector<16x1xi32>
    %181 = arith.cmpi slt, %2, %180 : vector<16x1xi32>
    %182 = arith.extui %181 : vector<16x1xi1> to vector<16x1xi32>
    %183 = arith.sitofp %182 : vector<16x1xi32> to vector<16x1xf32>
    %c5_i32 = arith.constant 5 : i32
    %184 = vector.broadcast %c5_i32 : i32 to vector<16x1xi32>
    %185 = arith.cmpi sge, %2, %184 : vector<16x1xi32>
    %186 = arith.extui %185 : vector<16x1xi1> to vector<16x1xi32>
    %187 = arith.sitofp %186 : vector<16x1xi32> to vector<16x1xf32>
    %c6_i32_48 = arith.constant 6 : i32
    %188 = vector.broadcast %c6_i32_48 : i32 to vector<16x1xi32>
    %189 = arith.cmpi slt, %2, %188 : vector<16x1xi32>
    %190 = arith.extui %189 : vector<16x1xi1> to vector<16x1xi32>
    %191 = arith.sitofp %190 : vector<16x1xi32> to vector<16x1xf32>
    %c10_i32_49 = arith.constant 10 : i32
    %192 = vector.broadcast %c10_i32_49 : i32 to vector<16x1xi32>
    %193 = arith.cmpi sge, %2, %192 : vector<16x1xi32>
    %194 = arith.extui %193 : vector<16x1xi1> to vector<16x1xi32>
    %195 = arith.sitofp %194 : vector<16x1xi32> to vector<16x1xf32>
    %196 = arith.addf %183, %187 : vector<16x1xf32>
    %c8 = arith.constant 8 : index
    %c0_50 = arith.constant 0 : index
    %c0_51 = arith.constant 0 : index
    %197 = vector.load %arg2[%c8, %c0_50, %c0_51] : memref<12x128x128xf32, #tpu.memory_space<vmem>>, vector<1x128x128xf32>
    %198 = vector.shape_cast %197 : vector<1x128x128xf32> to vector<128x128xf32>
    %cst_52 = arith.constant dense<0.000000e+00> : vector<16x128xf32>
    %199 = tpu.matmul %1, %198, %cst_52 {dimension_numbers = #tpu.dot_dimension_numbers<[1], [0], [0], [1], [0, 0, 1, 1], [], []>} : vector<16x128xf32>, vector<128x128xf32>, vector<16x128xf32> -> vector<16x128xf32>
    %c9 = arith.constant 9 : index
    %c0_53 = arith.constant 0 : index
    %c0_54 = arith.constant 0 : index
    %200 = vector.load %arg2[%c9, %c0_53, %c0_54] : memref<12x128x128xf32, #tpu.memory_space<vmem>>, vector<1x128x128xf32>
    %201 = vector.shape_cast %200 : vector<1x128x128xf32> to vector<128x128xf32>
    %cst_55 = arith.constant dense<0.000000e+00> : vector<16x128xf32>
    %202 = tpu.matmul %1, %201, %cst_55 {dimension_numbers = #tpu.dot_dimension_numbers<[1], [0], [0], [1], [0, 0, 1, 1], [], []>} : vector<16x128xf32>, vector<128x128xf32>, vector<16x128xf32> -> vector<16x128xf32>
    %c6_i32_56 = arith.constant 6 : i32
    %203 = tpu.dynamic_rotate %1 by %c6_i32_56 dim 0 : vector<16x128xf32>, i32 -> vector<16x128xf32>
    %204 = vector.broadcast %191 : vector<16x1xf32> to vector<16x128xf32>
    %205 = arith.mulf %203, %204 : vector<16x128xf32>
    %c10_i32_57 = arith.constant 10 : i32
    %206 = tpu.dynamic_rotate %1 by %c10_i32_57 dim 0 : vector<16x128xf32>, i32 -> vector<16x128xf32>
    %207 = vector.broadcast %195 : vector<16x1xf32> to vector<16x128xf32>
    %208 = arith.mulf %206, %207 : vector<16x128xf32>
    %209 = arith.addf %205, %208 : vector<16x128xf32>
    %210 = vector.broadcast %196 : vector<16x1xf32> to vector<16x128xf32>
    %211 = arith.mulf %210, %1 : vector<16x128xf32>
    %212 = arith.subf %209, %211 : vector<16x128xf32>
    %c11_i32_58 = arith.constant 11 : i32
    %213 = tpu.dynamic_rotate %199 by %c11_i32_58 dim 0 : vector<16x128xf32>, i32 -> vector<16x128xf32>
    %214 = vector.broadcast %183 : vector<16x1xf32> to vector<16x128xf32>
    %215 = arith.mulf %213, %214 : vector<16x128xf32>
    %c5_i32_59 = arith.constant 5 : i32
    %216 = tpu.dynamic_rotate %199 by %c5_i32_59 dim 0 : vector<16x128xf32>, i32 -> vector<16x128xf32>
    %217 = vector.broadcast %187 : vector<16x1xf32> to vector<16x128xf32>
    %218 = arith.mulf %216, %217 : vector<16x128xf32>
    %219 = arith.subf %215, %218 : vector<16x128xf32>
    %220 = arith.mulf %202, %212 : vector<16x128xf32>
    %221 = arith.mulf %219, %219 : vector<16x128xf32>
    %222 = arith.subf %220, %221 : vector<16x128xf32>
    %223 = arith.addf %179, %222 : vector<16x128xf32>
    %c10_i32_60 = arith.constant 10 : i32
    %224 = vector.broadcast %c10_i32_60 : i32 to vector<16x1xi32>
    %225 = arith.cmpi slt, %2, %224 : vector<16x1xi32>
    %226 = arith.extui %225 : vector<16x1xi1> to vector<16x1xi32>
    %227 = arith.sitofp %226 : vector<16x1xi32> to vector<16x1xf32>
    %c6_i32_61 = arith.constant 6 : i32
    %228 = vector.broadcast %c6_i32_61 : i32 to vector<16x1xi32>
    %229 = arith.cmpi sge, %2, %228 : vector<16x1xi32>
    %230 = arith.extui %229 : vector<16x1xi1> to vector<16x1xi32>
    %231 = arith.sitofp %230 : vector<16x1xi32> to vector<16x1xf32>
    %c4_i32_62 = arith.constant 4 : i32
    %232 = vector.broadcast %c4_i32_62 : i32 to vector<16x1xi32>
    %233 = arith.cmpi slt, %2, %232 : vector<16x1xi32>
    %234 = arith.extui %233 : vector<16x1xi1> to vector<16x1xi32>
    %235 = arith.sitofp %234 : vector<16x1xi32> to vector<16x1xf32>
    %c12_i32_63 = arith.constant 12 : i32
    %236 = vector.broadcast %c12_i32_63 : i32 to vector<16x1xi32>
    %237 = arith.cmpi sge, %2, %236 : vector<16x1xi32>
    %238 = arith.extui %237 : vector<16x1xi1> to vector<16x1xi32>
    %239 = arith.sitofp %238 : vector<16x1xi32> to vector<16x1xf32>
    %240 = arith.addf %227, %231 : vector<16x1xf32>
    %c10 = arith.constant 10 : index
    %c0_64 = arith.constant 0 : index
    %c0_65 = arith.constant 0 : index
    %241 = vector.load %arg2[%c10, %c0_64, %c0_65] : memref<12x128x128xf32, #tpu.memory_space<vmem>>, vector<1x128x128xf32>
    %242 = vector.shape_cast %241 : vector<1x128x128xf32> to vector<128x128xf32>
    %cst_66 = arith.constant dense<0.000000e+00> : vector<16x128xf32>
    %243 = tpu.matmul %1, %242, %cst_66 {dimension_numbers = #tpu.dot_dimension_numbers<[1], [0], [0], [1], [0, 0, 1, 1], [], []>} : vector<16x128xf32>, vector<128x128xf32>, vector<16x128xf32> -> vector<16x128xf32>
    %c11 = arith.constant 11 : index
    %c0_67 = arith.constant 0 : index
    %c0_68 = arith.constant 0 : index
    %244 = vector.load %arg2[%c11, %c0_67, %c0_68] : memref<12x128x128xf32, #tpu.memory_space<vmem>>, vector<1x128x128xf32>
    %245 = vector.shape_cast %244 : vector<1x128x128xf32> to vector<128x128xf32>
    %cst_69 = arith.constant dense<0.000000e+00> : vector<16x128xf32>
    %246 = tpu.matmul %1, %245, %cst_69 {dimension_numbers = #tpu.dot_dimension_numbers<[1], [0], [0], [1], [0, 0, 1, 1], [], []>} : vector<16x128xf32>, vector<128x128xf32>, vector<16x128xf32> -> vector<16x128xf32>
    %c4_i32_70 = arith.constant 4 : i32
    %247 = tpu.dynamic_rotate %1 by %c4_i32_70 dim 0 : vector<16x128xf32>, i32 -> vector<16x128xf32>
    %248 = vector.broadcast %235 : vector<16x1xf32> to vector<16x128xf32>
    %249 = arith.mulf %247, %248 : vector<16x128xf32>
    %c12_i32_71 = arith.constant 12 : i32
    %250 = tpu.dynamic_rotate %1 by %c12_i32_71 dim 0 : vector<16x128xf32>, i32 -> vector<16x128xf32>
    %251 = vector.broadcast %239 : vector<16x1xf32> to vector<16x128xf32>
    %252 = arith.mulf %250, %251 : vector<16x128xf32>
    %253 = arith.addf %249, %252 : vector<16x128xf32>
    %254 = vector.broadcast %240 : vector<16x1xf32> to vector<16x128xf32>
    %255 = arith.mulf %254, %1 : vector<16x128xf32>
    %256 = arith.subf %253, %255 : vector<16x128xf32>
    %c10_i32_72 = arith.constant 10 : i32
    %257 = tpu.dynamic_rotate %243 by %c10_i32_72 dim 0 : vector<16x128xf32>, i32 -> vector<16x128xf32>
    %258 = vector.broadcast %227 : vector<16x1xf32> to vector<16x128xf32>
    %259 = arith.mulf %257, %258 : vector<16x128xf32>
    %c6_i32_73 = arith.constant 6 : i32
    %260 = tpu.dynamic_rotate %243 by %c6_i32_73 dim 0 : vector<16x128xf32>, i32 -> vector<16x128xf32>
    %261 = vector.broadcast %231 : vector<16x1xf32> to vector<16x128xf32>
    %262 = arith.mulf %260, %261 : vector<16x128xf32>
    %263 = arith.subf %259, %262 : vector<16x128xf32>
    %264 = arith.mulf %246, %256 : vector<16x128xf32>
    %265 = arith.mulf %263, %263 : vector<16x128xf32>
    %266 = arith.subf %264, %265 : vector<16x128xf32>
    %267 = arith.addf %223, %266 : vector<16x128xf32>
    %c0_74 = arith.constant 0 : index
    %c0_75 = arith.constant 0 : index
    %c0_76 = arith.constant 0 : index
    %268 = vector.load %arg3[%c0_74, %c0_75, %c0_76] : memref<1x16x128xf32, #tpu.memory_space<vmem>>, vector<1x16x128xf32>
    %269 = vector.shape_cast %268 : vector<1x16x128xf32> to vector<16x128xf32>
    %270 = vector.shape_cast %267 : vector<16x128xf32> to vector<1x16x128xf32>
    tpu.vector_store %arg3[%c0_74, %c0_75, %c0_76], %270 {strides = array<i32>} : memref<1x16x128xf32, #tpu.memory_space<vmem>>, vector<1x16x128xf32>,
    return
  }
  func.func @transform_0(%arg0: i32) -> (i32, i32, i32) {
    %c0_i32 = arith.constant 0 : i32
    %c0_i32_0 = arith.constant 0 : i32
    %c0_i32_1 = arith.constant 0 : i32
    return %arg0, %c0_i32, %c0_i32_0 : i32, i32, i32
  }
  func.func @transform_1(%arg0: i32) -> (i32, i32, i32) {
    %c0_i32 = arith.constant 0 : i32
    %c0_i32_0 = arith.constant 0 : i32
    %c0_i32_1 = arith.constant 0 : i32
    %c0_i32_2 = arith.constant 0 : i32
    return %c0_i32, %c0_i32_0, %c0_i32_1 : i32, i32, i32
  }
  func.func @transform_2(%arg0: i32) -> (i32, i32, i32) {
    %c0_i32 = arith.constant 0 : i32
    %c0_i32_0 = arith.constant 0 : i32
    %c0_i32_1 = arith.constant 0 : i32
    return %arg0, %c0_i32, %c0_i32_0 : i32, i32, i32
  }
}

</mosaic_0001>

<llo_original>
// kernel: tpu_custom_call.1
$region0: #{tpu_custom_call.1}
  #allocation0 [shape = 'u32[]', space=smem, size = 0x4, offset = 0x4, fixed_abs, tag = 'smem constant byte address 0x4 - core index']
  #allocation1 [shape = 'u32[144,128]{1,0:T(1,128)}', space=vmem, size = 0x12000, scoped, tag = 'internal scratch']
  %s0 = inlined_call_operand.hbm [shape: f32[1,16,128], index: 0, kind: input, shape index: {}]
  %s1 = inlined_call_operand.hbm [shape: f32[12,128,128], index: 1, kind: input, shape index: {}]
  %s2 = inlined_call_operand.hbm [shape: f32[1,16,128], index: 2, kind: output, shape index: {}]
  %s3 = sld [smem:[#allocation0]]
  $region26: #{tpu_custom_call.1} parent=0
    _
  %s5 = ssub.s32 1, %s3
  %s6 = scalar_select 0, %s5, %s3
  $region1: #{tpu_custom_call.1} parent=0
    #allocation2 [shape = 'u8[8192]{0}', space=vmem, size = 0x2000, scoped, tag = 'input window, operand 0, single buffered']
    #allocation3 [shape = 's32[1]{0}', space=sflag, size = 0x4, scoped, tag = 'scoped memory for tpu_custom_call.1']
    #allocation4 [shape = 's32[1]{0}', space=sflag, size = 0x4, scoped, tag = 'scoped memory for tpu_custom_call.1']
    #allocation5 [shape = 'u8[786432]{0}', space=vmem, size = 0xc0000, scoped, tag = 'input window, operand 1, single buffered']
    #allocation6 [shape = 's32[1]{0}', space=sflag, size = 0x4, scoped, tag = 'scoped memory for tpu_custom_call.1']
    #allocation7 [shape = 'u8[8192]{0}', space=vmem, size = 0x2000, scoped, tag = 'output window, operand 0, single buffered']
    %7 = vsyncpa [#allocation3], 0
    %8 = vsyncpa [#allocation6], 0
    %9 = vsyncpa [#allocation4], 0
    // Predicated region
    $region2: #{tpu_custom_call.1} parent=1 // pred_check
      _
    $region3: #{tpu_custom_call.1} parent=1 // pred_check_branch
      %11 = sbr.rel (0) target = $region5
    $region4: #{tpu_custom_call.1} parent=1 // pred_region
      %s13 = ssub.s32 256, 256
      %14 = vsyncadd [#allocation3], %s13
      %s15 = sshll.u32 [#allocation2], 4
      %s16 = int_to_ptr.vmem [resolvable:$true] %s15
      %21 = dma.hbm_to_vmem [thread:$0]  %s0, 256, %s16, [#allocation3], 128, 128, 8
    $region5: #{tpu_custom_call.1} parent=1 // pred_fallthru
      _
    // Predicated region
    $region6: #{tpu_custom_call.1} parent=1 // pred_check
      _
    $region7: #{tpu_custom_call.1} parent=1 // pred_check_branch
      %23 = sbr.rel (0) target = $region9
    $region8: #{tpu_custom_call.1} parent=1 // pred_region
      %s25 = ssub.s32 24576, 24576
      %26 = vsyncadd [#allocation6], %s25
      %s27 = sshll.u32 [#allocation5], 4
      %s28 = int_to_ptr.vmem [resolvable:$true] %s27
      %33 = dma.hbm_to_vmem [thread:$0]  %s1, 24576, %s28, [#allocation6], 128, 128, 8
    $region9: #{tpu_custom_call.1} parent=1 // pred_fallthru
      _
    // Predicated region
    $region10: #{tpu_custom_call.1} parent=1 // pred_check
      _
    $region11: #{tpu_custom_call.1} parent=1 // pred_check_branch
      %35 = sbr.rel (0) target = $region13
    $region12: #{tpu_custom_call.1} parent=1 // pred_region
      %36 = dma.done [#allocation3], 256
    $region13: #{tpu_custom_call.1} parent=1 // pred_fallthru
      _
    // Predicated region
    $region14: #{tpu_custom_call.1} parent=1 // pred_check
      _
    $region15: #{tpu_custom_call.1} parent=1 // pred_check_branch
      %38 = sbr.rel (0) target = $region17
    $region16: #{tpu_custom_call.1} parent=1 // pred_region
      %39 = dma.done [#allocation6], 24576
    $region17: #{tpu_custom_call.1} parent=1 // pred_fallthru
      _
    %v40 = vld [vmem:[#allocation2] sm:$0xff]
    %v41 = vld [vmem:[#allocation2 + $0x8] sm:$0xff]
    %v42 = vlaneseq
    %v43 = vshrl.u32 %v42, 7
    %v44 = vadd.s32 %v43, 8
    %vm45 = vcmp.lt.s32.totalorder %v43, 15
    %vm46 = vcmp.lt.s32.totalorder %v44, 15
    %v47 = vsel %vm45, 1, 0
    %v48 = vsel %vm46, 1, 0
    %v49 = vcvt.s32.f32 %v47
    %v50 = vcvt.s32.f32 %v48
    %vm51 = vcmp.ge.s32.totalorder %v43, 1
    %vm52 = vcmp.ge.s32.totalorder %v44, 1
    %v53 = vsel %vm51, 1, 0
    %v54 = vsel %vm52, 1, 0
    %v55 = vcvt.s32.f32 %v53
    %v56 = vcvt.s32.f32 %v54
    %vm57 = vcmp.lt.s32.totalorder %v43, 14
    %vm58 = vcmp.lt.s32.totalorder %v44, 14
    %v59 = vsel %vm57, 1, 0
    %v60 = vsel %vm58, 1, 0
    %v61 = vcvt.s32.f32 %v59
    %v62 = vcvt.s32.f32 %v60
    %vm63 = vcmp.ge.s32.totalorder %v43, 2
    %vm64 = vcmp.ge.s32.totalorder %v44, 2
    %v65 = vsel %vm63, 1, 0
    %v66 = vsel %vm64, 1, 0
    %v67 = vcvt.s32.f32 %v65
    %v68 = vcvt.s32.f32 %v66
    %v69 = vadd.f32 %v49, %v55
    %v70 = vadd.f32 %v50, %v56
    %v71 = vld [vmem:[#allocation5] sm:$0xff]
    %v72 = vld [vmem:[#allocation5 + $0x8] sm:$0xff]
    %v73 = vld [vmem:[#allocation5 + $0x10] sm:$0xff]
    %v74 = vld [vmem:[#allocation5 + $0x18] sm:$0xff]
    %v75 = vld [vmem:[#allocation5 + $0x20] sm:$0xff]
    %v76 = vld [vmem:[#allocation5 + $0x28] sm:$0xff]
    %v77 = vld [vmem:[#allocation5 + $0x30] sm:$0xff]
    %v78 = vld [vmem:[#allocation5 + $0x38] sm:$0xff]
    %v79 = vld [vmem:[#allocation5 + $0x40] sm:$0xff]
    %v80 = vld [vmem:[#allocation5 + $0x48] sm:$0xff]
    %v81 = vld [vmem:[#allocation5 + $0x50] sm:$0xff]
    %v82 = vld [vmem:[#allocation5 + $0x58] sm:$0xff]
    %v83 = vld [vmem:[#allocation5 + $0x60] sm:$0xff]
    %v84 = vld [vmem:[#allocation5 + $0x68] sm:$0xff]
    %v85 = vld [vmem:[#allocation5 + $0x70] sm:$0xff]
    %v86 = vld [vmem:[#allocation5 + $0x78] sm:$0xff]
    %87 = vmatprep.subr.mxu0 0.0
    %v88 = vand.u32 %v71, 4294901760
    %89 = vmatpush1.msra.mxu0 %v88
    %90 = vmatprep.subr.mxu0 0.0
    %v91 = vand.u32 %v72, 4294901760
    %92 = vmatpush1.msra.mxu0 %v91
    %93 = vmatprep.subr.mxu0 0.0
    %v94 = vand.u32 %v73, 4294901760
    %95 = vmatpush1.msra.mxu0 %v94
    %96 = vmatprep.subr.mxu0 0.0
    %v97 = vand.u32 %v74, 4294901760
    %98 = vmatpush1.msra.mxu0 %v97
    %99 = vmatprep.subr.mxu0 0.0
    %v100 = vand.u32 %v75, 4294901760
    %101 = vmatpush1.msra.mxu0 %v100
    %102 = vmatprep.subr.mxu0 0.0
    %v103 = vand.u32 %v76, 4294901760
    %104 = vmatpush1.msra.mxu0 %v103
    %105 = vmatprep.subr.mxu0 0.0
    %v106 = vand.u32 %v77, 4294901760
    %107 = vmatpush1.msra.mxu0 %v106
    %108 = vmatprep.subr.mxu0 0.0
    %v109 = vand.u32 %v78, 4294901760
    %110 = vmatpush1.msra.mxu0 %v109
    %111 = vmatprep.subr.mxu0 0.0
    %v112 = vand.u32 %v79, 4294901760
    %113 = vmatpush1.msra.mxu0 %v112
    %114 = vmatprep.subr.mxu0 0.0
    %v115 = vand.u32 %v80, 4294901760
    %116 = vmatpush1.msra.mxu0 %v115
    %117 = vmatprep.subr.mxu0 0.0
    %v118 = vand.u32 %v81, 4294901760
    %119 = vmatpush1.msra.mxu0 %v118
    %120 = vmatprep.subr.mxu0 0.0
    %v121 = vand.u32 %v82, 4294901760
    %122 = vmatpush1.msra.mxu0 %v121
    %123 = vmatprep.subr.mxu0 0.0
    %v124 = vand.u32 %v83, 4294901760
    %125 = vmatpush1.msra.mxu0 %v124
    %126 = vmatprep.subr.mxu0 0.0
    %v127 = vand.u32 %v84, 4294901760
    %128 = vmatpush1.msra.mxu0 %v127
    %129 = vmatprep.subr.mxu0 0.0
    %v130 = vand.u32 %v85, 4294901760
    %131 = vmatpush1.msra.mxu0 %v130
    %132 = vmatprep.subr.mxu0 0.0
    %v133 = vand.u32 %v86, 4294901760
    %134 = vmatpush1.msra.mxu0 %v133
    %135 = vmatprep.subr.mxu0 0.0
    %136 = vmatpush1.msra.mxu0 0.0
    %137 = vmatprep.subr.mxu0 0.0
    %138 = vmatpush1.msra.mxu0 0.0
    %139 = vmatprep.subr.mxu0 0.0
    %140 = vmatpush1.msra.mxu0 0.0
    %141 = vmatprep.subr.mxu0 0.0
    %142 = vmatpush1.msra.mxu0 0.0
    %143 = vmatprep.subr.mxu0 0.0
    %144 = vmatpush1.msra.mxu0 0.0
    %145 = vmatprep.subr.mxu0 0.0
    %146 = vmatpush1.msra.mxu0 0.0
    %147 = vmatprep.subr.mxu0 0.0
    %148 = vmatpush1.msra.mxu0 0.0
    %149 = vmatprep.subr.mxu0 0.0
    %150 = vmatpush1.msra.mxu0 0.0
    %151 = vmatprep.subr.mxu0 0.0
    %152 = vmatpush1.msra.mxu0 0.0
    %153 = vmatprep.subr.mxu0 0.0
    %154 = vmatpush1.msra.mxu0 0.0
    %155 = vmatprep.subr.mxu0 0.0
    %156 = vmatpush1.msra.mxu0 0.0
    %157 = vmatprep.subr.mxu0 0.0
    %158 = vmatpush1.msra.mxu0 0.0
    %159 = vmatprep.subr.mxu0 0.0
    %160 = vmatpush1.msra.mxu0 0.0
    %161 = vmatprep.subr.mxu0 0.0
    %162 = vmatpush1.msra.mxu0 0.0
    %163 = vmatprep.subr.mxu0 0.0
    %164 = vmatpush1.msra.mxu0 0.0
    %165 = vmatprep.subr.mxu0 0.0
    %166 = vmatpush1.msra.mxu0 0.0
    %167 = vmatprep.mubr.f32.mxu0 0.0
    %v168 = vand.u32 %v40, 4294901760
    %v169 = vsub.f32 %v40, %v168
    %v170 = vand.u32 %v169, 4294901760
    %v171 = vsub.f32 %v169, %v170
    %v172 = vand.u32 %v171, 4294901760
    %173 = vmatmul.mubr.f32.gmra.mrb[0].mxu0 %v172
    %v174 = vpop.f32.mrb[0].mxu0
    %v175 = vadd.f32 0.0, %v174
    %v176 = vpop.f32.mrb[0].mxu0
    %177 = vmatprep.mubr.f32.mxu0 0.0
    %v178 = vand.u32 %v41, 4294901760
    %v179 = vsub.f32 %v41, %v178
    %v180 = vand.u32 %v179, 4294901760
    %v181 = vsub.f32 %v179, %v180
    %v182 = vand.u32 %v181, 4294901760
    %183 = vmatmul.mubr.f32.gmra.mrb[0].mxu0 %v182
    %v184 = vpop.f32.mrb[0].mxu0
    %v185 = vadd.f32 0.0, %v184
    %v186 = vpop.f32.mrb[0].mxu0
    %187 = vdwg.mxu0
    %188 = vmatprep.subr.mxu0 0.0
    %v189 = vand.u32 %v71, 4294901760
    %v190 = vsub.f32 %v71, %v189
    %v191 = vand.u32 %v190, 4294901760
    %v192 = vsub.f32 %v190, %v191
    %v193 = vand.u32 %v192, 4294901760
    %194 = vmatpush1.msra.mxu0 %v193
    %195 = vmatprep.subr.mxu0 0.0
    %v196 = vand.u32 %v72, 4294901760
    %v197 = vsub.f32 %v72, %v196
    %v198 = vand.u32 %v197, 4294901760
    %v199 = vsub.f32 %v197, %v198
    %v200 = vand.u32 %v199, 4294901760
    %201 = vmatpush1.msra.mxu0 %v200
    %202 = vmatprep.subr.mxu0 0.0
    %v203 = vand.u32 %v73, 4294901760
    %v204 = vsub.f32 %v73, %v203
    %v205 = vand.u32 %v204, 4294901760
    %v206 = vsub.f32 %v204, %v205
    %v207 = vand.u32 %v206, 4294901760
    %208 = vmatpush1.msra.mxu0 %v207
    %209 = vmatprep.subr.mxu0 0.0
    %v210 = vand.u32 %v74, 4294901760
    %v211 = vsub.f32 %v74, %v210
    %v212 = vand.u32 %v211, 4294901760
    %v213 = vsub.f32 %v211, %v212
    %v214 = vand.u32 %v213, 4294901760
    %215 = vmatpush1.msra.mxu0 %v214
    %216 = vmatprep.subr.mxu0 0.0
    %v217 = vand.u32 %v75, 4294901760
    %v218 = vsub.f32 %v75, %v217
    %v219 = vand.u32 %v218, 4294901760
    %v220 = vsub.f32 %v218, %v219
    %v221 = vand.u32 %v220, 4294901760
    %222 = vmatpush1.msra.mxu0 %v221
    %223 = vmatprep.subr.mxu0 0.0
    %v224 = vand.u32 %v76, 4294901760
    %v225 = vsub.f32 %v76, %v224
    %v226 = vand.u32 %v225, 4294901760
    %v227 = vsub.f32 %v225, %v226
    %v228 = vand.u32 %v227, 4294901760
    %229 = vmatpush1.msra.mxu0 %v228
    %230 = vmatprep.subr.mxu0 0.0
    %v231 = vand.u32 %v77, 4294901760
    %v232 = vsub.f32 %v77, %v231
    %v233 = vand.u32 %v232, 4294901760
    %v234 = vsub.f32 %v232, %v233
    %v235 = vand.u32 %v234, 4294901760
    %236 = vmatpush1.msra.mxu0 %v235
    %237 = vmatprep.subr.mxu0 0.0
    %v238 = vand.u32 %v78, 4294901760
    %v239 = vsub.f32 %v78, %v238
    %v240 = vand.u32 %v239, 4294901760
    %v241 = vsub.f32 %v239, %v240
    %v242 = vand.u32 %v241, 4294901760
    %243 = vmatpush1.msra.mxu0 %v242
    %244 = vmatprep.subr.mxu0 0.0
    %v245 = vand.u32 %v79, 4294901760
    %v246 = vsub.f32 %v79, %v245
    %v247 = vand.u32 %v246, 4294901760
    %v248 = vsub.f32 %v246, %v247
    %v249 = vand.u32 %v248, 4294901760
    %250 = vmatpush1.msra.mxu0 %v249
    %251 = vmatprep.subr.mxu0 0.0
    %v252 = vand.u32 %v80, 4294901760
    %v253 = vsub.f32 %v80, %v252
    %v254 = vand.u32 %v253, 4294901760
    %v255 = vsub.f32 %v253, %v254
    %v256 = vand.u32 %v255, 4294901760
    %257 = vmatpush1.msra.mxu0 %v256
    %258 = vmatprep.subr.mxu0 0.0
    %v259 = vand.u32 %v81, 4294901760
    %v260 = vsub.f32 %v81, %v259
    %v261 = vand.u32 %v260, 4294901760
    %v262 = vsub.f32 %v260, %v261
    %v263 = vand.u32 %v262, 4294901760
    %264 = vmatpush1.msra.mxu0 %v263
    %265 = vmatprep.subr.mxu0 0.0
    %v266 = vand.u32 %v82, 4294901760
    %v267 = vsub.f32 %v82, %v266
    %v268 = vand.u32 %v267, 4294901760
    %v269 = vsub.f32 %v267, %v268
    %v270 = vand.u32 %v269, 4294901760
    %271 = vmatpush1.msra.mxu0 %v270
    %272 = vmatprep.subr.mxu0 0.0
    %v273 = vand.u32 %v83, 4294901760
    %v274 = vsub.f32 %v83, %v273
    %v275 = vand.u32 %v274, 4294901760
    %v276 = vsub.f32 %v274, %v275
    %v277 = vand.u32 %v276, 4294901760
    %278 = vmatpush1.msra.mxu0 %v277
    %279 = vmatprep.subr.mxu0 0.0
    %v280 = vand.u32 %v84, 4294901760
    %v281 = vsub.f32 %v84, %v280
    %v282 = vand.u32 %v281, 4294901760
    %v283 = vsub.f32 %v281, %v282
    %v284 = vand.u32 %v283, 4294901760
    %285 = vmatpush1.msra.mxu0 %v284
    %286 = vmatprep.subr.mxu0 0.0
    %v287 = vand.u32 %v85, 4294901760
    %v288 = vsub.f32 %v85, %v287
    %v289 = vand.u32 %v288, 4294901760
    %v290 = vsub.f32 %v288, %v289
    %v291 = vand.u32 %v290, 4294901760
    %292 = vmatpush1.msra.mxu0 %v291
    %293 = vmatprep.subr.mxu0 0.0
    %v294 = vand.u32 %v86, 4294901760
    %v295 = vsub.f32 %v86, %v294
    %v296 = vand.u32 %v295, 4294901760
    %v297 = vsub.f32 %v295, %v296
    %v298 = vand.u32 %v297, 4294901760
    %299 = vmatpush1.msra.mxu0 %v298
    %300 = vmatprep.subr.mxu0 0.0
    %301 = vmatpush1.msra.mxu0 0.0
    %302 = vmatprep.subr.mxu0 0.0
    %303 = vmatpush1.msra.mxu0 0.0
    %304 = vmatprep.subr.mxu0 0.0
    %305 = vmatpush1.msra.mxu0 0.0
    %306 = vmatprep.subr.mxu0 0.0
    %307 = vmatpush1.msra.mxu0 0.0
    %308 = vmatprep.subr.mxu0 0.0
    %309 = vmatpush1.msra.mxu0 0.0
    %310 = vmatprep.subr.mxu0 0.0
    %311 = vmatpush1.msra.mxu0 0.0
    %312 = vmatprep.subr.mxu0 0.0
    %313 = vmatpush1.msra.mxu0 0.0
    %314 = vmatprep.subr.mxu0 0.0
    %315 = vmatpush1.msra.mxu0 0.0
    %316 = vmatprep.subr.mxu0 0.0
    %317 = vmatpush1.msra.mxu0 0.0
    %318 = vmatprep.subr.mxu0 0.0
    %319 = vmatpush1.msra.mxu0 0.0
    %320 = vmatprep.subr.mxu0 0.0
    %321 = vmatpush1.msra.mxu0 0.0
    %322 = vmatprep.subr.mxu0 0.0
    %323 = vmatpush1.msra.mxu0 0.0
    %324 = vmatprep.subr.mxu0 0.0
    %325 = vmatpush1.msra.mxu0 0.0
    %326 = vmatprep.subr.mxu0 0.0
    %327 = vmatpush1.msra.mxu0 0.0
    %328 = vmatprep.subr.mxu0 0.0
    %329 = vmatpush1.msra.mxu0 0.0
    %330 = vmatprep.subr.mxu0 0.0
    %331 = vmatpush1.msra.mxu0 0.0
    %332 = vmatprep.mubr.f32.mxu0 0.0
    %v333 = vand.u32 %v40, 4294901760
    %334 = vmatmul.mubr.f32.gmra.mrb[0].mxu0 %v333
    %v335 = vpop.f32.mrb[0].mxu0
    %v336 = vadd.f32 %v175, %v335
    %v337 = vpop.f32.mrb[0].mxu0
    %338 = vmatprep.mubr.f32.mxu0 0.0
    %v339 = vand.u32 %v41, 4294901760
    %340 = vmatmul.mubr.f32.gmra.mrb[0].mxu0 %v339
    %v341 = vpop.f32.mrb[0].mxu0
    %v342 = vadd.f32 %v185, %v341
    %v343 = vpop.f32.mrb[0].mxu0
    %344 = vdwg.mxu0
    %345 = vmatprep.subr.mxu0 0.0
    %v346 = vand.u32 %v71, 4294901760
    %v347 = vsub.f32 %v71, %v346
    %348 = vmatpush1.msra.mxu0 %v347
    %349 = vmatprep.subr.mxu0 0.0
    %v350 = vand.u32 %v72, 4294901760
    %v351 = vsub.f32 %v72, %v350
    %352 = vmatpush1.msra.mxu0 %v351
    %353 = vmatprep.subr.mxu0 0.0
    %v354 = vand.u32 %v73, 4294901760
    %v355 = vsub.f32 %v73, %v354
    %356 = vmatpush1.msra.mxu0 %v355
    %357 = vmatprep.subr.mxu0 0.0
    %v358 = vand.u32 %v74, 4294901760
    %v359 = vsub.f32 %v74, %v358
    %360 = vmatpush1.msra.mxu0 %v359
    %361 = vmatprep.subr.mxu0 0.0
    %v362 = vand.u32 %v75, 4294901760
    %v363 = vsub.f32 %v75, %v362
    %364 = vmatpush1.msra.mxu0 %v363
    %365 = vmatprep.subr.mxu0 0.0
    %v366 = vand.u32 %v76, 4294901760
    %v367 = vsub.f32 %v76, %v366
    %368 = vmatpush1.msra.mxu0 %v367
    %369 = vmatprep.subr.mxu0 0.0
    %v370 = vand.u32 %v77, 4294901760
    %v371 = vsub.f32 %v77, %v370
    %372 = vmatpush1.msra.mxu0 %v371
    %373 = vmatprep.subr.mxu0 0.0
    %v374 = vand.u32 %v78, 4294901760
    %v375 = vsub.f32 %v78, %v374
    %376 = vmatpush1.msra.mxu0 %v375
    %377 = vmatprep.subr.mxu0 0.0
    %v378 = vand.u32 %v79, 4294901760
    %v379 = vsub.f32 %v79, %v378
    %380 = vmatpush1.msra.mxu0 %v379
    %381 = vmatprep.subr.mxu0 0.0
    %v382 = vand.u32 %v80, 4294901760
    %v383 = vsub.f32 %v80, %v382
    %384 = vmatpush1.msra.mxu0 %v383
    %385 = vmatprep.subr.mxu0 0.0
    %v386 = vand.u32 %v81, 4294901760
    %v387 = vsub.f32 %v81, %v386
    %388 = vmatpush1.msra.mxu0 %v387
    %389 = vmatprep.subr.mxu0 0.0
    %v390 = vand.u32 %v82, 4294901760
    %v391 = vsub.f32 %v82, %v390
    %392 = vmatpush1.msra.mxu0 %v391
    %393 = vmatprep.subr.mxu0 0.0
    %v394 = vand.u32 %v83, 4294901760
    %v395 = vsub.f32 %v83, %v394
    %396 = vmatpush1.msra.mxu0 %v395
    %397 = vmatprep.subr.mxu0 0.0
    %v398 = vand.u32 %v84, 4294901760
    %v399 = vsub.f32 %v84, %v398
    %400 = vmatpush1.msra.mxu0 %v399
    %401 = vmatprep.subr.mxu0 0.0
    %v402 = vand.u32 %v85, 4294901760
    %v403 = vsub.f32 %v85, %v402
    %404 = vmatpush1.msra.mxu0 %v403
    %405 = vmatprep.subr.mxu0 0.0
    %v406 = vand.u32 %v86, 4294901760
    %v407 = vsub.f32 %v86, %v406
    %408 = vmatpush1.msra.mxu0 %v407
    %409 = vmatprep.subr.mxu0 0.0
    %410 = vmatpush1.msra.mxu0 0.0
    %411 = vmatprep.subr.mxu0 0.0
    %412 = vmatpush1.msra.mxu0 0.0
    %413 = vmatprep.subr.mxu0 0.0
    %414 = vmatpush1.msra.mxu0 0.0
    %415 = vmatprep.subr.mxu0 0.0
    %416 = vmatpush1.msra.mxu0 0.0
    %417 = vmatprep.subr.mxu0 0.0
    %418 = vmatpush1.msra.mxu0 0.0
    %419 = vmatprep.subr.mxu0 0.0
    %420 = vmatpush1.msra.mxu0 0.0
    %421 = vmatprep.subr.mxu0 0.0
    %422 = vmatpush1.msra.mxu0 0.0
    %423 = vmatprep.subr.mxu0 0.0
    %424 = vmatpush1.msra.mxu0 0.0
    %425 = vmatprep.subr.mxu0 0.0
    %426 = vmatpush1.msra.mxu0 0.0
    %427 = vmatprep.subr.mxu0 0.0
    %428 = vmatpush1.msra.mxu0 0.0
    %429 = vmatprep.subr.mxu0 0.0
    %430 = vmatpush1.msra.mxu0 0.0
    %431 = vmatprep.subr.mxu0 0.0
    %432 = vmatpush1.msra.mxu0 0.0
    %433 = vmatprep.subr.mxu0 0.0
    %434 = vmatpush1.msra.mxu0 0.0
    %435 = vmatprep.subr.mxu0 0.0
    %436 = vmatpush1.msra.mxu0 0.0
    %437 = vmatprep.subr.mxu0 0.0
    %438 = vmatpush1.msra.mxu0 0.0
    %439 = vmatprep.subr.mxu0 0.0
    %440 = vmatpush1.msra.mxu0 0.0
    %441 = vmatprep.mubr.f32.mxu0 0.0
    %v442 = vand.u32 %v40, 4294901760
    %v443 = vsub.f32 %v40, %v442
    %444 = vmatmul.mubr.f32.gmra.mrb[0].mxu0 %v443
    %v445 = vpop.f32.mrb[0].mxu0
    %v446 = vadd.f32 %v336, %v445
    %v447 = vpop.f32.mrb[0].mxu0
    %448 = vmatprep.mubr.f32.mxu0 0.0
    %v449 = vand.u32 %v41, 4294901760
    %v450 = vsub.f32 %v41, %v449
    %451 = vmatmul.mubr.f32.gmra.mrb[0].mxu0 %v450
    %v452 = vpop.f32.mrb[0].mxu0
    %v453 = vadd.f32 %v342, %v452
    %v454 = vpop.f32.mrb[0].mxu0
    %455 = vdwg.mxu0
    %456 = vmatprep.subr.mxu0 0.0
    %v457 = vand.u32 %v71, 4294901760
    %458 = vmatpush1.msra.mxu0 %v457
    %459 = vmatprep.subr.mxu0 0.0
    %v460 = vand.u32 %v72, 4294901760
    %461 = vmatpush1.msra.mxu0 %v460
    %462 = vmatprep.subr.mxu0 0.0
    %v463 = vand.u32 %v73, 4294901760
    %464 = vmatpush1.msra.mxu0 %v463
    %465 = vmatprep.subr.mxu0 0.0
    %v466 = vand.u32 %v74, 4294901760
    %467 = vmatpush1.msra.mxu0 %v466
    %468 = vmatprep.subr.mxu0 0.0
    %v469 = vand.u32 %v75, 4294901760
    %470 = vmatpush1.msra.mxu0 %v469
    %471 = vmatprep.subr.mxu0 0.0
    %v472 = vand.u32 %v76, 4294901760
    %473 = vmatpush1.msra.mxu0 %v472
    %474 = vmatprep.subr.mxu0 0.0
    %v475 = vand.u32 %v77, 4294901760
    %476 = vmatpush1.msra.mxu0 %v475
    %477 = vmatprep.subr.mxu0 0.0
    %v478 = vand.u32 %v78, 4294901760
    %479 = vmatpush1.msra.mxu0 %v478
    %480 = vmatprep.subr.mxu0 0.0
    %v481 = vand.u32 %v79, 4294901760
    %482 = vmatpush1.msra.mxu0 %v481
    %483 = vmatprep.subr.mxu0 0.0
    %v484 = vand.u32 %v80, 4294901760
    %485 = vmatpush1.msra.mxu0 %v484
    %486 = vmatprep.subr.mxu0 0.0
    %v487 = vand.u32 %v81, 4294901760
    %488 = vmatpush1.msra.mxu0 %v487
    %489 = vmatprep.subr.mxu0 0.0
    %v490 = vand.u32 %v82, 4294901760
    %491 = vmatpush1.msra.mxu0 %v490
    %492 = vmatprep.subr.mxu0 0.0
    %v493 = vand.u32 %v83, 4294901760
    %494 = vmatpush1.msra.mxu0 %v493
    %495 = vmatprep.subr.mxu0 0.0
    %v496 = vand.u32 %v84, 4294901760
    %497 = vmatpush1.msra.mxu0 %v496
    %498 = vmatprep.subr.mxu0 0.0
    %v499 = vand.u32 %v85, 4294901760
    %500 = vmatpush1.msra.mxu0 %v499
    %501 = vmatprep.subr.mxu0 0.0
    %v502 = vand.u32 %v86, 4294901760
    %503 = vmatpush1.msra.mxu0 %v502
    %504 = vmatprep.subr.mxu0 0.0
    %505 = vmatpush1.msra.mxu0 0.0
    %506 = vmatprep.subr.mxu0 0.0
    %507 = vmatpush1.msra.mxu0 0.0
    %508 = vmatprep.subr.mxu0 0.0
    %509 = vmatpush1.msra.mxu0 0.0
    %510 = vmatprep.subr.mxu0 0.0
    %511 = vmatpush1.msra.mxu0 0.0
    %512 = vmatprep.subr.mxu0 0.0
    %513 = vmatpush1.msra.mxu0 0.0
    %514 = vmatprep.subr.mxu0 0.0
    %515 = vmatpush1.msra.mxu0 0.0
    %516 = vmatprep.subr.mxu0 0.0
    %517 = vmatpush1.msra.mxu0 0.0
    %518 = vmatprep.subr.mxu0 0.0
    %519 = vmatpush1.msra.mxu0 0.0
    %520 = vmatprep.subr.mxu0 0.0
    %521 = vmatpush1.msra.mxu0 0.0
    %522 = vmatprep.subr.mxu0 0.0
    %523 = vmatpush1.msra.mxu0 0.0
    %524 = vmatprep.subr.mxu0 0.0
    %525 = vmatpush1.msra.mxu0 0.0
    %526 = vmatprep.subr.mxu0 0.0
    %527 = vmatpush1.msra.mxu0 0.0
    %528 = vmatprep.subr.mxu0 0.0
    %529 = vmatpush1.msra.mxu0 0.0
    %530 = vmatprep.subr.mxu0 0.0
    %531 = vmatpush1.msra.mxu0 0.0
    %532 = vmatprep.subr.mxu0 0.0
    %533 = vmatpush1.msra.mxu0 0.0
    %534 = vmatprep.subr.mxu0 0.0
    %535 = vmatpush1.msra.mxu0 0.0
    %536 = vmatprep.mubr.f32.mxu0 0.0
    %v537 = vand.u32 %v40, 4294901760
    %v538 = vsub.f32 %v40, %v537
    %v539 = vand.u32 %v538, 4294901760
    %540 = vmatmul.mubr.f32.gmra.mrb[0].mxu0 %v539
    %v541 = vpop.f32.mrb[0].mxu0
    %v542 = vadd.f32 %v446, %v541
    %v543 = vpop.f32.mrb[0].mxu0
    %544 = vmatprep.mubr.f32.mxu0 0.0
    %v545 = vand.u32 %v41, 4294901760
    %v546 = vsub.f32 %v41, %v545
    %v547 = vand.u32 %v546, 4294901760
    %548 = vmatmul.mubr.f32.gmra.mrb[0].mxu0 %v547
    %v549 = vpop.f32.mrb[0].mxu0
    %v550 = vadd.f32 %v453, %v549
    %v551 = vpop.f32.mrb[0].mxu0
    %552 = vdwg.mxu0
    %553 = vmatprep.subr.mxu0 0.0
    %v554 = vand.u32 %v71, 4294901760
    %v555 = vsub.f32 %v71, %v554
    %v556 = vand.u32 %v555, 4294901760
    %557 = vmatpush1.msra.mxu0 %v556
    %558 = vmatprep.subr.mxu0 0.0
    %v559 = vand.u32 %v72, 4294901760
    %v560 = vsub.f32 %v72, %v559
    %v561 = vand.u32 %v560, 4294901760
    %562 = vmatpush1.msra.mxu0 %v561
    %563 = vmatprep.subr.mxu0 0.0
    %v564 = vand.u32 %v73, 4294901760
    %v565 = vsub.f32 %v73, %v564
    %v566 = vand.u32 %v565, 4294901760
    %567 = vmatpush1.msra.mxu0 %v566
    %568 = vmatprep.subr.mxu0 0.0
    %v569 = vand.u32 %v74, 4294901760
    %v570 = vsub.f32 %v74, %v569
    %v571 = vand.u32 %v570, 4294901760
    %572 = vmatpush1.msra.mxu0 %v571
    %573 = vmatprep.subr.mxu0 0.0
    %v574 = vand.u32 %v75, 4294901760
    %v575 = vsub.f32 %v75, %v574
    %v576 = vand.u32 %v575, 4294901760
    %577 = vmatpush1.msra.mxu0 %v576
    %578 = vmatprep.subr.mxu0 0.0
    %v579 = vand.u32 %v76, 4294901760
    %v580 = vsub.f32 %v76, %v579
    %v581 = vand.u32 %v580, 4294901760
    %582 = vmatpush1.msra.mxu0 %v581
    %583 = vmatprep.subr.mxu0 0.0
    %v584 = vand.u32 %v77, 4294901760
    %v585 = vsub.f32 %v77, %v584
    %v586 = vand.u32 %v585, 4294901760
    %587 = vmatpush1.msra.mxu0 %v586
    %588 = vmatprep.subr.mxu0 0.0
    %v589 = vand.u32 %v78, 4294901760
    %v590 = vsub.f32 %v78, %v589
    %v591 = vand.u32 %v590, 4294901760
    %592 = vmatpush1.msra.mxu0 %v591
    %593 = vmatprep.subr.mxu0 0.0
    %v594 = vand.u32 %v79, 4294901760
    %v595 = vsub.f32 %v79, %v594
    %v596 = vand.u32 %v595, 4294901760
    %597 = vmatpush1.msra.mxu0 %v596
    %598 = vmatprep.subr.mxu0 0.0
    %v599 = vand.u32 %v80, 4294901760
    %v600 = vsub.f32 %v80, %v599
    %v601 = vand.u32 %v600, 4294901760
    %602 = vmatpush1.msra.mxu0 %v601
    %603 = vmatprep.subr.mxu0 0.0
    %v604 = vand.u32 %v81, 4294901760
    %v605 = vsub.f32 %v81, %v604
    %v606 = vand.u32 %v605, 4294901760
    %607 = vmatpush1.msra.mxu0 %v606
    %608 = vmatprep.subr.mxu0 0.0
    %v609 = vand.u32 %v82, 4294901760
    %v610 = vsub.f32 %v82, %v609
    %v611 = vand.u32 %v610, 4294901760
    %612 = vmatpush1.msra.mxu0 %v611
    %613 = vmatprep.subr.mxu0 0.0
    %v614 = vand.u32 %v83, 4294901760
    %v615 = vsub.f32 %v83, %v614
    %v616 = vand.u32 %v615, 4294901760
    %617 = vmatpush1.msra.mxu0 %v616
    %618 = vmatprep.subr.mxu0 0.0
    %v619 = vand.u32 %v84, 4294901760
    %v620 = vsub.f32 %v84, %v619
    %v621 = vand.u32 %v620, 4294901760
    %622 = vmatpush1.msra.mxu0 %v621
    %623 = vmatprep.subr.mxu0 0.0
    %v624 = vand.u32 %v85, 4294901760
    %v625 = vsub.f32 %v85, %v624
    %v626 = vand.u32 %v625, 4294901760
    %627 = vmatpush1.msra.mxu0 %v626
    %628 = vmatprep.subr.mxu0 0.0
    %v629 = vand.u32 %v86, 4294901760
    %v630 = vsub.f32 %v86, %v629
    %v631 = vand.u32 %v630, 4294901760
    %632 = vmatpush1.msra.mxu0 %v631
    %633 = vmatprep.subr.mxu0 0.0
    %634 = vmatpush1.msra.mxu0 0.0
    %635 = vmatprep.subr.mxu0 0.0
    %636 = vmatpush1.msra.mxu0 0.0
    %637 = vmatprep.subr.mxu0 0.0
    %638 = vmatpush1.msra.mxu0 0.0
    %639 = vmatprep.subr.mxu0 0.0
    %640 = vmatpush1.msra.mxu0 0.0
    %641 = vmatprep.subr.mxu0 0.0
    %642 = vmatpush1.msra.mxu0 0.0
    %643 = vmatprep.subr.mxu0 0.0
    %644 = vmatpush1.msra.mxu0 0.0
    %645 = vmatprep.subr.mxu0 0.0
    %646 = vmatpush1.msra.mxu0 0.0
    %647 = vmatprep.subr.mxu0 0.0
    %648 = vmatpush1.msra.mxu0 0.0
    %649 = vmatprep.subr.mxu0 0.0
    %650 = vmatpush1.msra.mxu0 0.0
    %651 = vmatprep.subr.mxu0 0.0
    %652 = vmatpush1.msra.mxu0 0.0
    %653 = vmatprep.subr.mxu0 0.0
    %654 = vmatpush1.msra.mxu0 0.0
    %655 = vmatprep.subr.mxu0 0.0
    %656 = vmatpush1.msra.mxu0 0.0
    %657 = vmatprep.subr.mxu0 0.0
    %658 = vmatpush1.msra.mxu0 0.0
    %659 = vmatprep.subr.mxu0 0.0
    %660 = vmatpush1.msra.mxu0 0.0
    %661 = vmatprep.subr.mxu0 0.0
    %662 = vmatpush1.msra.mxu0 0.0
    %663 = vmatprep.subr.mxu0 0.0
    %664 = vmatpush1.msra.mxu0 0.0
    %665 = vmatprep.mubr.f32.mxu0 0.0
    %v666 = vand.u32 %v40, 4294901760
    %667 = vmatmul.mubr.f32.gmra.mrb[0].mxu0 %v666
    %v668 = vpop.f32.mrb[0].mxu0
    %v669 = vadd.f32 %v542, %v668
    %v670 = vpop.f32.mrb[0].mxu0
    %671 = vmatprep.mubr.f32.mxu0 0.0
    %v672 = vand.u32 %v41, 4294901760
    %673 = vmatmul.mubr.f32.gmra.mrb[0].mxu0 %v672
    %v674 = vpop.f32.mrb[0].mxu0
    %v675 = vadd.f32 %v550, %v674
    %v676 = vpop.f32.mrb[0].mxu0
    %677 = vdwg.mxu0
    %678 = vmatprep.subr.mxu0 0.0
    %v679 = vand.u32 %v71, 4294901760
    %680 = vmatpush1.msra.mxu0 %v679
    %681 = vmatprep.subr.mxu0 0.0
    %v682 = vand.u32 %v72, 4294901760
    %683 = vmatpush1.msra.mxu0 %v682
    %684 = vmatprep.subr.mxu0 0.0
    %v685 = vand.u32 %v73, 4294901760
    %686 = vmatpush1.msra.mxu0 %v685
    %687 = vmatprep.subr.mxu0 0.0
    %v688 = vand.u32 %v74, 4294901760
    %689 = vmatpush1.msra.mxu0 %v688
    %690 = vmatprep.subr.mxu0 0.0
    %v691 = vand.u32 %v75, 4294901760
    %692 = vmatpush1.msra.mxu0 %v691
    %693 = vmatprep.subr.mxu0 0.0
    %v694 = vand.u32 %v76, 4294901760
    %695 = vmatpush1.msra.mxu0 %v694
    %696 = vmatprep.subr.mxu0 0.0
    %v697 = vand.u32 %v77, 4294901760
    %698 = vmatpush1.msra.mxu0 %v697
    %699 = vmatprep.subr.mxu0 0.0
    %v700 = vand.u32 %v78, 4294901760
    %701 = vmatpush1.msra.mxu0 %v700
    %702 = vmatprep.subr.mxu0 0.0
    %v703 = vand.u32 %v79, 4294901760
    %704 = vmatpush1.msra.mxu0 %v703
    %705 = vmatprep.subr.mxu0 0.0
    %v706 = vand.u32 %v80, 4294901760
    %707 = vmatpush1.msra.mxu0 %v706
    %708 = vmatprep.subr.mxu0 0.0
    %v709 = vand.u32 %v81, 4294901760
    %710 = vmatpush1.msra.mxu0 %v709
    %711 = vmatprep.subr.mxu0 0.0
    %v712 = vand.u32 %v82, 4294901760
    %713 = vmatpush1.msra.mxu0 %v712
    %714 = vmatprep.subr.mxu0 0.0
    %v715 = vand.u32 %v83, 4294901760
    %716 = vmatpush1.msra.mxu0 %v715
    %717 = vmatprep.subr.mxu0 0.0
    %v718 = vand.u32 %v84, 4294901760
    %719 = vmatpush1.msra.mxu0 %v718
    %720 = vmatprep.subr.mxu0 0.0
    %v721 = vand.u32 %v85, 4294901760
    %722 = vmatpush1.msra.mxu0 %v721
    %723 = vmatprep.subr.mxu0 0.0
    %v724 = vand.u32 %v86, 4294901760
    %725 = vmatpush1.msra.mxu0 %v724
    %726 = vmatprep.subr.mxu0 0.0
    %727 = vmatpush1.msra.mxu0 0.0
    %728 = vmatprep.subr.mxu0 0.0
    %729 = vmatpush1.msra.mxu0 0.0
    %730 = vmatprep.subr.mxu0 0.0
    %731 = vmatpush1.msra.mxu0 0.0
    %732 = vmatprep.subr.mxu0 0.0
    %733 = vmatpush1.msra.mxu0 0.0
    %734 = vmatprep.subr.mxu0 0.0
    %735 = vmatpush1.msra.mxu0 0.0
    %736 = vmatprep.subr.mxu0 0.0
    %737 = vmatpush1.msra.mxu0 0.0
    %738 = vmatprep.subr.mxu0 0.0
    %739 = vmatpush1.msra.mxu0 0.0
    %740 = vmatprep.subr.mxu0 0.0
    %741 = vmatpush1.msra.mxu0 0.0
    %742 = vmatprep.subr.mxu0 0.0
    %743 = vmatpush1.msra.mxu0 0.0
    %744 = vmatprep.subr.mxu0 0.0
    %745 = vmatpush1.msra.mxu0 0.0
    %746 = vmatprep.subr.mxu0 0.0
    %747 = vmatpush1.msra.mxu0 0.0
    %748 = vmatprep.subr.mxu0 0.0
    %749 = vmatpush1.msra.mxu0 0.0
    %750 = vmatprep.subr.mxu0 0.0
    %751 = vmatpush1.msra.mxu0 0.0
    %752 = vmatprep.subr.mxu0 0.0
    %753 = vmatpush1.msra.mxu0 0.0
    %754 = vmatprep.subr.mxu0 0.0
    %755 = vmatpush1.msra.mxu0 0.0
    %756 = vmatprep.subr.mxu0 0.0
    %757 = vmatpush1.msra.mxu0 0.0
    %758 = vmatprep.mubr.f32.mxu0 0.0
    %v759 = vand.u32 %v40, 4294901760
    %760 = vmatmul.mubr.f32.gmra.mrb[0].mxu0 %v759
    %v761 = vpop.f32.mrb[0].mxu0
    %v762 = vadd.f32 %v669, %v761
    %v763 = vpop.f32.mrb[0].mxu0
    %764 = vmatprep.mubr.f32.mxu0 0.0
    %v765 = vand.u32 %v41, 4294901760
    %766 = vmatmul.mubr.f32.gmra.mrb[0].mxu0 %v765
    %v767 = vpop.f32.mrb[0].mxu0
    %v768 = vadd.f32 %v675, %v767
    %v769 = vpop.f32.mrb[0].mxu0
    %770 = vdwg.mxu0
    %s771 = scalar_lea.vmem [#allocation5], 128
    %v772 = vld [vmem:[%s771] sm:$0xff]
    %v773 = vld [vmem:[%s771 + $0x8] sm:$0xff]
    %v774 = vld [vmem:[%s771 + $0x10] sm:$0xff]
    %v775 = vld [vmem:[%s771 + $0x18] sm:$0xff]
    %v776 = vld [vmem:[%s771 + $0x20] sm:$0xff]
    %v777 = vld [vmem:[%s771 + $0x28] sm:$0xff]
    %v778 = vld [vmem:[%s771 + $0x30] sm:$0xff]
    %v779 = vld [vmem:[%s771 + $0x38] sm:$0xff]
    %v780 = vld [vmem:[%s771 + $0x40] sm:$0xff]
    %v781 = vld [vmem:[%s771 + $0x48] sm:$0xff]
    %v782 = vld [vmem:[%s771 + $0x50] sm:$0xff]
    %v783 = vld [vmem:[%s771 + $0x58] sm:$0xff]
    %v784 = vld [vmem:[%s771 + $0x60] sm:$0xff]
    %v785 = vld [vmem:[%s771 + $0x68] sm:$0xff]
    %v786 = vld [vmem:[%s771 + $0x70] sm:$0xff]
    %v787 = vld [vmem:[%s771 + $0x78] sm:$0xff]
    %788 = vmatprep.subr.mxu0 0.0
    %v789 = vand.u32 %v772, 4294901760
    %790 = vmatpush1.msra.mxu0 %v789
    %791 = vmatprep.subr.mxu0 0.0
    %v792 = vand.u32 %v773, 4294901760
    %793 = vmatpush1.msra.mxu0 %v792
    %794 = vmatprep.subr.mxu0 0.0
    %v795 = vand.u32 %v774, 4294901760
    %796 = vmatpush1.msra.mxu0 %v795
    %797 = vmatprep.subr.mxu0 0.0
    %v798 = vand.u32 %v775, 4294901760
    %799 = vmatpush1.msra.mxu0 %v798
    %800 = vmatprep.subr.mxu0 0.0
    %v801 = vand.u32 %v776, 4294901760
    %802 = vmatpush1.msra.mxu0 %v801
    %803 = vmatprep.subr.mxu0 0.0
    %v804 = vand.u32 %v777, 4294901760
    %805 = vmatpush1.msra.mxu0 %v804
    %806 = vmatprep.subr.mxu0 0.0
    %v807 = vand.u32 %v778, 4294901760
    %808 = vmatpush1.msra.mxu0 %v807
    %809 = vmatprep.subr.mxu0 0.0
    %v810 = vand.u32 %v779, 4294901760
    %811 = vmatpush1.msra.mxu0 %v810
    %812 = vmatprep.subr.mxu0 0.0
    %v813 = vand.u32 %v780, 4294901760
    %814 = vmatpush1.msra.mxu0 %v813
    %815 = vmatprep.subr.mxu0 0.0
    %v816 = vand.u32 %v781, 4294901760
    %817 = vmatpush1.msra.mxu0 %v816
    %818 = vmatprep.subr.mxu0 0.0
    %v819 = vand.u32 %v782, 4294901760
    %820 = vmatpush1.msra.mxu0 %v819
    %821 = vmatprep.subr.mxu0 0.0
    %v822 = vand.u32 %v783, 4294901760
    %823 = vmatpush1.msra.mxu0 %v822
    %824 = vmatprep.subr.mxu0 0.0
    %v825 = vand.u32 %v784, 4294901760
    %826 = vmatpush1.msra.mxu0 %v825
    %827 = vmatprep.subr.mxu0 0.0
    %v828 = vand.u32 %v785, 4294901760
    %829 = vmatpush1.msra.mxu0 %v828
    %830 = vmatprep.subr.mxu0 0.0
    %v831 = vand.u32 %v786, 4294901760
    %832 = vmatpush1.msra.mxu0 %v831
    %833 = vmatprep.subr.mxu0 0.0
    %v834 = vand.u32 %v787, 4294901760
    %835 = vmatpush1.msra.mxu0 %v834
    %836 = vmatprep.subr.mxu0 0.0
    %837 = vmatpush1.msra.mxu0 0.0
    %838 = vmatprep.subr.mxu0 0.0
    %839 = vmatpush1.msra.mxu0 0.0
    %840 = vmatprep.subr.mxu0 0.0
    %841 = vmatpush1.msra.mxu0 0.0
    %842 = vmatprep.subr.mxu0 0.0
    %843 = vmatpush1.msra.mxu0 0.0
    %844 = vmatprep.subr.mxu0 0.0
    %845 = vmatpush1.msra.mxu0 0.0
    %846 = vmatprep.subr.mxu0 0.0
    %847 = vmatpush1.msra.mxu0 0.0
    %848 = vmatprep.subr.mxu0 0.0
    %849 = vmatpush1.msra.mxu0 0.0
    %850 = vmatprep.subr.mxu0 0.0
    %851 = vmatpush1.msra.mxu0 0.0
    %852 = vmatprep.subr.mxu0 0.0
    %853 = vmatpush1.msra.mxu0 0.0
    %854 = vmatprep.subr.mxu0 0.0
    %855 = vmatpush1.msra.mxu0 0.0
    %856 = vmatprep.subr.mxu0 0.0
    %857 = vmatpush1.msra.mxu0 0.0
    %858 = vmatprep.subr.mxu0 0.0
    %859 = vmatpush1.msra.mxu0 0.0
    %860 = vmatprep.subr.mxu0 0.0
    %861 = vmatpush1.msra.mxu0 0.0
    %862 = vmatprep.subr.mxu0 0.0
    %863 = vmatpush1.msra.mxu0 0.0
    %864 = vmatprep.subr.mxu0 0.0
    %865 = vmatpush1.msra.mxu0 0.0
    %866 = vmatprep.subr.mxu0 0.0
    %867 = vmatpush1.msra.mxu0 0.0
    %868 = vmatprep.mubr.f32.mxu0 0.0
    %v869 = vand.u32 %v40, 4294901760
    %v870 = vsub.f32 %v40, %v869
    %v871 = vand.u32 %v870, 4294901760
    %v872 = vsub.f32 %v870, %v871
    %v873 = vand.u32 %v872, 4294901760
    %874 = vmatmul.mubr.f32.gmra.mrb[0].mxu0 %v873
    %v875 = vpop.f32.mrb[0].mxu0
    %v876 = vadd.f32 0.0, %v875
    %v877 = vpop.f32.mrb[0].mxu0
    %878 = vmatprep.mubr.f32.mxu0 0.0
    %v879 = vand.u32 %v41, 4294901760
    %v880 = vsub.f32 %v41, %v879
    %v881 = vand.u32 %v880, 4294901760
    %v882 = vsub.f32 %v880, %v881
    %v883 = vand.u32 %v882, 4294901760
    %884 = vmatmul.mubr.f32.gmra.mrb[0].mxu0 %v883
    %v885 = vpop.f32.mrb[0].mxu0
    %v886 = vadd.f32 0.0, %v885
    %v887 = vpop.f32.mrb[0].mxu0
    %888 = vdwg.mxu0
    %889 = vmatprep.subr.mxu0 0.0
    %v890 = vand.u32 %v772, 4294901760
    %v891 = vsub.f32 %v772, %v890
    %v892 = vand.u32 %v891, 4294901760
    %v893 = vsub.f32 %v891, %v892
    %v894 = vand.u32 %v893, 4294901760
    %895 = vmatpush1.msra.mxu0 %v894
    %896 = vmatprep.subr.mxu0 0.0
    %v897 = vand.u32 %v773, 4294901760
    %v898 = vsub.f32 %v773, %v897
    %v899 = vand.u32 %v898, 4294901760
    %v900 = vsub.f32 %v898, %v899
    %v901 = vand.u32 %v900, 4294901760
    %902 = vmatpush1.msra.mxu0 %v901
    %903 = vmatprep.subr.mxu0 0.0
    %v904 = vand.u32 %v774, 4294901760
    %v905 = vsub.f32 %v774, %v904
    %v906 = vand.u32 %v905, 4294901760
    %v907 = vsub.f32 %v905, %v906
    %v908 = vand.u32 %v907, 4294901760
    %909 = vmatpush1.msra.mxu0 %v908
    %910 = vmatprep.subr.mxu0 0.0
    %v911 = vand.u32 %v775, 4294901760
    %v912 = vsub.f32 %v775, %v911
    %v913 = vand.u32 %v912, 4294901760
    %v914 = vsub.f32 %v912, %v913
    %v915 = vand.u32 %v914, 4294901760
    %916 = vmatpush1.msra.mxu0 %v915
    %917 = vmatprep.subr.mxu0 0.0
    %v918 = vand.u32 %v776, 4294901760
    %v919 = vsub.f32 %v776, %v918
    %v920 = vand.u32 %v919, 4294901760
    %v921 = vsub.f32 %v919, %v920
    %v922 = vand.u32 %v921, 4294901760
    %923 = vmatpush1.msra.mxu0 %v922
    %924 = vmatprep.subr.mxu0 0.0
    %v925 = vand.u32 %v777, 4294901760
    %v926 = vsub.f32 %v777, %v925
    %v927 = vand.u32 %v926, 4294901760
    %v928 = vsub.f32 %v926, %v927
    %v929 = vand.u32 %v928, 4294901760
    %930 = vmatpush1.msra.mxu0 %v929
    %931 = vmatprep.subr.mxu0 0.0
    %v932 = vand.u32 %v778, 4294901760
    %v933 = vsub.f32 %v778, %v932
    %v934 = vand.u32 %v933, 4294901760
    %v935 = vsub.f32 %v933, %v934
    %v936 = vand.u32 %v935, 4294901760
    %937 = vmatpush1.msra.mxu0 %v936
    %938 = vmatprep.subr.mxu0 0.0
    %v939 = vand.u32 %v779, 4294901760
    %v940 = vsub.f32 %v779, %v939
    %v941 = vand.u32 %v940, 4294901760
    %v942 = vsub.f32 %v940, %v941
    %v943 = vand.u32 %v942, 4294901760
    %944 = vmatpush1.msra.mxu0 %v943
    %945 = vmatprep.subr.mxu0 0.0
    %v946 = vand.u32 %v780, 4294901760
    %v947 = vsub.f32 %v780, %v946
    %v948 = vand.u32 %v947, 4294901760
    %v949 = vsub.f32 %v947, %v948
    %v950 = vand.u32 %v949, 4294901760
    %951 = vmatpush1.msra.mxu0 %v950
    %952 = vmatprep.subr.mxu0 0.0
    %v953 = vand.u32 %v781, 4294901760
    %v954 = vsub.f32 %v781, %v953
    %v955 = vand.u32 %v954, 4294901760
    %v956 = vsub.f32 %v954, %v955
    %v957 = vand.u32 %v956, 4294901760
    %958 = vmatpush1.msra.mxu0 %v957
    %959 = vmatprep.subr.mxu0 0.0
    %v960 = vand.u32 %v782, 4294901760
    %v961 = vsub.f32 %v782, %v960
    %v962 = vand.u32 %v961, 4294901760
    %v963 = vsub.f32 %v961, %v962
    %v964 = vand.u32 %v963, 4294901760
    %965 = vmatpush1.msra.mxu0 %v964
    %966 = vmatprep.subr.mxu0 0.0
    %v967 = vand.u32 %v783, 4294901760
    %v968 = vsub.f32 %v783, %v967
    %v969 = vand.u32 %v968, 4294901760
    %v970 = vsub.f32 %v968, %v969
    %v971 = vand.u32 %v970, 4294901760
    %972 = vmatpush1.msra.mxu0 %v971
    %973 = vmatprep.subr.mxu0 0.0
    %v974 = vand.u32 %v784, 4294901760
    %v975 = vsub.f32 %v784, %v974
    %v976 = vand.u32 %v975, 4294901760
    %v977 = vsub.f32 %v975, %v976
    %v978 = vand.u32 %v977, 4294901760
    %979 = vmatpush1.msra.mxu0 %v978
    %980 = vmatprep.subr.mxu0 0.0
    %v981 = vand.u32 %v785, 4294901760
    %v982 = vsub.f32 %v785, %v981
    %v983 = vand.u32 %v982, 4294901760
    %v984 = vsub.f32 %v982, %v983
    %v985 = vand.u32 %v984, 4294901760
    %986 = vmatpush1.msra.mxu0 %v985
    %987 = vmatprep.subr.mxu0 0.0
    %v988 = vand.u32 %v786, 4294901760
    %v989 = vsub.f32 %v786, %v988
    %v990 = vand.u32 %v989, 4294901760
    %v991 = vsub.f32 %v989, %v990
    %v992 = vand.u32 %v991, 4294901760
    %993 = vmatpush1.msra.mxu0 %v992
    %994 = vmatprep.subr.mxu0 0.0
    %v995 = vand.u32 %v787, 4294901760
    %v996 = vsub.f32 %v787, %v995
    %v997 = vand.u32 %v996, 4294901760
    %v998 = vsub.f32 %v996, %v997
    %v999 = vand.u32 %v998, 4294901760
    %1000 = vmatpush1.msra.mxu0 %v999
    %1001 = vmatprep.subr.mxu0 0.0
    %1002 = vmatpush1.msra.mxu0 0.0
    %1003 = vmatprep.subr.mxu0 0.0
    %1004 = vmatpush1.msra.mxu0 0.0
    %1005 = vmatprep.subr.mxu0 0.0
    %1006 = vmatpush1.msra.mxu0 0.0
    %1007 = vmatprep.subr.mxu0 0.0
    %1008 = vmatpush1.msra.mxu0 0.0
    %1009 = vmatprep.subr.mxu0 0.0
    %1010 = vmatpush1.msra.mxu0 0.0
    %1011 = vmatprep.subr.mxu0 0.0
    %1012 = vmatpush1.msra.mxu0 0.0
    %1013 = vmatprep.subr.mxu0 0.0
    %1014 = vmatpush1.msra.mxu0 0.0
    %1015 = vmatprep.subr.mxu0 0.0
    %1016 = vmatpush1.msra.mxu0 0.0
    %1017 = vmatprep.subr.mxu0 0.0
    %1018 = vmatpush1.msra.mxu0 0.0
    %1019 = vmatprep.subr.mxu0 0.0
    %1020 = vmatpush1.msra.mxu0 0.0
    %1021 = vmatprep.subr.mxu0 0.0
    %1022 = vmatpush1.msra.mxu0 0.0
    %1023 = vmatprep.subr.mxu0 0.0
    %1024 = vmatpush1.msra.mxu0 0.0
    %1025 = vmatprep.subr.mxu0 0.0
    %1026 = vmatpush1.msra.mxu0 0.0
    %1027 = vmatprep.subr.mxu0 0.0
    %1028 = vmatpush1.msra.mxu0 0.0
    %1029 = vmatprep.subr.mxu0 0.0
    %1030 = vmatpush1.msra.mxu0 0.0
    %1031 = vmatprep.subr.mxu0 0.0
    %1032 = vmatpush1.msra.mxu0 0.0
    %1033 = vmatprep.mubr.f32.mxu0 0.0
    %v1034 = vand.u32 %v40, 4294901760
    %1035 = vmatmul.mubr.f32.gmra.mrb[0].mxu0 %v1034
    %v1036 = vpop.f32.mrb[0].mxu0
    %v1037 = vadd.f32 %v876, %v1036
    %v1038 = vpop.f32.mrb[0].mxu0
    %1039 = vmatprep.mubr.f32.mxu0 0.0
    %v1040 = vand.u32 %v41, 4294901760
    %1041 = vmatmul.mubr.f32.gmra.mrb[0].mxu0 %v1040
    %v1042 = vpop.f32.mrb[0].mxu0
    %v1043 = vadd.f32 %v886, %v1042
    %v1044 = vpop.f32.mrb[0].mxu0
    %1045 = vdwg.mxu0
    %1046 = vmatprep.subr.mxu0 0.0
    %v1047 = vand.u32 %v772, 4294901760
    %v1048 = vsub.f32 %v772, %v1047
    %1049 = vmatpush1.msra.mxu0 %v1048
    %1050 = vmatprep.subr.mxu0 0.0
    %v1051 = vand.u32 %v773, 4294901760
    %v1052 = vsub.f32 %v773, %v1051
    %1053 = vmatpush1.msra.mxu0 %v1052
    %1054 = vmatprep.subr.mxu0 0.0
    %v1055 = vand.u32 %v774, 4294901760
    %v1056 = vsub.f32 %v774, %v1055
    %1057 = vmatpush1.msra.mxu0 %v1056
    %1058 = vmatprep.subr.mxu0 0.0
    %v1059 = vand.u32 %v775, 4294901760
    %v1060 = vsub.f32 %v775, %v1059
    %1061 = vmatpush1.msra.mxu0 %v1060
    %1062 = vmatprep.subr.mxu0 0.0
    %v1063 = vand.u32 %v776, 4294901760
    %v1064 = vsub.f32 %v776, %v1063
    %1065 = vmatpush1.msra.mxu0 %v1064
    %1066 = vmatprep.subr.mxu0 0.0
    %v1067 = vand.u32 %v777, 4294901760
    %v1068 = vsub.f32 %v777, %v1067
    %1069 = vmatpush1.msra.mxu0 %v1068
    %1070 = vmatprep.subr.mxu0 0.0
    %v1071 = vand.u32 %v778, 4294901760
    %v1072 = vsub.f32 %v778, %v1071
    %1073 = vmatpush1.msra.mxu0 %v1072
    %1074 = vmatprep.subr.mxu0 0.0
    %v1075 = vand.u32 %v779, 4294901760
    %v1076 = vsub.f32 %v779, %v1075
    %1077 = vmatpush1.msra.mxu0 %v1076
    %1078 = vmatprep.subr.mxu0 0.0
    %v1079 = vand.u32 %v780, 4294901760
    %v1080 = vsub.f32 %v780, %v1079
    %1081 = vmatpush1.msra.mxu0 %v1080
    %1082 = vmatprep.subr.mxu0 0.0
    %v1083 = vand.u32 %v781, 4294901760
    %v1084 = vsub.f32 %v781, %v1083
    %1085 = vmatpush1.msra.mxu0 %v1084
    %1086 = vmatprep.subr.mxu0 0.0
    %v1087 = vand.u32 %v782, 4294901760
    %v1088 = vsub.f32 %v782, %v1087
    %1089 = vmatpush1.msra.mxu0 %v1088
    %1090 = vmatprep.subr.mxu0 0.0
    %v1091 = vand.u32 %v783, 4294901760
    %v1092 = vsub.f32 %v783, %v1091
    %1093 = vmatpush1.msra.mxu0 %v1092
    %1094 = vmatprep.subr.mxu0 0.0
    %v1095 = vand.u32 %v784, 4294901760
    %v1096 = vsub.f32 %v784, %v1095
    %1097 = vmatpush1.msra.mxu0 %v1096
    %1098 = vmatprep.subr.mxu0 0.0
    %v1099 = vand.u32 %v785, 4294901760
    %v1100 = vsub.f32 %v785, %v1099
    %1101 = vmatpush1.msra.mxu0 %v1100
    %1102 = vmatprep.subr.mxu0 0.0
    %v1103 = vand.u32 %v786, 4294901760
    %v1104 = vsub.f32 %v786, %v1103
    %1105 = vmatpush1.msra.mxu0 %v1104
    %1106 = vmatprep.subr.mxu0 0.0
    %v1107 = vand.u32 %v787, 4294901760
    %v1108 = vsub.f32 %v787, %v1107
    %1109 = vmatpush1.msra.mxu0 %v1108
    %1110 = vmatprep.subr.mxu0 0.0
    %1111 = vmatpush1.msra.mxu0 0.0
    %1112 = vmatprep.subr.mxu0 0.0
    %1113 = vmatpush1.msra.mxu0 0.0
    %1114 = vmatprep.subr.mxu0 0.0
    %1115 = vmatpush1.msra.mxu0 0.0
    %1116 = vmatprep.subr.mxu0 0.0
    %1117 = vmatpush1.msra.mxu0 0.0
    %1118 = vmatprep.subr.mxu0 0.0
    %1119 = vmatpush1.msra.mxu0 0.0
    %1120 = vmatprep.subr.mxu0 0.0
    %1121 = vmatpush1.msra.mxu0 0.0
    %1122 = vmatprep.subr.mxu0 0.0
    %1123 = vmatpush1.msra.mxu0 0.0
    %1124 = vmatprep.subr.mxu0 0.0
    %1125 = vmatpush1.msra.mxu0 0.0
    %1126 = vmatprep.subr.mxu0 0.0
    %1127 = vmatpush1.msra.mxu0 0.0
    %1128 = vmatprep.subr.mxu0 0.0
    %1129 = vmatpush1.msra.mxu0 0.0
    %1130 = vmatprep.subr.mxu0 0.0
    %1131 = vmatpush1.msra.mxu0 0.0
    %1132 = vmatprep.subr.mxu0 0.0
    %1133 = vmatpush1.msra.mxu0 0.0
    %1134 = vmatprep.subr.mxu0 0.0
    %1135 = vmatpush1.msra.mxu0 0.0
    %1136 = vmatprep.subr.mxu0 0.0
    %1137 = vmatpush1.msra.mxu0 0.0
    %1138 = vmatprep.subr.mxu0 0.0
    %1139 = vmatpush1.msra.mxu0 0.0
    %1140 = vmatprep.subr.mxu0 0.0
    %1141 = vmatpush1.msra.mxu0 0.0
    %1142 = vmatprep.mubr.f32.mxu0 0.0
    %v1143 = vand.u32 %v40, 4294901760
    %v1144 = vsub.f32 %v40, %v1143
    %1145 = vmatmul.mubr.f32.gmra.mrb[0].mxu0 %v1144
    %v1146 = vpop.f32.mrb[0].mxu0
    %v1147 = vadd.f32 %v1037, %v1146
    %v1148 = vpop.f32.mrb[0].mxu0
    %1149 = vmatprep.mubr.f32.mxu0 0.0
    %v1150 = vand.u32 %v41, 4294901760
    %v1151 = vsub.f32 %v41, %v1150
    %1152 = vmatmul.mubr.f32.gmra.mrb[0].mxu0 %v1151
    %v1153 = vpop.f32.mrb[0].mxu0
    %v1154 = vadd.f32 %v1043, %v1153
    %v1155 = vpop.f32.mrb[0].mxu0
    %1156 = vdwg.mxu0
    %1157 = vmatprep.subr.mxu0 0.0
    %v1158 = vand.u32 %v772, 4294901760
    %1159 = vmatpush1.msra.mxu0 %v1158
    %1160 = vmatprep.subr.mxu0 0.0
    %v1161 = vand.u32 %v773, 4294901760
    %1162 = vmatpush1.msra.mxu0 %v1161
    %1163 = vmatprep.subr.mxu0 0.0
    %v1164 = vand.u32 %v774, 4294901760
    %1165 = vmatpush1.msra.mxu0 %v1164
    %1166 = vmatprep.subr.mxu0 0.0
    %v1167 = vand.u32 %v775, 4294901760
    %1168 = vmatpush1.msra.mxu0 %v1167
    %1169 = vmatprep.subr.mxu0 0.0
    %v1170 = vand.u32 %v776, 4294901760
    %1171 = vmatpush1.msra.mxu0 %v1170
    %1172 = vmatprep.subr.mxu0 0.0
    %v1173 = vand.u32 %v777, 4294901760
    %1174 = vmatpush1.msra.mxu0 %v1173
    %1175 = vmatprep.subr.mxu0 0.0
    %v1176 = vand.u32 %v778, 4294901760
    %1177 = vmatpush1.msra.mxu0 %v1176
    %1178 = vmatprep.subr.mxu0 0.0
    %v1179 = vand.u32 %v779, 4294901760
    %1180 = vmatpush1.msra.mxu0 %v1179
    %1181 = vmatprep.subr.mxu0 0.0
    %v1182 = vand.u32 %v780, 4294901760
    %1183 = vmatpush1.msra.mxu0 %v1182
    %1184 = vmatprep.subr.mxu0 0.0
    %v1185 = vand.u32 %v781, 4294901760
    %1186 = vmatpush1.msra.mxu0 %v1185
    %1187 = vmatprep.subr.mxu0 0.0
    %v1188 = vand.u32 %v782, 4294901760
    %1189 = vmatpush1.msra.mxu0 %v1188
    %1190 = vmatprep.subr.mxu0 0.0
    %v1191 = vand.u32 %v783, 4294901760
    %1192 = vmatpush1.msra.mxu0 %v1191
    %1193 = vmatprep.subr.mxu0 0.0
    %v1194 = vand.u32 %v784, 4294901760
    %1195 = vmatpush1.msra.mxu0 %v1194
    %1196 = vmatprep.subr.mxu0 0.0
    %v1197 = vand.u32 %v785, 4294901760
    %1198 = vmatpush1.msra.mxu0 %v1197
    %1199 = vmatprep.subr.mxu0 0.0
    %v1200 = vand.u32 %v786, 4294901760
    %1201 = vmatpush1.msra.mxu0 %v1200
    %1202 = vmatprep.subr.mxu0 0.0
    %v1203 = vand.u32 %v787, 4294901760
    %1204 = vmatpush1.msra.mxu0 %v1203
    %1205 = vmatprep.subr.mxu0 0.0
    %1206 = vmatpush1.msra.mxu0 0.0
    %1207 = vmatprep.subr.mxu0 0.0
    %1208 = vmatpush1.msra.mxu0 0.0
    %1209 = vmatprep.subr.mxu0 0.0
    %1210 = vmatpush1.msra.mxu0 0.0
    %1211 = vmatprep.subr.mxu0 0.0
    %1212 = vmatpush1.msra.mxu0 0.0
    %1213 = vmatprep.subr.mxu0 0.0
    %1214 = vmatpush1.msra.mxu0 0.0
    %1215 = vmatprep.subr.mxu0 0.0
    %1216 = vmatpush1.msra.mxu0 0.0
    %1217 = vmatprep.subr.mxu0 0.0
    %1218 = vmatpush1.msra.mxu0 0.0
    %1219 = vmatprep.subr.mxu0 0.0
    %1220 = vmatpush1.msra.mxu0 0.0
    %1221 = vmatprep.subr.mxu0 0.0
    %1222 = vmatpush1.msra.mxu0 0.0
    %1223 = vmatprep.subr.mxu0 0.0
    %1224 = vmatpush1.msra.mxu0 0.0
    %1225 = vmatprep.subr.mxu0 0.0
    %1226 = vmatpush1.msra.mxu0 0.0
    %1227 = vmatprep.subr.mxu0 0.0
    %1228 = vmatpush1.msra.mxu0 0.0
    %1229 = vmatprep.subr.mxu0 0.0
    %1230 = vmatpush1.msra.mxu0 0.0
    %1231 = vmatprep.subr.mxu0 0.0
    %1232 = vmatpush1.msra.mxu0 0.0
    %1233 = vmatprep.subr.mxu0 0.0
    %1234 = vmatpush1.msra.mxu0 0.0
    %1235 = vmatprep.subr.mxu0 0.0
    %1236 = vmatpush1.msra.mxu0 0.0
    %1237 = vmatprep.mubr.f32.mxu0 0.0
    %v1238 = vand.u32 %v40, 4294901760
    %v1239 = vsub.f32 %v40, %v1238
    %v1240 = vand.u32 %v1239, 4294901760
    %1241 = vmatmul.mubr.f32.gmra.mrb[0].mxu0 %v1240
    %v1242 = vpop.f32.mrb[0].mxu0
    %v1243 = vadd.f32 %v1147, %v1242
    %v1244 = vpop.f32.mrb[0].mxu0
    %1245 = vmatprep.mubr.f32.mxu0 0.0
    %v1246 = vand.u32 %v41, 4294901760
    %v1247 = vsub.f32 %v41, %v1246
    %v1248 = vand.u32 %v1247, 4294901760
    %1249 = vmatmul.mubr.f32.gmra.mrb[0].mxu0 %v1248
    %v1250 = vpop.f32.mrb[0].mxu0
    %v1251 = vadd.f32 %v1154, %v1250
    %v1252 = vpop.f32.mrb[0].mxu0
    %1253 = vdwg.mxu0
    %1254 = vmatprep.subr.mxu0 0.0
    %v1255 = vand.u32 %v772, 4294901760
    %v1256 = vsub.f32 %v772, %v1255
    %v1257 = vand.u32 %v1256, 4294901760
    %1258 = vmatpush1.msra.mxu0 %v1257
    %1259 = vmatprep.subr.mxu0 0.0
    %v1260 = vand.u32 %v773, 4294901760
    %v1261 = vsub.f32 %v773, %v1260
    %v1262 = vand.u32 %v1261, 4294901760
    %1263 = vmatpush1.msra.mxu0 %v1262
    %1264 = vmatprep.subr.mxu0 0.0
    %v1265 = vand.u32 %v774, 4294901760
    %v1266 = vsub.f32 %v774, %v1265
    %v1267 = vand.u32 %v1266, 4294901760
    %1268 = vmatpush1.msra.mxu0 %v1267
    %1269 = vmatprep.subr.mxu0 0.0
    %v1270 = vand.u32 %v775, 4294901760
    %v1271 = vsub.f32 %v775, %v1270
    %v1272 = vand.u32 %v1271, 4294901760
    %1273 = vmatpush1.msra.mxu0 %v1272
    %1274 = vmatprep.subr.mxu0 0.0
    %v1275 = vand.u32 %v776, 4294901760
    %v1276 = vsub.f32 %v776, %v1275
    %v1277 = vand.u32 %v1276, 4294901760
    %1278 = vmatpush1.msra.mxu0 %v1277
    %1279 = vmatprep.subr.mxu0 0.0
    %v1280 = vand.u32 %v777, 4294901760
    %v1281 = vsub.f32 %v777, %v1280
    %v1282 = vand.u32 %v1281, 4294901760
    %1283 = vmatpush1.msra.mxu0 %v1282
    %1284 = vmatprep.subr.mxu0 0.0
    %v1285 = vand.u32 %v778, 4294901760
    %v1286 = vsub.f32 %v778, %v1285
    %v1287 = vand.u32 %v1286, 4294901760
    %1288 = vmatpush1.msra.mxu0 %v1287
    %1289 = vmatprep.subr.mxu0 0.0
    %v1290 = vand.u32 %v779, 4294901760
    %v1291 = vsub.f32 %v779, %v1290
    %v1292 = vand.u32 %v1291, 4294901760
    %1293 = vmatpush1.msra.mxu0 %v1292
    %1294 = vmatprep.subr.mxu0 0.0
    %v1295 = vand.u32 %v780, 4294901760
    %v1296 = vsub.f32 %v780, %v1295
    %v1297 = vand.u32 %v1296, 4294901760
    %1298 = vmatpush1.msra.mxu0 %v1297
    %1299 = vmatprep.subr.mxu0 0.0
    %v1300 = vand.u32 %v781, 4294901760
    %v1301 = vsub.f32 %v781, %v1300
    %v1302 = vand.u32 %v1301, 4294901760
    %1303 = vmatpush1.msra.mxu0 %v1302
    %1304 = vmatprep.subr.mxu0 0.0
    %v1305 = vand.u32 %v782, 4294901760
    %v1306 = vsub.f32 %v782, %v1305
    %v1307 = vand.u32 %v1306, 4294901760
    %1308 = vmatpush1.msra.mxu0 %v1307
    %1309 = vmatprep.subr.mxu0 0.0
    %v1310 = vand.u32 %v783, 4294901760
    %v1311 = vsub.f32 %v783, %v1310
    %v1312 = vand.u32 %v1311, 4294901760
    %1313 = vmatpush1.msra.mxu0 %v1312
    %1314 = vmatprep.subr.mxu0 0.0
    %v1315 = vand.u32 %v784, 4294901760
    %v1316 = vsub.f32 %v784, %v1315
    %v1317 = vand.u32 %v1316, 4294901760
    %1318 = vmatpush1.msra.mxu0 %v1317
    %1319 = vmatprep.subr.mxu0 0.0
    %v1320 = vand.u32 %v785, 4294901760
    %v1321 = vsub.f32 %v785, %v1320
    %v1322 = vand.u32 %v1321, 4294901760
    %1323 = vmatpush1.msra.mxu0 %v1322
    %1324 = vmatprep.subr.mxu0 0.0
    %v1325 = vand.u32 %v786, 4294901760
    %v1326 = vsub.f32 %v786, %v1325
    %v1327 = vand.u32 %v1326, 4294901760
    %1328 = vmatpush1.msra.mxu0 %v1327
    %1329 = vmatprep.subr.mxu0 0.0
    %v1330 = vand.u32 %v787, 4294901760
    %v1331 = vsub.f32 %v787, %v1330
    %v1332 = vand.u32 %v1331, 4294901760
    %1333 = vmatpush1.msra.mxu0 %v1332
    %1334 = vmatprep.subr.mxu0 0.0
    %1335 = vmatpush1.msra.mxu0 0.0
    %1336 = vmatprep.subr.mxu0 0.0
    %1337 = vmatpush1.msra.mxu0 0.0
    %1338 = vmatprep.subr.mxu0 0.0
    %1339 = vmatpush1.msra.mxu0 0.0
    %1340 = vmatprep.subr.mxu0 0.0
    %1341 = vmatpush1.msra.mxu0 0.0
    %1342 = vmatprep.subr.mxu0 0.0
    %1343 = vmatpush1.msra.mxu0 0.0
    %1344 = vmatprep.subr.mxu0 0.0
    %1345 = vmatpush1.msra.mxu0 0.0
    %1346 = vmatprep.subr.mxu0 0.0
    %1347 = vmatpush1.msra.mxu0 0.0
    %1348 = vmatprep.subr.mxu0 0.0
    %1349 = vmatpush1.msra.mxu0 0.0
    %1350 = vmatprep.subr.mxu0 0.0
    %1351 = vmatpush1.msra.mxu0 0.0
    %1352 = vmatprep.subr.mxu0 0.0
    %1353 = vmatpush1.msra.mxu0 0.0
    %1354 = vmatprep.subr.mxu0 0.0
    %1355 = vmatpush1.msra.mxu0 0.0
    %1356 = vmatprep.subr.mxu0 0.0
    %1357 = vmatpush1.msra.mxu0 0.0
    %1358 = vmatprep.subr.mxu0 0.0
    %1359 = vmatpush1.msra.mxu0 0.0
    %1360 = vmatprep.subr.mxu0 0.0
    %1361 = vmatpush1.msra.mxu0 0.0
    %1362 = vmatprep.subr.mxu0 0.0
    %1363 = vmatpush1.msra.mxu0 0.0
    %1364 = vmatprep.subr.mxu0 0.0
    %1365 = vmatpush1.msra.mxu0 0.0
    %1366 = vmatprep.mubr.f32.mxu0 0.0
    %v1367 = vand.u32 %v40, 4294901760
    %1368 = vmatmul.mubr.f32.gmra.mrb[0].mxu0 %v1367
    %v1369 = vpop.f32.mrb[0].mxu0
    %v1370 = vadd.f32 %v1243, %v1369
    %v1371 = vpop.f32.mrb[0].mxu0
    %1372 = vmatprep.mubr.f32.mxu0 0.0
    %v1373 = vand.u32 %v41, 4294901760
    %1374 = vmatmul.mubr.f32.gmra.mrb[0].mxu0 %v1373
    %v1375 = vpop.f32.mrb[0].mxu0
    %v1376 = vadd.f32 %v1251, %v1375
    %v1377 = vpop.f32.mrb[0].mxu0
    %1378 = vdwg.mxu0
    %1379 = vmatprep.subr.mxu0 0.0
    %v1380 = vand.u32 %v772, 4294901760
    %1381 = vmatpush1.msra.mxu0 %v1380
    %1382 = vmatprep.subr.mxu0 0.0
    %v1383 = vand.u32 %v773, 4294901760
    %1384 = vmatpush1.msra.mxu0 %v1383
    %1385 = vmatprep.subr.mxu0 0.0
    %v1386 = vand.u32 %v774, 4294901760
    %1387 = vmatpush1.msra.mxu0 %v1386
    %1388 = vmatprep.subr.mxu0 0.0
    %v1389 = vand.u32 %v775, 4294901760
    %1390 = vmatpush1.msra.mxu0 %v1389
    %1391 = vmatprep.subr.mxu0 0.0
    %v1392 = vand.u32 %v776, 4294901760
    %1393 = vmatpush1.msra.mxu0 %v1392
    %1394 = vmatprep.subr.mxu0 0.0
    %v1395 = vand.u32 %v777, 4294901760
    %1396 = vmatpush1.msra.mxu0 %v1395
    %1397 = vmatprep.subr.mxu0 0.0
    %v1398 = vand.u32 %v778, 4294901760
    %1399 = vmatpush1.msra.mxu0 %v1398
    %1400 = vmatprep.subr.mxu0 0.0
    %v1401 = vand.u32 %v779, 4294901760
    %1402 = vmatpush1.msra.mxu0 %v1401
    %1403 = vmatprep.subr.mxu0 0.0
    %v1404 = vand.u32 %v780, 4294901760
    %1405 = vmatpush1.msra.mxu0 %v1404
    %1406 = vmatprep.subr.mxu0 0.0
    %v1407 = vand.u32 %v781, 4294901760
    %1408 = vmatpush1.msra.mxu0 %v1407
    %1409 = vmatprep.subr.mxu0 0.0
    %v1410 = vand.u32 %v782, 4294901760
    %1411 = vmatpush1.msra.mxu0 %v1410
    %1412 = vmatprep.subr.mxu0 0.0
    %v1413 = vand.u32 %v783, 4294901760
    %1414 = vmatpush1.msra.mxu0 %v1413
    %1415 = vmatprep.subr.mxu0 0.0
    %v1416 = vand.u32 %v784, 4294901760
    %1417 = vmatpush1.msra.mxu0 %v1416
    %1418 = vmatprep.subr.mxu0 0.0
    %v1419 = vand.u32 %v785, 4294901760
    %1420 = vmatpush1.msra.mxu0 %v1419
    %1421 = vmatprep.subr.mxu0 0.0
    %v1422 = vand.u32 %v786, 4294901760
    %1423 = vmatpush1.msra.mxu0 %v1422
    %1424 = vmatprep.subr.mxu0 0.0
    %v1425 = vand.u32 %v787, 4294901760
    %1426 = vmatpush1.msra.mxu0 %v1425
    %1427 = vmatprep.subr.mxu0 0.0
    %1428 = vmatpush1.msra.mxu0 0.0
    %1429 = vmatprep.subr.mxu0 0.0
    %1430 = vmatpush1.msra.mxu0 0.0
    %1431 = vmatprep.subr.mxu0 0.0
    %1432 = vmatpush1.msra.mxu0 0.0
    %1433 = vmatprep.subr.mxu0 0.0
    %1434 = vmatpush1.msra.mxu0 0.0
    %1435 = vmatprep.subr.mxu0 0.0
    %1436 = vmatpush1.msra.mxu0 0.0
    %1437 = vmatprep.subr.mxu0 0.0
    %1438 = vmatpush1.msra.mxu0 0.0
    %1439 = vmatprep.subr.mxu0 0.0
    %1440 = vmatpush1.msra.mxu0 0.0
    %1441 = vmatprep.subr.mxu0 0.0
    %1442 = vmatpush1.msra.mxu0 0.0
    %1443 = vmatprep.subr.mxu0 0.0
    %1444 = vmatpush1.msra.mxu0 0.0
    %1445 = vmatprep.subr.mxu0 0.0
    %1446 = vmatpush1.msra.mxu0 0.0
    %1447 = vmatprep.subr.mxu0 0.0
    %1448 = vmatpush1.msra.mxu0 0.0
    %1449 = vmatprep.subr.mxu0 0.0
    %1450 = vmatpush1.msra.mxu0 0.0
    %1451 = vmatprep.subr.mxu0 0.0
    %1452 = vmatpush1.msra.mxu0 0.0
    %1453 = vmatprep.subr.mxu0 0.0
    %1454 = vmatpush1.msra.mxu0 0.0
    %1455 = vmatprep.subr.mxu0 0.0
    %1456 = vmatpush1.msra.mxu0 0.0
    %1457 = vmatprep.subr.mxu0 0.0
    %1458 = vmatpush1.msra.mxu0 0.0
    %1459 = vmatprep.mubr.f32.mxu0 0.0
    %v1460 = vand.u32 %v40, 4294901760
    %1461 = vmatmul.mubr.f32.gmra.mrb[0].mxu0 %v1460
    %v1462 = vpop.f32.mrb[0].mxu0
    %v1463 = vadd.f32 %v1370, %v1462
    %v1464 = vpop.f32.mrb[0].mxu0
    %1465 = vmatprep.mubr.f32.mxu0 0.0
    %v1466 = vand.u32 %v41, 4294901760
    %1467 = vmatmul.mubr.f32.gmra.mrb[0].mxu0 %v1466
    %v1468 = vpop.f32.mrb[0].mxu0
    %v1469 = vadd.f32 %v1376, %v1468
    %v1470 = vpop.f32.mrb[0].mxu0
    %1471 = vdwg.mxu0
    %v1472 = vrot.slane %v40, 2
    %v1473 = vrot.slane %v41, 2
    %vm1474 = vcmp.lt.s32.totalorder %v43, 6
    %v1475 = vsel %vm1474, %v1472, %v1473
    %v1476 = vsel %vm1474, %v1473, %v1472
    %v1477 = vmul.f32 %v1475, %v61
    %v1478 = vmul.f32 %v1476, %v62
    %v1479 = vrot.slane %v40, 6
    %v1480 = vrot.slane %v41, 6
    %vm1481 = vcmp.lt.s32.totalorder %v43, 2
    %v1482 = vsel %vm1481, %v1479, %v1480
    %v1483 = vsel %vm1481, %v1480, %v1479
    %v1484 = vmul.f32 %v1483, %v67
    %v1485 = vmul.f32 %v1482, %v68
    %v1486 = vadd.f32 %v1477, %v1484
    %v1487 = vadd.f32 %v1478, %v1485
    %v1488 = vmul.f32 %v69, %v40
    %v1489 = vmul.f32 %v70, %v41
    %v1490 = vsub.f32 %v1486, %v1488
    %v1491 = vsub.f32 %v1487, %v1489
    %v1492 = vrot.slane %v762, 1
    %v1493 = vrot.slane %v768, 1
    %vm1494 = vcmp.lt.s32.totalorder %v43, 7
    %v1495 = vsel %vm1494, %v1492, %v1493
    %v1496 = vsel %vm1494, %v1493, %v1492
    %v1497 = vmul.f32 %v1495, %v49
    %v1498 = vmul.f32 %v1496, %v50
    %v1499 = vrot.slane %v762, 7
    %v1500 = vrot.slane %v768, 7
    %vm1501 = vcmp.lt.s32.totalorder %v43, 1
    %v1502 = vsel %vm1501, %v1499, %v1500
    %v1503 = vsel %vm1501, %v1500, %v1499
    %v1504 = vmul.f32 %v1503, %v55
    %v1505 = vmul.f32 %v1502, %v56
    %v1506 = vsub.f32 %v1497, %v1504
    %v1507 = vsub.f32 %v1498, %v1505
    %v1508 = vmul.f32 %v1463, %v1490
    %v1509 = vmul.f32 %v1469, %v1491
    %v1510 = vmul.f32 %v1506, %v1506
    %v1511 = vmul.f32 %v1507, %v1507
    %v1512 = vsub.f32 %v1508, %v1510
    %v1513 = vsub.f32 %v1509, %v1511
    %v1514 = vadd.f32 %v1512, 0.0
    %v1515 = vadd.f32 %v1513, 0.0
    %vm1516 = vcmp.lt.s32.totalorder %v43, 12
    %vm1517 = vcmp.lt.s32.totalorder %v44, 12
    %v1518 = vsel %vm1516, 1, 0
    %v1519 = vsel %vm1517, 1, 0
    %v1520 = vcvt.s32.f32 %v1518
    %v1521 = vcvt.s32.f32 %v1519
    %vm1522 = vcmp.ge.s32.totalorder %v43, 4
    %vm1523 = vcmp.ge.s32.totalorder %v44, 4
    %v1524 = vsel %vm1522, 1, 0
    %v1525 = vsel %vm1523, 1, 0
    %v1526 = vcvt.s32.f32 %v1524
    %v1527 = vcvt.s32.f32 %v1525
    %v1528 = vadd.f32 %v61, %v67
    %v1529 = vadd.f32 %v62, %v68
    %s1530 = scalar_lea.vmem [#allocation5], 256
    %v1531 = vld [vmem:[%s1530] sm:$0xff]
    %v1532 = vld [vmem:[%s1530 + $0x8] sm:$0xff]
    %v1533 = vld [vmem:[%s1530 + $0x10] sm:$0xff]
    %v1534 = vld [vmem:[%s1530 + $0x18] sm:$0xff]
    %v1535 = vld [vmem:[%s1530 + $0x20] sm:$0xff]
    %v1536 = vld [vmem:[%s1530 + $0x28] sm:$0xff]
    %v1537 = vld [vmem:[%s1530 + $0x30] sm:$0xff]
    %v1538 = vld [vmem:[%s1530 + $0x38] sm:$0xff]
    %v1539 = vld [vmem:[%s1530 + $0x40] sm:$0xff]
    %v1540 = vld [vmem:[%s1530 + $0x48] sm:$0xff]
    %v1541 = vld [vmem:[%s1530 + $0x50] sm:$0xff]
    %v1542 = vld [vmem:[%s1530 + $0x58] sm:$0xff]
    %v1543 = vld [vmem:[%s1530 + $0x60] sm:$0xff]
    %v1544 = vld [vmem:[%s1530 + $0x68] sm:$0xff]
    %v1545 = vld [vmem:[%s1530 + $0x70] sm:$0xff]
    %v1546 = vld [vmem:[%s1530 + $0x78] sm:$0xff]
    %1547 = vmatprep.subr.mxu0 0.0
    %v1548 = vand.u32 %v1531, 4294901760
    %1549 = vmatpush1.msra.mxu0 %v1548
    %1550 = vmatprep.subr.mxu0 0.0
    %v1551 = vand.u32 %v1532, 4294901760
    %1552 = vmatpush1.msra.mxu0 %v1551
    %1553 = vmatprep.subr.mxu0 0.0
    %v1554 = vand.u32 %v1533, 4294901760
    %1555 = vmatpush1.msra.mxu0 %v1554
    %1556 = vmatprep.subr.mxu0 0.0
    %v1557 = vand.u32 %v1534, 4294901760
    %1558 = vmatpush1.msra.mxu0 %v1557
    %1559 = vmatprep.subr.mxu0 0.0
    %v1560 = vand.u32 %v1535, 4294901760
    %1561 = vmatpush1.msra.mxu0 %v1560
    %1562 = vmatprep.subr.mxu0 0.0
    %v1563 = vand.u32 %v1536, 4294901760
    %1564 = vmatpush1.msra.mxu0 %v1563
    %1565 = vmatprep.subr.mxu0 0.0
    %v1566 = vand.u32 %v1537, 4294901760
    %1567 = vmatpush1.msra.mxu0 %v1566
    %1568 = vmatprep.subr.mxu0 0.0
    %v1569 = vand.u32 %v1538, 4294901760
    %1570 = vmatpush1.msra.mxu0 %v1569
    %1571 = vmatprep.subr.mxu0 0.0
    %v1572 = vand.u32 %v1539, 4294901760
    %1573 = vmatpush1.msra.mxu0 %v1572
    %1574 = vmatprep.subr.mxu0 0.0
    %v1575 = vand.u32 %v1540, 4294901760
    %1576 = vmatpush1.msra.mxu0 %v1575
    %1577 = vmatprep.subr.mxu0 0.0
    %v1578 = vand.u32 %v1541, 4294901760
    %1579 = vmatpush1.msra.mxu0 %v1578
    %1580 = vmatprep.subr.mxu0 0.0
    %v1581 = vand.u32 %v1542, 4294901760
    %1582 = vmatpush1.msra.mxu0 %v1581
    %1583 = vmatprep.subr.mxu0 0.0
    %v1584 = vand.u32 %v1543, 4294901760
    %1585 = vmatpush1.msra.mxu0 %v1584
    %1586 = vmatprep.subr.mxu0 0.0
    %v1587 = vand.u32 %v1544, 4294901760
    %1588 = vmatpush1.msra.mxu0 %v1587
    %1589 = vmatprep.subr.mxu0 0.0
    %v1590 = vand.u32 %v1545, 4294901760
    %1591 = vmatpush1.msra.mxu0 %v1590
    %1592 = vmatprep.subr.mxu0 0.0
    %v1593 = vand.u32 %v1546, 4294901760
    %1594 = vmatpush1.msra.mxu0 %v1593
    %1595 = vmatprep.subr.mxu0 0.0
    %1596 = vmatpush1.msra.mxu0 0.0
    %1597 = vmatprep.subr.mxu0 0.0
    %1598 = vmatpush1.msra.mxu0 0.0
    %1599 = vmatprep.subr.mxu0 0.0
    %1600 = vmatpush1.msra.mxu0 0.0
    %1601 = vmatprep.subr.mxu0 0.0
    %1602 = vmatpush1.msra.mxu0 0.0
    %1603 = vmatprep.subr.mxu0 0.0
    %1604 = vmatpush1.msra.mxu0 0.0
    %1605 = vmatprep.subr.mxu0 0.0
    %1606 = vmatpush1.msra.mxu0 0.0
    %1607 = vmatprep.subr.mxu0 0.0
    %1608 = vmatpush1.msra.mxu0 0.0
    %1609 = vmatprep.subr.mxu0 0.0
    %1610 = vmatpush1.msra.mxu0 0.0
    %1611 = vmatprep.subr.mxu0 0.0
    %1612 = vmatpush1.msra.mxu0 0.0
    %1613 = vmatprep.subr.mxu0 0.0
    %1614 = vmatpush1.msra.mxu0 0.0
    %1615 = vmatprep.subr.mxu0 0.0
    %1616 = vmatpush1.msra.mxu0 0.0
    %1617 = vmatprep.subr.mxu0 0.0
    %1618 = vmatpush1.msra.mxu0 0.0
    %1619 = vmatprep.subr.mxu0 0.0
    %1620 = vmatpush1.msra.mxu0 0.0
    %1621 = vmatprep.subr.mxu0 0.0
    %1622 = vmatpush1.msra.mxu0 0.0
    %1623 = vmatprep.subr.mxu0 0.0
    %1624 = vmatpush1.msra.mxu0 0.0
    %1625 = vmatprep.subr.mxu0 0.0
    %1626 = vmatpush1.msra.mxu0 0.0
    %1627 = vmatprep.mubr.f32.mxu0 0.0
    %v1628 = vand.u32 %v40, 4294901760
    %v1629 = vsub.f32 %v40, %v1628
    %v1630 = vand.u32 %v1629, 4294901760
    %v1631 = vsub.f32 %v1629, %v1630
    %v1632 = vand.u32 %v1631, 4294901760
    %1633 = vmatmul.mubr.f32.gmra.mrb[0].mxu0 %v1632
    %v1634 = vpop.f32.mrb[0].mxu0
    %v1635 = vadd.f32 0.0, %v1634
    %v1636 = vpop.f32.mrb[0].mxu0
    %1637 = vmatprep.mubr.f32.mxu0 0.0
    %v1638 = vand.u32 %v41, 4294901760
    %v1639 = vsub.f32 %v41, %v1638
    %v1640 = vand.u32 %v1639, 4294901760
    %v1641 = vsub.f32 %v1639, %v1640
    %v1642 = vand.u32 %v1641, 4294901760
    %1643 = vmatmul.mubr.f32.gmra.mrb[0].mxu0 %v1642
    %v1644 = vpop.f32.mrb[0].mxu0
    %v1645 = vadd.f32 0.0, %v1644
    %v1646 = vpop.f32.mrb[0].mxu0
    %1647 = vdwg.mxu0
    %1648 = vmatprep.subr.mxu0 0.0
    %v1649 = vand.u32 %v1531, 4294901760
    %v1650 = vsub.f32 %v1531, %v1649
    %v1651 = vand.u32 %v1650, 4294901760
    %v1652 = vsub.f32 %v1650, %v1651
    %v1653 = vand.u32 %v1652, 4294901760
    %1654 = vmatpush1.msra.mxu0 %v1653
    %1655 = vmatprep.subr.mxu0 0.0
    %v1656 = vand.u32 %v1532, 4294901760
    %v1657 = vsub.f32 %v1532, %v1656
    %v1658 = vand.u32 %v1657, 4294901760
    %v1659 = vsub.f32 %v1657, %v1658
    %v1660 = vand.u32 %v1659, 4294901760
    %1661 = vmatpush1.msra.mxu0 %v1660
    %1662 = vmatprep.subr.mxu0 0.0
    %v1663 = vand.u32 %v1533, 4294901760
    %v1664 = vsub.f32 %v1533, %v1663
    %v1665 = vand.u32 %v1664, 4294901760
    %v1666 = vsub.f32 %v1664, %v1665
    %v1667 = vand.u32 %v1666, 4294901760
    %1668 = vmatpush1.msra.mxu0 %v1667
    %1669 = vmatprep.subr.mxu0 0.0
    %v1670 = vand.u32 %v1534, 4294901760
    %v1671 = vsub.f32 %v1534, %v1670
    %v1672 = vand.u32 %v1671, 4294901760
    %v1673 = vsub.f32 %v1671, %v1672
    %v1674 = vand.u32 %v1673, 4294901760
    %1675 = vmatpush1.msra.mxu0 %v1674
    %1676 = vmatprep.subr.mxu0 0.0
    %v1677 = vand.u32 %v1535, 4294901760
    %v1678 = vsub.f32 %v1535, %v1677
    %v1679 = vand.u32 %v1678, 4294901760
    %v1680 = vsub.f32 %v1678, %v1679
    %v1681 = vand.u32 %v1680, 4294901760
    %1682 = vmatpush1.msra.mxu0 %v1681
    %1683 = vmatprep.subr.mxu0 0.0
    %v1684 = vand.u32 %v1536, 4294901760
    %v1685 = vsub.f32 %v1536, %v1684
    %v1686 = vand.u32 %v1685, 4294901760
    %v1687 = vsub.f32 %v1685, %v1686
    %v1688 = vand.u32 %v1687, 4294901760
    %1689 = vmatpush1.msra.mxu0 %v1688
    %1690 = vmatprep.subr.mxu0 0.0
    %v1691 = vand.u32 %v1537, 4294901760
    %v1692 = vsub.f32 %v1537, %v1691
    %v1693 = vand.u32 %v1692, 4294901760
    %v1694 = vsub.f32 %v1692, %v1693
    %v1695 = vand.u32 %v1694, 4294901760
    %1696 = vmatpush1.msra.mxu0 %v1695
    %1697 = vmatprep.subr.mxu0 0.0
    %v1698 = vand.u32 %v1538, 4294901760
    %v1699 = vsub.f32 %v1538, %v1698
    %v1700 = vand.u32 %v1699, 4294901760
    %v1701 = vsub.f32 %v1699, %v1700
    %v1702 = vand.u32 %v1701, 4294901760
    %1703 = vmatpush1.msra.mxu0 %v1702
    %1704 = vmatprep.subr.mxu0 0.0
    %v1705 = vand.u32 %v1539, 4294901760
    %v1706 = vsub.f32 %v1539, %v1705
    %v1707 = vand.u32 %v1706, 4294901760
    %v1708 = vsub.f32 %v1706, %v1707
    %v1709 = vand.u32 %v1708, 4294901760
    %1710 = vmatpush1.msra.mxu0 %v1709
    %1711 = vmatprep.subr.mxu0 0.0
    %v1712 = vand.u32 %v1540, 4294901760
    %v1713 = vsub.f32 %v1540, %v1712
    %v1714 = vand.u32 %v1713, 4294901760
    %v1715 = vsub.f32 %v1713, %v1714
    %v1716 = vand.u32 %v1715, 4294901760
    %1717 = vmatpush1.msra.mxu0 %v1716
    %1718 = vmatprep.subr.mxu0 0.0
    %v1719 = vand.u32 %v1541, 4294901760
    %v1720 = vsub.f32 %v1541, %v1719
    %v1721 = vand.u32 %v1720, 4294901760
    %v1722 = vsub.f32 %v1720, %v1721
    %v1723 = vand.u32 %v1722, 4294901760
    %1724 = vmatpush1.msra.mxu0 %v1723
    %1725 = vmatprep.subr.mxu0 0.0
    %v1726 = vand.u32 %v1542, 4294901760
    %v1727 = vsub.f32 %v1542, %v1726
    %v1728 = vand.u32 %v1727, 4294901760
    %v1729 = vsub.f32 %v1727, %v1728
    %v1730 = vand.u32 %v1729, 4294901760
    %1731 = vmatpush1.msra.mxu0 %v1730
    %1732 = vmatprep.subr.mxu0 0.0
    %v1733 = vand.u32 %v1543, 4294901760
    %v1734 = vsub.f32 %v1543, %v1733
    %v1735 = vand.u32 %v1734, 4294901760
    %v1736 = vsub.f32 %v1734, %v1735
    %v1737 = vand.u32 %v1736, 4294901760
    %1738 = vmatpush1.msra.mxu0 %v1737
    %1739 = vmatprep.subr.mxu0 0.0
    %v1740 = vand.u32 %v1544, 4294901760
    %v1741 = vsub.f32 %v1544, %v1740
    %v1742 = vand.u32 %v1741, 4294901760
    %v1743 = vsub.f32 %v1741, %v1742
    %v1744 = vand.u32 %v1743, 4294901760
    %1745 = vmatpush1.msra.mxu0 %v1744
    %1746 = vmatprep.subr.mxu0 0.0
    %v1747 = vand.u32 %v1545, 4294901760
    %v1748 = vsub.f32 %v1545, %v1747
    %v1749 = vand.u32 %v1748, 4294901760
    %v1750 = vsub.f32 %v1748, %v1749
    %v1751 = vand.u32 %v1750, 4294901760
    %1752 = vmatpush1.msra.mxu0 %v1751
    %1753 = vmatprep.subr.mxu0 0.0
    %v1754 = vand.u32 %v1546, 4294901760
    %v1755 = vsub.f32 %v1546, %v1754
    %v1756 = vand.u32 %v1755, 4294901760
    %v1757 = vsub.f32 %v1755, %v1756
    %v1758 = vand.u32 %v1757, 4294901760
    %1759 = vmatpush1.msra.mxu0 %v1758
    %1760 = vmatprep.subr.mxu0 0.0
    %1761 = vmatpush1.msra.mxu0 0.0
    %1762 = vmatprep.subr.mxu0 0.0
    %1763 = vmatpush1.msra.mxu0 0.0
    %1764 = vmatprep.subr.mxu0 0.0
    %1765 = vmatpush1.msra.mxu0 0.0
    %1766 = vmatprep.subr.mxu0 0.0
    %1767 = vmatpush1.msra.mxu0 0.0
    %1768 = vmatprep.subr.mxu0 0.0
    %1769 = vmatpush1.msra.mxu0 0.0
    %1770 = vmatprep.subr.mxu0 0.0
    %1771 = vmatpush1.msra.mxu0 0.0
    %1772 = vmatprep.subr.mxu0 0.0
    %1773 = vmatpush1.msra.mxu0 0.0
    %1774 = vmatprep.subr.mxu0 0.0
    %1775 = vmatpush1.msra.mxu0 0.0
    %1776 = vmatprep.subr.mxu0 0.0
    %1777 = vmatpush1.msra.mxu0 0.0
    %1778 = vmatprep.subr.mxu0 0.0
    %1779 = vmatpush1.msra.mxu0 0.0
    %1780 = vmatprep.subr.mxu0 0.0
    %1781 = vmatpush1.msra.mxu0 0.0
    %1782 = vmatprep.subr.mxu0 0.0
    %1783 = vmatpush1.msra.mxu0 0.0
    %1784 = vmatprep.subr.mxu0 0.0
    %1785 = vmatpush1.msra.mxu0 0.0
    %1786 = vmatprep.subr.mxu0 0.0
    %1787 = vmatpush1.msra.mxu0 0.0
    %1788 = vmatprep.subr.mxu0 0.0
    %1789 = vmatpush1.msra.mxu0 0.0
    %1790 = vmatprep.subr.mxu0 0.0
    %1791 = vmatpush1.msra.mxu0 0.0
    %1792 = vmatprep.mubr.f32.mxu0 0.0
    %v1793 = vand.u32 %v40, 4294901760
    %1794 = vmatmul.mubr.f32.gmra.mrb[0].mxu0 %v1793
    %v1795 = vpop.f32.mrb[0].mxu0
    %v1796 = vadd.f32 %v1635, %v1795
    %v1797 = vpop.f32.mrb[0].mxu0
    %1798 = vmatprep.mubr.f32.mxu0 0.0
    %v1799 = vand.u32 %v41, 4294901760
    %1800 = vmatmul.mubr.f32.gmra.mrb[0].mxu0 %v1799
    %v1801 = vpop.f32.mrb[0].mxu0
    %v1802 = vadd.f32 %v1645, %v1801
    %v1803 = vpop.f32.mrb[0].mxu0
    %1804 = vdwg.mxu0
    %1805 = vmatprep.subr.mxu0 0.0
    %v1806 = vand.u32 %v1531, 4294901760
    %v1807 = vsub.f32 %v1531, %v1806
    %1808 = vmatpush1.msra.mxu0 %v1807
    %1809 = vmatprep.subr.mxu0 0.0
    %v1810 = vand.u32 %v1532, 4294901760
    %v1811 = vsub.f32 %v1532, %v1810
    %1812 = vmatpush1.msra.mxu0 %v1811
    %1813 = vmatprep.subr.mxu0 0.0
    %v1814 = vand.u32 %v1533, 4294901760
    %v1815 = vsub.f32 %v1533, %v1814
    %1816 = vmatpush1.msra.mxu0 %v1815
    %1817 = vmatprep.subr.mxu0 0.0
    %v1818 = vand.u32 %v1534, 4294901760
    %v1819 = vsub.f32 %v1534, %v1818
    %1820 = vmatpush1.msra.mxu0 %v1819
    %1821 = vmatprep.subr.mxu0 0.0
    %v1822 = vand.u32 %v1535, 4294901760
    %v1823 = vsub.f32 %v1535, %v1822
    %1824 = vmatpush1.msra.mxu0 %v1823
    %1825 = vmatprep.subr.mxu0 0.0
    %v1826 = vand.u32 %v1536, 4294901760
    %v1827 = vsub.f32 %v1536, %v1826
    %1828 = vmatpush1.msra.mxu0 %v1827
    %1829 = vmatprep.subr.mxu0 0.0
    %v1830 = vand.u32 %v1537, 4294901760
    %v1831 = vsub.f32 %v1537, %v1830
    %1832 = vmatpush1.msra.mxu0 %v1831
    %1833 = vmatprep.subr.mxu0 0.0
    %v1834 = vand.u32 %v1538, 4294901760
    %v1835 = vsub.f32 %v1538, %v1834
    %1836 = vmatpush1.msra.mxu0 %v1835
    %1837 = vmatprep.subr.mxu0 0.0
    %v1838 = vand.u32 %v1539, 4294901760
    %v1839 = vsub.f32 %v1539, %v1838
    %1840 = vmatpush1.msra.mxu0 %v1839
    %1841 = vmatprep.subr.mxu0 0.0
    %v1842 = vand.u32 %v1540, 4294901760
    %v1843 = vsub.f32 %v1540, %v1842
    %1844 = vmatpush1.msra.mxu0 %v1843
    %1845 = vmatprep.subr.mxu0 0.0
    %v1846 = vand.u32 %v1541, 4294901760
    %v1847 = vsub.f32 %v1541, %v1846
    %1848 = vmatpush1.msra.mxu0 %v1847
    %1849 = vmatprep.subr.mxu0 0.0
    %v1850 = vand.u32 %v1542, 4294901760
    %v1851 = vsub.f32 %v1542, %v1850
    %1852 = vmatpush1.msra.mxu0 %v1851
    %1853 = vmatprep.subr.mxu0 0.0
    %v1854 = vand.u32 %v1543, 4294901760
    %v1855 = vsub.f32 %v1543, %v1854
    %1856 = vmatpush1.msra.mxu0 %v1855
    %1857 = vmatprep.subr.mxu0 0.0
    %v1858 = vand.u32 %v1544, 4294901760
    %v1859 = vsub.f32 %v1544, %v1858
    %1860 = vmatpush1.msra.mxu0 %v1859
    %1861 = vmatprep.subr.mxu0 0.0
    %v1862 = vand.u32 %v1545, 4294901760
    %v1863 = vsub.f32 %v1545, %v1862
    %1864 = vmatpush1.msra.mxu0 %v1863
    %1865 = vmatprep.subr.mxu0 0.0
    %v1866 = vand.u32 %v1546, 4294901760
    %v1867 = vsub.f32 %v1546, %v1866
    %1868 = vmatpush1.msra.mxu0 %v1867
    %1869 = vmatprep.subr.mxu0 0.0
    %1870 = vmatpush1.msra.mxu0 0.0
    %1871 = vmatprep.subr.mxu0 0.0
    %1872 = vmatpush1.msra.mxu0 0.0
    %1873 = vmatprep.subr.mxu0 0.0
    %1874 = vmatpush1.msra.mxu0 0.0
    %1875 = vmatprep.subr.mxu0 0.0
    %1876 = vmatpush1.msra.mxu0 0.0
    %1877 = vmatprep.subr.mxu0 0.0
    %1878 = vmatpush1.msra.mxu0 0.0
    %1879 = vmatprep.subr.mxu0 0.0
    %1880 = vmatpush1.msra.mxu0 0.0
    %1881 = vmatprep.subr.mxu0 0.0
    %1882 = vmatpush1.msra.mxu0 0.0
    %1883 = vmatprep.subr.mxu0 0.0
    %1884 = vmatpush1.msra.mxu0 0.0
    %1885 = vmatprep.subr.mxu0 0.0
    %1886 = vmatpush1.msra.mxu0 0.0
    %1887 = vmatprep.subr.mxu0 0.0
    %1888 = vmatpush1.msra.mxu0 0.0
    %1889 = vmatprep.subr.mxu0 0.0
    %1890 = vmatpush1.msra.mxu0 0.0
    %1891 = vmatprep.subr.mxu0 0.0
    %1892 = vmatpush1.msra.mxu0 0.0
    %1893 = vmatprep.subr.mxu0 0.0
    %1894 = vmatpush1.msra.mxu0 0.0
    %1895 = vmatprep.subr.mxu0 0.0
    %1896 = vmatpush1.msra.mxu0 0.0
    %1897 = vmatprep.subr.mxu0 0.0
    %1898 = vmatpush1.msra.mxu0 0.0
    %1899 = vmatprep.subr.mxu0 0.0
    %1900 = vmatpush1.msra.mxu0 0.0
    %1901 = vmatprep.mubr.f32.mxu0 0.0
    %v1902 = vand.u32 %v40, 4294901760
    %v1903 = vsub.f32 %v40, %v1902
    %1904 = vmatmul.mubr.f32.gmra.mrb[0].mxu0 %v1903
    %v1905 = vpop.f32.mrb[0].mxu0
    %v1906 = vadd.f32 %v1796, %v1905
    %v1907 = vpop.f32.mrb[0].mxu0
    %1908 = vmatprep.mubr.f32.mxu0 0.0
    %v1909 = vand.u32 %v41, 4294901760
    %v1910 = vsub.f32 %v41, %v1909
    %1911 = vmatmul.mubr.f32.gmra.mrb[0].mxu0 %v1910
    %v1912 = vpop.f32.mrb[0].mxu0
    %v1913 = vadd.f32 %v1802, %v1912
    %v1914 = vpop.f32.mrb[0].mxu0
    %1915 = vdwg.mxu0
    %1916 = vmatprep.subr.mxu0 0.0
    %v1917 = vand.u32 %v1531, 4294901760
    %1918 = vmatpush1.msra.mxu0 %v1917
    %1919 = vmatprep.subr.mxu0 0.0
    %v1920 = vand.u32 %v1532, 4294901760
    %1921 = vmatpush1.msra.mxu0 %v1920
    %1922 = vmatprep.subr.mxu0 0.0
    %v1923 = vand.u32 %v1533, 4294901760
    %1924 = vmatpush1.msra.mxu0 %v1923
    %1925 = vmatprep.subr.mxu0 0.0
    %v1926 = vand.u32 %v1534, 4294901760
    %1927 = vmatpush1.msra.mxu0 %v1926
    %1928 = vmatprep.subr.mxu0 0.0
    %v1929 = vand.u32 %v1535, 4294901760
    %1930 = vmatpush1.msra.mxu0 %v1929
    %1931 = vmatprep.subr.mxu0 0.0
    %v1932 = vand.u32 %v1536, 4294901760
    %1933 = vmatpush1.msra.mxu0 %v1932
    %1934 = vmatprep.subr.mxu0 0.0
    %v1935 = vand.u32 %v1537, 4294901760
    %1936 = vmatpush1.msra.mxu0 %v1935
    %1937 = vmatprep.subr.mxu0 0.0
    %v1938 = vand.u32 %v1538, 4294901760
    %1939 = vmatpush1.msra.mxu0 %v1938
    %1940 = vmatprep.subr.mxu0 0.0
    %v1941 = vand.u32 %v1539, 4294901760
    %1942 = vmatpush1.msra.mxu0 %v1941
    %1943 = vmatprep.subr.mxu0 0.0
    %v1944 = vand.u32 %v1540, 4294901760
    %1945 = vmatpush1.msra.mxu0 %v1944
    %1946 = vmatprep.subr.mxu0 0.0
    %v1947 = vand.u32 %v1541, 4294901760
    %1948 = vmatpush1.msra.mxu0 %v1947
    %1949 = vmatprep.subr.mxu0 0.0
    %v1950 = vand.u32 %v1542, 4294901760
    %1951 = vmatpush1.msra.mxu0 %v1950
    %1952 = vmatprep.subr.mxu0 0.0
    %v1953 = vand.u32 %v1543, 4294901760
    %1954 = vmatpush1.msra.mxu0 %v1953
    %1955 = vmatprep.subr.mxu0 0.0
    %v1956 = vand.u32 %v1544, 4294901760
    %1957 = vmatpush1.msra.mxu0 %v1956
    %1958 = vmatprep.subr.mxu0 0.0
    %v1959 = vand.u32 %v1545, 4294901760
    %1960 = vmatpush1.msra.mxu0 %v1959
    %1961 = vmatprep.subr.mxu0 0.0
    %v1962 = vand.u32 %v1546, 4294901760
    %1963 = vmatpush1.msra.mxu0 %v1962
    %1964 = vmatprep.subr.mxu0 0.0
    %1965 = vmatpush1.msra.mxu0 0.0
    %1966 = vmatprep.subr.mxu0 0.0
    %1967 = vmatpush1.msra.mxu0 0.0
    %1968 = vmatprep.subr.mxu0 0.0
    %1969 = vmatpush1.msra.mxu0 0.0
    %1970 = vmatprep.subr.mxu0 0.0
    %1971 = vmatpush1.msra.mxu0 0.0
    %1972 = vmatprep.subr.mxu0 0.0
    %1973 = vmatpush1.msra.mxu0 0.0
    %1974 = vmatprep.subr.mxu0 0.0
    %1975 = vmatpush1.msra.mxu0 0.0
    %1976 = vmatprep.subr.mxu0 0.0
    %1977 = vmatpush1.msra.mxu0 0.0
    %1978 = vmatprep.subr.mxu0 0.0
    %1979 = vmatpush1.msra.mxu0 0.0
    %1980 = vmatprep.subr.mxu0 0.0
    %1981 = vmatpush1.msra.mxu0 0.0
    %1982 = vmatprep.subr.mxu0 0.0
    %1983 = vmatpush1.msra.mxu0 0.0
    %1984 = vmatprep.subr.mxu0 0.0
    %1985 = vmatpush1.msra.mxu0 0.0
    %1986 = vmatprep.subr.mxu0 0.0
    %1987 = vmatpush1.msra.mxu0 0.0
    %1988 = vmatprep.subr.mxu0 0.0
    %1989 = vmatpush1.msra.mxu0 0.0
    %1990 = vmatprep.subr.mxu0 0.0
    %1991 = vmatpush1.msra.mxu0 0.0
    %1992 = vmatprep.subr.mxu0 0.0
    %1993 = vmatpush1.msra.mxu0 0.0
    %1994 = vmatprep.subr.mxu0 0.0
    %1995 = vmatpush1.msra.mxu0 0.0
    %1996 = vmatprep.mubr.f32.mxu0 0.0
    %v1997 = vand.u32 %v40, 4294901760
    %v1998 = vsub.f32 %v40, %v1997
    %v1999 = vand.u32 %v1998, 4294901760
    %2000 = vmatmul.mubr.f32.gmra.mrb[0].mxu0 %v1999
    %v2001 = vpop.f32.mrb[0].mxu0
    %v2002 = vadd.f32 %v1906, %v2001
    %v2003 = vpop.f32.mrb[0].mxu0
    %2004 = vmatprep.mubr.f32.mxu0 0.0
    %v2005 = vand.u32 %v41, 4294901760
    %v2006 = vsub.f32 %v41, %v2005
    %v2007 = vand.u32 %v2006, 4294901760
    %2008 = vmatmul.mubr.f32.gmra.mrb[0].mxu0 %v2007
    %v2009 = vpop.f32.mrb[0].mxu0
    %v2010 = vadd.f32 %v1913, %v2009
    %v2011 = vpop.f32.mrb[0].mxu0
    %2012 = vdwg.mxu0
    %2013 = vmatprep.subr.mxu0 0.0
    %v2014 = vand.u32 %v1531, 4294901760
    %v2015 = vsub.f32 %v1531, %v2014
    %v2016 = vand.u32 %v2015, 4294901760
    %2017 = vmatpush1.msra.mxu0 %v2016
    %2018 = vmatprep.subr.mxu0 0.0
    %v2019 = vand.u32 %v1532, 4294901760
    %v2020 = vsub.f32 %v1532, %v2019
    %v2021 = vand.u32 %v2020, 4294901760
    %2022 = vmatpush1.msra.mxu0 %v2021
    %2023 = vmatprep.subr.mxu0 0.0
    %v2024 = vand.u32 %v1533, 4294901760
    %v2025 = vsub.f32 %v1533, %v2024
    %v2026 = vand.u32 %v2025, 4294901760
    %2027 = vmatpush1.msra.mxu0 %v2026
    %2028 = vmatprep.subr.mxu0 0.0
    %v2029 = vand.u32 %v1534, 4294901760
    %v2030 = vsub.f32 %v1534, %v2029
    %v2031 = vand.u32 %v2030, 4294901760
    %2032 = vmatpush1.msra.mxu0 %v2031
    %2033 = vmatprep.subr.mxu0 0.0
    %v2034 = vand.u32 %v1535, 4294901760
    %v2035 = vsub.f32 %v1535, %v2034
    %v2036 = vand.u32 %v2035, 4294901760
    %2037 = vmatpush1.msra.mxu0 %v2036
    %2038 = vmatprep.subr.mxu0 0.0
    %v2039 = vand.u32 %v1536, 4294901760
    %v2040 = vsub.f32 %v1536, %v2039
    %v2041 = vand.u32 %v2040, 4294901760
    %2042 = vmatpush1.msra.mxu0 %v2041
    %2043 = vmatprep.subr.mxu0 0.0
    %v2044 = vand.u32 %v1537, 4294901760
    %v2045 = vsub.f32 %v1537, %v2044
    %v2046 = vand.u32 %v2045, 4294901760
    %2047 = vmatpush1.msra.mxu0 %v2046
    %2048 = vmatprep.subr.mxu0 0.0
    %v2049 = vand.u32 %v1538, 4294901760
    %v2050 = vsub.f32 %v1538, %v2049
    %v2051 = vand.u32 %v2050, 4294901760
    %2052 = vmatpush1.msra.mxu0 %v2051
    %2053 = vmatprep.subr.mxu0 0.0
    %v2054 = vand.u32 %v1539, 4294901760
    %v2055 = vsub.f32 %v1539, %v2054
    %v2056 = vand.u32 %v2055, 4294901760
    %2057 = vmatpush1.msra.mxu0 %v2056
    %2058 = vmatprep.subr.mxu0 0.0
    %v2059 = vand.u32 %v1540, 4294901760
    %v2060 = vsub.f32 %v1540, %v2059
    %v2061 = vand.u32 %v2060, 4294901760
    %2062 = vmatpush1.msra.mxu0 %v2061
    %2063 = vmatprep.subr.mxu0 0.0
    %v2064 = vand.u32 %v1541, 4294901760
    %v2065 = vsub.f32 %v1541, %v2064
    %v2066 = vand.u32 %v2065, 4294901760
    %2067 = vmatpush1.msra.mxu0 %v2066
    %2068 = vmatprep.subr.mxu0 0.0
    %v2069 = vand.u32 %v1542, 4294901760
    %v2070 = vsub.f32 %v1542, %v2069
    %v2071 = vand.u32 %v2070, 4294901760
    %2072 = vmatpush1.msra.mxu0 %v2071
    %2073 = vmatprep.subr.mxu0 0.0
    %v2074 = vand.u32 %v1543, 4294901760
    %v2075 = vsub.f32 %v1543, %v2074
    %v2076 = vand.u32 %v2075, 4294901760
    %2077 = vmatpush1.msra.mxu0 %v2076
    %2078 = vmatprep.subr.mxu0 0.0
    %v2079 = vand.u32 %v1544, 4294901760
    %v2080 = vsub.f32 %v1544, %v2079
    %v2081 = vand.u32 %v2080, 4294901760
    %2082 = vmatpush1.msra.mxu0 %v2081
    %2083 = vmatprep.subr.mxu0 0.0
    %v2084 = vand.u32 %v1545, 4294901760
    %v2085 = vsub.f32 %v1545, %v2084
    %v2086 = vand.u32 %v2085, 4294901760
    %2087 = vmatpush1.msra.mxu0 %v2086
    %2088 = vmatprep.subr.mxu0 0.0
    %v2089 = vand.u32 %v1546, 4294901760
    %v2090 = vsub.f32 %v1546, %v2089
    %v2091 = vand.u32 %v2090, 4294901760
    %2092 = vmatpush1.msra.mxu0 %v2091
    %2093 = vmatprep.subr.mxu0 0.0
    %2094 = vmatpush1.msra.mxu0 0.0
    %2095 = vmatprep.subr.mxu0 0.0
    %2096 = vmatpush1.msra.mxu0 0.0
    %2097 = vmatprep.subr.mxu0 0.0
    %2098 = vmatpush1.msra.mxu0 0.0
    %2099 = vmatprep.subr.mxu0 0.0
    %2100 = vmatpush1.msra.mxu0 0.0
    %2101 = vmatprep.subr.mxu0 0.0
    %2102 = vmatpush1.msra.mxu0 0.0
    %2103 = vmatprep.subr.mxu0 0.0
    %2104 = vmatpush1.msra.mxu0 0.0
    %2105 = vmatprep.subr.mxu0 0.0
    %2106 = vmatpush1.msra.mxu0 0.0
    %2107 = vmatprep.subr.mxu0 0.0
    %2108 = vmatpush1.msra.mxu0 0.0
    %2109 = vmatprep.subr.mxu0 0.0
    %2110 = vmatpush1.msra.mxu0 0.0
    %2111 = vmatprep.subr.mxu0 0.0
    %2112 = vmatpush1.msra.mxu0 0.0
    %2113 = vmatprep.subr.mxu0 0.0
    %2114 = vmatpush1.msra.mxu0 0.0
    %2115 = vmatprep.subr.mxu0 0.0
    %2116 = vmatpush1.msra.mxu0 0.0
    %2117 = vmatprep.subr.mxu0 0.0
    %2118 = vmatpush1.msra.mxu0 0.0
    %2119 = vmatprep.subr.mxu0 0.0
    %2120 = vmatpush1.msra.mxu0 0.0
    %2121 = vmatprep.subr.mxu0 0.0
    %2122 = vmatpush1.msra.mxu0 0.0
    %2123 = vmatprep.subr.mxu0 0.0
    %2124 = vmatpush1.msra.mxu0 0.0
    %2125 = vmatprep.mubr.f32.mxu0 0.0
    %v2126 = vand.u32 %v40, 4294901760
    %2127 = vmatmul.mubr.f32.gmra.mrb[0].mxu0 %v2126
    %v2128 = vpop.f32.mrb[0].mxu0
    %v2129 = vadd.f32 %v2002, %v2128
    %v2130 = vpop.f32.mrb[0].mxu0
    %2131 = vmatprep.mubr.f32.mxu0 0.0
    %v2132 = vand.u32 %v41, 4294901760
    %2133 = vmatmul.mubr.f32.gmra.mrb[0].mxu0 %v2132
    %v2134 = vpop.f32.mrb[0].mxu0
    %v2135 = vadd.f32 %v2010, %v2134
    %v2136 = vpop.f32.mrb[0].mxu0
    %2137 = vdwg.mxu0
    %2138 = vmatprep.subr.mxu0 0.0
    %v2139 = vand.u32 %v1531, 4294901760
    %2140 = vmatpush1.msra.mxu0 %v2139
    %2141 = vmatprep.subr.mxu0 0.0
    %v2142 = vand.u32 %v1532, 4294901760
    %2143 = vmatpush1.msra.mxu0 %v2142
    %2144 = vmatprep.subr.mxu0 0.0
    %v2145 = vand.u32 %v1533, 4294901760
    %2146 = vmatpush1.msra.mxu0 %v2145
    %2147 = vmatprep.subr.mxu0 0.0
    %v2148 = vand.u32 %v1534, 4294901760
    %2149 = vmatpush1.msra.mxu0 %v2148
    %2150 = vmatprep.subr.mxu0 0.0
    %v2151 = vand.u32 %v1535, 4294901760
    %2152 = vmatpush1.msra.mxu0 %v2151
    %2153 = vmatprep.subr.mxu0 0.0
    %v2154 = vand.u32 %v1536, 4294901760
    %2155 = vmatpush1.msra.mxu0 %v2154
    %2156 = vmatprep.subr.mxu0 0.0
    %v2157 = vand.u32 %v1537, 4294901760
    %2158 = vmatpush1.msra.mxu0 %v2157
    %2159 = vmatprep.subr.mxu0 0.0
    %v2160 = vand.u32 %v1538, 4294901760
    %2161 = vmatpush1.msra.mxu0 %v2160
    %2162 = vmatprep.subr.mxu0 0.0
    %v2163 = vand.u32 %v1539, 4294901760
    %2164 = vmatpush1.msra.mxu0 %v2163
    %2165 = vmatprep.subr.mxu0 0.0
    %v2166 = vand.u32 %v1540, 4294901760
    %2167 = vmatpush1.msra.mxu0 %v2166
    %2168 = vmatprep.subr.mxu0 0.0
    %v2169 = vand.u32 %v1541, 4294901760
    %2170 = vmatpush1.msra.mxu0 %v2169
    %2171 = vmatprep.subr.mxu0 0.0
    %v2172 = vand.u32 %v1542, 4294901760
    %2173 = vmatpush1.msra.mxu0 %v2172
    %2174 = vmatprep.subr.mxu0 0.0
    %v2175 = vand.u32 %v1543, 4294901760
    %2176 = vmatpush1.msra.mxu0 %v2175
    %2177 = vmatprep.subr.mxu0 0.0
    %v2178 = vand.u32 %v1544, 4294901760
    %2179 = vmatpush1.msra.mxu0 %v2178
    %2180 = vmatprep.subr.mxu0 0.0
    %v2181 = vand.u32 %v1545, 4294901760
    %2182 = vmatpush1.msra.mxu0 %v2181
    %2183 = vmatprep.subr.mxu0 0.0
    %v2184 = vand.u32 %v1546, 4294901760
    %2185 = vmatpush1.msra.mxu0 %v2184
    %2186 = vmatprep.subr.mxu0 0.0
    %2187 = vmatpush1.msra.mxu0 0.0
    %2188 = vmatprep.subr.mxu0 0.0
    %2189 = vmatpush1.msra.mxu0 0.0
    %2190 = vmatprep.subr.mxu0 0.0
    %2191 = vmatpush1.msra.mxu0 0.0
    %2192 = vmatprep.subr.mxu0 0.0
    %2193 = vmatpush1.msra.mxu0 0.0
    %2194 = vmatprep.subr.mxu0 0.0
    %2195 = vmatpush1.msra.mxu0 0.0
    %2196 = vmatprep.subr.mxu0 0.0
    %2197 = vmatpush1.msra.mxu0 0.0
    %2198 = vmatprep.subr.mxu0 0.0
    %2199 = vmatpush1.msra.mxu0 0.0
    %2200 = vmatprep.subr.mxu0 0.0
    %2201 = vmatpush1.msra.mxu0 0.0
    %2202 = vmatprep.subr.mxu0 0.0
    %2203 = vmatpush1.msra.mxu0 0.0
    %2204 = vmatprep.subr.mxu0 0.0
    %2205 = vmatpush1.msra.mxu0 0.0
    %2206 = vmatprep.subr.mxu0 0.0
    %2207 = vmatpush1.msra.mxu0 0.0
    %2208 = vmatprep.subr.mxu0 0.0
    %2209 = vmatpush1.msra.mxu0 0.0
    %2210 = vmatprep.subr.mxu0 0.0
    %2211 = vmatpush1.msra.mxu0 0.0
    %2212 = vmatprep.subr.mxu0 0.0
    %2213 = vmatpush1.msra.mxu0 0.0
    %2214 = vmatprep.subr.mxu0 0.0
    %2215 = vmatpush1.msra.mxu0 0.0
    %2216 = vmatprep.subr.mxu0 0.0
    %2217 = vmatpush1.msra.mxu0 0.0
    %2218 = vmatprep.mubr.f32.mxu0 0.0
    %v2219 = vand.u32 %v40, 4294901760
    %2220 = vmatmul.mubr.f32.gmra.mrb[0].mxu0 %v2219
    %v2221 = vpop.f32.mrb[0].mxu0
    %v2222 = vadd.f32 %v2129, %v2221
    %v2223 = vpop.f32.mrb[0].mxu0
    %2224 = vmatprep.mubr.f32.mxu0 0.0
    %v2225 = vand.u32 %v41, 4294901760
    %2226 = vmatmul.mubr.f32.gmra.mrb[0].mxu0 %v2225
    %v2227 = vpop.f32.mrb[0].mxu0
    %v2228 = vadd.f32 %v2135, %v2227
    %v2229 = vpop.f32.mrb[0].mxu0
    %2230 = vdwg.mxu0
    %s2231 = scalar_lea.vmem [#allocation5], 384
    %v2232 = vld [vmem:[%s2231] sm:$0xff]
    %v2233 = vld [vmem:[%s2231 + $0x8] sm:$0xff]
    %v2234 = vld [vmem:[%s2231 + $0x10] sm:$0xff]
    %v2235 = vld [vmem:[%s2231 + $0x18] sm:$0xff]
    %v2236 = vld [vmem:[%s2231 + $0x20] sm:$0xff]
    %v2237 = vld [vmem:[%s2231 + $0x28] sm:$0xff]
    %v2238 = vld [vmem:[%s2231 + $0x30] sm:$0xff]
    %v2239 = vld [vmem:[%s2231 + $0x38] sm:$0xff]
    %v2240 = vld [vmem:[%s2231 + $0x40] sm:$0xff]
    %v2241 = vld [vmem:[%s2231 + $0x48] sm:$0xff]
    %v2242 = vld [vmem:[%s2231 + $0x50] sm:$0xff]
    %v2243 = vld [vmem:[%s2231 + $0x58] sm:$0xff]
    %v2244 = vld [vmem:[%s2231 + $0x60] sm:$0xff]
    %v2245 = vld [vmem:[%s2231 + $0x68] sm:$0xff]
    %v2246 = vld [vmem:[%s2231 + $0x70] sm:$0xff]
    %v2247 = vld [vmem:[%s2231 + $0x78] sm:$0xff]
    %2248 = vmatprep.subr.mxu0 0.0
    %v2249 = vand.u32 %v2232, 4294901760
    %2250 = vmatpush1.msra.mxu0 %v2249
    %2251 = vmatprep.subr.mxu0 0.0
    %v2252 = vand.u32 %v2233, 4294901760
    %2253 = vmatpush1.msra.mxu0 %v2252
    %2254 = vmatprep.subr.mxu0 0.0
    %v2255 = vand.u32 %v2234, 4294901760
    %2256 = vmatpush1.msra.mxu0 %v2255
    %2257 = vmatprep.subr.mxu0 0.0
    %v2258 = vand.u32 %v2235, 4294901760
    %2259 = vmatpush1.msra.mxu0 %v2258
    %2260 = vmatprep.subr.mxu0 0.0
    %v2261 = vand.u32 %v2236, 4294901760
    %2262 = vmatpush1.msra.mxu0 %v2261
    %2263 = vmatprep.subr.mxu0 0.0
    %v2264 = vand.u32 %v2237, 4294901760
    %2265 = vmatpush1.msra.mxu0 %v2264
    %2266 = vmatprep.subr.mxu0 0.0
    %v2267 = vand.u32 %v2238, 4294901760
    %2268 = vmatpush1.msra.mxu0 %v2267
    %2269 = vmatprep.subr.mxu0 0.0
    %v2270 = vand.u32 %v2239, 4294901760
    %2271 = vmatpush1.msra.mxu0 %v2270
    %2272 = vmatprep.subr.mxu0 0.0
    %v2273 = vand.u32 %v2240, 4294901760
    %2274 = vmatpush1.msra.mxu0 %v2273
    %2275 = vmatprep.subr.mxu0 0.0
    %v2276 = vand.u32 %v2241, 4294901760
    %2277 = vmatpush1.msra.mxu0 %v2276
    %2278 = vmatprep.subr.mxu0 0.0
    %v2279 = vand.u32 %v2242, 4294901760
    %2280 = vmatpush1.msra.mxu0 %v2279
    %2281 = vmatprep.subr.mxu0 0.0
    %v2282 = vand.u32 %v2243, 4294901760
    %2283 = vmatpush1.msra.mxu0 %v2282
    %2284 = vmatprep.subr.mxu0 0.0
    %v2285 = vand.u32 %v2244, 4294901760
    %2286 = vmatpush1.msra.mxu0 %v2285
    %2287 = vmatprep.subr.mxu0 0.0
    %v2288 = vand.u32 %v2245, 4294901760
    %2289 = vmatpush1.msra.mxu0 %v2288
    %2290 = vmatprep.subr.mxu0 0.0
    %v2291 = vand.u32 %v2246, 4294901760
    %2292 = vmatpush1.msra.mxu0 %v2291
    %2293 = vmatprep.subr.mxu0 0.0
    %v2294 = vand.u32 %v2247, 4294901760
    %2295 = vmatpush1.msra.mxu0 %v2294
    %2296 = vmatprep.subr.mxu0 0.0
    %2297 = vmatpush1.msra.mxu0 0.0
    %2298 = vmatprep.subr.mxu0 0.0
    %2299 = vmatpush1.msra.mxu0 0.0
    %2300 = vmatprep.subr.mxu0 0.0
    %2301 = vmatpush1.msra.mxu0 0.0
    %2302 = vmatprep.subr.mxu0 0.0
    %2303 = vmatpush1.msra.mxu0 0.0
    %2304 = vmatprep.subr.mxu0 0.0
    %2305 = vmatpush1.msra.mxu0 0.0
    %2306 = vmatprep.subr.mxu0 0.0
    %2307 = vmatpush1.msra.mxu0 0.0
    %2308 = vmatprep.subr.mxu0 0.0
    %2309 = vmatpush1.msra.mxu0 0.0
    %2310 = vmatprep.subr.mxu0 0.0
    %2311 = vmatpush1.msra.mxu0 0.0
    %2312 = vmatprep.subr.mxu0 0.0
    %2313 = vmatpush1.msra.mxu0 0.0
    %2314 = vmatprep.subr.mxu0 0.0
    %2315 = vmatpush1.msra.mxu0 0.0
    %2316 = vmatprep.subr.mxu0 0.0
    %2317 = vmatpush1.msra.mxu0 0.0
    %2318 = vmatprep.subr.mxu0 0.0
    %2319 = vmatpush1.msra.mxu0 0.0
    %2320 = vmatprep.subr.mxu0 0.0
    %2321 = vmatpush1.msra.mxu0 0.0
    %2322 = vmatprep.subr.mxu0 0.0
    %2323 = vmatpush1.msra.mxu0 0.0
    %2324 = vmatprep.subr.mxu0 0.0
    %2325 = vmatpush1.msra.mxu0 0.0
    %2326 = vmatprep.subr.mxu0 0.0
    %2327 = vmatpush1.msra.mxu0 0.0
    %2328 = vmatprep.mubr.f32.mxu0 0.0
    %v2329 = vand.u32 %v40, 4294901760
    %v2330 = vsub.f32 %v40, %v2329
    %v2331 = vand.u32 %v2330, 4294901760
    %v2332 = vsub.f32 %v2330, %v2331
    %v2333 = vand.u32 %v2332, 4294901760
    %2334 = vmatmul.mubr.f32.gmra.mrb[0].mxu0 %v2333
    %v2335 = vpop.f32.mrb[0].mxu0
    %v2336 = vadd.f32 0.0, %v2335
    %v2337 = vpop.f32.mrb[0].mxu0
    %2338 = vmatprep.mubr.f32.mxu0 0.0
    %v2339 = vand.u32 %v41, 4294901760
    %v2340 = vsub.f32 %v41, %v2339
    %v2341 = vand.u32 %v2340, 4294901760
    %v2342 = vsub.f32 %v2340, %v2341
    %v2343 = vand.u32 %v2342, 4294901760
    %2344 = vmatmul.mubr.f32.gmra.mrb[0].mxu0 %v2343
    %v2345 = vpop.f32.mrb[0].mxu0
    %v2346 = vadd.f32 0.0, %v2345
    %v2347 = vpop.f32.mrb[0].mxu0
    %2348 = vdwg.mxu0
    %2349 = vmatprep.subr.mxu0 0.0
    %v2350 = vand.u32 %v2232, 4294901760
    %v2351 = vsub.f32 %v2232, %v2350
    %v2352 = vand.u32 %v2351, 4294901760
    %v2353 = vsub.f32 %v2351, %v2352
    %v2354 = vand.u32 %v2353, 4294901760
    %2355 = vmatpush1.msra.mxu0 %v2354
    %2356 = vmatprep.subr.mxu0 0.0
    %v2357 = vand.u32 %v2233, 4294901760
    %v2358 = vsub.f32 %v2233, %v2357
    %v2359 = vand.u32 %v2358, 4294901760
    %v2360 = vsub.f32 %v2358, %v2359
    %v2361 = vand.u32 %v2360, 4294901760
    %2362 = vmatpush1.msra.mxu0 %v2361
    %2363 = vmatprep.subr.mxu0 0.0
    %v2364 = vand.u32 %v2234, 4294901760
    %v2365 = vsub.f32 %v2234, %v2364
    %v2366 = vand.u32 %v2365, 4294901760
    %v2367 = vsub.f32 %v2365, %v2366
    %v2368 = vand.u32 %v2367, 4294901760
    %2369 = vmatpush1.msra.mxu0 %v2368
    %2370 = vmatprep.subr.mxu0 0.0
    %v2371 = vand.u32 %v2235, 4294901760
    %v2372 = vsub.f32 %v2235, %v2371
    %v2373 = vand.u32 %v2372, 4294901760
    %v2374 = vsub.f32 %v2372, %v2373
    %v2375 = vand.u32 %v2374, 4294901760
    %2376 = vmatpush1.msra.mxu0 %v2375
    %2377 = vmatprep.subr.mxu0 0.0
    %v2378 = vand.u32 %v2236, 4294901760
    %v2379 = vsub.f32 %v2236, %v2378
    %v2380 = vand.u32 %v2379, 4294901760
    %v2381 = vsub.f32 %v2379, %v2380
    %v2382 = vand.u32 %v2381, 4294901760
    %2383 = vmatpush1.msra.mxu0 %v2382
    %2384 = vmatprep.subr.mxu0 0.0
    %v2385 = vand.u32 %v2237, 4294901760
    %v2386 = vsub.f32 %v2237, %v2385
    %v2387 = vand.u32 %v2386, 4294901760
    %v2388 = vsub.f32 %v2386, %v2387
    %v2389 = vand.u32 %v2388, 4294901760
    %2390 = vmatpush1.msra.mxu0 %v2389
    %2391 = vmatprep.subr.mxu0 0.0
    %v2392 = vand.u32 %v2238, 4294901760
    %v2393 = vsub.f32 %v2238, %v2392
    %v2394 = vand.u32 %v2393, 4294901760
    %v2395 = vsub.f32 %v2393, %v2394
    %v2396 = vand.u32 %v2395, 4294901760
    %2397 = vmatpush1.msra.mxu0 %v2396
    %2398 = vmatprep.subr.mxu0 0.0
    %v2399 = vand.u32 %v2239, 4294901760
    %v2400 = vsub.f32 %v2239, %v2399
    %v2401 = vand.u32 %v2400, 4294901760
    %v2402 = vsub.f32 %v2400, %v2401
    %v2403 = vand.u32 %v2402, 4294901760
    %2404 = vmatpush1.msra.mxu0 %v2403
    %2405 = vmatprep.subr.mxu0 0.0
    %v2406 = vand.u32 %v2240, 4294901760
    %v2407 = vsub.f32 %v2240, %v2406
    %v2408 = vand.u32 %v2407, 4294901760
    %v2409 = vsub.f32 %v2407, %v2408
    %v2410 = vand.u32 %v2409, 4294901760
    %2411 = vmatpush1.msra.mxu0 %v2410
    %2412 = vmatprep.subr.mxu0 0.0
    %v2413 = vand.u32 %v2241, 4294901760
    %v2414 = vsub.f32 %v2241, %v2413
    %v2415 = vand.u32 %v2414, 4294901760
    %v2416 = vsub.f32 %v2414, %v2415
    %v2417 = vand.u32 %v2416, 4294901760
    %2418 = vmatpush1.msra.mxu0 %v2417
    %2419 = vmatprep.subr.mxu0 0.0
    %v2420 = vand.u32 %v2242, 4294901760
    %v2421 = vsub.f32 %v2242, %v2420
    %v2422 = vand.u32 %v2421, 4294901760
    %v2423 = vsub.f32 %v2421, %v2422
    %v2424 = vand.u32 %v2423, 4294901760
    %2425 = vmatpush1.msra.mxu0 %v2424
    %2426 = vmatprep.subr.mxu0 0.0
    %v2427 = vand.u32 %v2243, 4294901760
    %v2428 = vsub.f32 %v2243, %v2427
    %v2429 = vand.u32 %v2428, 4294901760
    %v2430 = vsub.f32 %v2428, %v2429
    %v2431 = vand.u32 %v2430, 4294901760
    %2432 = vmatpush1.msra.mxu0 %v2431
    %2433 = vmatprep.subr.mxu0 0.0
    %v2434 = vand.u32 %v2244, 4294901760
    %v2435 = vsub.f32 %v2244, %v2434
    %v2436 = vand.u32 %v2435, 4294901760
    %v2437 = vsub.f32 %v2435, %v2436
    %v2438 = vand.u32 %v2437, 4294901760
    %2439 = vmatpush1.msra.mxu0 %v2438
    %2440 = vmatprep.subr.mxu0 0.0
    %v2441 = vand.u32 %v2245, 4294901760
    %v2442 = vsub.f32 %v2245, %v2441
    %v2443 = vand.u32 %v2442, 4294901760
    %v2444 = vsub.f32 %v2442, %v2443
    %v2445 = vand.u32 %v2444, 4294901760
    %2446 = vmatpush1.msra.mxu0 %v2445
    %2447 = vmatprep.subr.mxu0 0.0
    %v2448 = vand.u32 %v2246, 4294901760
    %v2449 = vsub.f32 %v2246, %v2448
    %v2450 = vand.u32 %v2449, 4294901760
    %v2451 = vsub.f32 %v2449, %v2450
    %v2452 = vand.u32 %v2451, 4294901760
    %2453 = vmatpush1.msra.mxu0 %v2452
    %2454 = vmatprep.subr.mxu0 0.0
    %v2455 = vand.u32 %v2247, 4294901760
    %v2456 = vsub.f32 %v2247, %v2455
    %v2457 = vand.u32 %v2456, 4294901760
    %v2458 = vsub.f32 %v2456, %v2457
    %v2459 = vand.u32 %v2458, 4294901760
    %2460 = vmatpush1.msra.mxu0 %v2459
    %2461 = vmatprep.subr.mxu0 0.0
    %2462 = vmatpush1.msra.mxu0 0.0
    %2463 = vmatprep.subr.mxu0 0.0
    %2464 = vmatpush1.msra.mxu0 0.0
    %2465 = vmatprep.subr.mxu0 0.0
    %2466 = vmatpush1.msra.mxu0 0.0
    %2467 = vmatprep.subr.mxu0 0.0
    %2468 = vmatpush1.msra.mxu0 0.0
    %2469 = vmatprep.subr.mxu0 0.0
    %2470 = vmatpush1.msra.mxu0 0.0
    %2471 = vmatprep.subr.mxu0 0.0
    %2472 = vmatpush1.msra.mxu0 0.0
    %2473 = vmatprep.subr.mxu0 0.0
    %2474 = vmatpush1.msra.mxu0 0.0
    %2475 = vmatprep.subr.mxu0 0.0
    %2476 = vmatpush1.msra.mxu0 0.0
    %2477 = vmatprep.subr.mxu0 0.0
    %2478 = vmatpush1.msra.mxu0 0.0
    %2479 = vmatprep.subr.mxu0 0.0
    %2480 = vmatpush1.msra.mxu0 0.0
    %2481 = vmatprep.subr.mxu0 0.0
    %2482 = vmatpush1.msra.mxu0 0.0
    %2483 = vmatprep.subr.mxu0 0.0
    %2484 = vmatpush1.msra.mxu0 0.0
    %2485 = vmatprep.subr.mxu0 0.0
    %2486 = vmatpush1.msra.mxu0 0.0
    %2487 = vmatprep.subr.mxu0 0.0
    %2488 = vmatpush1.msra.mxu0 0.0
    %2489 = vmatprep.subr.mxu0 0.0
    %2490 = vmatpush1.msra.mxu0 0.0
    %2491 = vmatprep.subr.mxu0 0.0
    %2492 = vmatpush1.msra.mxu0 0.0
    %2493 = vmatprep.mubr.f32.mxu0 0.0
    %v2494 = vand.u32 %v40, 4294901760
    %2495 = vmatmul.mubr.f32.gmra.mrb[0].mxu0 %v2494
    %v2496 = vpop.f32.mrb[0].mxu0
    %v2497 = vadd.f32 %v2336, %v2496
    %v2498 = vpop.f32.mrb[0].mxu0
    %2499 = vmatprep.mubr.f32.mxu0 0.0
    %v2500 = vand.u32 %v41, 4294901760
    %2501 = vmatmul.mubr.f32.gmra.mrb[0].mxu0 %v2500
    %v2502 = vpop.f32.mrb[0].mxu0
    %v2503 = vadd.f32 %v2346, %v2502
    %v2504 = vpop.f32.mrb[0].mxu0
    %2505 = vdwg.mxu0
    %2506 = vmatprep.subr.mxu0 0.0
    %v2507 = vand.u32 %v2232, 4294901760
    %v2508 = vsub.f32 %v2232, %v2507
    %2509 = vmatpush1.msra.mxu0 %v2508
    %2510 = vmatprep.subr.mxu0 0.0
    %v2511 = vand.u32 %v2233, 4294901760
    %v2512 = vsub.f32 %v2233, %v2511
    %2513 = vmatpush1.msra.mxu0 %v2512
    %2514 = vmatprep.subr.mxu0 0.0
    %v2515 = vand.u32 %v2234, 4294901760
    %v2516 = vsub.f32 %v2234, %v2515
    %2517 = vmatpush1.msra.mxu0 %v2516
    %2518 = vmatprep.subr.mxu0 0.0
    %v2519 = vand.u32 %v2235, 4294901760
    %v2520 = vsub.f32 %v2235, %v2519
    %2521 = vmatpush1.msra.mxu0 %v2520
    %2522 = vmatprep.subr.mxu0 0.0
    %v2523 = vand.u32 %v2236, 4294901760
    %v2524 = vsub.f32 %v2236, %v2523
    %2525 = vmatpush1.msra.mxu0 %v2524
    %2526 = vmatprep.subr.mxu0 0.0
    %v2527 = vand.u32 %v2237, 4294901760
    %v2528 = vsub.f32 %v2237, %v2527
    %2529 = vmatpush1.msra.mxu0 %v2528
    %2530 = vmatprep.subr.mxu0 0.0
    %v2531 = vand.u32 %v2238, 4294901760
    %v2532 = vsub.f32 %v2238, %v2531
    %2533 = vmatpush1.msra.mxu0 %v2532
    %2534 = vmatprep.subr.mxu0 0.0
    %v2535 = vand.u32 %v2239, 4294901760
    %v2536 = vsub.f32 %v2239, %v2535
    %2537 = vmatpush1.msra.mxu0 %v2536
    %2538 = vmatprep.subr.mxu0 0.0
    %v2539 = vand.u32 %v2240, 4294901760
    %v2540 = vsub.f32 %v2240, %v2539
    %2541 = vmatpush1.msra.mxu0 %v2540
    %2542 = vmatprep.subr.mxu0 0.0
    %v2543 = vand.u32 %v2241, 4294901760
    %v2544 = vsub.f32 %v2241, %v2543
    %2545 = vmatpush1.msra.mxu0 %v2544
    %2546 = vmatprep.subr.mxu0 0.0
    %v2547 = vand.u32 %v2242, 4294901760
    %v2548 = vsub.f32 %v2242, %v2547
    %2549 = vmatpush1.msra.mxu0 %v2548
    %2550 = vmatprep.subr.mxu0 0.0
    %v2551 = vand.u32 %v2243, 4294901760
    %v2552 = vsub.f32 %v2243, %v2551
    %2553 = vmatpush1.msra.mxu0 %v2552
    %2554 = vmatprep.subr.mxu0 0.0
    %v2555 = vand.u32 %v2244, 4294901760
    %v2556 = vsub.f32 %v2244, %v2555
    %2557 = vmatpush1.msra.mxu0 %v2556
    %2558 = vmatprep.subr.mxu0 0.0
    %v2559 = vand.u32 %v2245, 4294901760
    %v2560 = vsub.f32 %v2245, %v2559
    %2561 = vmatpush1.msra.mxu0 %v2560
    %2562 = vmatprep.subr.mxu0 0.0
    %v2563 = vand.u32 %v2246, 4294901760
    %v2564 = vsub.f32 %v2246, %v2563
    %2565 = vmatpush1.msra.mxu0 %v2564
    %2566 = vmatprep.subr.mxu0 0.0
    %v2567 = vand.u32 %v2247, 4294901760
    %v2568 = vsub.f32 %v2247, %v2567
    %2569 = vmatpush1.msra.mxu0 %v2568
    %2570 = vmatprep.subr.mxu0 0.0
    %2571 = vmatpush1.msra.mxu0 0.0
    %2572 = vmatprep.subr.mxu0 0.0
    %2573 = vmatpush1.msra.mxu0 0.0
    %2574 = vmatprep.subr.mxu0 0.0
    %2575 = vmatpush1.msra.mxu0 0.0
    %2576 = vmatprep.subr.mxu0 0.0
    %2577 = vmatpush1.msra.mxu0 0.0
    %2578 = vmatprep.subr.mxu0 0.0
    %2579 = vmatpush1.msra.mxu0 0.0
    %2580 = vmatprep.subr.mxu0 0.0
    %2581 = vmatpush1.msra.mxu0 0.0
    %2582 = vmatprep.subr.mxu0 0.0
    %2583 = vmatpush1.msra.mxu0 0.0
    %2584 = vmatprep.subr.mxu0 0.0
    %2585 = vmatpush1.msra.mxu0 0.0
    %2586 = vmatprep.subr.mxu0 0.0
    %2587 = vmatpush1.msra.mxu0 0.0
    %2588 = vmatprep.subr.mxu0 0.0
    %2589 = vmatpush1.msra.mxu0 0.0
    %2590 = vmatprep.subr.mxu0 0.0
    %2591 = vmatpush1.msra.mxu0 0.0
    %2592 = vmatprep.subr.mxu0 0.0
    %2593 = vmatpush1.msra.mxu0 0.0
    %2594 = vmatprep.subr.mxu0 0.0
    %2595 = vmatpush1.msra.mxu0 0.0
    %2596 = vmatprep.subr.mxu0 0.0
    %2597 = vmatpush1.msra.mxu0 0.0
    %2598 = vmatprep.subr.mxu0 0.0
    %2599 = vmatpush1.msra.mxu0 0.0
    %2600 = vmatprep.subr.mxu0 0.0
    %2601 = vmatpush1.msra.mxu0 0.0
    %2602 = vmatprep.mubr.f32.mxu0 0.0
    %v2603 = vand.u32 %v40, 4294901760
    %v2604 = vsub.f32 %v40, %v2603
    %2605 = vmatmul.mubr.f32.gmra.mrb[0].mxu0 %v2604
    %v2606 = vpop.f32.mrb[0].mxu0
    %v2607 = vadd.f32 %v2497, %v2606
    %v2608 = vpop.f32.mrb[0].mxu0
    %2609 = vmatprep.mubr.f32.mxu0 0.0
    %v2610 = vand.u32 %v41, 4294901760
    %v2611 = vsub.f32 %v41, %v2610
    %2612 = vmatmul.mubr.f32.gmra.mrb[0].mxu0 %v2611
    %v2613 = vpop.f32.mrb[0].mxu0
    %v2614 = vadd.f32 %v2503, %v2613
    %v2615 = vpop.f32.mrb[0].mxu0
    %2616 = vdwg.mxu0
    %2617 = vmatprep.subr.mxu0 0.0
    %v2618 = vand.u32 %v2232, 4294901760
    %2619 = vmatpush1.msra.mxu0 %v2618
    %2620 = vmatprep.subr.mxu0 0.0
    %v2621 = vand.u32 %v2233, 4294901760
    %2622 = vmatpush1.msra.mxu0 %v2621
    %2623 = vmatprep.subr.mxu0 0.0
    %v2624 = vand.u32 %v2234, 4294901760
    %2625 = vmatpush1.msra.mxu0 %v2624
    %2626 = vmatprep.subr.mxu0 0.0
    %v2627 = vand.u32 %v2235, 4294901760
    %2628 = vmatpush1.msra.mxu0 %v2627
    %2629 = vmatprep.subr.mxu0 0.0
    %v2630 = vand.u32 %v2236, 4294901760
    %2631 = vmatpush1.msra.mxu0 %v2630
    %2632 = vmatprep.subr.mxu0 0.0
    %v2633 = vand.u32 %v2237, 4294901760
    %2634 = vmatpush1.msra.mxu0 %v2633
    %2635 = vmatprep.subr.mxu0 0.0
    %v2636 = vand.u32 %v2238, 4294901760
    %2637 = vmatpush1.msra.mxu0 %v2636
    %2638 = vmatprep.subr.mxu0 0.0
    %v2639 = vand.u32 %v2239, 4294901760
    %2640 = vmatpush1.msra.mxu0 %v2639
    %2641 = vmatprep.subr.mxu0 0.0
    %v2642 = vand.u32 %v2240, 4294901760
    %2643 = vmatpush1.msra.mxu0 %v2642
    %2644 = vmatprep.subr.mxu0 0.0
    %v2645 = vand.u32 %v2241, 4294901760
    %2646 = vmatpush1.msra.mxu0 %v2645
    %2647 = vmatprep.subr.mxu0 0.0
    %v2648 = vand.u32 %v2242, 4294901760
    %2649 = vmatpush1.msra.mxu0 %v2648
    %2650 = vmatprep.subr.mxu0 0.0
    %v2651 = vand.u32 %v2243, 4294901760
    %2652 = vmatpush1.msra.mxu0 %v2651
    %2653 = vmatprep.subr.mxu0 0.0
    %v2654 = vand.u32 %v2244, 4294901760
    %2655 = vmatpush1.msra.mxu0 %v2654
    %2656 = vmatprep.subr.mxu0 0.0
    %v2657 = vand.u32 %v2245, 4294901760
    %2658 = vmatpush1.msra.mxu0 %v2657
    %2659 = vmatprep.subr.mxu0 0.0
    %v2660 = vand.u32 %v2246, 4294901760
    %2661 = vmatpush1.msra.mxu0 %v2660
    %2662 = vmatprep.subr.mxu0 0.0
    %v2663 = vand.u32 %v2247, 4294901760
    %2664 = vmatpush1.msra.mxu0 %v2663
    %2665 = vmatprep.subr.mxu0 0.0
    %2666 = vmatpush1.msra.mxu0 0.0
    %2667 = vmatprep.subr.mxu0 0.0
    %2668 = vmatpush1.msra.mxu0 0.0
    %2669 = vmatprep.subr.mxu0 0.0
    %2670 = vmatpush1.msra.mxu0 0.0
    %2671 = vmatprep.subr.mxu0 0.0
    %2672 = vmatpush1.msra.mxu0 0.0
    %2673 = vmatprep.subr.mxu0 0.0
    %2674 = vmatpush1.msra.mxu0 0.0
    %2675 = vmatprep.subr.mxu0 0.0
    %2676 = vmatpush1.msra.mxu0 0.0
    %2677 = vmatprep.subr.mxu0 0.0
    %2678 = vmatpush1.msra.mxu0 0.0
    %2679 = vmatprep.subr.mxu0 0.0
    %2680 = vmatpush1.msra.mxu0 0.0
    %2681 = vmatprep.subr.mxu0 0.0
    %2682 = vmatpush1.msra.mxu0 0.0
    %2683 = vmatprep.subr.mxu0 0.0
    %2684 = vmatpush1.msra.mxu0 0.0
    %2685 = vmatprep.subr.mxu0 0.0
    %2686 = vmatpush1.msra.mxu0 0.0
    %2687 = vmatprep.subr.mxu0 0.0
    %2688 = vmatpush1.msra.mxu0 0.0
    %2689 = vmatprep.subr.mxu0 0.0
    %2690 = vmatpush1.msra.mxu0 0.0
    %2691 = vmatprep.subr.mxu0 0.0
    %2692 = vmatpush1.msra.mxu0 0.0
    %2693 = vmatprep.subr.mxu0 0.0
    %2694 = vmatpush1.msra.mxu0 0.0
    %2695 = vmatprep.subr.mxu0 0.0
    %2696 = vmatpush1.msra.mxu0 0.0
    %2697 = vmatprep.mubr.f32.mxu0 0.0
    %v2698 = vand.u32 %v40, 4294901760
    %v2699 = vsub.f32 %v40, %v2698
    %v2700 = vand.u32 %v2699, 4294901760
    %2701 = vmatmul.mubr.f32.gmra.mrb[0].mxu0 %v2700
    %v2702 = vpop.f32.mrb[0].mxu0
    %v2703 = vadd.f32 %v2607, %v2702
    %v2704 = vpop.f32.mrb[0].mxu0
    %2705 = vmatprep.mubr.f32.mxu0 0.0
    %v2706 = vand.u32 %v41, 4294901760
    %v2707 = vsub.f32 %v41, %v2706
    %v2708 = vand.u32 %v2707, 4294901760
    %2709 = vmatmul.mubr.f32.gmra.mrb[0].mxu0 %v2708
    %v2710 = vpop.f32.mrb[0].mxu0
    %v2711 = vadd.f32 %v2614, %v2710
    %v2712 = vpop.f32.mrb[0].mxu0
    %2713 = vdwg.mxu0
    %2714 = vmatprep.subr.mxu0 0.0
    %v2715 = vand.u32 %v2232, 4294901760
    %v2716 = vsub.f32 %v2232, %v2715
    %v2717 = vand.u32 %v2716, 4294901760
    %2718 = vmatpush1.msra.mxu0 %v2717
    %2719 = vmatprep.subr.mxu0 0.0
    %v2720 = vand.u32 %v2233, 4294901760
    %v2721 = vsub.f32 %v2233, %v2720
    %v2722 = vand.u32 %v2721, 4294901760
    %2723 = vmatpush1.msra.mxu0 %v2722
    %2724 = vmatprep.subr.mxu0 0.0
    %v2725 = vand.u32 %v2234, 4294901760
    %v2726 = vsub.f32 %v2234, %v2725
    %v2727 = vand.u32 %v2726, 4294901760
    %2728 = vmatpush1.msra.mxu0 %v2727
    %2729 = vmatprep.subr.mxu0 0.0
    %v2730 = vand.u32 %v2235, 4294901760
    %v2731 = vsub.f32 %v2235, %v2730
    %v2732 = vand.u32 %v2731, 4294901760
    %2733 = vmatpush1.msra.mxu0 %v2732
    %2734 = vmatprep.subr.mxu0 0.0
    %v2735 = vand.u32 %v2236, 4294901760
    %v2736 = vsub.f32 %v2236, %v2735
    %v2737 = vand.u32 %v2736, 4294901760
    %2738 = vmatpush1.msra.mxu0 %v2737
    %2739 = vmatprep.subr.mxu0 0.0
    %v2740 = vand.u32 %v2237, 4294901760
    %v2741 = vsub.f32 %v2237, %v2740
    %v2742 = vand.u32 %v2741, 4294901760
    %2743 = vmatpush1.msra.mxu0 %v2742
    %2744 = vmatprep.subr.mxu0 0.0
    %v2745 = vand.u32 %v2238, 4294901760
    %v2746 = vsub.f32 %v2238, %v2745
    %v2747 = vand.u32 %v2746, 4294901760
    %2748 = vmatpush1.msra.mxu0 %v2747
    %2749 = vmatprep.subr.mxu0 0.0
    %v2750 = vand.u32 %v2239, 4294901760
    %v2751 = vsub.f32 %v2239, %v2750
    %v2752 = vand.u32 %v2751, 4294901760
    %2753 = vmatpush1.msra.mxu0 %v2752
    %2754 = vmatprep.subr.mxu0 0.0
    %v2755 = vand.u32 %v2240, 4294901760
    %v2756 = vsub.f32 %v2240, %v2755
    %v2757 = vand.u32 %v2756, 4294901760
    %2758 = vmatpush1.msra.mxu0 %v2757
    %2759 = vmatprep.subr.mxu0 0.0
    %v2760 = vand.u32 %v2241, 4294901760
    %v2761 = vsub.f32 %v2241, %v2760
    %v2762 = vand.u32 %v2761, 4294901760
    %2763 = vmatpush1.msra.mxu0 %v2762
    %2764 = vmatprep.subr.mxu0 0.0
    %v2765 = vand.u32 %v2242, 4294901760
    %v2766 = vsub.f32 %v2242, %v2765
    %v2767 = vand.u32 %v2766, 4294901760
    %2768 = vmatpush1.msra.mxu0 %v2767
    %2769 = vmatprep.subr.mxu0 0.0
    %v2770 = vand.u32 %v2243, 4294901760
    %v2771 = vsub.f32 %v2243, %v2770
    %v2772 = vand.u32 %v2771, 4294901760
    %2773 = vmatpush1.msra.mxu0 %v2772
    %2774 = vmatprep.subr.mxu0 0.0
    %v2775 = vand.u32 %v2244, 4294901760
    %v2776 = vsub.f32 %v2244, %v2775
    %v2777 = vand.u32 %v2776, 4294901760
    %2778 = vmatpush1.msra.mxu0 %v2777
    %2779 = vmatprep.subr.mxu0 0.0
    %v2780 = vand.u32 %v2245, 4294901760
    %v2781 = vsub.f32 %v2245, %v2780
    %v2782 = vand.u32 %v2781, 4294901760
    %2783 = vmatpush1.msra.mxu0 %v2782
    %2784 = vmatprep.subr.mxu0 0.0
    %v2785 = vand.u32 %v2246, 4294901760
    %v2786 = vsub.f32 %v2246, %v2785
    %v2787 = vand.u32 %v2786, 4294901760
    %2788 = vmatpush1.msra.mxu0 %v2787
    %2789 = vmatprep.subr.mxu0 0.0
    %v2790 = vand.u32 %v2247, 4294901760
    %v2791 = vsub.f32 %v2247, %v2790
    %v2792 = vand.u32 %v2791, 4294901760
    %2793 = vmatpush1.msra.mxu0 %v2792
    %2794 = vmatprep.subr.mxu0 0.0
    %2795 = vmatpush1.msra.mxu0 0.0
    %2796 = vmatprep.subr.mxu0 0.0
    %2797 = vmatpush1.msra.mxu0 0.0
    %2798 = vmatprep.subr.mxu0 0.0
    %2799 = vmatpush1.msra.mxu0 0.0
    %2800 = vmatprep.subr.mxu0 0.0
    %2801 = vmatpush1.msra.mxu0 0.0
    %2802 = vmatprep.subr.mxu0 0.0
    %2803 = vmatpush1.msra.mxu0 0.0
    %2804 = vmatprep.subr.mxu0 0.0
    %2805 = vmatpush1.msra.mxu0 0.0
    %2806 = vmatprep.subr.mxu0 0.0
    %2807 = vmatpush1.msra.mxu0 0.0
    %2808 = vmatprep.subr.mxu0 0.0
    %2809 = vmatpush1.msra.mxu0 0.0
    %2810 = vmatprep.subr.mxu0 0.0
    %2811 = vmatpush1.msra.mxu0 0.0
    %2812 = vmatprep.subr.mxu0 0.0
    %2813 = vmatpush1.msra.mxu0 0.0
    %2814 = vmatprep.subr.mxu0 0.0
    %2815 = vmatpush1.msra.mxu0 0.0
    %2816 = vmatprep.subr.mxu0 0.0
    %2817 = vmatpush1.msra.mxu0 0.0
    %2818 = vmatprep.subr.mxu0 0.0
    %2819 = vmatpush1.msra.mxu0 0.0
    %2820 = vmatprep.subr.mxu0 0.0
    %2821 = vmatpush1.msra.mxu0 0.0
    %2822 = vmatprep.subr.mxu0 0.0
    %2823 = vmatpush1.msra.mxu0 0.0
    %2824 = vmatprep.subr.mxu0 0.0
    %2825 = vmatpush1.msra.mxu0 0.0
    %2826 = vmatprep.mubr.f32.mxu0 0.0
    %v2827 = vand.u32 %v40, 4294901760
    %2828 = vmatmul.mubr.f32.gmra.mrb[0].mxu0 %v2827
    %v2829 = vpop.f32.mrb[0].mxu0
    %v2830 = vadd.f32 %v2703, %v2829
    %v2831 = vpop.f32.mrb[0].mxu0
    %2832 = vmatprep.mubr.f32.mxu0 0.0
    %v2833 = vand.u32 %v41, 4294901760
    %2834 = vmatmul.mubr.f32.gmra.mrb[0].mxu0 %v2833
    %v2835 = vpop.f32.mrb[0].mxu0
    %v2836 = vadd.f32 %v2711, %v2835
    %v2837 = vpop.f32.mrb[0].mxu0
    %2838 = vdwg.mxu0
    %2839 = vmatprep.subr.mxu0 0.0
    %v2840 = vand.u32 %v2232, 4294901760
    %2841 = vmatpush1.msra.mxu0 %v2840
    %2842 = vmatprep.subr.mxu0 0.0
    %v2843 = vand.u32 %v2233, 4294901760
    %2844 = vmatpush1.msra.mxu0 %v2843
    %2845 = vmatprep.subr.mxu0 0.0
    %v2846 = vand.u32 %v2234, 4294901760
    %2847 = vmatpush1.msra.mxu0 %v2846
    %2848 = vmatprep.subr.mxu0 0.0
    %v2849 = vand.u32 %v2235, 4294901760
    %2850 = vmatpush1.msra.mxu0 %v2849
    %2851 = vmatprep.subr.mxu0 0.0
    %v2852 = vand.u32 %v2236, 4294901760
    %2853 = vmatpush1.msra.mxu0 %v2852
    %2854 = vmatprep.subr.mxu0 0.0
    %v2855 = vand.u32 %v2237, 4294901760
    %2856 = vmatpush1.msra.mxu0 %v2855
    %2857 = vmatprep.subr.mxu0 0.0
    %v2858 = vand.u32 %v2238, 4294901760
    %2859 = vmatpush1.msra.mxu0 %v2858
    %2860 = vmatprep.subr.mxu0 0.0
    %v2861 = vand.u32 %v2239, 4294901760
    %2862 = vmatpush1.msra.mxu0 %v2861
    %2863 = vmatprep.subr.mxu0 0.0
    %v2864 = vand.u32 %v2240, 4294901760
    %2865 = vmatpush1.msra.mxu0 %v2864
    %2866 = vmatprep.subr.mxu0 0.0
    %v2867 = vand.u32 %v2241, 4294901760
    %2868 = vmatpush1.msra.mxu0 %v2867
    %2869 = vmatprep.subr.mxu0 0.0
    %v2870 = vand.u32 %v2242, 4294901760
    %2871 = vmatpush1.msra.mxu0 %v2870
    %2872 = vmatprep.subr.mxu0 0.0
    %v2873 = vand.u32 %v2243, 4294901760
    %2874 = vmatpush1.msra.mxu0 %v2873
    %2875 = vmatprep.subr.mxu0 0.0
    %v2876 = vand.u32 %v2244, 4294901760
    %2877 = vmatpush1.msra.mxu0 %v2876
    %2878 = vmatprep.subr.mxu0 0.0
    %v2879 = vand.u32 %v2245, 4294901760
    %2880 = vmatpush1.msra.mxu0 %v2879
    %2881 = vmatprep.subr.mxu0 0.0
    %v2882 = vand.u32 %v2246, 4294901760
    %2883 = vmatpush1.msra.mxu0 %v2882
    %2884 = vmatprep.subr.mxu0 0.0
    %v2885 = vand.u32 %v2247, 4294901760
    %2886 = vmatpush1.msra.mxu0 %v2885
    %2887 = vmatprep.subr.mxu0 0.0
    %2888 = vmatpush1.msra.mxu0 0.0
    %2889 = vmatprep.subr.mxu0 0.0
    %2890 = vmatpush1.msra.mxu0 0.0
    %2891 = vmatprep.subr.mxu0 0.0
    %2892 = vmatpush1.msra.mxu0 0.0
    %2893 = vmatprep.subr.mxu0 0.0
    %2894 = vmatpush1.msra.mxu0 0.0
    %2895 = vmatprep.subr.mxu0 0.0
    %2896 = vmatpush1.msra.mxu0 0.0
    %2897 = vmatprep.subr.mxu0 0.0
    %2898 = vmatpush1.msra.mxu0 0.0
    %2899 = vmatprep.subr.mxu0 0.0
    %2900 = vmatpush1.msra.mxu0 0.0
    %2901 = vmatprep.subr.mxu0 0.0
    %2902 = vmatpush1.msra.mxu0 0.0
    %2903 = vmatprep.subr.mxu0 0.0
    %2904 = vmatpush1.msra.mxu0 0.0
    %2905 = vmatprep.subr.mxu0 0.0
    %2906 = vmatpush1.msra.mxu0 0.0
    %2907 = vmatprep.subr.mxu0 0.0
    %2908 = vmatpush1.msra.mxu0 0.0
    %2909 = vmatprep.subr.mxu0 0.0
    %2910 = vmatpush1.msra.mxu0 0.0
    %2911 = vmatprep.subr.mxu0 0.0
    %2912 = vmatpush1.msra.mxu0 0.0
    %2913 = vmatprep.subr.mxu0 0.0
    %2914 = vmatpush1.msra.mxu0 0.0
    %2915 = vmatprep.subr.mxu0 0.0
    %2916 = vmatpush1.msra.mxu0 0.0
    %2917 = vmatprep.subr.mxu0 0.0
    %2918 = vmatpush1.msra.mxu0 0.0
    %2919 = vmatprep.mubr.f32.mxu0 0.0
    %v2920 = vand.u32 %v40, 4294901760
    %2921 = vmatmul.mubr.f32.gmra.mrb[0].mxu0 %v2920
    %v2922 = vpop.f32.mrb[0].mxu0
    %v2923 = vadd.f32 %v2830, %v2922
    %v2924 = vpop.f32.mrb[0].mxu0
    %2925 = vmatprep.mubr.f32.mxu0 0.0
    %v2926 = vand.u32 %v41, 4294901760
    %2927 = vmatmul.mubr.f32.gmra.mrb[0].mxu0 %v2926
    %v2928 = vpop.f32.mrb[0].mxu0
    %v2929 = vadd.f32 %v2836, %v2928
    %v2930 = vpop.f32.mrb[0].mxu0
    %2931 = vdwg.mxu0
    %v2932 = vrot.slane %v40, 4
    %v2933 = vrot.slane %v41, 4
    %vm2934 = vcmp.lt.s32.totalorder %v43, 4
    %v2935 = vsel %vm2934, %v2932, %v2933
    %v2936 = vsel %vm2934, %v2933, %v2932
    %v2937 = vmul.f32 %v2935, %v1520
    %v2938 = vmul.f32 %v2936, %v1521
    %v2939 = vmul.f32 %v2936, %v1526
    %v2940 = vmul.f32 %v2935, %v1527
    %v2941 = vadd.f32 %v2937, %v2939
    %v2942 = vadd.f32 %v2938, %v2940
    %v2943 = vmul.f32 %v1528, %v40
    %v2944 = vmul.f32 %v1529, %v41
    %v2945 = vsub.f32 %v2941, %v2943
    %v2946 = vsub.f32 %v2942, %v2944
    %v2947 = vrot.slane %v2222, 2
    %v2948 = vrot.slane %v2228, 2
    %v2949 = vsel %vm1474, %v2947, %v2948
    %v2950 = vsel %vm1474, %v2948, %v2947
    %v2951 = vmul.f32 %v2949, %v61
    %v2952 = vmul.f32 %v2950, %v62
    %v2953 = vrot.slane %v2222, 6
    %v2954 = vrot.slane %v2228, 6
    %v2955 = vsel %vm1481, %v2953, %v2954
    %v2956 = vsel %vm1481, %v2954, %v2953
    %v2957 = vmul.f32 %v2956, %v67
    %v2958 = vmul.f32 %v2955, %v68
    %v2959 = vsub.f32 %v2951, %v2957
    %v2960 = vsub.f32 %v2952, %v2958
    %v2961 = vmul.f32 %v2923, %v2945
    %v2962 = vmul.f32 %v2929, %v2946
    %v2963 = vmul.f32 %v2959, %v2959
    %v2964 = vmul.f32 %v2960, %v2960
    %v2965 = vsub.f32 %v2961, %v2963
    %v2966 = vsub.f32 %v2962, %v2964
    %v2967 = vadd.f32 %v1514, %v2965
    %v2968 = vadd.f32 %v1515, %v2966
    %vm2969 = vcmp.lt.s32.totalorder %v43, 13
    %vm2970 = vcmp.lt.s32.totalorder %v44, 13
    %v2971 = vsel %vm2969, 1, 0
    %v2972 = vsel %vm2970, 1, 0
    %v2973 = vcvt.s32.f32 %v2971
    %v2974 = vcvt.s32.f32 %v2972
    %vm2975 = vcmp.ge.s32.totalorder %v43, 3
    %vm2976 = vcmp.ge.s32.totalorder %v44, 3
    %v2977 = vsel %vm2975, 1, 0
    %v2978 = vsel %vm2976, 1, 0
    %v2979 = vcvt.s32.f32 %v2977
    %v2980 = vcvt.s32.f32 %v2978
    %vm2981 = vcmp.lt.s32.totalorder %v43, 10
    %vm2982 = vcmp.lt.s32.totalorder %v44, 10
    %v2983 = vsel %vm2981, 1, 0
    %v2984 = vsel %vm2982, 1, 0
    %v2985 = vcvt.s32.f32 %v2983
    %v2986 = vcvt.s32.f32 %v2984
    %vm2987 = vcmp.ge.s32.totalorder %v43, 6
    %vm2988 = vcmp.ge.s32.totalorder %v44, 6
    %v2989 = vsel %vm2987, 1, 0
    %v2990 = vsel %vm2988, 1, 0
    %v2991 = vcvt.s32.f32 %v2989
    %v2992 = vcvt.s32.f32 %v2990
    %v2993 = vadd.f32 %v2973, %v2979
    %v2994 = vadd.f32 %v2974, %v2980
    %s2995 = scalar_lea.vmem [#allocation5], 512
    %v2996 = vld [vmem:[%s2995] sm:$0xff]
    %v2997 = vld [vmem:[%s2995 + $0x8] sm:$0xff]
    %v2998 = vld [vmem:[%s2995 + $0x10] sm:$0xff]
    %v2999 = vld [vmem:[%s2995 + $0x18] sm:$0xff]
    %v3000 = vld [vmem:[%s2995 + $0x20] sm:$0xff]
    %v3001 = vld [vmem:[%s2995 + $0x28] sm:$0xff]
    %v3002 = vld [vmem:[%s2995 + $0x30] sm:$0xff]
    %v3003 = vld [vmem:[%s2995 + $0x38] sm:$0xff]
    %v3004 = vld [vmem:[%s2995 + $0x40] sm:$0xff]
    %v3005 = vld [vmem:[%s2995 + $0x48] sm:$0xff]
    %v3006 = vld [vmem:[%s2995 + $0x50] sm:$0xff]
    %v3007 = vld [vmem:[%s2995 + $0x58] sm:$0xff]
    %v3008 = vld [vmem:[%s2995 + $0x60] sm:$0xff]
    %v3009 = vld [vmem:[%s2995 + $0x68] sm:$0xff]
    %v3010 = vld [vmem:[%s2995 + $0x70] sm:$0xff]
    %v3011 = vld [vmem:[%s2995 + $0x78] sm:$0xff]
    %3012 = vmatprep.subr.mxu0 0.0
    %v3013 = vand.u32 %v2996, 4294901760
    %3014 = vmatpush1.msra.mxu0 %v3013
    %3015 = vmatprep.subr.mxu0 0.0
    %v3016 = vand.u32 %v2997, 4294901760
    %3017 = vmatpush1.msra.mxu0 %v3016
    %3018 = vmatprep.subr.mxu0 0.0
    %v3019 = vand.u32 %v2998, 4294901760
    %3020 = vmatpush1.msra.mxu0 %v3019
    %3021 = vmatprep.subr.mxu0 0.0
    %v3022 = vand.u32 %v2999, 4294901760
    %3023 = vmatpush1.msra.mxu0 %v3022
    %3024 = vmatprep.subr.mxu0 0.0
    %v3025 = vand.u32 %v3000, 4294901760
    %3026 = vmatpush1.msra.mxu0 %v3025
    %3027 = vmatprep.subr.mxu0 0.0
    %v3028 = vand.u32 %v3001, 4294901760
    %3029 = vmatpush1.msra.mxu0 %v3028
    %3030 = vmatprep.subr.mxu0 0.0
    %v3031 = vand.u32 %v3002, 4294901760
    %3032 = vmatpush1.msra.mxu0 %v3031
    %3033 = vmatprep.subr.mxu0 0.0
    %v3034 = vand.u32 %v3003, 4294901760
    %3035 = vmatpush1.msra.mxu0 %v3034
    %3036 = vmatprep.subr.mxu0 0.0
    %v3037 = vand.u32 %v3004, 4294901760
    %3038 = vmatpush1.msra.mxu0 %v3037
    %3039 = vmatprep.subr.mxu0 0.0
    %v3040 = vand.u32 %v3005, 4294901760
    %3041 = vmatpush1.msra.mxu0 %v3040
    %3042 = vmatprep.subr.mxu0 0.0
    %v3043 = vand.u32 %v3006, 4294901760
    %3044 = vmatpush1.msra.mxu0 %v3043
    %3045 = vmatprep.subr.mxu0 0.0
    %v3046 = vand.u32 %v3007, 4294901760
    %3047 = vmatpush1.msra.mxu0 %v3046
    %3048 = vmatprep.subr.mxu0 0.0
    %v3049 = vand.u32 %v3008, 4294901760
    %3050 = vmatpush1.msra.mxu0 %v3049
    %3051 = vmatprep.subr.mxu0 0.0
    %v3052 = vand.u32 %v3009, 4294901760
    %3053 = vmatpush1.msra.mxu0 %v3052
    %3054 = vmatprep.subr.mxu0 0.0
    %v3055 = vand.u32 %v3010, 4294901760
    %3056 = vmatpush1.msra.mxu0 %v3055
    %3057 = vmatprep.subr.mxu0 0.0
    %v3058 = vand.u32 %v3011, 4294901760
    %3059 = vmatpush1.msra.mxu0 %v3058
    %3060 = vmatprep.subr.mxu0 0.0
    %3061 = vmatpush1.msra.mxu0 0.0
    %3062 = vmatprep.subr.mxu0 0.0
    %3063 = vmatpush1.msra.mxu0 0.0
    %3064 = vmatprep.subr.mxu0 0.0
    %3065 = vmatpush1.msra.mxu0 0.0
    %3066 = vmatprep.subr.mxu0 0.0
    %3067 = vmatpush1.msra.mxu0 0.0
    %3068 = vmatprep.subr.mxu0 0.0
    %3069 = vmatpush1.msra.mxu0 0.0
    %3070 = vmatprep.subr.mxu0 0.0
    %3071 = vmatpush1.msra.mxu0 0.0
    %3072 = vmatprep.subr.mxu0 0.0
    %3073 = vmatpush1.msra.mxu0 0.0
    %3074 = vmatprep.subr.mxu0 0.0
    %3075 = vmatpush1.msra.mxu0 0.0
    %3076 = vmatprep.subr.mxu0 0.0
    %3077 = vmatpush1.msra.mxu0 0.0
    %3078 = vmatprep.subr.mxu0 0.0
    %3079 = vmatpush1.msra.mxu0 0.0
    %3080 = vmatprep.subr.mxu0 0.0
    %3081 = vmatpush1.msra.mxu0 0.0
    %3082 = vmatprep.subr.mxu0 0.0
    %3083 = vmatpush1.msra.mxu0 0.0
    %3084 = vmatprep.subr.mxu0 0.0
    %3085 = vmatpush1.msra.mxu0 0.0
    %3086 = vmatprep.subr.mxu0 0.0
    %3087 = vmatpush1.msra.mxu0 0.0
    %3088 = vmatprep.subr.mxu0 0.0
    %3089 = vmatpush1.msra.mxu0 0.0
    %3090 = vmatprep.subr.mxu0 0.0
    %3091 = vmatpush1.msra.mxu0 0.0
    %3092 = vmatprep.mubr.f32.mxu0 0.0
    %v3093 = vand.u32 %v40, 4294901760
    %v3094 = vsub.f32 %v40, %v3093
    %v3095 = vand.u32 %v3094, 4294901760
    %v3096 = vsub.f32 %v3094, %v3095
    %v3097 = vand.u32 %v3096, 4294901760
    %3098 = vmatmul.mubr.f32.gmra.mrb[0].mxu0 %v3097
    %v3099 = vpop.f32.mrb[0].mxu0
    %v3100 = vadd.f32 0.0, %v3099
    %v3101 = vpop.f32.mrb[0].mxu0
    %3102 = vmatprep.mubr.f32.mxu0 0.0
    %v3103 = vand.u32 %v41, 4294901760
    %v3104 = vsub.f32 %v41, %v3103
    %v3105 = vand.u32 %v3104, 4294901760
    %v3106 = vsub.f32 %v3104, %v3105
    %v3107 = vand.u32 %v3106, 4294901760
    %3108 = vmatmul.mubr.f32.gmra.mrb[0].mxu0 %v3107
    %v3109 = vpop.f32.mrb[0].mxu0
    %v3110 = vadd.f32 0.0, %v3109
    %v3111 = vpop.f32.mrb[0].mxu0
    %3112 = vdwg.mxu0
    %3113 = vmatprep.subr.mxu0 0.0
    %v3114 = vand.u32 %v2996, 4294901760
    %v3115 = vsub.f32 %v2996, %v3114
    %v3116 = vand.u32 %v3115, 4294901760
    %v3117 = vsub.f32 %v3115, %v3116
    %v3118 = vand.u32 %v3117, 4294901760
    %3119 = vmatpush1.msra.mxu0 %v3118
    %3120 = vmatprep.subr.mxu0 0.0
    %v3121 = vand.u32 %v2997, 4294901760
    %v3122 = vsub.f32 %v2997, %v3121
    %v3123 = vand.u32 %v3122, 4294901760
    %v3124 = vsub.f32 %v3122, %v3123
    %v3125 = vand.u32 %v3124, 4294901760
    %3126 = vmatpush1.msra.mxu0 %v3125
    %3127 = vmatprep.subr.mxu0 0.0
    %v3128 = vand.u32 %v2998, 4294901760
    %v3129 = vsub.f32 %v2998, %v3128
    %v3130 = vand.u32 %v3129, 4294901760
    %v3131 = vsub.f32 %v3129, %v3130
    %v3132 = vand.u32 %v3131, 4294901760
    %3133 = vmatpush1.msra.mxu0 %v3132
    %3134 = vmatprep.subr.mxu0 0.0
    %v3135 = vand.u32 %v2999, 4294901760
    %v3136 = vsub.f32 %v2999, %v3135
    %v3137 = vand.u32 %v3136, 4294901760
    %v3138 = vsub.f32 %v3136, %v3137
    %v3139 = vand.u32 %v3138, 4294901760
    %3140 = vmatpush1.msra.mxu0 %v3139
    %3141 = vmatprep.subr.mxu0 0.0
    %v3142 = vand.u32 %v3000, 4294901760
    %v3143 = vsub.f32 %v3000, %v3142
    %v3144 = vand.u32 %v3143, 4294901760
    %v3145 = vsub.f32 %v3143, %v3144
    %v3146 = vand.u32 %v3145, 4294901760
    %3147 = vmatpush1.msra.mxu0 %v3146
    %3148 = vmatprep.subr.mxu0 0.0
    %v3149 = vand.u32 %v3001, 4294901760
    %v3150 = vsub.f32 %v3001, %v3149
    %v3151 = vand.u32 %v3150, 4294901760
    %v3152 = vsub.f32 %v3150, %v3151
    %v3153 = vand.u32 %v3152, 4294901760
    %3154 = vmatpush1.msra.mxu0 %v3153
    %3155 = vmatprep.subr.mxu0 0.0
    %v3156 = vand.u32 %v3002, 4294901760
    %v3157 = vsub.f32 %v3002, %v3156
    %v3158 = vand.u32 %v3157, 4294901760
    %v3159 = vsub.f32 %v3157, %v3158
    %v3160 = vand.u32 %v3159, 4294901760
    %3161 = vmatpush1.msra.mxu0 %v3160
    %3162 = vmatprep.subr.mxu0 0.0
    %v3163 = vand.u32 %v3003, 4294901760
    %v3164 = vsub.f32 %v3003, %v3163
    %v3165 = vand.u32 %v3164, 4294901760
    %v3166 = vsub.f32 %v3164, %v3165
    %v3167 = vand.u32 %v3166, 4294901760
    %3168 = vmatpush1.msra.mxu0 %v3167
    %3169 = vmatprep.subr.mxu0 0.0
    %v3170 = vand.u32 %v3004, 4294901760
    %v3171 = vsub.f32 %v3004, %v3170
    %v3172 = vand.u32 %v3171, 4294901760
    %v3173 = vsub.f32 %v3171, %v3172
    %v3174 = vand.u32 %v3173, 4294901760
    %3175 = vmatpush1.msra.mxu0 %v3174
    %3176 = vmatprep.subr.mxu0 0.0
    %v3177 = vand.u32 %v3005, 4294901760
    %v3178 = vsub.f32 %v3005, %v3177
    %v3179 = vand.u32 %v3178, 4294901760
    %v3180 = vsub.f32 %v3178, %v3179
    %v3181 = vand.u32 %v3180, 4294901760
    %3182 = vmatpush1.msra.mxu0 %v3181
    %3183 = vmatprep.subr.mxu0 0.0
    %v3184 = vand.u32 %v3006, 4294901760
    %v3185 = vsub.f32 %v3006, %v3184
    %v3186 = vand.u32 %v3185, 4294901760
    %v3187 = vsub.f32 %v3185, %v3186
    %v3188 = vand.u32 %v3187, 4294901760
    %3189 = vmatpush1.msra.mxu0 %v3188
    %3190 = vmatprep.subr.mxu0 0.0
    %v3191 = vand.u32 %v3007, 4294901760
    %v3192 = vsub.f32 %v3007, %v3191
    %v3193 = vand.u32 %v3192, 4294901760
    %v3194 = vsub.f32 %v3192, %v3193
    %v3195 = vand.u32 %v3194, 4294901760
    %3196 = vmatpush1.msra.mxu0 %v3195
    %3197 = vmatprep.subr.mxu0 0.0
    %v3198 = vand.u32 %v3008, 4294901760
    %v3199 = vsub.f32 %v3008, %v3198
    %v3200 = vand.u32 %v3199, 4294901760
    %v3201 = vsub.f32 %v3199, %v3200
    %v3202 = vand.u32 %v3201, 4294901760
    %3203 = vmatpush1.msra.mxu0 %v3202
    %3204 = vmatprep.subr.mxu0 0.0
    %v3205 = vand.u32 %v3009, 4294901760
    %v3206 = vsub.f32 %v3009, %v3205
    %v3207 = vand.u32 %v3206, 4294901760
    %v3208 = vsub.f32 %v3206, %v3207
    %v3209 = vand.u32 %v3208, 4294901760
    %3210 = vmatpush1.msra.mxu0 %v3209
    %3211 = vmatprep.subr.mxu0 0.0
    %v3212 = vand.u32 %v3010, 4294901760
    %v3213 = vsub.f32 %v3010, %v3212
    %v3214 = vand.u32 %v3213, 4294901760
    %v3215 = vsub.f32 %v3213, %v3214
    %v3216 = vand.u32 %v3215, 4294901760
    %3217 = vmatpush1.msra.mxu0 %v3216
    %3218 = vmatprep.subr.mxu0 0.0
    %v3219 = vand.u32 %v3011, 4294901760
    %v3220 = vsub.f32 %v3011, %v3219
    %v3221 = vand.u32 %v3220, 4294901760
    %v3222 = vsub.f32 %v3220, %v3221
    %v3223 = vand.u32 %v3222, 4294901760
    %3224 = vmatpush1.msra.mxu0 %v3223
    %3225 = vmatprep.subr.mxu0 0.0
    %3226 = vmatpush1.msra.mxu0 0.0
    %3227 = vmatprep.subr.mxu0 0.0
    %3228 = vmatpush1.msra.mxu0 0.0
    %3229 = vmatprep.subr.mxu0 0.0
    %3230 = vmatpush1.msra.mxu0 0.0
    %3231 = vmatprep.subr.mxu0 0.0
    %3232 = vmatpush1.msra.mxu0 0.0
    %3233 = vmatprep.subr.mxu0 0.0
    %3234 = vmatpush1.msra.mxu0 0.0
    %3235 = vmatprep.subr.mxu0 0.0
    %3236 = vmatpush1.msra.mxu0 0.0
    %3237 = vmatprep.subr.mxu0 0.0
    %3238 = vmatpush1.msra.mxu0 0.0
    %3239 = vmatprep.subr.mxu0 0.0
    %3240 = vmatpush1.msra.mxu0 0.0
    %3241 = vmatprep.subr.mxu0 0.0
    %3242 = vmatpush1.msra.mxu0 0.0
    %3243 = vmatprep.subr.mxu0 0.0
    %3244 = vmatpush1.msra.mxu0 0.0
    %3245 = vmatprep.subr.mxu0 0.0
    %3246 = vmatpush1.msra.mxu0 0.0
    %3247 = vmatprep.subr.mxu0 0.0
    %3248 = vmatpush1.msra.mxu0 0.0
    %3249 = vmatprep.subr.mxu0 0.0
    %3250 = vmatpush1.msra.mxu0 0.0
    %3251 = vmatprep.subr.mxu0 0.0
    %3252 = vmatpush1.msra.mxu0 0.0
    %3253 = vmatprep.subr.mxu0 0.0
    %3254 = vmatpush1.msra.mxu0 0.0
    %3255 = vmatprep.subr.mxu0 0.0
    %3256 = vmatpush1.msra.mxu0 0.0
    %3257 = vmatprep.mubr.f32.mxu0 0.0
    %v3258 = vand.u32 %v40, 4294901760
    %3259 = vmatmul.mubr.f32.gmra.mrb[0].mxu0 %v3258
    %v3260 = vpop.f32.mrb[0].mxu0
    %v3261 = vadd.f32 %v3100, %v3260
    %v3262 = vpop.f32.mrb[0].mxu0
    %3263 = vmatprep.mubr.f32.mxu0 0.0
    %v3264 = vand.u32 %v41, 4294901760
    %3265 = vmatmul.mubr.f32.gmra.mrb[0].mxu0 %v3264
    %v3266 = vpop.f32.mrb[0].mxu0
    %v3267 = vadd.f32 %v3110, %v3266
    %v3268 = vpop.f32.mrb[0].mxu0
    %3269 = vdwg.mxu0
    %3270 = vmatprep.subr.mxu0 0.0
    %v3271 = vand.u32 %v2996, 4294901760
    %v3272 = vsub.f32 %v2996, %v3271
    %3273 = vmatpush1.msra.mxu0 %v3272
    %3274 = vmatprep.subr.mxu0 0.0
    %v3275 = vand.u32 %v2997, 4294901760
    %v3276 = vsub.f32 %v2997, %v3275
    %3277 = vmatpush1.msra.mxu0 %v3276
    %3278 = vmatprep.subr.mxu0 0.0
    %v3279 = vand.u32 %v2998, 4294901760
    %v3280 = vsub.f32 %v2998, %v3279
    %3281 = vmatpush1.msra.mxu0 %v3280
    %3282 = vmatprep.subr.mxu0 0.0
    %v3283 = vand.u32 %v2999, 4294901760
    %v3284 = vsub.f32 %v2999, %v3283
    %3285 = vmatpush1.msra.mxu0 %v3284
    %3286 = vmatprep.subr.mxu0 0.0
    %v3287 = vand.u32 %v3000, 4294901760
    %v3288 = vsub.f32 %v3000, %v3287
    %3289 = vmatpush1.msra.mxu0 %v3288
    %3290 = vmatprep.subr.mxu0 0.0
    %v3291 = vand.u32 %v3001, 4294901760
    %v3292 = vsub.f32 %v3001, %v3291
    %3293 = vmatpush1.msra.mxu0 %v3292
    %3294 = vmatprep.subr.mxu0 0.0
    %v3295 = vand.u32 %v3002, 4294901760
    %v3296 = vsub.f32 %v3002, %v3295
    %3297 = vmatpush1.msra.mxu0 %v3296
    %3298 = vmatprep.subr.mxu0 0.0
    %v3299 = vand.u32 %v3003, 4294901760
    %v3300 = vsub.f32 %v3003, %v3299
    %3301 = vmatpush1.msra.mxu0 %v3300
    %3302 = vmatprep.subr.mxu0 0.0
    %v3303 = vand.u32 %v3004, 4294901760
    %v3304 = vsub.f32 %v3004, %v3303
    %3305 = vmatpush1.msra.mxu0 %v3304
    %3306 = vmatprep.subr.mxu0 0.0
    %v3307 = vand.u32 %v3005, 4294901760
    %v3308 = vsub.f32 %v3005, %v3307
    %3309 = vmatpush1.msra.mxu0 %v3308
    %3310 = vmatprep.subr.mxu0 0.0
    %v3311 = vand.u32 %v3006, 4294901760
    %v3312 = vsub.f32 %v3006, %v3311
    %3313 = vmatpush1.msra.mxu0 %v3312
    %3314 = vmatprep.subr.mxu0 0.0
    %v3315 = vand.u32 %v3007, 4294901760
    %v3316 = vsub.f32 %v3007, %v3315
    %3317 = vmatpush1.msra.mxu0 %v3316
    %3318 = vmatprep.subr.mxu0 0.0
    %v3319 = vand.u32 %v3008, 4294901760
    %v3320 = vsub.f32 %v3008, %v3319
    %3321 = vmatpush1.msra.mxu0 %v3320
    %3322 = vmatprep.subr.mxu0 0.0
    %v3323 = vand.u32 %v3009, 4294901760
    %v3324 = vsub.f32 %v3009, %v3323
    %3325 = vmatpush1.msra.mxu0 %v3324
    %3326 = vmatprep.subr.mxu0 0.0
    %v3327 = vand.u32 %v3010, 4294901760
    %v3328 = vsub.f32 %v3010, %v3327
    %3329 = vmatpush1.msra.mxu0 %v3328
    %3330 = vmatprep.subr.mxu0 0.0
    %v3331 = vand.u32 %v3011, 4294901760
    %v3332 = vsub.f32 %v3011, %v3331
    %3333 = vmatpush1.msra.mxu0 %v3332
    %3334 = vmatprep.subr.mxu0 0.0
    %3335 = vmatpush1.msra.mxu0 0.0
    %3336 = vmatprep.subr.mxu0 0.0
    %3337 = vmatpush1.msra.mxu0 0.0
    %3338 = vmatprep.subr.mxu0 0.0
    %3339 = vmatpush1.msra.mxu0 0.0
    %3340 = vmatprep.subr.mxu0 0.0
    %3341 = vmatpush1.msra.mxu0 0.0
    %3342 = vmatprep.subr.mxu0 0.0
    %3343 = vmatpush1.msra.mxu0 0.0
    %3344 = vmatprep.subr.mxu0 0.0
    %3345 = vmatpush1.msra.mxu0 0.0
    %3346 = vmatprep.subr.mxu0 0.0
    %3347 = vmatpush1.msra.mxu0 0.0
    %3348 = vmatprep.subr.mxu0 0.0
    %3349 = vmatpush1.msra.mxu0 0.0
    %3350 = vmatprep.subr.mxu0 0.0
    %3351 = vmatpush1.msra.mxu0 0.0
    %3352 = vmatprep.subr.mxu0 0.0
    %3353 = vmatpush1.msra.mxu0 0.0
    %3354 = vmatprep.subr.mxu0 0.0
    %3355 = vmatpush1.msra.mxu0 0.0
    %3356 = vmatprep.subr.mxu0 0.0
    %3357 = vmatpush1.msra.mxu0 0.0
    %3358 = vmatprep.subr.mxu0 0.0
    %3359 = vmatpush1.msra.mxu0 0.0
    %3360 = vmatprep.subr.mxu0 0.0
    %3361 = vmatpush1.msra.mxu0 0.0
    %3362 = vmatprep.subr.mxu0 0.0
    %3363 = vmatpush1.msra.mxu0 0.0
    %3364 = vmatprep.subr.mxu0 0.0
    %3365 = vmatpush1.msra.mxu0 0.0
    %3366 = vmatprep.mubr.f32.mxu0 0.0
    %v3367 = vand.u32 %v40, 4294901760
    %v3368 = vsub.f32 %v40, %v3367
    %3369 = vmatmul.mubr.f32.gmra.mrb[0].mxu0 %v3368
    %v3370 = vpop.f32.mrb[0].mxu0
    %v3371 = vadd.f32 %v3261, %v3370
    %v3372 = vpop.f32.mrb[0].mxu0
    %3373 = vmatprep.mubr.f32.mxu0 0.0
    %v3374 = vand.u32 %v41, 4294901760
    %v3375 = vsub.f32 %v41, %v3374
    %3376 = vmatmul.mubr.f32.gmra.mrb[0].mxu0 %v3375
    %v3377 = vpop.f32.mrb[0].mxu0
    %v3378 = vadd.f32 %v3267, %v3377
    %v3379 = vpop.f32.mrb[0].mxu0
    %3380 = vdwg.mxu0
    %3381 = vmatprep.subr.mxu0 0.0
    %v3382 = vand.u32 %v2996, 4294901760
    %3383 = vmatpush1.msra.mxu0 %v3382
    %3384 = vmatprep.subr.mxu0 0.0
    %v3385 = vand.u32 %v2997, 4294901760
    %3386 = vmatpush1.msra.mxu0 %v3385
    %3387 = vmatprep.subr.mxu0 0.0
    %v3388 = vand.u32 %v2998, 4294901760
    %3389 = vmatpush1.msra.mxu0 %v3388
    %3390 = vmatprep.subr.mxu0 0.0
    %v3391 = vand.u32 %v2999, 4294901760
    %3392 = vmatpush1.msra.mxu0 %v3391
    %3393 = vmatprep.subr.mxu0 0.0
    %v3394 = vand.u32 %v3000, 4294901760
    %3395 = vmatpush1.msra.mxu0 %v3394
    %3396 = vmatprep.subr.mxu0 0.0
    %v3397 = vand.u32 %v3001, 4294901760
    %3398 = vmatpush1.msra.mxu0 %v3397
    %3399 = vmatprep.subr.mxu0 0.0
    %v3400 = vand.u32 %v3002, 4294901760
    %3401 = vmatpush1.msra.mxu0 %v3400
    %3402 = vmatprep.subr.mxu0 0.0
    %v3403 = vand.u32 %v3003, 4294901760
    %3404 = vmatpush1.msra.mxu0 %v3403
    %3405 = vmatprep.subr.mxu0 0.0
    %v3406 = vand.u32 %v3004, 4294901760
    %3407 = vmatpush1.msra.mxu0 %v3406
    %3408 = vmatprep.subr.mxu0 0.0
    %v3409 = vand.u32 %v3005, 4294901760
    %3410 = vmatpush1.msra.mxu0 %v3409
    %3411 = vmatprep.subr.mxu0 0.0
    %v3412 = vand.u32 %v3006, 4294901760
    %3413 = vmatpush1.msra.mxu0 %v3412
    %3414 = vmatprep.subr.mxu0 0.0
    %v3415 = vand.u32 %v3007, 4294901760
    %3416 = vmatpush1.msra.mxu0 %v3415
    %3417 = vmatprep.subr.mxu0 0.0
    %v3418 = vand.u32 %v3008, 4294901760
    %3419 = vmatpush1.msra.mxu0 %v3418
    %3420 = vmatprep.subr.mxu0 0.0
    %v3421 = vand.u32 %v3009, 4294901760
    %3422 = vmatpush1.msra.mxu0 %v3421
    %3423 = vmatprep.subr.mxu0 0.0
    %v3424 = vand.u32 %v3010, 4294901760
    %3425 = vmatpush1.msra.mxu0 %v3424
    %3426 = vmatprep.subr.mxu0 0.0
    %v3427 = vand.u32 %v3011, 4294901760
    %3428 = vmatpush1.msra.mxu0 %v3427
    %3429 = vmatprep.subr.mxu0 0.0
    %3430 = vmatpush1.msra.mxu0 0.0
    %3431 = vmatprep.subr.mxu0 0.0
    %3432 = vmatpush1.msra.mxu0 0.0
    %3433 = vmatprep.subr.mxu0 0.0
    %3434 = vmatpush1.msra.mxu0 0.0
    %3435 = vmatprep.subr.mxu0 0.0
    %3436 = vmatpush1.msra.mxu0 0.0
    %3437 = vmatprep.subr.mxu0 0.0
    %3438 = vmatpush1.msra.mxu0 0.0
    %3439 = vmatprep.subr.mxu0 0.0
    %3440 = vmatpush1.msra.mxu0 0.0
    %3441 = vmatprep.subr.mxu0 0.0
    %3442 = vmatpush1.msra.mxu0 0.0
    %3443 = vmatprep.subr.mxu0 0.0
    %3444 = vmatpush1.msra.mxu0 0.0
    %3445 = vmatprep.subr.mxu0 0.0
    %3446 = vmatpush1.msra.mxu0 0.0
    %3447 = vmatprep.subr.mxu0 0.0
    %3448 = vmatpush1.msra.mxu0 0.0
    %3449 = vmatprep.subr.mxu0 0.0
    %3450 = vmatpush1.msra.mxu0 0.0
    %3451 = vmatprep.subr.mxu0 0.0
    %3452 = vmatpush1.msra.mxu0 0.0
    %3453 = vmatprep.subr.mxu0 0.0
    %3454 = vmatpush1.msra.mxu0 0.0
    %3455 = vmatprep.subr.mxu0 0.0
    %3456 = vmatpush1.msra.mxu0 0.0
    %3457 = vmatprep.subr.mxu0 0.0
    %3458 = vmatpush1.msra.mxu0 0.0
    %3459 = vmatprep.subr.mxu0 0.0
    %3460 = vmatpush1.msra.mxu0 0.0
    %3461 = vmatprep.mubr.f32.mxu0 0.0
    %v3462 = vand.u32 %v40, 4294901760
    %v3463 = vsub.f32 %v40, %v3462
    %v3464 = vand.u32 %v3463, 4294901760
    %3465 = vmatmul.mubr.f32.gmra.mrb[0].mxu0 %v3464
    %v3466 = vpop.f32.mrb[0].mxu0
    %v3467 = vadd.f32 %v3371, %v3466
    %v3468 = vpop.f32.mrb[0].mxu0
    %3469 = vmatprep.mubr.f32.mxu0 0.0
    %v3470 = vand.u32 %v41, 4294901760
    %v3471 = vsub.f32 %v41, %v3470
    %v3472 = vand.u32 %v3471, 4294901760
    %3473 = vmatmul.mubr.f32.gmra.mrb[0].mxu0 %v3472
    %v3474 = vpop.f32.mrb[0].mxu0
    %v3475 = vadd.f32 %v3378, %v3474
    %v3476 = vpop.f32.mrb[0].mxu0
    %3477 = vdwg.mxu0
    %3478 = vmatprep.subr.mxu0 0.0
    %v3479 = vand.u32 %v2996, 4294901760
    %v3480 = vsub.f32 %v2996, %v3479
    %v3481 = vand.u32 %v3480, 4294901760
    %3482 = vmatpush1.msra.mxu0 %v3481
    %3483 = vmatprep.subr.mxu0 0.0
    %v3484 = vand.u32 %v2997, 4294901760
    %v3485 = vsub.f32 %v2997, %v3484
    %v3486 = vand.u32 %v3485, 4294901760
    %3487 = vmatpush1.msra.mxu0 %v3486
    %3488 = vmatprep.subr.mxu0 0.0
    %v3489 = vand.u32 %v2998, 4294901760
    %v3490 = vsub.f32 %v2998, %v3489
    %v3491 = vand.u32 %v3490, 4294901760
    %3492 = vmatpush1.msra.mxu0 %v3491
    %3493 = vmatprep.subr.mxu0 0.0
    %v3494 = vand.u32 %v2999, 4294901760
    %v3495 = vsub.f32 %v2999, %v3494
    %v3496 = vand.u32 %v3495, 4294901760
    %3497 = vmatpush1.msra.mxu0 %v3496
    %3498 = vmatprep.subr.mxu0 0.0
    %v3499 = vand.u32 %v3000, 4294901760
    %v3500 = vsub.f32 %v3000, %v3499
    %v3501 = vand.u32 %v3500, 4294901760
    %3502 = vmatpush1.msra.mxu0 %v3501
    %3503 = vmatprep.subr.mxu0 0.0
    %v3504 = vand.u32 %v3001, 4294901760
    %v3505 = vsub.f32 %v3001, %v3504
    %v3506 = vand.u32 %v3505, 4294901760
    %3507 = vmatpush1.msra.mxu0 %v3506
    %3508 = vmatprep.subr.mxu0 0.0
    %v3509 = vand.u32 %v3002, 4294901760
    %v3510 = vsub.f32 %v3002, %v3509
    %v3511 = vand.u32 %v3510, 4294901760
    %3512 = vmatpush1.msra.mxu0 %v3511
    %3513 = vmatprep.subr.mxu0 0.0
    %v3514 = vand.u32 %v3003, 4294901760
    %v3515 = vsub.f32 %v3003, %v3514
    %v3516 = vand.u32 %v3515, 4294901760
    %3517 = vmatpush1.msra.mxu0 %v3516
    %3518 = vmatprep.subr.mxu0 0.0
    %v3519 = vand.u32 %v3004, 4294901760
    %v3520 = vsub.f32 %v3004, %v3519
    %v3521 = vand.u32 %v3520, 4294901760
    %3522 = vmatpush1.msra.mxu0 %v3521
    %3523 = vmatprep.subr.mxu0 0.0
    %v3524 = vand.u32 %v3005, 4294901760
    %v3525 = vsub.f32 %v3005, %v3524
    %v3526 = vand.u32 %v3525, 4294901760
    %3527 = vmatpush1.msra.mxu0 %v3526
    %3528 = vmatprep.subr.mxu0 0.0
    %v3529 = vand.u32 %v3006, 4294901760
    %v3530 = vsub.f32 %v3006, %v3529
    %v3531 = vand.u32 %v3530, 4294901760
    %3532 = vmatpush1.msra.mxu0 %v3531
    %3533 = vmatprep.subr.mxu0 0.0
    %v3534 = vand.u32 %v3007, 4294901760
    %v3535 = vsub.f32 %v3007, %v3534
    %v3536 = vand.u32 %v3535, 4294901760
    %3537 = vmatpush1.msra.mxu0 %v3536
    %3538 = vmatprep.subr.mxu0 0.0
    %v3539 = vand.u32 %v3008, 4294901760
    %v3540 = vsub.f32 %v3008, %v3539
    %v3541 = vand.u32 %v3540, 4294901760
    %3542 = vmatpush1.msra.mxu0 %v3541
    %3543 = vmatprep.subr.mxu0 0.0
    %v3544 = vand.u32 %v3009, 4294901760
    %v3545 = vsub.f32 %v3009, %v3544
    %v3546 = vand.u32 %v3545, 4294901760
    %3547 = vmatpush1.msra.mxu0 %v3546
    %3548 = vmatprep.subr.mxu0 0.0
    %v3549 = vand.u32 %v3010, 4294901760
    %v3550 = vsub.f32 %v3010, %v3549
    %v3551 = vand.u32 %v3550, 4294901760
    %3552 = vmatpush1.msra.mxu0 %v3551
    %3553 = vmatprep.subr.mxu0 0.0
    %v3554 = vand.u32 %v3011, 4294901760
    %v3555 = vsub.f32 %v3011, %v3554
    %v3556 = vand.u32 %v3555, 4294901760
    %3557 = vmatpush1.msra.mxu0 %v3556
    %3558 = vmatprep.subr.mxu0 0.0
    %3559 = vmatpush1.msra.mxu0 0.0
    %3560 = vmatprep.subr.mxu0 0.0
    %3561 = vmatpush1.msra.mxu0 0.0
    %3562 = vmatprep.subr.mxu0 0.0
    %3563 = vmatpush1.msra.mxu0 0.0
    %3564 = vmatprep.subr.mxu0 0.0
    %3565 = vmatpush1.msra.mxu0 0.0
    %3566 = vmatprep.subr.mxu0 0.0
    %3567 = vmatpush1.msra.mxu0 0.0
    %3568 = vmatprep.subr.mxu0 0.0
    %3569 = vmatpush1.msra.mxu0 0.0
    %3570 = vmatprep.subr.mxu0 0.0
    %3571 = vmatpush1.msra.mxu0 0.0
    %3572 = vmatprep.subr.mxu0 0.0
    %3573 = vmatpush1.msra.mxu0 0.0
    %3574 = vmatprep.subr.mxu0 0.0
    %3575 = vmatpush1.msra.mxu0 0.0
    %3576 = vmatprep.subr.mxu0 0.0
    %3577 = vmatpush1.msra.mxu0 0.0
    %3578 = vmatprep.subr.mxu0 0.0
    %3579 = vmatpush1.msra.mxu0 0.0
    %3580 = vmatprep.subr.mxu0 0.0
    %3581 = vmatpush1.msra.mxu0 0.0
    %3582 = vmatprep.subr.mxu0 0.0
    %3583 = vmatpush1.msra.mxu0 0.0
    %3584 = vmatprep.subr.mxu0 0.0
    %3585 = vmatpush1.msra.mxu0 0.0
    %3586 = vmatprep.subr.mxu0 0.0
    %3587 = vmatpush1.msra.mxu0 0.0
    %3588 = vmatprep.subr.mxu0 0.0
    %3589 = vmatpush1.msra.mxu0 0.0
    %3590 = vmatprep.mubr.f32.mxu0 0.0
    %v3591 = vand.u32 %v40, 4294901760
    %3592 = vmatmul.mubr.f32.gmra.mrb[0].mxu0 %v3591
    %v3593 = vpop.f32.mrb[0].mxu0
    %v3594 = vadd.f32 %v3467, %v3593
    %v3595 = vpop.f32.mrb[0].mxu0
    %3596 = vmatprep.mubr.f32.mxu0 0.0
    %v3597 = vand.u32 %v41, 4294901760
    %3598 = vmatmul.mubr.f32.gmra.mrb[0].mxu0 %v3597
    %v3599 = vpop.f32.mrb[0].mxu0
    %v3600 = vadd.f32 %v3475, %v3599
    %v3601 = vpop.f32.mrb[0].mxu0
    %3602 = vdwg.mxu0
    %3603 = vmatprep.subr.mxu0 0.0
    %v3604 = vand.u32 %v2996, 4294901760
    %3605 = vmatpush1.msra.mxu0 %v3604
    %3606 = vmatprep.subr.mxu0 0.0
    %v3607 = vand.u32 %v2997, 4294901760
    %3608 = vmatpush1.msra.mxu0 %v3607
    %3609 = vmatprep.subr.mxu0 0.0
    %v3610 = vand.u32 %v2998, 4294901760
    %3611 = vmatpush1.msra.mxu0 %v3610
    %3612 = vmatprep.subr.mxu0 0.0
    %v3613 = vand.u32 %v2999, 4294901760
    %3614 = vmatpush1.msra.mxu0 %v3613
    %3615 = vmatprep.subr.mxu0 0.0
    %v3616 = vand.u32 %v3000, 4294901760
    %3617 = vmatpush1.msra.mxu0 %v3616
    %3618 = vmatprep.subr.mxu0 0.0
    %v3619 = vand.u32 %v3001, 4294901760
    %3620 = vmatpush1.msra.mxu0 %v3619
    %3621 = vmatprep.subr.mxu0 0.0
    %v3622 = vand.u32 %v3002, 4294901760
    %3623 = vmatpush1.msra.mxu0 %v3622
    %3624 = vmatprep.subr.mxu0 0.0
    %v3625 = vand.u32 %v3003, 4294901760
    %3626 = vmatpush1.msra.mxu0 %v3625
    %3627 = vmatprep.subr.mxu0 0.0
    %v3628 = vand.u32 %v3004, 4294901760
    %3629 = vmatpush1.msra.mxu0 %v3628
    %3630 = vmatprep.subr.mxu0 0.0
    %v3631 = vand.u32 %v3005, 4294901760
    %3632 = vmatpush1.msra.mxu0 %v3631
    %3633 = vmatprep.subr.mxu0 0.0
    %v3634 = vand.u32 %v3006, 4294901760
    %3635 = vmatpush1.msra.mxu0 %v3634
    %3636 = vmatprep.subr.mxu0 0.0
    %v3637 = vand.u32 %v3007, 4294901760
    %3638 = vmatpush1.msra.mxu0 %v3637
    %3639 = vmatprep.subr.mxu0 0.0
    %v3640 = vand.u32 %v3008, 4294901760
    %3641 = vmatpush1.msra.mxu0 %v3640
    %3642 = vmatprep.subr.mxu0 0.0
    %v3643 = vand.u32 %v3009, 4294901760
    %3644 = vmatpush1.msra.mxu0 %v3643
    %3645 = vmatprep.subr.mxu0 0.0
    %v3646 = vand.u32 %v3010, 4294901760
    %3647 = vmatpush1.msra.mxu0 %v3646
    %3648 = vmatprep.subr.mxu0 0.0
    %v3649 = vand.u32 %v3011, 4294901760
    %3650 = vmatpush1.msra.mxu0 %v3649
    %3651 = vmatprep.subr.mxu0 0.0
    %3652 = vmatpush1.msra.mxu0 0.0
    %3653 = vmatprep.subr.mxu0 0.0
    %3654 = vmatpush1.msra.mxu0 0.0
    %3655 = vmatprep.subr.mxu0 0.0
    %3656 = vmatpush1.msra.mxu0 0.0
    %3657 = vmatprep.subr.mxu0 0.0
    %3658 = vmatpush1.msra.mxu0 0.0
    %3659 = vmatprep.subr.mxu0 0.0
    %3660 = vmatpush1.msra.mxu0 0.0
    %3661 = vmatprep.subr.mxu0 0.0
    %3662 = vmatpush1.msra.mxu0 0.0
    %3663 = vmatprep.subr.mxu0 0.0
    %3664 = vmatpush1.msra.mxu0 0.0
    %3665 = vmatprep.subr.mxu0 0.0
    %3666 = vmatpush1.msra.mxu0 0.0
    %3667 = vmatprep.subr.mxu0 0.0
    %3668 = vmatpush1.msra.mxu0 0.0
    %3669 = vmatprep.subr.mxu0 0.0
    %3670 = vmatpush1.msra.mxu0 0.0
    %3671 = vmatprep.subr.mxu0 0.0
    %3672 = vmatpush1.msra.mxu0 0.0
    %3673 = vmatprep.subr.mxu0 0.0
    %3674 = vmatpush1.msra.mxu0 0.0
    %3675 = vmatprep.subr.mxu0 0.0
    %3676 = vmatpush1.msra.mxu0 0.0
    %3677 = vmatprep.subr.mxu0 0.0
    %3678 = vmatpush1.msra.mxu0 0.0
    %3679 = vmatprep.subr.mxu0 0.0
    %3680 = vmatpush1.msra.mxu0 0.0
    %3681 = vmatprep.subr.mxu0 0.0
    %3682 = vmatpush1.msra.mxu0 0.0
    %3683 = vmatprep.mubr.f32.mxu0 0.0
    %v3684 = vand.u32 %v40, 4294901760
    %3685 = vmatmul.mubr.f32.gmra.mrb[0].mxu0 %v3684
    %v3686 = vpop.f32.mrb[0].mxu0
    %v3687 = vadd.f32 %v3594, %v3686
    %v3688 = vpop.f32.mrb[0].mxu0
    %3689 = vmatprep.mubr.f32.mxu0 0.0
    %v3690 = vand.u32 %v41, 4294901760
    %3691 = vmatmul.mubr.f32.gmra.mrb[0].mxu0 %v3690
    %v3692 = vpop.f32.mrb[0].mxu0
    %v3693 = vadd.f32 %v3600, %v3692
    %v3694 = vpop.f32.mrb[0].mxu0
    %3695 = vdwg.mxu0
    %s3696 = scalar_lea.vmem [#allocation5], 640
    %v3697 = vld [vmem:[%s3696] sm:$0xff]
    %v3698 = vld [vmem:[%s3696 + $0x8] sm:$0xff]
    %v3699 = vld [vmem:[%s3696 + $0x10] sm:$0xff]
    %v3700 = vld [vmem:[%s3696 + $0x18] sm:$0xff]
    %v3701 = vld [vmem:[%s3696 + $0x20] sm:$0xff]
    %v3702 = vld [vmem:[%s3696 + $0x28] sm:$0xff]
    %v3703 = vld [vmem:[%s3696 + $0x30] sm:$0xff]
    %v3704 = vld [vmem:[%s3696 + $0x38] sm:$0xff]
    %v3705 = vld [vmem:[%s3696 + $0x40] sm:$0xff]
    %v3706 = vld [vmem:[%s3696 + $0x48] sm:$0xff]
    %v3707 = vld [vmem:[%s3696 + $0x50] sm:$0xff]
    %v3708 = vld [vmem:[%s3696 + $0x58] sm:$0xff]
    %v3709 = vld [vmem:[%s3696 + $0x60] sm:$0xff]
    %v3710 = vld [vmem:[%s3696 + $0x68] sm:$0xff]
    %v3711 = vld [vmem:[%s3696 + $0x70] sm:$0xff]
    %v3712 = vld [vmem:[%s3696 + $0x78] sm:$0xff]
    %3713 = vmatprep.subr.mxu0 0.0
    %v3714 = vand.u32 %v3697, 4294901760
    %3715 = vmatpush1.msra.mxu0 %v3714
    %3716 = vmatprep.subr.mxu0 0.0
    %v3717 = vand.u32 %v3698, 4294901760
    %3718 = vmatpush1.msra.mxu0 %v3717
    %3719 = vmatprep.subr.mxu0 0.0
    %v3720 = vand.u32 %v3699, 4294901760
    %3721 = vmatpush1.msra.mxu0 %v3720
    %3722 = vmatprep.subr.mxu0 0.0
    %v3723 = vand.u32 %v3700, 4294901760
    %3724 = vmatpush1.msra.mxu0 %v3723
    %3725 = vmatprep.subr.mxu0 0.0
    %v3726 = vand.u32 %v3701, 4294901760
    %3727 = vmatpush1.msra.mxu0 %v3726
    %3728 = vmatprep.subr.mxu0 0.0
    %v3729 = vand.u32 %v3702, 4294901760
    %3730 = vmatpush1.msra.mxu0 %v3729
    %3731 = vmatprep.subr.mxu0 0.0
    %v3732 = vand.u32 %v3703, 4294901760
    %3733 = vmatpush1.msra.mxu0 %v3732
    %3734 = vmatprep.subr.mxu0 0.0
    %v3735 = vand.u32 %v3704, 4294901760
    %3736 = vmatpush1.msra.mxu0 %v3735
    %3737 = vmatprep.subr.mxu0 0.0
    %v3738 = vand.u32 %v3705, 4294901760
    %3739 = vmatpush1.msra.mxu0 %v3738
    %3740 = vmatprep.subr.mxu0 0.0
    %v3741 = vand.u32 %v3706, 4294901760
    %3742 = vmatpush1.msra.mxu0 %v3741
    %3743 = vmatprep.subr.mxu0 0.0
    %v3744 = vand.u32 %v3707, 4294901760
    %3745 = vmatpush1.msra.mxu0 %v3744
    %3746 = vmatprep.subr.mxu0 0.0
    %v3747 = vand.u32 %v3708, 4294901760
    %3748 = vmatpush1.msra.mxu0 %v3747
    %3749 = vmatprep.subr.mxu0 0.0
    %v3750 = vand.u32 %v3709, 4294901760
    %3751 = vmatpush1.msra.mxu0 %v3750
    %3752 = vmatprep.subr.mxu0 0.0
    %v3753 = vand.u32 %v3710, 4294901760
    %3754 = vmatpush1.msra.mxu0 %v3753
    %3755 = vmatprep.subr.mxu0 0.0
    %v3756 = vand.u32 %v3711, 4294901760
    %3757 = vmatpush1.msra.mxu0 %v3756
    %3758 = vmatprep.subr.mxu0 0.0
    %v3759 = vand.u32 %v3712, 4294901760
    %3760 = vmatpush1.msra.mxu0 %v3759
    %3761 = vmatprep.subr.mxu0 0.0
    %3762 = vmatpush1.msra.mxu0 0.0
    %3763 = vmatprep.subr.mxu0 0.0
    %3764 = vmatpush1.msra.mxu0 0.0
    %3765 = vmatprep.subr.mxu0 0.0
    %3766 = vmatpush1.msra.mxu0 0.0
    %3767 = vmatprep.subr.mxu0 0.0
    %3768 = vmatpush1.msra.mxu0 0.0
    %3769 = vmatprep.subr.mxu0 0.0
    %3770 = vmatpush1.msra.mxu0 0.0
    %3771 = vmatprep.subr.mxu0 0.0
    %3772 = vmatpush1.msra.mxu0 0.0
    %3773 = vmatprep.subr.mxu0 0.0
    %3774 = vmatpush1.msra.mxu0 0.0
    %3775 = vmatprep.subr.mxu0 0.0
    %3776 = vmatpush1.msra.mxu0 0.0
    %3777 = vmatprep.subr.mxu0 0.0
    %3778 = vmatpush1.msra.mxu0 0.0
    %3779 = vmatprep.subr.mxu0 0.0
    %3780 = vmatpush1.msra.mxu0 0.0
    %3781 = vmatprep.subr.mxu0 0.0
    %3782 = vmatpush1.msra.mxu0 0.0
    %3783 = vmatprep.subr.mxu0 0.0
    %3784 = vmatpush1.msra.mxu0 0.0
    %3785 = vmatprep.subr.mxu0 0.0
    %3786 = vmatpush1.msra.mxu0 0.0
    %3787 = vmatprep.subr.mxu0 0.0
    %3788 = vmatpush1.msra.mxu0 0.0
    %3789 = vmatprep.subr.mxu0 0.0
    %3790 = vmatpush1.msra.mxu0 0.0
    %3791 = vmatprep.subr.mxu0 0.0
    %3792 = vmatpush1.msra.mxu0 0.0
    %3793 = vmatprep.mubr.f32.mxu0 0.0
    %v3794 = vand.u32 %v40, 4294901760
    %v3795 = vsub.f32 %v40, %v3794
    %v3796 = vand.u32 %v3795, 4294901760
    %v3797 = vsub.f32 %v3795, %v3796
    %v3798 = vand.u32 %v3797, 4294901760
    %3799 = vmatmul.mubr.f32.gmra.mrb[0].mxu0 %v3798
    %v3800 = vpop.f32.mrb[0].mxu0
    %v3801 = vadd.f32 0.0, %v3800
    %v3802 = vpop.f32.mrb[0].mxu0
    %3803 = vmatprep.mubr.f32.mxu0 0.0
    %v3804 = vand.u32 %v41, 4294901760
    %v3805 = vsub.f32 %v41, %v3804
    %v3806 = vand.u32 %v3805, 4294901760
    %v3807 = vsub.f32 %v3805, %v3806
    %v3808 = vand.u32 %v3807, 4294901760
    %3809 = vmatmul.mubr.f32.gmra.mrb[0].mxu0 %v3808
    %v3810 = vpop.f32.mrb[0].mxu0
    %v3811 = vadd.f32 0.0, %v3810
    %v3812 = vpop.f32.mrb[0].mxu0
    %3813 = vdwg.mxu0
    %3814 = vmatprep.subr.mxu0 0.0
    %v3815 = vand.u32 %v3697, 4294901760
    %v3816 = vsub.f32 %v3697, %v3815
    %v3817 = vand.u32 %v3816, 4294901760
    %v3818 = vsub.f32 %v3816, %v3817
    %v3819 = vand.u32 %v3818, 4294901760
    %3820 = vmatpush1.msra.mxu0 %v3819
    %3821 = vmatprep.subr.mxu0 0.0
    %v3822 = vand.u32 %v3698, 4294901760
    %v3823 = vsub.f32 %v3698, %v3822
    %v3824 = vand.u32 %v3823, 4294901760
    %v3825 = vsub.f32 %v3823, %v3824
    %v3826 = vand.u32 %v3825, 4294901760
    %3827 = vmatpush1.msra.mxu0 %v3826
    %3828 = vmatprep.subr.mxu0 0.0
    %v3829 = vand.u32 %v3699, 4294901760
    %v3830 = vsub.f32 %v3699, %v3829
    %v3831 = vand.u32 %v3830, 4294901760
    %v3832 = vsub.f32 %v3830, %v3831
    %v3833 = vand.u32 %v3832, 4294901760
    %3834 = vmatpush1.msra.mxu0 %v3833
    %3835 = vmatprep.subr.mxu0 0.0
    %v3836 = vand.u32 %v3700, 4294901760
    %v3837 = vsub.f32 %v3700, %v3836
    %v3838 = vand.u32 %v3837, 4294901760
    %v3839 = vsub.f32 %v3837, %v3838
    %v3840 = vand.u32 %v3839, 4294901760
    %3841 = vmatpush1.msra.mxu0 %v3840
    %3842 = vmatprep.subr.mxu0 0.0
    %v3843 = vand.u32 %v3701, 4294901760
    %v3844 = vsub.f32 %v3701, %v3843
    %v3845 = vand.u32 %v3844, 4294901760
    %v3846 = vsub.f32 %v3844, %v3845
    %v3847 = vand.u32 %v3846, 4294901760
    %3848 = vmatpush1.msra.mxu0 %v3847
    %3849 = vmatprep.subr.mxu0 0.0
    %v3850 = vand.u32 %v3702, 4294901760
    %v3851 = vsub.f32 %v3702, %v3850
    %v3852 = vand.u32 %v3851, 4294901760
    %v3853 = vsub.f32 %v3851, %v3852
    %v3854 = vand.u32 %v3853, 4294901760
    %3855 = vmatpush1.msra.mxu0 %v3854
    %3856 = vmatprep.subr.mxu0 0.0
    %v3857 = vand.u32 %v3703, 4294901760
    %v3858 = vsub.f32 %v3703, %v3857
    %v3859 = vand.u32 %v3858, 4294901760
    %v3860 = vsub.f32 %v3858, %v3859
    %v3861 = vand.u32 %v3860, 4294901760
    %3862 = vmatpush1.msra.mxu0 %v3861
    %3863 = vmatprep.subr.mxu0 0.0
    %v3864 = vand.u32 %v3704, 4294901760
    %v3865 = vsub.f32 %v3704, %v3864
    %v3866 = vand.u32 %v3865, 4294901760
    %v3867 = vsub.f32 %v3865, %v3866
    %v3868 = vand.u32 %v3867, 4294901760
    %3869 = vmatpush1.msra.mxu0 %v3868
    %3870 = vmatprep.subr.mxu0 0.0
    %v3871 = vand.u32 %v3705, 4294901760
    %v3872 = vsub.f32 %v3705, %v3871
    %v3873 = vand.u32 %v3872, 4294901760
    %v3874 = vsub.f32 %v3872, %v3873
    %v3875 = vand.u32 %v3874, 4294901760
    %3876 = vmatpush1.msra.mxu0 %v3875
    %3877 = vmatprep.subr.mxu0 0.0
    %v3878 = vand.u32 %v3706, 4294901760
    %v3879 = vsub.f32 %v3706, %v3878
    %v3880 = vand.u32 %v3879, 4294901760
    %v3881 = vsub.f32 %v3879, %v3880
    %v3882 = vand.u32 %v3881, 4294901760
    %3883 = vmatpush1.msra.mxu0 %v3882
    %3884 = vmatprep.subr.mxu0 0.0
    %v3885 = vand.u32 %v3707, 4294901760
    %v3886 = vsub.f32 %v3707, %v3885
    %v3887 = vand.u32 %v3886, 4294901760
    %v3888 = vsub.f32 %v3886, %v3887
    %v3889 = vand.u32 %v3888, 4294901760
    %3890 = vmatpush1.msra.mxu0 %v3889
    %3891 = vmatprep.subr.mxu0 0.0
    %v3892 = vand.u32 %v3708, 4294901760
    %v3893 = vsub.f32 %v3708, %v3892
    %v3894 = vand.u32 %v3893, 4294901760
    %v3895 = vsub.f32 %v3893, %v3894
    %v3896 = vand.u32 %v3895, 4294901760
    %3897 = vmatpush1.msra.mxu0 %v3896
    %3898 = vmatprep.subr.mxu0 0.0
    %v3899 = vand.u32 %v3709, 4294901760
    %v3900 = vsub.f32 %v3709, %v3899
    %v3901 = vand.u32 %v3900, 4294901760
    %v3902 = vsub.f32 %v3900, %v3901
    %v3903 = vand.u32 %v3902, 4294901760
    %3904 = vmatpush1.msra.mxu0 %v3903
    %3905 = vmatprep.subr.mxu0 0.0
    %v3906 = vand.u32 %v3710, 4294901760
    %v3907 = vsub.f32 %v3710, %v3906
    %v3908 = vand.u32 %v3907, 4294901760
    %v3909 = vsub.f32 %v3907, %v3908
    %v3910 = vand.u32 %v3909, 4294901760
    %3911 = vmatpush1.msra.mxu0 %v3910
    %3912 = vmatprep.subr.mxu0 0.0
    %v3913 = vand.u32 %v3711, 4294901760
    %v3914 = vsub.f32 %v3711, %v3913
    %v3915 = vand.u32 %v3914, 4294901760
    %v3916 = vsub.f32 %v3914, %v3915
    %v3917 = vand.u32 %v3916, 4294901760
    %3918 = vmatpush1.msra.mxu0 %v3917
    %3919 = vmatprep.subr.mxu0 0.0
    %v3920 = vand.u32 %v3712, 4294901760
    %v3921 = vsub.f32 %v3712, %v3920
    %v3922 = vand.u32 %v3921, 4294901760
    %v3923 = vsub.f32 %v3921, %v3922
    %v3924 = vand.u32 %v3923, 4294901760
    %3925 = vmatpush1.msra.mxu0 %v3924
    %3926 = vmatprep.subr.mxu0 0.0
    %3927 = vmatpush1.msra.mxu0 0.0
    %3928 = vmatprep.subr.mxu0 0.0
    %3929 = vmatpush1.msra.mxu0 0.0
    %3930 = vmatprep.subr.mxu0 0.0
    %3931 = vmatpush1.msra.mxu0 0.0
    %3932 = vmatprep.subr.mxu0 0.0
    %3933 = vmatpush1.msra.mxu0 0.0
    %3934 = vmatprep.subr.mxu0 0.0
    %3935 = vmatpush1.msra.mxu0 0.0
    %3936 = vmatprep.subr.mxu0 0.0
    %3937 = vmatpush1.msra.mxu0 0.0
    %3938 = vmatprep.subr.mxu0 0.0
    %3939 = vmatpush1.msra.mxu0 0.0
    %3940 = vmatprep.subr.mxu0 0.0
    %3941 = vmatpush1.msra.mxu0 0.0
    %3942 = vmatprep.subr.mxu0 0.0
    %3943 = vmatpush1.msra.mxu0 0.0
    %3944 = vmatprep.subr.mxu0 0.0
    %3945 = vmatpush1.msra.mxu0 0.0
    %3946 = vmatprep.subr.mxu0 0.0
    %3947 = vmatpush1.msra.mxu0 0.0
    %3948 = vmatprep.subr.mxu0 0.0
    %3949 = vmatpush1.msra.mxu0 0.0
    %3950 = vmatprep.subr.mxu0 0.0
    %3951 = vmatpush1.msra.mxu0 0.0
    %3952 = vmatprep.subr.mxu0 0.0
    %3953 = vmatpush1.msra.mxu0 0.0
    %3954 = vmatprep.subr.mxu0 0.0
    %3955 = vmatpush1.msra.mxu0 0.0
    %3956 = vmatprep.subr.mxu0 0.0
    %3957 = vmatpush1.msra.mxu0 0.0
    %3958 = vmatprep.mubr.f32.mxu0 0.0
    %v3959 = vand.u32 %v40, 4294901760
    %3960 = vmatmul.mubr.f32.gmra.mrb[0].mxu0 %v3959
    %v3961 = vpop.f32.mrb[0].mxu0
    %v3962 = vadd.f32 %v3801, %v3961
    %v3963 = vpop.f32.mrb[0].mxu0
    %3964 = vmatprep.mubr.f32.mxu0 0.0
    %v3965 = vand.u32 %v41, 4294901760
    %3966 = vmatmul.mubr.f32.gmra.mrb[0].mxu0 %v3965
    %v3967 = vpop.f32.mrb[0].mxu0
    %v3968 = vadd.f32 %v3811, %v3967
    %v3969 = vpop.f32.mrb[0].mxu0
    %3970 = vdwg.mxu0
    %3971 = vmatprep.subr.mxu0 0.0
    %v3972 = vand.u32 %v3697, 4294901760
    %v3973 = vsub.f32 %v3697, %v3972
    %3974 = vmatpush1.msra.mxu0 %v3973
    %3975 = vmatprep.subr.mxu0 0.0
    %v3976 = vand.u32 %v3698, 4294901760
    %v3977 = vsub.f32 %v3698, %v3976
    %3978 = vmatpush1.msra.mxu0 %v3977
    %3979 = vmatprep.subr.mxu0 0.0
    %v3980 = vand.u32 %v3699, 4294901760
    %v3981 = vsub.f32 %v3699, %v3980
    %3982 = vmatpush1.msra.mxu0 %v3981
    %3983 = vmatprep.subr.mxu0 0.0
    %v3984 = vand.u32 %v3700, 4294901760
    %v3985 = vsub.f32 %v3700, %v3984
    %3986 = vmatpush1.msra.mxu0 %v3985
    %3987 = vmatprep.subr.mxu0 0.0
    %v3988 = vand.u32 %v3701, 4294901760
    %v3989 = vsub.f32 %v3701, %v3988
    %3990 = vmatpush1.msra.mxu0 %v3989
    %3991 = vmatprep.subr.mxu0 0.0
    %v3992 = vand.u32 %v3702, 4294901760
    %v3993 = vsub.f32 %v3702, %v3992
    %3994 = vmatpush1.msra.mxu0 %v3993
    %3995 = vmatprep.subr.mxu0 0.0
    %v3996 = vand.u32 %v3703, 4294901760
    %v3997 = vsub.f32 %v3703, %v3996
    %3998 = vmatpush1.msra.mxu0 %v3997
    %3999 = vmatprep.subr.mxu0 0.0
    %v4000 = vand.u32 %v3704, 4294901760
    %v4001 = vsub.f32 %v3704, %v4000
    %4002 = vmatpush1.msra.mxu0 %v4001
    %4003 = vmatprep.subr.mxu0 0.0
    %v4004 = vand.u32 %v3705, 4294901760
    %v4005 = vsub.f32 %v3705, %v4004
    %4006 = vmatpush1.msra.mxu0 %v4005
    %4007 = vmatprep.subr.mxu0 0.0
    %v4008 = vand.u32 %v3706, 4294901760
    %v4009 = vsub.f32 %v3706, %v4008
    %4010 = vmatpush1.msra.mxu0 %v4009
    %4011 = vmatprep.subr.mxu0 0.0
    %v4012 = vand.u32 %v3707, 4294901760
    %v4013 = vsub.f32 %v3707, %v4012
    %4014 = vmatpush1.msra.mxu0 %v4013
    %4015 = vmatprep.subr.mxu0 0.0
    %v4016 = vand.u32 %v3708, 4294901760
    %v4017 = vsub.f32 %v3708, %v4016
    %4018 = vmatpush1.msra.mxu0 %v4017
    %4019 = vmatprep.subr.mxu0 0.0
    %v4020 = vand.u32 %v3709, 4294901760
    %v4021 = vsub.f32 %v3709, %v4020
    %4022 = vmatpush1.msra.mxu0 %v4021
    %4023 = vmatprep.subr.mxu0 0.0
    %v4024 = vand.u32 %v3710, 4294901760
    %v4025 = vsub.f32 %v3710, %v4024
    %4026 = vmatpush1.msra.mxu0 %v4025
    %4027 = vmatprep.subr.mxu0 0.0
    %v4028 = vand.u32 %v3711, 4294901760
    %v4029 = vsub.f32 %v3711, %v4028
    %4030 = vmatpush1.msra.mxu0 %v4029
    %4031 = vmatprep.subr.mxu0 0.0
    %v4032 = vand.u32 %v3712, 4294901760
    %v4033 = vsub.f32 %v3712, %v4032
    %4034 = vmatpush1.msra.mxu0 %v4033
    %4035 = vmatprep.subr.mxu0 0.0
    %4036 = vmatpush1.msra.mxu0 0.0
    %4037 = vmatprep.subr.mxu0 0.0
    %4038 = vmatpush1.msra.mxu0 0.0
    %4039 = vmatprep.subr.mxu0 0.0
    %4040 = vmatpush1.msra.mxu0 0.0
    %4041 = vmatprep.subr.mxu0 0.0
    %4042 = vmatpush1.msra.mxu0 0.0
    %4043 = vmatprep.subr.mxu0 0.0
    %4044 = vmatpush1.msra.mxu0 0.0
    %4045 = vmatprep.subr.mxu0 0.0
    %4046 = vmatpush1.msra.mxu0 0.0
    %4047 = vmatprep.subr.mxu0 0.0
    %4048 = vmatpush1.msra.mxu0 0.0
    %4049 = vmatprep.subr.mxu0 0.0
    %4050 = vmatpush1.msra.mxu0 0.0
    %4051 = vmatprep.subr.mxu0 0.0
    %4052 = vmatpush1.msra.mxu0 0.0
    %4053 = vmatprep.subr.mxu0 0.0
    %4054 = vmatpush1.msra.mxu0 0.0
    %4055 = vmatprep.subr.mxu0 0.0
    %4056 = vmatpush1.msra.mxu0 0.0
    %4057 = vmatprep.subr.mxu0 0.0
    %4058 = vmatpush1.msra.mxu0 0.0
    %4059 = vmatprep.subr.mxu0 0.0
    %4060 = vmatpush1.msra.mxu0 0.0
    %4061 = vmatprep.subr.mxu0 0.0
    %4062 = vmatpush1.msra.mxu0 0.0
    %4063 = vmatprep.subr.mxu0 0.0
    %4064 = vmatpush1.msra.mxu0 0.0
    %4065 = vmatprep.subr.mxu0 0.0
    %4066 = vmatpush1.msra.mxu0 0.0
    %4067 = vmatprep.mubr.f32.mxu0 0.0
    %v4068 = vand.u32 %v40, 4294901760
    %v4069 = vsub.f32 %v40, %v4068
    %4070 = vmatmul.mubr.f32.gmra.mrb[0].mxu0 %v4069
    %v4071 = vpop.f32.mrb[0].mxu0
    %v4072 = vadd.f32 %v3962, %v4071
    %v4073 = vpop.f32.mrb[0].mxu0
    %4074 = vmatprep.mubr.f32.mxu0 0.0
    %v4075 = vand.u32 %v41, 4294901760
    %v4076 = vsub.f32 %v41, %v4075
    %4077 = vmatmul.mubr.f32.gmra.mrb[0].mxu0 %v4076
    %v4078 = vpop.f32.mrb[0].mxu0
    %v4079 = vadd.f32 %v3968, %v4078
    %v4080 = vpop.f32.mrb[0].mxu0
    %4081 = vdwg.mxu0
    %4082 = vmatprep.subr.mxu0 0.0
    %v4083 = vand.u32 %v3697, 4294901760
    %4084 = vmatpush1.msra.mxu0 %v4083
    %4085 = vmatprep.subr.mxu0 0.0
    %v4086 = vand.u32 %v3698, 4294901760
    %4087 = vmatpush1.msra.mxu0 %v4086
    %4088 = vmatprep.subr.mxu0 0.0
    %v4089 = vand.u32 %v3699, 4294901760
    %4090 = vmatpush1.msra.mxu0 %v4089
    %4091 = vmatprep.subr.mxu0 0.0
    %v4092 = vand.u32 %v3700, 4294901760
    %4093 = vmatpush1.msra.mxu0 %v4092
    %4094 = vmatprep.subr.mxu0 0.0
    %v4095 = vand.u32 %v3701, 4294901760
    %4096 = vmatpush1.msra.mxu0 %v4095
    %4097 = vmatprep.subr.mxu0 0.0
    %v4098 = vand.u32 %v3702, 4294901760
    %4099 = vmatpush1.msra.mxu0 %v4098
    %4100 = vmatprep.subr.mxu0 0.0
    %v4101 = vand.u32 %v3703, 4294901760
    %4102 = vmatpush1.msra.mxu0 %v4101
    %4103 = vmatprep.subr.mxu0 0.0
    %v4104 = vand.u32 %v3704, 4294901760
    %4105 = vmatpush1.msra.mxu0 %v4104
    %4106 = vmatprep.subr.mxu0 0.0
    %v4107 = vand.u32 %v3705, 4294901760
    %4108 = vmatpush1.msra.mxu0 %v4107
    %4109 = vmatprep.subr.mxu0 0.0
    %v4110 = vand.u32 %v3706, 4294901760
    %4111 = vmatpush1.msra.mxu0 %v4110
    %4112 = vmatprep.subr.mxu0 0.0
    %v4113 = vand.u32 %v3707, 4294901760
    %4114 = vmatpush1.msra.mxu0 %v4113
    %4115 = vmatprep.subr.mxu0 0.0
    %v4116 = vand.u32 %v3708, 4294901760
    %4117 = vmatpush1.msra.mxu0 %v4116
    %4118 = vmatprep.subr.mxu0 0.0
    %v4119 = vand.u32 %v3709, 4294901760
    %4120 = vmatpush1.msra.mxu0 %v4119
    %4121 = vmatprep.subr.mxu0 0.0
    %v4122 = vand.u32 %v3710, 4294901760
    %4123 = vmatpush1.msra.mxu0 %v4122
    %4124 = vmatprep.subr.mxu0 0.0
    %v4125 = vand.u32 %v3711, 4294901760
    %4126 = vmatpush1.msra.mxu0 %v4125
    %4127 = vmatprep.subr.mxu0 0.0
    %v4128 = vand.u32 %v3712, 4294901760
    %4129 = vmatpush1.msra.mxu0 %v4128
    %4130 = vmatprep.subr.mxu0 0.0
    %4131 = vmatpush1.msra.mxu0 0.0
    %4132 = vmatprep.subr.mxu0 0.0
    %4133 = vmatpush1.msra.mxu0 0.0
    %4134 = vmatprep.subr.mxu0 0.0
    %4135 = vmatpush1.msra.mxu0 0.0
    %4136 = vmatprep.subr.mxu0 0.0
    %4137 = vmatpush1.msra.mxu0 0.0
    %4138 = vmatprep.subr.mxu0 0.0
    %4139 = vmatpush1.msra.mxu0 0.0
    %4140 = vmatprep.subr.mxu0 0.0
    %4141 = vmatpush1.msra.mxu0 0.0
    %4142 = vmatprep.subr.mxu0 0.0
    %4143 = vmatpush1.msra.mxu0 0.0
    %4144 = vmatprep.subr.mxu0 0.0
    %4145 = vmatpush1.msra.mxu0 0.0
    %4146 = vmatprep.subr.mxu0 0.0
    %4147 = vmatpush1.msra.mxu0 0.0
    %4148 = vmatprep.subr.mxu0 0.0
    %4149 = vmatpush1.msra.mxu0 0.0
    %4150 = vmatprep.subr.mxu0 0.0
    %4151 = vmatpush1.msra.mxu0 0.0
    %4152 = vmatprep.subr.mxu0 0.0
    %4153 = vmatpush1.msra.mxu0 0.0
    %4154 = vmatprep.subr.mxu0 0.0
    %4155 = vmatpush1.msra.mxu0 0.0
    %4156 = vmatprep.subr.mxu0 0.0
    %4157 = vmatpush1.msra.mxu0 0.0
    %4158 = vmatprep.subr.mxu0 0.0
    %4159 = vmatpush1.msra.mxu0 0.0
    %4160 = vmatprep.subr.mxu0 0.0
    %4161 = vmatpush1.msra.mxu0 0.0
    %4162 = vmatprep.mubr.f32.mxu0 0.0
    %v4163 = vand.u32 %v40, 4294901760
    %v4164 = vsub.f32 %v40, %v4163
    %v4165 = vand.u32 %v4164, 4294901760
    %4166 = vmatmul.mubr.f32.gmra.mrb[0].mxu0 %v4165
    %v4167 = vpop.f32.mrb[0].mxu0
    %v4168 = vadd.f32 %v4072, %v4167
    %v4169 = vpop.f32.mrb[0].mxu0
    %4170 = vmatprep.mubr.f32.mxu0 0.0
    %v4171 = vand.u32 %v41, 4294901760
    %v4172 = vsub.f32 %v41, %v4171
    %v4173 = vand.u32 %v4172, 4294901760
    %4174 = vmatmul.mubr.f32.gmra.mrb[0].mxu0 %v4173
    %v4175 = vpop.f32.mrb[0].mxu0
    %v4176 = vadd.f32 %v4079, %v4175
    %v4177 = vpop.f32.mrb[0].mxu0
    %4178 = vdwg.mxu0
    %4179 = vmatprep.subr.mxu0 0.0
    %v4180 = vand.u32 %v3697, 4294901760
    %v4181 = vsub.f32 %v3697, %v4180
    %v4182 = vand.u32 %v4181, 4294901760
    %4183 = vmatpush1.msra.mxu0 %v4182
    %4184 = vmatprep.subr.mxu0 0.0
    %v4185 = vand.u32 %v3698, 4294901760
    %v4186 = vsub.f32 %v3698, %v4185
    %v4187 = vand.u32 %v4186, 4294901760
    %4188 = vmatpush1.msra.mxu0 %v4187
    %4189 = vmatprep.subr.mxu0 0.0
    %v4190 = vand.u32 %v3699, 4294901760
    %v4191 = vsub.f32 %v3699, %v4190
    %v4192 = vand.u32 %v4191, 4294901760
    %4193 = vmatpush1.msra.mxu0 %v4192
    %4194 = vmatprep.subr.mxu0 0.0
    %v4195 = vand.u32 %v3700, 4294901760
    %v4196 = vsub.f32 %v3700, %v4195
    %v4197 = vand.u32 %v4196, 4294901760
    %4198 = vmatpush1.msra.mxu0 %v4197
    %4199 = vmatprep.subr.mxu0 0.0
    %v4200 = vand.u32 %v3701, 4294901760
    %v4201 = vsub.f32 %v3701, %v4200
    %v4202 = vand.u32 %v4201, 4294901760
    %4203 = vmatpush1.msra.mxu0 %v4202
    %4204 = vmatprep.subr.mxu0 0.0
    %v4205 = vand.u32 %v3702, 4294901760
    %v4206 = vsub.f32 %v3702, %v4205
    %v4207 = vand.u32 %v4206, 4294901760
    %4208 = vmatpush1.msra.mxu0 %v4207
    %4209 = vmatprep.subr.mxu0 0.0
    %v4210 = vand.u32 %v3703, 4294901760
    %v4211 = vsub.f32 %v3703, %v4210
    %v4212 = vand.u32 %v4211, 4294901760
    %4213 = vmatpush1.msra.mxu0 %v4212
    %4214 = vmatprep.subr.mxu0 0.0
    %v4215 = vand.u32 %v3704, 4294901760
    %v4216 = vsub.f32 %v3704, %v4215
    %v4217 = vand.u32 %v4216, 4294901760
    %4218 = vmatpush1.msra.mxu0 %v4217
    %4219 = vmatprep.subr.mxu0 0.0
    %v4220 = vand.u32 %v3705, 4294901760
    %v4221 = vsub.f32 %v3705, %v4220
    %v4222 = vand.u32 %v4221, 4294901760
    %4223 = vmatpush1.msra.mxu0 %v4222
    %4224 = vmatprep.subr.mxu0 0.0
    %v4225 = vand.u32 %v3706, 4294901760
    %v4226 = vsub.f32 %v3706, %v4225
    %v4227 = vand.u32 %v4226, 4294901760
    %4228 = vmatpush1.msra.mxu0 %v4227
    %4229 = vmatprep.subr.mxu0 0.0
    %v4230 = vand.u32 %v3707, 4294901760
    %v4231 = vsub.f32 %v3707, %v4230
    %v4232 = vand.u32 %v4231, 4294901760
    %4233 = vmatpush1.msra.mxu0 %v4232
    %4234 = vmatprep.subr.mxu0 0.0
    %v4235 = vand.u32 %v3708, 4294901760
    %v4236 = vsub.f32 %v3708, %v4235
    %v4237 = vand.u32 %v4236, 4294901760
    %4238 = vmatpush1.msra.mxu0 %v4237
    %4239 = vmatprep.subr.mxu0 0.0
    %v4240 = vand.u32 %v3709, 4294901760
    %v4241 = vsub.f32 %v3709, %v4240
    %v4242 = vand.u32 %v4241, 4294901760
    %4243 = vmatpush1.msra.mxu0 %v4242
    %4244 = vmatprep.subr.mxu0 0.0
    %v4245 = vand.u32 %v3710, 4294901760
    %v4246 = vsub.f32 %v3710, %v4245
    %v4247 = vand.u32 %v4246, 4294901760
    %4248 = vmatpush1.msra.mxu0 %v4247
    %4249 = vmatprep.subr.mxu0 0.0
    %v4250 = vand.u32 %v3711, 4294901760
    %v4251 = vsub.f32 %v3711, %v4250
    %v4252 = vand.u32 %v4251, 4294901760
    %4253 = vmatpush1.msra.mxu0 %v4252
    %4254 = vmatprep.subr.mxu0 0.0
    %v4255 = vand.u32 %v3712, 4294901760
    %v4256 = vsub.f32 %v3712, %v4255
    %v4257 = vand.u32 %v4256, 4294901760
    %4258 = vmatpush1.msra.mxu0 %v4257
    %4259 = vmatprep.subr.mxu0 0.0
    %4260 = vmatpush1.msra.mxu0 0.0
    %4261 = vmatprep.subr.mxu0 0.0
    %4262 = vmatpush1.msra.mxu0 0.0
    %4263 = vmatprep.subr.mxu0 0.0
    %4264 = vmatpush1.msra.mxu0 0.0
    %4265 = vmatprep.subr.mxu0 0.0
    %4266 = vmatpush1.msra.mxu0 0.0
    %4267 = vmatprep.subr.mxu0 0.0
    %4268 = vmatpush1.msra.mxu0 0.0
    %4269 = vmatprep.subr.mxu0 0.0
    %4270 = vmatpush1.msra.mxu0 0.0
    %4271 = vmatprep.subr.mxu0 0.0
    %4272 = vmatpush1.msra.mxu0 0.0
    %4273 = vmatprep.subr.mxu0 0.0
    %4274 = vmatpush1.msra.mxu0 0.0
    %4275 = vmatprep.subr.mxu0 0.0
    %4276 = vmatpush1.msra.mxu0 0.0
    %4277 = vmatprep.subr.mxu0 0.0
    %4278 = vmatpush1.msra.mxu0 0.0
    %4279 = vmatprep.subr.mxu0 0.0
    %4280 = vmatpush1.msra.mxu0 0.0
    %4281 = vmatprep.subr.mxu0 0.0
    %4282 = vmatpush1.msra.mxu0 0.0
    %4283 = vmatprep.subr.mxu0 0.0
    %4284 = vmatpush1.msra.mxu0 0.0
    %4285 = vmatprep.subr.mxu0 0.0
    %4286 = vmatpush1.msra.mxu0 0.0
    %4287 = vmatprep.subr.mxu0 0.0
    %4288 = vmatpush1.msra.mxu0 0.0
    %4289 = vmatprep.subr.mxu0 0.0
    %4290 = vmatpush1.msra.mxu0 0.0
    %4291 = vmatprep.mubr.f32.mxu0 0.0
    %v4292 = vand.u32 %v40, 4294901760
    %4293 = vmatmul.mubr.f32.gmra.mrb[0].mxu0 %v4292
    %v4294 = vpop.f32.mrb[0].mxu0
    %v4295 = vadd.f32 %v4168, %v4294
    %v4296 = vpop.f32.mrb[0].mxu0
    %4297 = vmatprep.mubr.f32.mxu0 0.0
    %v4298 = vand.u32 %v41, 4294901760
    %4299 = vmatmul.mubr.f32.gmra.mrb[0].mxu0 %v4298
    %v4300 = vpop.f32.mrb[0].mxu0
    %v4301 = vadd.f32 %v4176, %v4300
    %v4302 = vpop.f32.mrb[0].mxu0
    %4303 = vdwg.mxu0
    %4304 = vmatprep.subr.mxu0 0.0
    %v4305 = vand.u32 %v3697, 4294901760
    %4306 = vmatpush1.msra.mxu0 %v4305
    %4307 = vmatprep.subr.mxu0 0.0
    %v4308 = vand.u32 %v3698, 4294901760
    %4309 = vmatpush1.msra.mxu0 %v4308
    %4310 = vmatprep.subr.mxu0 0.0
    %v4311 = vand.u32 %v3699, 4294901760
    %4312 = vmatpush1.msra.mxu0 %v4311
    %4313 = vmatprep.subr.mxu0 0.0
    %v4314 = vand.u32 %v3700, 4294901760
    %4315 = vmatpush1.msra.mxu0 %v4314
    %4316 = vmatprep.subr.mxu0 0.0
    %v4317 = vand.u32 %v3701, 4294901760
    %4318 = vmatpush1.msra.mxu0 %v4317
    %4319 = vmatprep.subr.mxu0 0.0
    %v4320 = vand.u32 %v3702, 4294901760
    %4321 = vmatpush1.msra.mxu0 %v4320
    %4322 = vmatprep.subr.mxu0 0.0
    %v4323 = vand.u32 %v3703, 4294901760
    %4324 = vmatpush1.msra.mxu0 %v4323
    %4325 = vmatprep.subr.mxu0 0.0
    %v4326 = vand.u32 %v3704, 4294901760
    %4327 = vmatpush1.msra.mxu0 %v4326
    %4328 = vmatprep.subr.mxu0 0.0
    %v4329 = vand.u32 %v3705, 4294901760
    %4330 = vmatpush1.msra.mxu0 %v4329
    %4331 = vmatprep.subr.mxu0 0.0
    %v4332 = vand.u32 %v3706, 4294901760
    %4333 = vmatpush1.msra.mxu0 %v4332
    %4334 = vmatprep.subr.mxu0 0.0
    %v4335 = vand.u32 %v3707, 4294901760
    %4336 = vmatpush1.msra.mxu0 %v4335
    %4337 = vmatprep.subr.mxu0 0.0
    %v4338 = vand.u32 %v3708, 4294901760
    %4339 = vmatpush1.msra.mxu0 %v4338
    %4340 = vmatprep.subr.mxu0 0.0
    %v4341 = vand.u32 %v3709, 4294901760
    %4342 = vmatpush1.msra.mxu0 %v4341
    %4343 = vmatprep.subr.mxu0 0.0
    %v4344 = vand.u32 %v3710, 4294901760
    %4345 = vmatpush1.msra.mxu0 %v4344
    %4346 = vmatprep.subr.mxu0 0.0
    %v4347 = vand.u32 %v3711, 4294901760
    %4348 = vmatpush1.msra.mxu0 %v4347
    %4349 = vmatprep.subr.mxu0 0.0
    %v4350 = vand.u32 %v3712, 4294901760
    %4351 = vmatpush1.msra.mxu0 %v4350
    %4352 = vmatprep.subr.mxu0 0.0
    %4353 = vmatpush1.msra.mxu0 0.0
    %4354 = vmatprep.subr.mxu0 0.0
    %4355 = vmatpush1.msra.mxu0 0.0
    %4356 = vmatprep.subr.mxu0 0.0
    %4357 = vmatpush1.msra.mxu0 0.0
    %4358 = vmatprep.subr.mxu0 0.0
    %4359 = vmatpush1.msra.mxu0 0.0
    %4360 = vmatprep.subr.mxu0 0.0
    %4361 = vmatpush1.msra.mxu0 0.0
    %4362 = vmatprep.subr.mxu0 0.0
    %4363 = vmatpush1.msra.mxu0 0.0
    %4364 = vmatprep.subr.mxu0 0.0
    %4365 = vmatpush1.msra.mxu0 0.0
    %4366 = vmatprep.subr.mxu0 0.0
    %4367 = vmatpush1.msra.mxu0 0.0
    %4368 = vmatprep.subr.mxu0 0.0
    %4369 = vmatpush1.msra.mxu0 0.0
    %4370 = vmatprep.subr.mxu0 0.0
    %4371 = vmatpush1.msra.mxu0 0.0
    %4372 = vmatprep.subr.mxu0 0.0
    %4373 = vmatpush1.msra.mxu0 0.0
    %4374 = vmatprep.subr.mxu0 0.0
    %4375 = vmatpush1.msra.mxu0 0.0
    %4376 = vmatprep.subr.mxu0 0.0
    %4377 = vmatpush1.msra.mxu0 0.0
    %4378 = vmatprep.subr.mxu0 0.0
    %4379 = vmatpush1.msra.mxu0 0.0
    %4380 = vmatprep.subr.mxu0 0.0
    %4381 = vmatpush1.msra.mxu0 0.0
    %4382 = vmatprep.subr.mxu0 0.0
    %4383 = vmatpush1.msra.mxu0 0.0
    %4384 = vmatprep.mubr.f32.mxu0 0.0
    %v4385 = vand.u32 %v40, 4294901760
    %4386 = vmatmul.mubr.f32.gmra.mrb[0].mxu0 %v4385
    %v4387 = vpop.f32.mrb[0].mxu0
    %v4388 = vadd.f32 %v4295, %v4387
    %v4389 = vpop.f32.mrb[0].mxu0
    %4390 = vmatprep.mubr.f32.mxu0 0.0
    %v4391 = vand.u32 %v41, 4294901760
    %4392 = vmatmul.mubr.f32.gmra.mrb[0].mxu0 %v4391
    %v4393 = vpop.f32.mrb[0].mxu0
    %v4394 = vadd.f32 %v4301, %v4393
    %v4395 = vpop.f32.mrb[0].mxu0
    %4396 = vdwg.mxu0
    %v4397 = vmul.f32 %v1482, %v2985
    %v4398 = vmul.f32 %v1483, %v2986
    %v4399 = vmul.f32 %v1476, %v2991
    %v4400 = vmul.f32 %v1475, %v2992
    %v4401 = vadd.f32 %v4397, %v4399
    %v4402 = vadd.f32 %v4398, %v4400
    %v4403 = vmul.f32 %v2993, %v40
    %v4404 = vmul.f32 %v2994, %v41
    %v4405 = vsub.f32 %v4401, %v4403
    %v4406 = vsub.f32 %v4402, %v4404
    %v4407 = vrot.slane %v3687, 3
    %v4408 = vrot.slane %v3693, 3
    %vm4409 = vcmp.lt.s32.totalorder %v43, 5
    %v4410 = vsel %vm4409, %v4407, %v4408
    %v4411 = vsel %vm4409, %v4408, %v4407
    %v4412 = vmul.f32 %v4410, %v2973
    %v4413 = vmul.f32 %v4411, %v2974
    %v4414 = vrot.slane %v3687, 5
    %v4415 = vrot.slane %v3693, 5
    %vm4416 = vcmp.lt.s32.totalorder %v43, 3
    %v4417 = vsel %vm4416, %v4414, %v4415
    %v4418 = vsel %vm4416, %v4415, %v4414
    %v4419 = vmul.f32 %v4418, %v2979
    %v4420 = vmul.f32 %v4417, %v2980
    %v4421 = vsub.f32 %v4412, %v4419
    %v4422 = vsub.f32 %v4413, %v4420
    %v4423 = vmul.f32 %v4388, %v4405
    %v4424 = vmul.f32 %v4394, %v4406
    %v4425 = vmul.f32 %v4421, %v4421
    %v4426 = vmul.f32 %v4422, %v4422
    %v4427 = vsub.f32 %v4423, %v4425
    %v4428 = vsub.f32 %v4424, %v4426
    %v4429 = vadd.f32 %v2967, %v4427
    %v4430 = vadd.f32 %v2968, %v4428
    %vm4431 = vcmp.lt.s32.totalorder %v43, 8
    %vm4432 = vcmp.lt.s32.totalorder %v44, 8
    %v4433 = vsel %vm4431, 1, 0
    %v4434 = vsel %vm4432, 1, 0
    %v4435 = vcvt.s32.f32 %v4433
    %v4436 = vcvt.s32.f32 %v4434
    %vm4437 = vcmp.ge.s32.totalorder %v43, 8
    %vm4438 = vcmp.ge.s32.totalorder %v44, 8
    %v4439 = vsel %vm4437, 1, 0
    %v4440 = vsel %vm4438, 1, 0
    %v4441 = vcvt.s32.f32 %v4439
    %v4442 = vcvt.s32.f32 %v4440
    %v4443 = vadd.f32 %v1520, %v1526
    %v4444 = vadd.f32 %v1521, %v1527
    %s4445 = scalar_lea.vmem [#allocation5], 768
    %v4446 = vld [vmem:[%s4445] sm:$0xff]
    %v4447 = vld [vmem:[%s4445 + $0x8] sm:$0xff]
    %v4448 = vld [vmem:[%s4445 + $0x10] sm:$0xff]
    %v4449 = vld [vmem:[%s4445 + $0x18] sm:$0xff]
    %v4450 = vld [vmem:[%s4445 + $0x20] sm:$0xff]
    %v4451 = vld [vmem:[%s4445 + $0x28] sm:$0xff]
    %v4452 = vld [vmem:[%s4445 + $0x30] sm:$0xff]
    %v4453 = vld [vmem:[%s4445 + $0x38] sm:$0xff]
    %v4454 = vld [vmem:[%s4445 + $0x40] sm:$0xff]
    %v4455 = vld [vmem:[%s4445 + $0x48] sm:$0xff]
    %v4456 = vld [vmem:[%s4445 + $0x50] sm:$0xff]
    %v4457 = vld [vmem:[%s4445 + $0x58] sm:$0xff]
    %v4458 = vld [vmem:[%s4445 + $0x60] sm:$0xff]
    %v4459 = vld [vmem:[%s4445 + $0x68] sm:$0xff]
    %v4460 = vld [vmem:[%s4445 + $0x70] sm:$0xff]
    %v4461 = vld [vmem:[%s4445 + $0x78] sm:$0xff]
    %4462 = vmatprep.subr.mxu0 0.0
    %v4463 = vand.u32 %v4446, 4294901760
    %4464 = vmatpush1.msra.mxu0 %v4463
    %4465 = vmatprep.subr.mxu0 0.0
    %v4466 = vand.u32 %v4447, 4294901760
    %4467 = vmatpush1.msra.mxu0 %v4466
    %4468 = vmatprep.subr.mxu0 0.0
    %v4469 = vand.u32 %v4448, 4294901760
    %4470 = vmatpush1.msra.mxu0 %v4469
    %4471 = vmatprep.subr.mxu0 0.0
    %v4472 = vand.u32 %v4449, 4294901760
    %4473 = vmatpush1.msra.mxu0 %v4472
    %4474 = vmatprep.subr.mxu0 0.0
    %v4475 = vand.u32 %v4450, 4294901760
    %4476 = vmatpush1.msra.mxu0 %v4475
    %4477 = vmatprep.subr.mxu0 0.0
    %v4478 = vand.u32 %v4451, 4294901760
    %4479 = vmatpush1.msra.mxu0 %v4478
    %4480 = vmatprep.subr.mxu0 0.0
    %v4481 = vand.u32 %v4452, 4294901760
    %4482 = vmatpush1.msra.mxu0 %v4481
    %4483 = vmatprep.subr.mxu0 0.0
    %v4484 = vand.u32 %v4453, 4294901760
    %4485 = vmatpush1.msra.mxu0 %v4484
    %4486 = vmatprep.subr.mxu0 0.0
    %v4487 = vand.u32 %v4454, 4294901760
    %4488 = vmatpush1.msra.mxu0 %v4487
    %4489 = vmatprep.subr.mxu0 0.0
    %v4490 = vand.u32 %v4455, 4294901760
    %4491 = vmatpush1.msra.mxu0 %v4490
    %4492 = vmatprep.subr.mxu0 0.0
    %v4493 = vand.u32 %v4456, 4294901760
    %4494 = vmatpush1.msra.mxu0 %v4493
    %4495 = vmatprep.subr.mxu0 0.0
    %v4496 = vand.u32 %v4457, 4294901760
    %4497 = vmatpush1.msra.mxu0 %v4496
    %4498 = vmatprep.subr.mxu0 0.0
    %v4499 = vand.u32 %v4458, 4294901760
    %4500 = vmatpush1.msra.mxu0 %v4499
    %4501 = vmatprep.subr.mxu0 0.0
    %v4502 = vand.u32 %v4459, 4294901760
    %4503 = vmatpush1.msra.mxu0 %v4502
    %4504 = vmatprep.subr.mxu0 0.0
    %v4505 = vand.u32 %v4460, 4294901760
    %4506 = vmatpush1.msra.mxu0 %v4505
    %4507 = vmatprep.subr.mxu0 0.0
    %v4508 = vand.u32 %v4461, 4294901760
    %4509 = vmatpush1.msra.mxu0 %v4508
    %4510 = vmatprep.subr.mxu0 0.0
    %4511 = vmatpush1.msra.mxu0 0.0
    %4512 = vmatprep.subr.mxu0 0.0
    %4513 = vmatpush1.msra.mxu0 0.0
    %4514 = vmatprep.subr.mxu0 0.0
    %4515 = vmatpush1.msra.mxu0 0.0
    %4516 = vmatprep.subr.mxu0 0.0
    %4517 = vmatpush1.msra.mxu0 0.0
    %4518 = vmatprep.subr.mxu0 0.0
    %4519 = vmatpush1.msra.mxu0 0.0
    %4520 = vmatprep.subr.mxu0 0.0
    %4521 = vmatpush1.msra.mxu0 0.0
    %4522 = vmatprep.subr.mxu0 0.0
    %4523 = vmatpush1.msra.mxu0 0.0
    %4524 = vmatprep.subr.mxu0 0.0
    %4525 = vmatpush1.msra.mxu0 0.0
    %4526 = vmatprep.subr.mxu0 0.0
    %4527 = vmatpush1.msra.mxu0 0.0
    %4528 = vmatprep.subr.mxu0 0.0
    %4529 = vmatpush1.msra.mxu0 0.0
    %4530 = vmatprep.subr.mxu0 0.0
    %4531 = vmatpush1.msra.mxu0 0.0
    %4532 = vmatprep.subr.mxu0 0.0
    %4533 = vmatpush1.msra.mxu0 0.0
    %4534 = vmatprep.subr.mxu0 0.0
    %4535 = vmatpush1.msra.mxu0 0.0
    %4536 = vmatprep.subr.mxu0 0.0
    %4537 = vmatpush1.msra.mxu0 0.0
    %4538 = vmatprep.subr.mxu0 0.0
    %4539 = vmatpush1.msra.mxu0 0.0
    %4540 = vmatprep.subr.mxu0 0.0
    %4541 = vmatpush1.msra.mxu0 0.0
    %4542 = vmatprep.mubr.f32.mxu0 0.0
    %v4543 = vand.u32 %v40, 4294901760
    %v4544 = vsub.f32 %v40, %v4543
    %v4545 = vand.u32 %v4544, 4294901760
    %v4546 = vsub.f32 %v4544, %v4545
    %v4547 = vand.u32 %v4546, 4294901760
    %4548 = vmatmul.mubr.f32.gmra.mrb[0].mxu0 %v4547
    %v4549 = vpop.f32.mrb[0].mxu0
    %v4550 = vadd.f32 0.0, %v4549
    %v4551 = vpop.f32.mrb[0].mxu0
    %4552 = vmatprep.mubr.f32.mxu0 0.0
    %v4553 = vand.u32 %v41, 4294901760
    %v4554 = vsub.f32 %v41, %v4553
    %v4555 = vand.u32 %v4554, 4294901760
    %v4556 = vsub.f32 %v4554, %v4555
    %v4557 = vand.u32 %v4556, 4294901760
    %4558 = vmatmul.mubr.f32.gmra.mrb[0].mxu0 %v4557
    %v4559 = vpop.f32.mrb[0].mxu0
    %v4560 = vadd.f32 0.0, %v4559
    %v4561 = vpop.f32.mrb[0].mxu0
    %4562 = vdwg.mxu0
    %4563 = vmatprep.subr.mxu0 0.0
    %v4564 = vand.u32 %v4446, 4294901760
    %v4565 = vsub.f32 %v4446, %v4564
    %v4566 = vand.u32 %v4565, 4294901760
    %v4567 = vsub.f32 %v4565, %v4566
    %v4568 = vand.u32 %v4567, 4294901760
    %4569 = vmatpush1.msra.mxu0 %v4568
    %4570 = vmatprep.subr.mxu0 0.0
    %v4571 = vand.u32 %v4447, 4294901760
    %v4572 = vsub.f32 %v4447, %v4571
    %v4573 = vand.u32 %v4572, 4294901760
    %v4574 = vsub.f32 %v4572, %v4573
    %v4575 = vand.u32 %v4574, 4294901760
    %4576 = vmatpush1.msra.mxu0 %v4575
    %4577 = vmatprep.subr.mxu0 0.0
    %v4578 = vand.u32 %v4448, 4294901760
    %v4579 = vsub.f32 %v4448, %v4578
    %v4580 = vand.u32 %v4579, 4294901760
    %v4581 = vsub.f32 %v4579, %v4580
    %v4582 = vand.u32 %v4581, 4294901760
    %4583 = vmatpush1.msra.mxu0 %v4582
    %4584 = vmatprep.subr.mxu0 0.0
    %v4585 = vand.u32 %v4449, 4294901760
    %v4586 = vsub.f32 %v4449, %v4585
    %v4587 = vand.u32 %v4586, 4294901760
    %v4588 = vsub.f32 %v4586, %v4587
    %v4589 = vand.u32 %v4588, 4294901760
    %4590 = vmatpush1.msra.mxu0 %v4589
    %4591 = vmatprep.subr.mxu0 0.0
    %v4592 = vand.u32 %v4450, 4294901760
    %v4593 = vsub.f32 %v4450, %v4592
    %v4594 = vand.u32 %v4593, 4294901760
    %v4595 = vsub.f32 %v4593, %v4594
    %v4596 = vand.u32 %v4595, 4294901760
    %4597 = vmatpush1.msra.mxu0 %v4596
    %4598 = vmatprep.subr.mxu0 0.0
    %v4599 = vand.u32 %v4451, 4294901760
    %v4600 = vsub.f32 %v4451, %v4599
    %v4601 = vand.u32 %v4600, 4294901760
    %v4602 = vsub.f32 %v4600, %v4601
    %v4603 = vand.u32 %v4602, 4294901760
    %4604 = vmatpush1.msra.mxu0 %v4603
    %4605 = vmatprep.subr.mxu0 0.0
    %v4606 = vand.u32 %v4452, 4294901760
    %v4607 = vsub.f32 %v4452, %v4606
    %v4608 = vand.u32 %v4607, 4294901760
    %v4609 = vsub.f32 %v4607, %v4608
    %v4610 = vand.u32 %v4609, 4294901760
    %4611 = vmatpush1.msra.mxu0 %v4610
    %4612 = vmatprep.subr.mxu0 0.0
    %v4613 = vand.u32 %v4453, 4294901760
    %v4614 = vsub.f32 %v4453, %v4613
    %v4615 = vand.u32 %v4614, 4294901760
    %v4616 = vsub.f32 %v4614, %v4615
    %v4617 = vand.u32 %v4616, 4294901760
    %4618 = vmatpush1.msra.mxu0 %v4617
    %4619 = vmatprep.subr.mxu0 0.0
    %v4620 = vand.u32 %v4454, 4294901760
    %v4621 = vsub.f32 %v4454, %v4620
    %v4622 = vand.u32 %v4621, 4294901760
    %v4623 = vsub.f32 %v4621, %v4622
    %v4624 = vand.u32 %v4623, 4294901760
    %4625 = vmatpush1.msra.mxu0 %v4624
    %4626 = vmatprep.subr.mxu0 0.0
    %v4627 = vand.u32 %v4455, 4294901760
    %v4628 = vsub.f32 %v4455, %v4627
    %v4629 = vand.u32 %v4628, 4294901760
    %v4630 = vsub.f32 %v4628, %v4629
    %v4631 = vand.u32 %v4630, 4294901760
    %4632 = vmatpush1.msra.mxu0 %v4631
    %4633 = vmatprep.subr.mxu0 0.0
    %v4634 = vand.u32 %v4456, 4294901760
    %v4635 = vsub.f32 %v4456, %v4634
    %v4636 = vand.u32 %v4635, 4294901760
    %v4637 = vsub.f32 %v4635, %v4636
    %v4638 = vand.u32 %v4637, 4294901760
    %4639 = vmatpush1.msra.mxu0 %v4638
    %4640 = vmatprep.subr.mxu0 0.0
    %v4641 = vand.u32 %v4457, 4294901760
    %v4642 = vsub.f32 %v4457, %v4641
    %v4643 = vand.u32 %v4642, 4294901760
    %v4644 = vsub.f32 %v4642, %v4643
    %v4645 = vand.u32 %v4644, 4294901760
    %4646 = vmatpush1.msra.mxu0 %v4645
    %4647 = vmatprep.subr.mxu0 0.0
    %v4648 = vand.u32 %v4458, 4294901760
    %v4649 = vsub.f32 %v4458, %v4648
    %v4650 = vand.u32 %v4649, 4294901760
    %v4651 = vsub.f32 %v4649, %v4650
    %v4652 = vand.u32 %v4651, 4294901760
    %4653 = vmatpush1.msra.mxu0 %v4652
    %4654 = vmatprep.subr.mxu0 0.0
    %v4655 = vand.u32 %v4459, 4294901760
    %v4656 = vsub.f32 %v4459, %v4655
    %v4657 = vand.u32 %v4656, 4294901760
    %v4658 = vsub.f32 %v4656, %v4657
    %v4659 = vand.u32 %v4658, 4294901760
    %4660 = vmatpush1.msra.mxu0 %v4659
    %4661 = vmatprep.subr.mxu0 0.0
    %v4662 = vand.u32 %v4460, 4294901760
    %v4663 = vsub.f32 %v4460, %v4662
    %v4664 = vand.u32 %v4663, 4294901760
    %v4665 = vsub.f32 %v4663, %v4664
    %v4666 = vand.u32 %v4665, 4294901760
    %4667 = vmatpush1.msra.mxu0 %v4666
    %4668 = vmatprep.subr.mxu0 0.0
    %v4669 = vand.u32 %v4461, 4294901760
    %v4670 = vsub.f32 %v4461, %v4669
    %v4671 = vand.u32 %v4670, 4294901760
    %v4672 = vsub.f32 %v4670, %v4671
    %v4673 = vand.u32 %v4672, 4294901760
    %4674 = vmatpush1.msra.mxu0 %v4673
    %4675 = vmatprep.subr.mxu0 0.0
    %4676 = vmatpush1.msra.mxu0 0.0
    %4677 = vmatprep.subr.mxu0 0.0
    %4678 = vmatpush1.msra.mxu0 0.0
    %4679 = vmatprep.subr.mxu0 0.0
    %4680 = vmatpush1.msra.mxu0 0.0
    %4681 = vmatprep.subr.mxu0 0.0
    %4682 = vmatpush1.msra.mxu0 0.0
    %4683 = vmatprep.subr.mxu0 0.0
    %4684 = vmatpush1.msra.mxu0 0.0
    %4685 = vmatprep.subr.mxu0 0.0
    %4686 = vmatpush1.msra.mxu0 0.0
    %4687 = vmatprep.subr.mxu0 0.0
    %4688 = vmatpush1.msra.mxu0 0.0
    %4689 = vmatprep.subr.mxu0 0.0
    %4690 = vmatpush1.msra.mxu0 0.0
    %4691 = vmatprep.subr.mxu0 0.0
    %4692 = vmatpush1.msra.mxu0 0.0
    %4693 = vmatprep.subr.mxu0 0.0
    %4694 = vmatpush1.msra.mxu0 0.0
    %4695 = vmatprep.subr.mxu0 0.0
    %4696 = vmatpush1.msra.mxu0 0.0
    %4697 = vmatprep.subr.mxu0 0.0
    %4698 = vmatpush1.msra.mxu0 0.0
    %4699 = vmatprep.subr.mxu0 0.0
    %4700 = vmatpush1.msra.mxu0 0.0
    %4701 = vmatprep.subr.mxu0 0.0
    %4702 = vmatpush1.msra.mxu0 0.0
    %4703 = vmatprep.subr.mxu0 0.0
    %4704 = vmatpush1.msra.mxu0 0.0
    %4705 = vmatprep.subr.mxu0 0.0
    %4706 = vmatpush1.msra.mxu0 0.0
    %4707 = vmatprep.mubr.f32.mxu0 0.0
    %v4708 = vand.u32 %v40, 4294901760
    %4709 = vmatmul.mubr.f32.gmra.mrb[0].mxu0 %v4708
    %v4710 = vpop.f32.mrb[0].mxu0
    %v4711 = vadd.f32 %v4550, %v4710
    %v4712 = vpop.f32.mrb[0].mxu0
    %4713 = vmatprep.mubr.f32.mxu0 0.0
    %v4714 = vand.u32 %v41, 4294901760
    %4715 = vmatmul.mubr.f32.gmra.mrb[0].mxu0 %v4714
    %v4716 = vpop.f32.mrb[0].mxu0
    %v4717 = vadd.f32 %v4560, %v4716
    %v4718 = vpop.f32.mrb[0].mxu0
    %4719 = vdwg.mxu0
    %4720 = vmatprep.subr.mxu0 0.0
    %v4721 = vand.u32 %v4446, 4294901760
    %v4722 = vsub.f32 %v4446, %v4721
    %4723 = vmatpush1.msra.mxu0 %v4722
    %4724 = vmatprep.subr.mxu0 0.0
    %v4725 = vand.u32 %v4447, 4294901760
    %v4726 = vsub.f32 %v4447, %v4725
    %4727 = vmatpush1.msra.mxu0 %v4726
    %4728 = vmatprep.subr.mxu0 0.0
    %v4729 = vand.u32 %v4448, 4294901760
    %v4730 = vsub.f32 %v4448, %v4729
    %4731 = vmatpush1.msra.mxu0 %v4730
    %4732 = vmatprep.subr.mxu0 0.0
    %v4733 = vand.u32 %v4449, 4294901760
    %v4734 = vsub.f32 %v4449, %v4733
    %4735 = vmatpush1.msra.mxu0 %v4734
    %4736 = vmatprep.subr.mxu0 0.0
    %v4737 = vand.u32 %v4450, 4294901760
    %v4738 = vsub.f32 %v4450, %v4737
    %4739 = vmatpush1.msra.mxu0 %v4738
    %4740 = vmatprep.subr.mxu0 0.0
    %v4741 = vand.u32 %v4451, 4294901760
    %v4742 = vsub.f32 %v4451, %v4741
    %4743 = vmatpush1.msra.mxu0 %v4742
    %4744 = vmatprep.subr.mxu0 0.0
    %v4745 = vand.u32 %v4452, 4294901760
    %v4746 = vsub.f32 %v4452, %v4745
    %4747 = vmatpush1.msra.mxu0 %v4746
    %4748 = vmatprep.subr.mxu0 0.0
    %v4749 = vand.u32 %v4453, 4294901760
    %v4750 = vsub.f32 %v4453, %v4749
    %4751 = vmatpush1.msra.mxu0 %v4750
    %4752 = vmatprep.subr.mxu0 0.0
    %v4753 = vand.u32 %v4454, 4294901760
    %v4754 = vsub.f32 %v4454, %v4753
    %4755 = vmatpush1.msra.mxu0 %v4754
    %4756 = vmatprep.subr.mxu0 0.0
    %v4757 = vand.u32 %v4455, 4294901760
    %v4758 = vsub.f32 %v4455, %v4757
    %4759 = vmatpush1.msra.mxu0 %v4758
    %4760 = vmatprep.subr.mxu0 0.0
    %v4761 = vand.u32 %v4456, 4294901760
    %v4762 = vsub.f32 %v4456, %v4761
    %4763 = vmatpush1.msra.mxu0 %v4762
    %4764 = vmatprep.subr.mxu0 0.0
    %v4765 = vand.u32 %v4457, 4294901760
    %v4766 = vsub.f32 %v4457, %v4765
    %4767 = vmatpush1.msra.mxu0 %v4766
    %4768 = vmatprep.subr.mxu0 0.0
    %v4769 = vand.u32 %v4458, 4294901760
    %v4770 = vsub.f32 %v4458, %v4769
    %4771 = vmatpush1.msra.mxu0 %v4770
    %4772 = vmatprep.subr.mxu0 0.0
    %v4773 = vand.u32 %v4459, 4294901760
    %v4774 = vsub.f32 %v4459, %v4773
    %4775 = vmatpush1.msra.mxu0 %v4774
    %4776 = vmatprep.subr.mxu0 0.0
    %v4777 = vand.u32 %v4460, 4294901760
    %v4778 = vsub.f32 %v4460, %v4777
    %4779 = vmatpush1.msra.mxu0 %v4778
    %4780 = vmatprep.subr.mxu0 0.0
    %v4781 = vand.u32 %v4461, 4294901760
    %v4782 = vsub.f32 %v4461, %v4781
    %4783 = vmatpush1.msra.mxu0 %v4782
    %4784 = vmatprep.subr.mxu0 0.0
    %4785 = vmatpush1.msra.mxu0 0.0
    %4786 = vmatprep.subr.mxu0 0.0
    %4787 = vmatpush1.msra.mxu0 0.0
    %4788 = vmatprep.subr.mxu0 0.0
    %4789 = vmatpush1.msra.mxu0 0.0
    %4790 = vmatprep.subr.mxu0 0.0
    %4791 = vmatpush1.msra.mxu0 0.0
    %4792 = vmatprep.subr.mxu0 0.0
    %4793 = vmatpush1.msra.mxu0 0.0
    %4794 = vmatprep.subr.mxu0 0.0
    %4795 = vmatpush1.msra.mxu0 0.0
    %4796 = vmatprep.subr.mxu0 0.0
    %4797 = vmatpush1.msra.mxu0 0.0
    %4798 = vmatprep.subr.mxu0 0.0
    %4799 = vmatpush1.msra.mxu0 0.0
    %4800 = vmatprep.subr.mxu0 0.0
    %4801 = vmatpush1.msra.mxu0 0.0
    %4802 = vmatprep.subr.mxu0 0.0
    %4803 = vmatpush1.msra.mxu0 0.0
    %4804 = vmatprep.subr.mxu0 0.0
    %4805 = vmatpush1.msra.mxu0 0.0
    %4806 = vmatprep.subr.mxu0 0.0
    %4807 = vmatpush1.msra.mxu0 0.0
    %4808 = vmatprep.subr.mxu0 0.0
    %4809 = vmatpush1.msra.mxu0 0.0
    %4810 = vmatprep.subr.mxu0 0.0
    %4811 = vmatpush1.msra.mxu0 0.0
    %4812 = vmatprep.subr.mxu0 0.0
    %4813 = vmatpush1.msra.mxu0 0.0
    %4814 = vmatprep.subr.mxu0 0.0
    %4815 = vmatpush1.msra.mxu0 0.0
    %4816 = vmatprep.mubr.f32.mxu0 0.0
    %v4817 = vand.u32 %v40, 4294901760
    %v4818 = vsub.f32 %v40, %v4817
    %4819 = vmatmul.mubr.f32.gmra.mrb[0].mxu0 %v4818
    %v4820 = vpop.f32.mrb[0].mxu0
    %v4821 = vadd.f32 %v4711, %v4820
    %v4822 = vpop.f32.mrb[0].mxu0
    %4823 = vmatprep.mubr.f32.mxu0 0.0
    %v4824 = vand.u32 %v41, 4294901760
    %v4825 = vsub.f32 %v41, %v4824
    %4826 = vmatmul.mubr.f32.gmra.mrb[0].mxu0 %v4825
    %v4827 = vpop.f32.mrb[0].mxu0
    %v4828 = vadd.f32 %v4717, %v4827
    %v4829 = vpop.f32.mrb[0].mxu0
    %4830 = vdwg.mxu0
    %4831 = vmatprep.subr.mxu0 0.0
    %v4832 = vand.u32 %v4446, 4294901760
    %4833 = vmatpush1.msra.mxu0 %v4832
    %4834 = vmatprep.subr.mxu0 0.0
    %v4835 = vand.u32 %v4447, 4294901760
    %4836 = vmatpush1.msra.mxu0 %v4835
    %4837 = vmatprep.subr.mxu0 0.0
    %v4838 = vand.u32 %v4448, 4294901760
    %4839 = vmatpush1.msra.mxu0 %v4838
    %4840 = vmatprep.subr.mxu0 0.0
    %v4841 = vand.u32 %v4449, 4294901760
    %4842 = vmatpush1.msra.mxu0 %v4841
    %4843 = vmatprep.subr.mxu0 0.0
    %v4844 = vand.u32 %v4450, 4294901760
    %4845 = vmatpush1.msra.mxu0 %v4844
    %4846 = vmatprep.subr.mxu0 0.0
    %v4847 = vand.u32 %v4451, 4294901760
    %4848 = vmatpush1.msra.mxu0 %v4847
    %4849 = vmatprep.subr.mxu0 0.0
    %v4850 = vand.u32 %v4452, 4294901760
    %4851 = vmatpush1.msra.mxu0 %v4850
    %4852 = vmatprep.subr.mxu0 0.0
    %v4853 = vand.u32 %v4453, 4294901760
    %4854 = vmatpush1.msra.mxu0 %v4853
    %4855 = vmatprep.subr.mxu0 0.0
    %v4856 = vand.u32 %v4454, 4294901760
    %4857 = vmatpush1.msra.mxu0 %v4856
    %4858 = vmatprep.subr.mxu0 0.0
    %v4859 = vand.u32 %v4455, 4294901760
    %4860 = vmatpush1.msra.mxu0 %v4859
    %4861 = vmatprep.subr.mxu0 0.0
    %v4862 = vand.u32 %v4456, 4294901760
    %4863 = vmatpush1.msra.mxu0 %v4862
    %4864 = vmatprep.subr.mxu0 0.0
    %v4865 = vand.u32 %v4457, 4294901760
    %4866 = vmatpush1.msra.mxu0 %v4865
    %4867 = vmatprep.subr.mxu0 0.0
    %v4868 = vand.u32 %v4458, 4294901760
    %4869 = vmatpush1.msra.mxu0 %v4868
    %4870 = vmatprep.subr.mxu0 0.0
    %v4871 = vand.u32 %v4459, 4294901760
    %4872 = vmatpush1.msra.mxu0 %v4871
    %4873 = vmatprep.subr.mxu0 0.0
    %v4874 = vand.u32 %v4460, 4294901760
    %4875 = vmatpush1.msra.mxu0 %v4874
    %4876 = vmatprep.subr.mxu0 0.0
    %v4877 = vand.u32 %v4461, 4294901760
    %4878 = vmatpush1.msra.mxu0 %v4877
    %4879 = vmatprep.subr.mxu0 0.0
    %4880 = vmatpush1.msra.mxu0 0.0
    %4881 = vmatprep.subr.mxu0 0.0
    %4882 = vmatpush1.msra.mxu0 0.0
    %4883 = vmatprep.subr.mxu0 0.0
    %4884 = vmatpush1.msra.mxu0 0.0
    %4885 = vmatprep.subr.mxu0 0.0
    %4886 = vmatpush1.msra.mxu0 0.0
    %4887 = vmatprep.subr.mxu0 0.0
    %4888 = vmatpush1.msra.mxu0 0.0
    %4889 = vmatprep.subr.mxu0 0.0
    %4890 = vmatpush1.msra.mxu0 0.0
    %4891 = vmatprep.subr.mxu0 0.0
    %4892 = vmatpush1.msra.mxu0 0.0
    %4893 = vmatprep.subr.mxu0 0.0
    %4894 = vmatpush1.msra.mxu0 0.0
    %4895 = vmatprep.subr.mxu0 0.0
    %4896 = vmatpush1.msra.mxu0 0.0
    %4897 = vmatprep.subr.mxu0 0.0
    %4898 = vmatpush1.msra.mxu0 0.0
    %4899 = vmatprep.subr.mxu0 0.0
    %4900 = vmatpush1.msra.mxu0 0.0
    %4901 = vmatprep.subr.mxu0 0.0
    %4902 = vmatpush1.msra.mxu0 0.0
    %4903 = vmatprep.subr.mxu0 0.0
    %4904 = vmatpush1.msra.mxu0 0.0
    %4905 = vmatprep.subr.mxu0 0.0
    %4906 = vmatpush1.msra.mxu0 0.0
    %4907 = vmatprep.subr.mxu0 0.0
    %4908 = vmatpush1.msra.mxu0 0.0
    %4909 = vmatprep.subr.mxu0 0.0
    %4910 = vmatpush1.msra.mxu0 0.0
    %4911 = vmatprep.mubr.f32.mxu0 0.0
    %v4912 = vand.u32 %v40, 4294901760
    %v4913 = vsub.f32 %v40, %v4912
    %v4914 = vand.u32 %v4913, 4294901760
    %4915 = vmatmul.mubr.f32.gmra.mrb[0].mxu0 %v4914
    %v4916 = vpop.f32.mrb[0].mxu0
    %v4917 = vadd.f32 %v4821, %v4916
    %v4918 = vpop.f32.mrb[0].mxu0
    %4919 = vmatprep.mubr.f32.mxu0 0.0
    %v4920 = vand.u32 %v41, 4294901760
    %v4921 = vsub.f32 %v41, %v4920
    %v4922 = vand.u32 %v4921, 4294901760
    %4923 = vmatmul.mubr.f32.gmra.mrb[0].mxu0 %v4922
    %v4924 = vpop.f32.mrb[0].mxu0
    %v4925 = vadd.f32 %v4828, %v4924
    %v4926 = vpop.f32.mrb[0].mxu0
    %4927 = vdwg.mxu0
    %4928 = vmatprep.subr.mxu0 0.0
    %v4929 = vand.u32 %v4446, 4294901760
    %v4930 = vsub.f32 %v4446, %v4929
    %v4931 = vand.u32 %v4930, 4294901760
    %4932 = vmatpush1.msra.mxu0 %v4931
    %4933 = vmatprep.subr.mxu0 0.0
    %v4934 = vand.u32 %v4447, 4294901760
    %v4935 = vsub.f32 %v4447, %v4934
    %v4936 = vand.u32 %v4935, 4294901760
    %4937 = vmatpush1.msra.mxu0 %v4936
    %4938 = vmatprep.subr.mxu0 0.0
    %v4939 = vand.u32 %v4448, 4294901760
    %v4940 = vsub.f32 %v4448, %v4939
    %v4941 = vand.u32 %v4940, 4294901760
    %4942 = vmatpush1.msra.mxu0 %v4941
    %4943 = vmatprep.subr.mxu0 0.0
    %v4944 = vand.u32 %v4449, 4294901760
    %v4945 = vsub.f32 %v4449, %v4944
    %v4946 = vand.u32 %v4945, 4294901760
    %4947 = vmatpush1.msra.mxu0 %v4946
    %4948 = vmatprep.subr.mxu0 0.0
    %v4949 = vand.u32 %v4450, 4294901760
    %v4950 = vsub.f32 %v4450, %v4949
    %v4951 = vand.u32 %v4950, 4294901760
    %4952 = vmatpush1.msra.mxu0 %v4951
    %4953 = vmatprep.subr.mxu0 0.0
    %v4954 = vand.u32 %v4451, 4294901760
    %v4955 = vsub.f32 %v4451, %v4954
    %v4956 = vand.u32 %v4955, 4294901760
    %4957 = vmatpush1.msra.mxu0 %v4956
    %4958 = vmatprep.subr.mxu0 0.0
    %v4959 = vand.u32 %v4452, 4294901760
    %v4960 = vsub.f32 %v4452, %v4959
    %v4961 = vand.u32 %v4960, 4294901760
    %4962 = vmatpush1.msra.mxu0 %v4961
    %4963 = vmatprep.subr.mxu0 0.0
    %v4964 = vand.u32 %v4453, 4294901760
    %v4965 = vsub.f32 %v4453, %v4964
    %v4966 = vand.u32 %v4965, 4294901760
    %4967 = vmatpush1.msra.mxu0 %v4966
    %4968 = vmatprep.subr.mxu0 0.0
    %v4969 = vand.u32 %v4454, 4294901760
    %v4970 = vsub.f32 %v4454, %v4969
    %v4971 = vand.u32 %v4970, 4294901760
    %4972 = vmatpush1.msra.mxu0 %v4971
    %4973 = vmatprep.subr.mxu0 0.0
    %v4974 = vand.u32 %v4455, 4294901760
    %v4975 = vsub.f32 %v4455, %v4974
    %v4976 = vand.u32 %v4975, 4294901760
    %4977 = vmatpush1.msra.mxu0 %v4976
    %4978 = vmatprep.subr.mxu0 0.0
    %v4979 = vand.u32 %v4456, 4294901760
    %v4980 = vsub.f32 %v4456, %v4979
    %v4981 = vand.u32 %v4980, 4294901760
    %4982 = vmatpush1.msra.mxu0 %v4981
    %4983 = vmatprep.subr.mxu0 0.0
    %v4984 = vand.u32 %v4457, 4294901760
    %v4985 = vsub.f32 %v4457, %v4984
    %v4986 = vand.u32 %v4985, 4294901760
    %4987 = vmatpush1.msra.mxu0 %v4986
    %4988 = vmatprep.subr.mxu0 0.0
    %v4989 = vand.u32 %v4458, 4294901760
    %v4990 = vsub.f32 %v4458, %v4989
    %v4991 = vand.u32 %v4990, 4294901760
    %4992 = vmatpush1.msra.mxu0 %v4991
    %4993 = vmatprep.subr.mxu0 0.0
    %v4994 = vand.u32 %v4459, 4294901760
    %v4995 = vsub.f32 %v4459, %v4994
    %v4996 = vand.u32 %v4995, 4294901760
    %4997 = vmatpush1.msra.mxu0 %v4996
    %4998 = vmatprep.subr.mxu0 0.0
    %v4999 = vand.u32 %v4460, 4294901760
    %v5000 = vsub.f32 %v4460, %v4999
    %v5001 = vand.u32 %v5000, 4294901760
    %5002 = vmatpush1.msra.mxu0 %v5001
    %5003 = vmatprep.subr.mxu0 0.0
    %v5004 = vand.u32 %v4461, 4294901760
    %v5005 = vsub.f32 %v4461, %v5004
    %v5006 = vand.u32 %v5005, 4294901760
    %5007 = vmatpush1.msra.mxu0 %v5006
    %5008 = vmatprep.subr.mxu0 0.0
    %5009 = vmatpush1.msra.mxu0 0.0
    %5010 = vmatprep.subr.mxu0 0.0
    %5011 = vmatpush1.msra.mxu0 0.0
    %5012 = vmatprep.subr.mxu0 0.0
    %5013 = vmatpush1.msra.mxu0 0.0
    %5014 = vmatprep.subr.mxu0 0.0
    %5015 = vmatpush1.msra.mxu0 0.0
    %5016 = vmatprep.subr.mxu0 0.0
    %5017 = vmatpush1.msra.mxu0 0.0
    %5018 = vmatprep.subr.mxu0 0.0
    %5019 = vmatpush1.msra.mxu0 0.0
    %5020 = vmatprep.subr.mxu0 0.0
    %5021 = vmatpush1.msra.mxu0 0.0
    %5022 = vmatprep.subr.mxu0 0.0
    %5023 = vmatpush1.msra.mxu0 0.0
    %5024 = vmatprep.subr.mxu0 0.0
    %5025 = vmatpush1.msra.mxu0 0.0
    %5026 = vmatprep.subr.mxu0 0.0
    %5027 = vmatpush1.msra.mxu0 0.0
    %5028 = vmatprep.subr.mxu0 0.0
    %5029 = vmatpush1.msra.mxu0 0.0
    %5030 = vmatprep.subr.mxu0 0.0
    %5031 = vmatpush1.msra.mxu0 0.0
    %5032 = vmatprep.subr.mxu0 0.0
    %5033 = vmatpush1.msra.mxu0 0.0
    %5034 = vmatprep.subr.mxu0 0.0
    %5035 = vmatpush1.msra.mxu0 0.0
    %5036 = vmatprep.subr.mxu0 0.0
    %5037 = vmatpush1.msra.mxu0 0.0
    %5038 = vmatprep.subr.mxu0 0.0
    %5039 = vmatpush1.msra.mxu0 0.0
    %5040 = vmatprep.mubr.f32.mxu0 0.0
    %v5041 = vand.u32 %v40, 4294901760
    %5042 = vmatmul.mubr.f32.gmra.mrb[0].mxu0 %v5041
    %v5043 = vpop.f32.mrb[0].mxu0
    %v5044 = vadd.f32 %v4917, %v5043
    %v5045 = vpop.f32.mrb[0].mxu0
    %5046 = vmatprep.mubr.f32.mxu0 0.0
    %v5047 = vand.u32 %v41, 4294901760
    %5048 = vmatmul.mubr.f32.gmra.mrb[0].mxu0 %v5047
    %v5049 = vpop.f32.mrb[0].mxu0
    %v5050 = vadd.f32 %v4925, %v5049
    %v5051 = vpop.f32.mrb[0].mxu0
    %5052 = vdwg.mxu0
    %5053 = vmatprep.subr.mxu0 0.0
    %v5054 = vand.u32 %v4446, 4294901760
    %5055 = vmatpush1.msra.mxu0 %v5054
    %5056 = vmatprep.subr.mxu0 0.0
    %v5057 = vand.u32 %v4447, 4294901760
    %5058 = vmatpush1.msra.mxu0 %v5057
    %5059 = vmatprep.subr.mxu0 0.0
    %v5060 = vand.u32 %v4448, 4294901760
    %5061 = vmatpush1.msra.mxu0 %v5060
    %5062 = vmatprep.subr.mxu0 0.0
    %v5063 = vand.u32 %v4449, 4294901760
    %5064 = vmatpush1.msra.mxu0 %v5063
    %5065 = vmatprep.subr.mxu0 0.0
    %v5066 = vand.u32 %v4450, 4294901760
    %5067 = vmatpush1.msra.mxu0 %v5066
    %5068 = vmatprep.subr.mxu0 0.0
    %v5069 = vand.u32 %v4451, 4294901760
    %5070 = vmatpush1.msra.mxu0 %v5069
    %5071 = vmatprep.subr.mxu0 0.0
    %v5072 = vand.u32 %v4452, 4294901760
    %5073 = vmatpush1.msra.mxu0 %v5072
    %5074 = vmatprep.subr.mxu0 0.0
    %v5075 = vand.u32 %v4453, 4294901760
    %5076 = vmatpush1.msra.mxu0 %v5075
    %5077 = vmatprep.subr.mxu0 0.0
    %v5078 = vand.u32 %v4454, 4294901760
    %5079 = vmatpush1.msra.mxu0 %v5078
    %5080 = vmatprep.subr.mxu0 0.0
    %v5081 = vand.u32 %v4455, 4294901760
    %5082 = vmatpush1.msra.mxu0 %v5081
    %5083 = vmatprep.subr.mxu0 0.0
    %v5084 = vand.u32 %v4456, 4294901760
    %5085 = vmatpush1.msra.mxu0 %v5084
    %5086 = vmatprep.subr.mxu0 0.0
    %v5087 = vand.u32 %v4457, 4294901760
    %5088 = vmatpush1.msra.mxu0 %v5087
    %5089 = vmatprep.subr.mxu0 0.0
    %v5090 = vand.u32 %v4458, 4294901760
    %5091 = vmatpush1.msra.mxu0 %v5090
    %5092 = vmatprep.subr.mxu0 0.0
    %v5093 = vand.u32 %v4459, 4294901760
    %5094 = vmatpush1.msra.mxu0 %v5093
    %5095 = vmatprep.subr.mxu0 0.0
    %v5096 = vand.u32 %v4460, 4294901760
    %5097 = vmatpush1.msra.mxu0 %v5096
    %5098 = vmatprep.subr.mxu0 0.0
    %v5099 = vand.u32 %v4461, 4294901760
    %5100 = vmatpush1.msra.mxu0 %v5099
    %5101 = vmatprep.subr.mxu0 0.0
    %5102 = vmatpush1.msra.mxu0 0.0
    %5103 = vmatprep.subr.mxu0 0.0
    %5104 = vmatpush1.msra.mxu0 0.0
    %5105 = vmatprep.subr.mxu0 0.0
    %5106 = vmatpush1.msra.mxu0 0.0
    %5107 = vmatprep.subr.mxu0 0.0
    %5108 = vmatpush1.msra.mxu0 0.0
    %5109 = vmatprep.subr.mxu0 0.0
    %5110 = vmatpush1.msra.mxu0 0.0
    %5111 = vmatprep.subr.mxu0 0.0
    %5112 = vmatpush1.msra.mxu0 0.0
    %5113 = vmatprep.subr.mxu0 0.0
    %5114 = vmatpush1.msra.mxu0 0.0
    %5115 = vmatprep.subr.mxu0 0.0
    %5116 = vmatpush1.msra.mxu0 0.0
    %5117 = vmatprep.subr.mxu0 0.0
    %5118 = vmatpush1.msra.mxu0 0.0
    %5119 = vmatprep.subr.mxu0 0.0
    %5120 = vmatpush1.msra.mxu0 0.0
    %5121 = vmatprep.subr.mxu0 0.0
    %5122 = vmatpush1.msra.mxu0 0.0
    %5123 = vmatprep.subr.mxu0 0.0
    %5124 = vmatpush1.msra.mxu0 0.0
    %5125 = vmatprep.subr.mxu0 0.0
    %5126 = vmatpush1.msra.mxu0 0.0
    %5127 = vmatprep.subr.mxu0 0.0
    %5128 = vmatpush1.msra.mxu0 0.0
    %5129 = vmatprep.subr.mxu0 0.0
    %5130 = vmatpush1.msra.mxu0 0.0
    %5131 = vmatprep.subr.mxu0 0.0
    %5132 = vmatpush1.msra.mxu0 0.0
    %5133 = vmatprep.mubr.f32.mxu0 0.0
    %v5134 = vand.u32 %v40, 4294901760
    %5135 = vmatmul.mubr.f32.gmra.mrb[0].mxu0 %v5134
    %v5136 = vpop.f32.mrb[0].mxu0
    %v5137 = vadd.f32 %v5044, %v5136
    %v5138 = vpop.f32.mrb[0].mxu0
    %5139 = vmatprep.mubr.f32.mxu0 0.0
    %v5140 = vand.u32 %v41, 4294901760
    %5141 = vmatmul.mubr.f32.gmra.mrb[0].mxu0 %v5140
    %v5142 = vpop.f32.mrb[0].mxu0
    %v5143 = vadd.f32 %v5050, %v5142
    %v5144 = vpop.f32.mrb[0].mxu0
    %5145 = vdwg.mxu0
    %s5146 = scalar_lea.vmem [#allocation5], 896
    %v5147 = vld [vmem:[%s5146] sm:$0xff]
    %v5148 = vld [vmem:[%s5146 + $0x8] sm:$0xff]
    %v5149 = vld [vmem:[%s5146 + $0x10] sm:$0xff]
    %v5150 = vld [vmem:[%s5146 + $0x18] sm:$0xff]
    %v5151 = vld [vmem:[%s5146 + $0x20] sm:$0xff]
    %v5152 = vld [vmem:[%s5146 + $0x28] sm:$0xff]
    %v5153 = vld [vmem:[%s5146 + $0x30] sm:$0xff]
    %v5154 = vld [vmem:[%s5146 + $0x38] sm:$0xff]
    %v5155 = vld [vmem:[%s5146 + $0x40] sm:$0xff]
    %v5156 = vld [vmem:[%s5146 + $0x48] sm:$0xff]
    %v5157 = vld [vmem:[%s5146 + $0x50] sm:$0xff]
    %v5158 = vld [vmem:[%s5146 + $0x58] sm:$0xff]
    %v5159 = vld [vmem:[%s5146 + $0x60] sm:$0xff]
    %v5160 = vld [vmem:[%s5146 + $0x68] sm:$0xff]
    %v5161 = vld [vmem:[%s5146 + $0x70] sm:$0xff]
    %v5162 = vld [vmem:[%s5146 + $0x78] sm:$0xff]
    %5163 = vmatprep.subr.mxu0 0.0
    %v5164 = vand.u32 %v5147, 4294901760
    %5165 = vmatpush1.msra.mxu0 %v5164
    %5166 = vmatprep.subr.mxu0 0.0
    %v5167 = vand.u32 %v5148, 4294901760
    %5168 = vmatpush1.msra.mxu0 %v5167
    %5169 = vmatprep.subr.mxu0 0.0
    %v5170 = vand.u32 %v5149, 4294901760
    %5171 = vmatpush1.msra.mxu0 %v5170
    %5172 = vmatprep.subr.mxu0 0.0
    %v5173 = vand.u32 %v5150, 4294901760
    %5174 = vmatpush1.msra.mxu0 %v5173
    %5175 = vmatprep.subr.mxu0 0.0
    %v5176 = vand.u32 %v5151, 4294901760
    %5177 = vmatpush1.msra.mxu0 %v5176
    %5178 = vmatprep.subr.mxu0 0.0
    %v5179 = vand.u32 %v5152, 4294901760
    %5180 = vmatpush1.msra.mxu0 %v5179
    %5181 = vmatprep.subr.mxu0 0.0
    %v5182 = vand.u32 %v5153, 4294901760
    %5183 = vmatpush1.msra.mxu0 %v5182
    %5184 = vmatprep.subr.mxu0 0.0
    %v5185 = vand.u32 %v5154, 4294901760
    %5186 = vmatpush1.msra.mxu0 %v5185
    %5187 = vmatprep.subr.mxu0 0.0
    %v5188 = vand.u32 %v5155, 4294901760
    %5189 = vmatpush1.msra.mxu0 %v5188
    %5190 = vmatprep.subr.mxu0 0.0
    %v5191 = vand.u32 %v5156, 4294901760
    %5192 = vmatpush1.msra.mxu0 %v5191
    %5193 = vmatprep.subr.mxu0 0.0
    %v5194 = vand.u32 %v5157, 4294901760
    %5195 = vmatpush1.msra.mxu0 %v5194
    %5196 = vmatprep.subr.mxu0 0.0
    %v5197 = vand.u32 %v5158, 4294901760
    %5198 = vmatpush1.msra.mxu0 %v5197
    %5199 = vmatprep.subr.mxu0 0.0
    %v5200 = vand.u32 %v5159, 4294901760
    %5201 = vmatpush1.msra.mxu0 %v5200
    %5202 = vmatprep.subr.mxu0 0.0
    %v5203 = vand.u32 %v5160, 4294901760
    %5204 = vmatpush1.msra.mxu0 %v5203
    %5205 = vmatprep.subr.mxu0 0.0
    %v5206 = vand.u32 %v5161, 4294901760
    %5207 = vmatpush1.msra.mxu0 %v5206
    %5208 = vmatprep.subr.mxu0 0.0
    %v5209 = vand.u32 %v5162, 4294901760
    %5210 = vmatpush1.msra.mxu0 %v5209
    %5211 = vmatprep.subr.mxu0 0.0
    %5212 = vmatpush1.msra.mxu0 0.0
    %5213 = vmatprep.subr.mxu0 0.0
    %5214 = vmatpush1.msra.mxu0 0.0
    %5215 = vmatprep.subr.mxu0 0.0
    %5216 = vmatpush1.msra.mxu0 0.0
    %5217 = vmatprep.subr.mxu0 0.0
    %5218 = vmatpush1.msra.mxu0 0.0
    %5219 = vmatprep.subr.mxu0 0.0
    %5220 = vmatpush1.msra.mxu0 0.0
    %5221 = vmatprep.subr.mxu0 0.0
    %5222 = vmatpush1.msra.mxu0 0.0
    %5223 = vmatprep.subr.mxu0 0.0
    %5224 = vmatpush1.msra.mxu0 0.0
    %5225 = vmatprep.subr.mxu0 0.0
    %5226 = vmatpush1.msra.mxu0 0.0
    %5227 = vmatprep.subr.mxu0 0.0
    %5228 = vmatpush1.msra.mxu0 0.0
    %5229 = vmatprep.subr.mxu0 0.0
    %5230 = vmatpush1.msra.mxu0 0.0
    %5231 = vmatprep.subr.mxu0 0.0
    %5232 = vmatpush1.msra.mxu0 0.0
    %5233 = vmatprep.subr.mxu0 0.0
    %5234 = vmatpush1.msra.mxu0 0.0
    %5235 = vmatprep.subr.mxu0 0.0
    %5236 = vmatpush1.msra.mxu0 0.0
    %5237 = vmatprep.subr.mxu0 0.0
    %5238 = vmatpush1.msra.mxu0 0.0
    %5239 = vmatprep.subr.mxu0 0.0
    %5240 = vmatpush1.msra.mxu0 0.0
    %5241 = vmatprep.subr.mxu0 0.0
    %5242 = vmatpush1.msra.mxu0 0.0
    %5243 = vmatprep.mubr.f32.mxu0 0.0
    %v5244 = vand.u32 %v40, 4294901760
    %v5245 = vsub.f32 %v40, %v5244
    %v5246 = vand.u32 %v5245, 4294901760
    %v5247 = vsub.f32 %v5245, %v5246
    %v5248 = vand.u32 %v5247, 4294901760
    %5249 = vmatmul.mubr.f32.gmra.mrb[0].mxu0 %v5248
    %v5250 = vpop.f32.mrb[0].mxu0
    %v5251 = vadd.f32 0.0, %v5250
    %v5252 = vpop.f32.mrb[0].mxu0
    %5253 = vmatprep.mubr.f32.mxu0 0.0
    %v5254 = vand.u32 %v41, 4294901760
    %v5255 = vsub.f32 %v41, %v5254
    %v5256 = vand.u32 %v5255, 4294901760
    %v5257 = vsub.f32 %v5255, %v5256
    %v5258 = vand.u32 %v5257, 4294901760
    %5259 = vmatmul.mubr.f32.gmra.mrb[0].mxu0 %v5258
    %v5260 = vpop.f32.mrb[0].mxu0
    %v5261 = vadd.f32 0.0, %v5260
    %v5262 = vpop.f32.mrb[0].mxu0
    %5263 = vdwg.mxu0
    %5264 = vmatprep.subr.mxu0 0.0
    %v5265 = vand.u32 %v5147, 4294901760
    %v5266 = vsub.f32 %v5147, %v5265
    %v5267 = vand.u32 %v5266, 4294901760
    %v5268 = vsub.f32 %v5266, %v5267
    %v5269 = vand.u32 %v5268, 4294901760
    %5270 = vmatpush1.msra.mxu0 %v5269
    %5271 = vmatprep.subr.mxu0 0.0
    %v5272 = vand.u32 %v5148, 4294901760
    %v5273 = vsub.f32 %v5148, %v5272
    %v5274 = vand.u32 %v5273, 4294901760
    %v5275 = vsub.f32 %v5273, %v5274
    %v5276 = vand.u32 %v5275, 4294901760
    %5277 = vmatpush1.msra.mxu0 %v5276
    %5278 = vmatprep.subr.mxu0 0.0
    %v5279 = vand.u32 %v5149, 4294901760
    %v5280 = vsub.f32 %v5149, %v5279
    %v5281 = vand.u32 %v5280, 4294901760
    %v5282 = vsub.f32 %v5280, %v5281
    %v5283 = vand.u32 %v5282, 4294901760
    %5284 = vmatpush1.msra.mxu0 %v5283
    %5285 = vmatprep.subr.mxu0 0.0
    %v5286 = vand.u32 %v5150, 4294901760
    %v5287 = vsub.f32 %v5150, %v5286
    %v5288 = vand.u32 %v5287, 4294901760
    %v5289 = vsub.f32 %v5287, %v5288
    %v5290 = vand.u32 %v5289, 4294901760
    %5291 = vmatpush1.msra.mxu0 %v5290
    %5292 = vmatprep.subr.mxu0 0.0
    %v5293 = vand.u32 %v5151, 4294901760
    %v5294 = vsub.f32 %v5151, %v5293
    %v5295 = vand.u32 %v5294, 4294901760
    %v5296 = vsub.f32 %v5294, %v5295
    %v5297 = vand.u32 %v5296, 4294901760
    %5298 = vmatpush1.msra.mxu0 %v5297
    %5299 = vmatprep.subr.mxu0 0.0
    %v5300 = vand.u32 %v5152, 4294901760
    %v5301 = vsub.f32 %v5152, %v5300
    %v5302 = vand.u32 %v5301, 4294901760
    %v5303 = vsub.f32 %v5301, %v5302
    %v5304 = vand.u32 %v5303, 4294901760
    %5305 = vmatpush1.msra.mxu0 %v5304
    %5306 = vmatprep.subr.mxu0 0.0
    %v5307 = vand.u32 %v5153, 4294901760
    %v5308 = vsub.f32 %v5153, %v5307
    %v5309 = vand.u32 %v5308, 4294901760
    %v5310 = vsub.f32 %v5308, %v5309
    %v5311 = vand.u32 %v5310, 4294901760
    %5312 = vmatpush1.msra.mxu0 %v5311
    %5313 = vmatprep.subr.mxu0 0.0
    %v5314 = vand.u32 %v5154, 4294901760
    %v5315 = vsub.f32 %v5154, %v5314
    %v5316 = vand.u32 %v5315, 4294901760
    %v5317 = vsub.f32 %v5315, %v5316
    %v5318 = vand.u32 %v5317, 4294901760
    %5319 = vmatpush1.msra.mxu0 %v5318
    %5320 = vmatprep.subr.mxu0 0.0
    %v5321 = vand.u32 %v5155, 4294901760
    %v5322 = vsub.f32 %v5155, %v5321
    %v5323 = vand.u32 %v5322, 4294901760
    %v5324 = vsub.f32 %v5322, %v5323
    %v5325 = vand.u32 %v5324, 4294901760
    %5326 = vmatpush1.msra.mxu0 %v5325
    %5327 = vmatprep.subr.mxu0 0.0
    %v5328 = vand.u32 %v5156, 4294901760
    %v5329 = vsub.f32 %v5156, %v5328
    %v5330 = vand.u32 %v5329, 4294901760
    %v5331 = vsub.f32 %v5329, %v5330
    %v5332 = vand.u32 %v5331, 4294901760
    %5333 = vmatpush1.msra.mxu0 %v5332
    %5334 = vmatprep.subr.mxu0 0.0
    %v5335 = vand.u32 %v5157, 4294901760
    %v5336 = vsub.f32 %v5157, %v5335
    %v5337 = vand.u32 %v5336, 4294901760
    %v5338 = vsub.f32 %v5336, %v5337
    %v5339 = vand.u32 %v5338, 4294901760
    %5340 = vmatpush1.msra.mxu0 %v5339
    %5341 = vmatprep.subr.mxu0 0.0
    %v5342 = vand.u32 %v5158, 4294901760
    %v5343 = vsub.f32 %v5158, %v5342
    %v5344 = vand.u32 %v5343, 4294901760
    %v5345 = vsub.f32 %v5343, %v5344
    %v5346 = vand.u32 %v5345, 4294901760
    %5347 = vmatpush1.msra.mxu0 %v5346
    %5348 = vmatprep.subr.mxu0 0.0
    %v5349 = vand.u32 %v5159, 4294901760
    %v5350 = vsub.f32 %v5159, %v5349
    %v5351 = vand.u32 %v5350, 4294901760
    %v5352 = vsub.f32 %v5350, %v5351
    %v5353 = vand.u32 %v5352, 4294901760
    %5354 = vmatpush1.msra.mxu0 %v5353
    %5355 = vmatprep.subr.mxu0 0.0
    %v5356 = vand.u32 %v5160, 4294901760
    %v5357 = vsub.f32 %v5160, %v5356
    %v5358 = vand.u32 %v5357, 4294901760
    %v5359 = vsub.f32 %v5357, %v5358
    %v5360 = vand.u32 %v5359, 4294901760
    %5361 = vmatpush1.msra.mxu0 %v5360
    %5362 = vmatprep.subr.mxu0 0.0
    %v5363 = vand.u32 %v5161, 4294901760
    %v5364 = vsub.f32 %v5161, %v5363
    %v5365 = vand.u32 %v5364, 4294901760
    %v5366 = vsub.f32 %v5364, %v5365
    %v5367 = vand.u32 %v5366, 4294901760
    %5368 = vmatpush1.msra.mxu0 %v5367
    %5369 = vmatprep.subr.mxu0 0.0
    %v5370 = vand.u32 %v5162, 4294901760
    %v5371 = vsub.f32 %v5162, %v5370
    %v5372 = vand.u32 %v5371, 4294901760
    %v5373 = vsub.f32 %v5371, %v5372
    %v5374 = vand.u32 %v5373, 4294901760
    %5375 = vmatpush1.msra.mxu0 %v5374
    %5376 = vmatprep.subr.mxu0 0.0
    %5377 = vmatpush1.msra.mxu0 0.0
    %5378 = vmatprep.subr.mxu0 0.0
    %5379 = vmatpush1.msra.mxu0 0.0
    %5380 = vmatprep.subr.mxu0 0.0
    %5381 = vmatpush1.msra.mxu0 0.0
    %5382 = vmatprep.subr.mxu0 0.0
    %5383 = vmatpush1.msra.mxu0 0.0
    %5384 = vmatprep.subr.mxu0 0.0
    %5385 = vmatpush1.msra.mxu0 0.0
    %5386 = vmatprep.subr.mxu0 0.0
    %5387 = vmatpush1.msra.mxu0 0.0
    %5388 = vmatprep.subr.mxu0 0.0
    %5389 = vmatpush1.msra.mxu0 0.0
    %5390 = vmatprep.subr.mxu0 0.0
    %5391 = vmatpush1.msra.mxu0 0.0
    %5392 = vmatprep.subr.mxu0 0.0
    %5393 = vmatpush1.msra.mxu0 0.0
    %5394 = vmatprep.subr.mxu0 0.0
    %5395 = vmatpush1.msra.mxu0 0.0
    %5396 = vmatprep.subr.mxu0 0.0
    %5397 = vmatpush1.msra.mxu0 0.0
    %5398 = vmatprep.subr.mxu0 0.0
    %5399 = vmatpush1.msra.mxu0 0.0
    %5400 = vmatprep.subr.mxu0 0.0
    %5401 = vmatpush1.msra.mxu0 0.0
    %5402 = vmatprep.subr.mxu0 0.0
    %5403 = vmatpush1.msra.mxu0 0.0
    %5404 = vmatprep.subr.mxu0 0.0
    %5405 = vmatpush1.msra.mxu0 0.0
    %5406 = vmatprep.subr.mxu0 0.0
    %5407 = vmatpush1.msra.mxu0 0.0
    %5408 = vmatprep.mubr.f32.mxu0 0.0
    %v5409 = vand.u32 %v40, 4294901760
    %5410 = vmatmul.mubr.f32.gmra.mrb[0].mxu0 %v5409
    %v5411 = vpop.f32.mrb[0].mxu0
    %v5412 = vadd.f32 %v5251, %v5411
    %v5413 = vpop.f32.mrb[0].mxu0
    %5414 = vmatprep.mubr.f32.mxu0 0.0
    %v5415 = vand.u32 %v41, 4294901760
    %5416 = vmatmul.mubr.f32.gmra.mrb[0].mxu0 %v5415
    %v5417 = vpop.f32.mrb[0].mxu0
    %v5418 = vadd.f32 %v5261, %v5417
    %v5419 = vpop.f32.mrb[0].mxu0
    %5420 = vdwg.mxu0
    %5421 = vmatprep.subr.mxu0 0.0
    %v5422 = vand.u32 %v5147, 4294901760
    %v5423 = vsub.f32 %v5147, %v5422
    %5424 = vmatpush1.msra.mxu0 %v5423
    %5425 = vmatprep.subr.mxu0 0.0
    %v5426 = vand.u32 %v5148, 4294901760
    %v5427 = vsub.f32 %v5148, %v5426
    %5428 = vmatpush1.msra.mxu0 %v5427
    %5429 = vmatprep.subr.mxu0 0.0
    %v5430 = vand.u32 %v5149, 4294901760
    %v5431 = vsub.f32 %v5149, %v5430
    %5432 = vmatpush1.msra.mxu0 %v5431
    %5433 = vmatprep.subr.mxu0 0.0
    %v5434 = vand.u32 %v5150, 4294901760
    %v5435 = vsub.f32 %v5150, %v5434
    %5436 = vmatpush1.msra.mxu0 %v5435
    %5437 = vmatprep.subr.mxu0 0.0
    %v5438 = vand.u32 %v5151, 4294901760
    %v5439 = vsub.f32 %v5151, %v5438
    %5440 = vmatpush1.msra.mxu0 %v5439
    %5441 = vmatprep.subr.mxu0 0.0
    %v5442 = vand.u32 %v5152, 4294901760
    %v5443 = vsub.f32 %v5152, %v5442
    %5444 = vmatpush1.msra.mxu0 %v5443
    %5445 = vmatprep.subr.mxu0 0.0
    %v5446 = vand.u32 %v5153, 4294901760
    %v5447 = vsub.f32 %v5153, %v5446
    %5448 = vmatpush1.msra.mxu0 %v5447
    %5449 = vmatprep.subr.mxu0 0.0
    %v5450 = vand.u32 %v5154, 4294901760
    %v5451 = vsub.f32 %v5154, %v5450
    %5452 = vmatpush1.msra.mxu0 %v5451
    %5453 = vmatprep.subr.mxu0 0.0
    %v5454 = vand.u32 %v5155, 4294901760
    %v5455 = vsub.f32 %v5155, %v5454
    %5456 = vmatpush1.msra.mxu0 %v5455
    %5457 = vmatprep.subr.mxu0 0.0
    %v5458 = vand.u32 %v5156, 4294901760
    %v5459 = vsub.f32 %v5156, %v5458
    %5460 = vmatpush1.msra.mxu0 %v5459
    %5461 = vmatprep.subr.mxu0 0.0
    %v5462 = vand.u32 %v5157, 4294901760
    %v5463 = vsub.f32 %v5157, %v5462
    %5464 = vmatpush1.msra.mxu0 %v5463
    %5465 = vmatprep.subr.mxu0 0.0
    %v5466 = vand.u32 %v5158, 4294901760
    %v5467 = vsub.f32 %v5158, %v5466
    %5468 = vmatpush1.msra.mxu0 %v5467
    %5469 = vmatprep.subr.mxu0 0.0
    %v5470 = vand.u32 %v5159, 4294901760
    %v5471 = vsub.f32 %v5159, %v5470
    %5472 = vmatpush1.msra.mxu0 %v5471
    %5473 = vmatprep.subr.mxu0 0.0
    %v5474 = vand.u32 %v5160, 4294901760
    %v5475 = vsub.f32 %v5160, %v5474
    %5476 = vmatpush1.msra.mxu0 %v5475
    %5477 = vmatprep.subr.mxu0 0.0
    %v5478 = vand.u32 %v5161, 4294901760
    %v5479 = vsub.f32 %v5161, %v5478
    %5480 = vmatpush1.msra.mxu0 %v5479
    %5481 = vmatprep.subr.mxu0 0.0
    %v5482 = vand.u32 %v5162, 4294901760
    %v5483 = vsub.f32 %v5162, %v5482
    %5484 = vmatpush1.msra.mxu0 %v5483
    %5485 = vmatprep.subr.mxu0 0.0
    %5486 = vmatpush1.msra.mxu0 0.0
    %5487 = vmatprep.subr.mxu0 0.0
    %5488 = vmatpush1.msra.mxu0 0.0
    %5489 = vmatprep.subr.mxu0 0.0
    %5490 = vmatpush1.msra.mxu0 0.0
    %5491 = vmatprep.subr.mxu0 0.0
    %5492 = vmatpush1.msra.mxu0 0.0
    %5493 = vmatprep.subr.mxu0 0.0
    %5494 = vmatpush1.msra.mxu0 0.0
    %5495 = vmatprep.subr.mxu0 0.0
    %5496 = vmatpush1.msra.mxu0 0.0
    %5497 = vmatprep.subr.mxu0 0.0
    %5498 = vmatpush1.msra.mxu0 0.0
    %5499 = vmatprep.subr.mxu0 0.0
    %5500 = vmatpush1.msra.mxu0 0.0
    %5501 = vmatprep.subr.mxu0 0.0
    %5502 = vmatpush1.msra.mxu0 0.0
    %5503 = vmatprep.subr.mxu0 0.0
    %5504 = vmatpush1.msra.mxu0 0.0
    %5505 = vmatprep.subr.mxu0 0.0
    %5506 = vmatpush1.msra.mxu0 0.0
    %5507 = vmatprep.subr.mxu0 0.0
    %5508 = vmatpush1.msra.mxu0 0.0
    %5509 = vmatprep.subr.mxu0 0.0
    %5510 = vmatpush1.msra.mxu0 0.0
    %5511 = vmatprep.subr.mxu0 0.0
    %5512 = vmatpush1.msra.mxu0 0.0
    %5513 = vmatprep.subr.mxu0 0.0
    %5514 = vmatpush1.msra.mxu0 0.0
    %5515 = vmatprep.subr.mxu0 0.0
    %5516 = vmatpush1.msra.mxu0 0.0
    %5517 = vmatprep.mubr.f32.mxu0 0.0
    %v5518 = vand.u32 %v40, 4294901760
    %v5519 = vsub.f32 %v40, %v5518
    %5520 = vmatmul.mubr.f32.gmra.mrb[0].mxu0 %v5519
    %v5521 = vpop.f32.mrb[0].mxu0
    %v5522 = vadd.f32 %v5412, %v5521
    %v5523 = vpop.f32.mrb[0].mxu0
    %5524 = vmatprep.mubr.f32.mxu0 0.0
    %v5525 = vand.u32 %v41, 4294901760
    %v5526 = vsub.f32 %v41, %v5525
    %5527 = vmatmul.mubr.f32.gmra.mrb[0].mxu0 %v5526
    %v5528 = vpop.f32.mrb[0].mxu0
    %v5529 = vadd.f32 %v5418, %v5528
    %v5530 = vpop.f32.mrb[0].mxu0
    %5531 = vdwg.mxu0
    %5532 = vmatprep.subr.mxu0 0.0
    %v5533 = vand.u32 %v5147, 4294901760
    %5534 = vmatpush1.msra.mxu0 %v5533
    %5535 = vmatprep.subr.mxu0 0.0
    %v5536 = vand.u32 %v5148, 4294901760
    %5537 = vmatpush1.msra.mxu0 %v5536
    %5538 = vmatprep.subr.mxu0 0.0
    %v5539 = vand.u32 %v5149, 4294901760
    %5540 = vmatpush1.msra.mxu0 %v5539
    %5541 = vmatprep.subr.mxu0 0.0
    %v5542 = vand.u32 %v5150, 4294901760
    %5543 = vmatpush1.msra.mxu0 %v5542
    %5544 = vmatprep.subr.mxu0 0.0
    %v5545 = vand.u32 %v5151, 4294901760
    %5546 = vmatpush1.msra.mxu0 %v5545
    %5547 = vmatprep.subr.mxu0 0.0
    %v5548 = vand.u32 %v5152, 4294901760
    %5549 = vmatpush1.msra.mxu0 %v5548
    %5550 = vmatprep.subr.mxu0 0.0
    %v5551 = vand.u32 %v5153, 4294901760
    %5552 = vmatpush1.msra.mxu0 %v5551
    %5553 = vmatprep.subr.mxu0 0.0
    %v5554 = vand.u32 %v5154, 4294901760
    %5555 = vmatpush1.msra.mxu0 %v5554
    %5556 = vmatprep.subr.mxu0 0.0
    %v5557 = vand.u32 %v5155, 4294901760
    %5558 = vmatpush1.msra.mxu0 %v5557
    %5559 = vmatprep.subr.mxu0 0.0
    %v5560 = vand.u32 %v5156, 4294901760
    %5561 = vmatpush1.msra.mxu0 %v5560
    %5562 = vmatprep.subr.mxu0 0.0
    %v5563 = vand.u32 %v5157, 4294901760
    %5564 = vmatpush1.msra.mxu0 %v5563
    %5565 = vmatprep.subr.mxu0 0.0
    %v5566 = vand.u32 %v5158, 4294901760
    %5567 = vmatpush1.msra.mxu0 %v5566
    %5568 = vmatprep.subr.mxu0 0.0
    %v5569 = vand.u32 %v5159, 4294901760
    %5570 = vmatpush1.msra.mxu0 %v5569
    %5571 = vmatprep.subr.mxu0 0.0
    %v5572 = vand.u32 %v5160, 4294901760
    %5573 = vmatpush1.msra.mxu0 %v5572
    %5574 = vmatprep.subr.mxu0 0.0
    %v5575 = vand.u32 %v5161, 4294901760
    %5576 = vmatpush1.msra.mxu0 %v5575
    %5577 = vmatprep.subr.mxu0 0.0
    %v5578 = vand.u32 %v5162, 4294901760
    %5579 = vmatpush1.msra.mxu0 %v5578
    %5580 = vmatprep.subr.mxu0 0.0
    %5581 = vmatpush1.msra.mxu0 0.0
    %5582 = vmatprep.subr.mxu0 0.0
    %5583 = vmatpush1.msra.mxu0 0.0
    %5584 = vmatprep.subr.mxu0 0.0
    %5585 = vmatpush1.msra.mxu0 0.0
    %5586 = vmatprep.subr.mxu0 0.0
    %5587 = vmatpush1.msra.mxu0 0.0
    %5588 = vmatprep.subr.mxu0 0.0
    %5589 = vmatpush1.msra.mxu0 0.0
    %5590 = vmatprep.subr.mxu0 0.0
    %5591 = vmatpush1.msra.mxu0 0.0
    %5592 = vmatprep.subr.mxu0 0.0
    %5593 = vmatpush1.msra.mxu0 0.0
    %5594 = vmatprep.subr.mxu0 0.0
    %5595 = vmatpush1.msra.mxu0 0.0
    %5596 = vmatprep.subr.mxu0 0.0
    %5597 = vmatpush1.msra.mxu0 0.0
    %5598 = vmatprep.subr.mxu0 0.0
    %5599 = vmatpush1.msra.mxu0 0.0
    %5600 = vmatprep.subr.mxu0 0.0
    %5601 = vmatpush1.msra.mxu0 0.0
    %5602 = vmatprep.subr.mxu0 0.0
    %5603 = vmatpush1.msra.mxu0 0.0
    %5604 = vmatprep.subr.mxu0 0.0
    %5605 = vmatpush1.msra.mxu0 0.0
    %5606 = vmatprep.subr.mxu0 0.0
    %5607 = vmatpush1.msra.mxu0 0.0
    %5608 = vmatprep.subr.mxu0 0.0
    %5609 = vmatpush1.msra.mxu0 0.0
    %5610 = vmatprep.subr.mxu0 0.0
    %5611 = vmatpush1.msra.mxu0 0.0
    %5612 = vmatprep.mubr.f32.mxu0 0.0
    %v5613 = vand.u32 %v40, 4294901760
    %v5614 = vsub.f32 %v40, %v5613
    %v5615 = vand.u32 %v5614, 4294901760
    %5616 = vmatmul.mubr.f32.gmra.mrb[0].mxu0 %v5615
    %v5617 = vpop.f32.mrb[0].mxu0
    %v5618 = vadd.f32 %v5522, %v5617
    %v5619 = vpop.f32.mrb[0].mxu0
    %5620 = vmatprep.mubr.f32.mxu0 0.0
    %v5621 = vand.u32 %v41, 4294901760
    %v5622 = vsub.f32 %v41, %v5621
    %v5623 = vand.u32 %v5622, 4294901760
    %5624 = vmatmul.mubr.f32.gmra.mrb[0].mxu0 %v5623
    %v5625 = vpop.f32.mrb[0].mxu0
    %v5626 = vadd.f32 %v5529, %v5625
    %v5627 = vpop.f32.mrb[0].mxu0
    %5628 = vdwg.mxu0
    %5629 = vmatprep.subr.mxu0 0.0
    %v5630 = vand.u32 %v5147, 4294901760
    %v5631 = vsub.f32 %v5147, %v5630
    %v5632 = vand.u32 %v5631, 4294901760
    %5633 = vmatpush1.msra.mxu0 %v5632
    %5634 = vmatprep.subr.mxu0 0.0
    %v5635 = vand.u32 %v5148, 4294901760
    %v5636 = vsub.f32 %v5148, %v5635
    %v5637 = vand.u32 %v5636, 4294901760
    %5638 = vmatpush1.msra.mxu0 %v5637
    %5639 = vmatprep.subr.mxu0 0.0
    %v5640 = vand.u32 %v5149, 4294901760
    %v5641 = vsub.f32 %v5149, %v5640
    %v5642 = vand.u32 %v5641, 4294901760
    %5643 = vmatpush1.msra.mxu0 %v5642
    %5644 = vmatprep.subr.mxu0 0.0
    %v5645 = vand.u32 %v5150, 4294901760
    %v5646 = vsub.f32 %v5150, %v5645
    %v5647 = vand.u32 %v5646, 4294901760
    %5648 = vmatpush1.msra.mxu0 %v5647
    %5649 = vmatprep.subr.mxu0 0.0
    %v5650 = vand.u32 %v5151, 4294901760
    %v5651 = vsub.f32 %v5151, %v5650
    %v5652 = vand.u32 %v5651, 4294901760
    %5653 = vmatpush1.msra.mxu0 %v5652
    %5654 = vmatprep.subr.mxu0 0.0
    %v5655 = vand.u32 %v5152, 4294901760
    %v5656 = vsub.f32 %v5152, %v5655
    %v5657 = vand.u32 %v5656, 4294901760
    %5658 = vmatpush1.msra.mxu0 %v5657
    %5659 = vmatprep.subr.mxu0 0.0
    %v5660 = vand.u32 %v5153, 4294901760
    %v5661 = vsub.f32 %v5153, %v5660
    %v5662 = vand.u32 %v5661, 4294901760
    %5663 = vmatpush1.msra.mxu0 %v5662
    %5664 = vmatprep.subr.mxu0 0.0
    %v5665 = vand.u32 %v5154, 4294901760
    %v5666 = vsub.f32 %v5154, %v5665
    %v5667 = vand.u32 %v5666, 4294901760
    %5668 = vmatpush1.msra.mxu0 %v5667
    %5669 = vmatprep.subr.mxu0 0.0
    %v5670 = vand.u32 %v5155, 4294901760
    %v5671 = vsub.f32 %v5155, %v5670
    %v5672 = vand.u32 %v5671, 4294901760
    %5673 = vmatpush1.msra.mxu0 %v5672
    %5674 = vmatprep.subr.mxu0 0.0
    %v5675 = vand.u32 %v5156, 4294901760
    %v5676 = vsub.f32 %v5156, %v5675
    %v5677 = vand.u32 %v5676, 4294901760
    %5678 = vmatpush1.msra.mxu0 %v5677
    %5679 = vmatprep.subr.mxu0 0.0
    %v5680 = vand.u32 %v5157, 4294901760
    %v5681 = vsub.f32 %v5157, %v5680
    %v5682 = vand.u32 %v5681, 4294901760
    %5683 = vmatpush1.msra.mxu0 %v5682
    %5684 = vmatprep.subr.mxu0 0.0
    %v5685 = vand.u32 %v5158, 4294901760
    %v5686 = vsub.f32 %v5158, %v5685
    %v5687 = vand.u32 %v5686, 4294901760
    %5688 = vmatpush1.msra.mxu0 %v5687
    %5689 = vmatprep.subr.mxu0 0.0
    %v5690 = vand.u32 %v5159, 4294901760
    %v5691 = vsub.f32 %v5159, %v5690
    %v5692 = vand.u32 %v5691, 4294901760
    %5693 = vmatpush1.msra.mxu0 %v5692
    %5694 = vmatprep.subr.mxu0 0.0
    %v5695 = vand.u32 %v5160, 4294901760
    %v5696 = vsub.f32 %v5160, %v5695
    %v5697 = vand.u32 %v5696, 4294901760
    %5698 = vmatpush1.msra.mxu0 %v5697
    %5699 = vmatprep.subr.mxu0 0.0
    %v5700 = vand.u32 %v5161, 4294901760
    %v5701 = vsub.f32 %v5161, %v5700
    %v5702 = vand.u32 %v5701, 4294901760
    %5703 = vmatpush1.msra.mxu0 %v5702
    %5704 = vmatprep.subr.mxu0 0.0
    %v5705 = vand.u32 %v5162, 4294901760
    %v5706 = vsub.f32 %v5162, %v5705
    %v5707 = vand.u32 %v5706, 4294901760
    %5708 = vmatpush1.msra.mxu0 %v5707
    %5709 = vmatprep.subr.mxu0 0.0
    %5710 = vmatpush1.msra.mxu0 0.0
    %5711 = vmatprep.subr.mxu0 0.0
    %5712 = vmatpush1.msra.mxu0 0.0
    %5713 = vmatprep.subr.mxu0 0.0
    %5714 = vmatpush1.msra.mxu0 0.0
    %5715 = vmatprep.subr.mxu0 0.0
    %5716 = vmatpush1.msra.mxu0 0.0
    %5717 = vmatprep.subr.mxu0 0.0
    %5718 = vmatpush1.msra.mxu0 0.0
    %5719 = vmatprep.subr.mxu0 0.0
    %5720 = vmatpush1.msra.mxu0 0.0
    %5721 = vmatprep.subr.mxu0 0.0
    %5722 = vmatpush1.msra.mxu0 0.0
    %5723 = vmatprep.subr.mxu0 0.0
    %5724 = vmatpush1.msra.mxu0 0.0
    %5725 = vmatprep.subr.mxu0 0.0
    %5726 = vmatpush1.msra.mxu0 0.0
    %5727 = vmatprep.subr.mxu0 0.0
    %5728 = vmatpush1.msra.mxu0 0.0
    %5729 = vmatprep.subr.mxu0 0.0
    %5730 = vmatpush1.msra.mxu0 0.0
    %5731 = vmatprep.subr.mxu0 0.0
    %5732 = vmatpush1.msra.mxu0 0.0
    %5733 = vmatprep.subr.mxu0 0.0
    %5734 = vmatpush1.msra.mxu0 0.0
    %5735 = vmatprep.subr.mxu0 0.0
    %5736 = vmatpush1.msra.mxu0 0.0
    %5737 = vmatprep.subr.mxu0 0.0
    %5738 = vmatpush1.msra.mxu0 0.0
    %5739 = vmatprep.subr.mxu0 0.0
    %5740 = vmatpush1.msra.mxu0 0.0
    %5741 = vmatprep.mubr.f32.mxu0 0.0
    %v5742 = vand.u32 %v40, 4294901760
    %5743 = vmatmul.mubr.f32.gmra.mrb[0].mxu0 %v5742
    %v5744 = vpop.f32.mrb[0].mxu0
    %v5745 = vadd.f32 %v5618, %v5744
    %v5746 = vpop.f32.mrb[0].mxu0
    %5747 = vmatprep.mubr.f32.mxu0 0.0
    %v5748 = vand.u32 %v41, 4294901760
    %5749 = vmatmul.mubr.f32.gmra.mrb[0].mxu0 %v5748
    %v5750 = vpop.f32.mrb[0].mxu0
    %v5751 = vadd.f32 %v5626, %v5750
    %v5752 = vpop.f32.mrb[0].mxu0
    %5753 = vdwg.mxu0
    %5754 = vmatprep.subr.mxu0 0.0
    %v5755 = vand.u32 %v5147, 4294901760
    %5756 = vmatpush1.msra.mxu0 %v5755
    %5757 = vmatprep.subr.mxu0 0.0
    %v5758 = vand.u32 %v5148, 4294901760
    %5759 = vmatpush1.msra.mxu0 %v5758
    %5760 = vmatprep.subr.mxu0 0.0
    %v5761 = vand.u32 %v5149, 4294901760
    %5762 = vmatpush1.msra.mxu0 %v5761
    %5763 = vmatprep.subr.mxu0 0.0
    %v5764 = vand.u32 %v5150, 4294901760
    %5765 = vmatpush1.msra.mxu0 %v5764
    %5766 = vmatprep.subr.mxu0 0.0
    %v5767 = vand.u32 %v5151, 4294901760
    %5768 = vmatpush1.msra.mxu0 %v5767
    %5769 = vmatprep.subr.mxu0 0.0
    %v5770 = vand.u32 %v5152, 4294901760
    %5771 = vmatpush1.msra.mxu0 %v5770
    %5772 = vmatprep.subr.mxu0 0.0
    %v5773 = vand.u32 %v5153, 4294901760
    %5774 = vmatpush1.msra.mxu0 %v5773
    %5775 = vmatprep.subr.mxu0 0.0
    %v5776 = vand.u32 %v5154, 4294901760
    %5777 = vmatpush1.msra.mxu0 %v5776
    %5778 = vmatprep.subr.mxu0 0.0
    %v5779 = vand.u32 %v5155, 4294901760
    %5780 = vmatpush1.msra.mxu0 %v5779
    %5781 = vmatprep.subr.mxu0 0.0
    %v5782 = vand.u32 %v5156, 4294901760
    %5783 = vmatpush1.msra.mxu0 %v5782
    %5784 = vmatprep.subr.mxu0 0.0
    %v5785 = vand.u32 %v5157, 4294901760
    %5786 = vmatpush1.msra.mxu0 %v5785
    %5787 = vmatprep.subr.mxu0 0.0
    %v5788 = vand.u32 %v5158, 4294901760
    %5789 = vmatpush1.msra.mxu0 %v5788
    %5790 = vmatprep.subr.mxu0 0.0
    %v5791 = vand.u32 %v5159, 4294901760
    %5792 = vmatpush1.msra.mxu0 %v5791
    %5793 = vmatprep.subr.mxu0 0.0
    %v5794 = vand.u32 %v5160, 4294901760
    %5795 = vmatpush1.msra.mxu0 %v5794
    %5796 = vmatprep.subr.mxu0 0.0
    %v5797 = vand.u32 %v5161, 4294901760
    %5798 = vmatpush1.msra.mxu0 %v5797
    %5799 = vmatprep.subr.mxu0 0.0
    %v5800 = vand.u32 %v5162, 4294901760
    %5801 = vmatpush1.msra.mxu0 %v5800
    %5802 = vmatprep.subr.mxu0 0.0
    %5803 = vmatpush1.msra.mxu0 0.0
    %5804 = vmatprep.subr.mxu0 0.0
    %5805 = vmatpush1.msra.mxu0 0.0
    %5806 = vmatprep.subr.mxu0 0.0
    %5807 = vmatpush1.msra.mxu0 0.0
    %5808 = vmatprep.subr.mxu0 0.0
    %5809 = vmatpush1.msra.mxu0 0.0
    %5810 = vmatprep.subr.mxu0 0.0
    %5811 = vmatpush1.msra.mxu0 0.0
    %5812 = vmatprep.subr.mxu0 0.0
    %5813 = vmatpush1.msra.mxu0 0.0
    %5814 = vmatprep.subr.mxu0 0.0
    %5815 = vmatpush1.msra.mxu0 0.0
    %5816 = vmatprep.subr.mxu0 0.0
    %5817 = vmatpush1.msra.mxu0 0.0
    %5818 = vmatprep.subr.mxu0 0.0
    %5819 = vmatpush1.msra.mxu0 0.0
    %5820 = vmatprep.subr.mxu0 0.0
    %5821 = vmatpush1.msra.mxu0 0.0
    %5822 = vmatprep.subr.mxu0 0.0
    %5823 = vmatpush1.msra.mxu0 0.0
    %5824 = vmatprep.subr.mxu0 0.0
    %5825 = vmatpush1.msra.mxu0 0.0
    %5826 = vmatprep.subr.mxu0 0.0
    %5827 = vmatpush1.msra.mxu0 0.0
    %5828 = vmatprep.subr.mxu0 0.0
    %5829 = vmatpush1.msra.mxu0 0.0
    %5830 = vmatprep.subr.mxu0 0.0
    %5831 = vmatpush1.msra.mxu0 0.0
    %5832 = vmatprep.subr.mxu0 0.0
    %5833 = vmatpush1.msra.mxu0 0.0
    %5834 = vmatprep.mubr.f32.mxu0 0.0
    %v5835 = vand.u32 %v40, 4294901760
    %5836 = vmatmul.mubr.f32.gmra.mrb[0].mxu0 %v5835
    %v5837 = vpop.f32.mrb[0].mxu0
    %v5838 = vadd.f32 %v5745, %v5837
    %v5839 = vpop.f32.mrb[0].mxu0
    %5840 = vmatprep.mubr.f32.mxu0 0.0
    %v5841 = vand.u32 %v41, 4294901760
    %5842 = vmatmul.mubr.f32.gmra.mrb[0].mxu0 %v5841
    %v5843 = vpop.f32.mrb[0].mxu0
    %v5844 = vadd.f32 %v5751, %v5843
    %v5845 = vpop.f32.mrb[0].mxu0
    %5846 = vdwg.mxu0
    %v5847 = vmul.f32 %v41, %v4435
    %v5848 = vmul.f32 %v40, %v4436
    %v5849 = vmul.f32 %v41, %v4441
    %v5850 = vmul.f32 %v40, %v4442
    %v5851 = vadd.f32 %v5847, %v5849
    %v5852 = vadd.f32 %v5848, %v5850
    %v5853 = vmul.f32 %v4443, %v40
    %v5854 = vmul.f32 %v4444, %v41
    %v5855 = vsub.f32 %v5851, %v5853
    %v5856 = vsub.f32 %v5852, %v5854
    %v5857 = vrot.slane %v5137, 4
    %v5858 = vrot.slane %v5143, 4
    %v5859 = vsel %vm2934, %v5857, %v5858
    %v5860 = vsel %vm2934, %v5858, %v5857
    %v5861 = vmul.f32 %v5859, %v1520
    %v5862 = vmul.f32 %v5860, %v1521
    %v5863 = vmul.f32 %v5860, %v1526
    %v5864 = vmul.f32 %v5859, %v1527
    %v5865 = vsub.f32 %v5861, %v5863
    %v5866 = vsub.f32 %v5862, %v5864
    %v5867 = vmul.f32 %v5838, %v5855
    %v5868 = vmul.f32 %v5844, %v5856
    %v5869 = vmul.f32 %v5865, %v5865
    %v5870 = vmul.f32 %v5866, %v5866
    %v5871 = vsub.f32 %v5867, %v5869
    %v5872 = vsub.f32 %v5868, %v5870
    %v5873 = vadd.f32 %v4429, %v5871
    %v5874 = vadd.f32 %v4430, %v5872
    %vm5875 = vcmp.lt.s32.totalorder %v43, 11
    %vm5876 = vcmp.lt.s32.totalorder %v44, 11
    %v5877 = vsel %vm5875, 1, 0
    %v5878 = vsel %vm5876, 1, 0
    %v5879 = vcvt.s32.f32 %v5877
    %v5880 = vcvt.s32.f32 %v5878
    %vm5881 = vcmp.ge.s32.totalorder %v43, 5
    %vm5882 = vcmp.ge.s32.totalorder %v44, 5
    %v5883 = vsel %vm5881, 1, 0
    %v5884 = vsel %vm5882, 1, 0
    %v5885 = vcvt.s32.f32 %v5883
    %v5886 = vcvt.s32.f32 %v5884
    %vm5887 = vcmp.lt.s32.totalorder %v44, 6
    %v5888 = vsel %vm1474, 1, 0
    %v5889 = vsel %vm5887, 1, 0
    %v5890 = vcvt.s32.f32 %v5888
    %v5891 = vcvt.s32.f32 %v5889
    %vm5892 = vcmp.ge.s32.totalorder %v43, 10
    %vm5893 = vcmp.ge.s32.totalorder %v44, 10
    %v5894 = vsel %vm5892, 1, 0
    %v5895 = vsel %vm5893, 1, 0
    %v5896 = vcvt.s32.f32 %v5894
    %v5897 = vcvt.s32.f32 %v5895
    %v5898 = vadd.f32 %v5879, %v5885
    %v5899 = vadd.f32 %v5880, %v5886
    %s5900 = scalar_lea.vmem [#allocation5], 1024
    %v5901 = vld [vmem:[%s5900] sm:$0xff]
    %v5902 = vld [vmem:[%s5900 + $0x8] sm:$0xff]
    %v5903 = vld [vmem:[%s5900 + $0x10] sm:$0xff]
    %v5904 = vld [vmem:[%s5900 + $0x18] sm:$0xff]
    %v5905 = vld [vmem:[%s5900 + $0x20] sm:$0xff]
    %v5906 = vld [vmem:[%s5900 + $0x28] sm:$0xff]
    %v5907 = vld [vmem:[%s5900 + $0x30] sm:$0xff]
    %v5908 = vld [vmem:[%s5900 + $0x38] sm:$0xff]
    %v5909 = vld [vmem:[%s5900 + $0x40] sm:$0xff]
    %v5910 = vld [vmem:[%s5900 + $0x48] sm:$0xff]
    %v5911 = vld [vmem:[%s5900 + $0x50] sm:$0xff]
    %v5912 = vld [vmem:[%s5900 + $0x58] sm:$0xff]
    %v5913 = vld [vmem:[%s5900 + $0x60] sm:$0xff]
    %v5914 = vld [vmem:[%s5900 + $0x68] sm:$0xff]
    %v5915 = vld [vmem:[%s5900 + $0x70] sm:$0xff]
    %v5916 = vld [vmem:[%s5900 + $0x78] sm:$0xff]
    %5917 = vmatprep.subr.mxu0 0.0
    %v5918 = vand.u32 %v5901, 4294901760
    %5919 = vmatpush1.msra.mxu0 %v5918
    %5920 = vmatprep.subr.mxu0 0.0
    %v5921 = vand.u32 %v5902, 4294901760
    %5922 = vmatpush1.msra.mxu0 %v5921
    %5923 = vmatprep.subr.mxu0 0.0
    %v5924 = vand.u32 %v5903, 4294901760
    %5925 = vmatpush1.msra.mxu0 %v5924
    %5926 = vmatprep.subr.mxu0 0.0
    %v5927 = vand.u32 %v5904, 4294901760
    %5928 = vmatpush1.msra.mxu0 %v5927
    %5929 = vmatprep.subr.mxu0 0.0
    %v5930 = vand.u32 %v5905, 4294901760
    %5931 = vmatpush1.msra.mxu0 %v5930
    %5932 = vmatprep.subr.mxu0 0.0
    %v5933 = vand.u32 %v5906, 4294901760
    %5934 = vmatpush1.msra.mxu0 %v5933
    %5935 = vmatprep.subr.mxu0 0.0
    %v5936 = vand.u32 %v5907, 4294901760
    %5937 = vmatpush1.msra.mxu0 %v5936
    %5938 = vmatprep.subr.mxu0 0.0
    %v5939 = vand.u32 %v5908, 4294901760
    %5940 = vmatpush1.msra.mxu0 %v5939
    %5941 = vmatprep.subr.mxu0 0.0
    %v5942 = vand.u32 %v5909, 4294901760
    %5943 = vmatpush1.msra.mxu0 %v5942
    %5944 = vmatprep.subr.mxu0 0.0
    %v5945 = vand.u32 %v5910, 4294901760
    %5946 = vmatpush1.msra.mxu0 %v5945
    %5947 = vmatprep.subr.mxu0 0.0
    %v5948 = vand.u32 %v5911, 4294901760
    %5949 = vmatpush1.msra.mxu0 %v5948
    %5950 = vmatprep.subr.mxu0 0.0
    %v5951 = vand.u32 %v5912, 4294901760
    %5952 = vmatpush1.msra.mxu0 %v5951
    %5953 = vmatprep.subr.mxu0 0.0
    %v5954 = vand.u32 %v5913, 4294901760
    %5955 = vmatpush1.msra.mxu0 %v5954
    %5956 = vmatprep.subr.mxu0 0.0
    %v5957 = vand.u32 %v5914, 4294901760
    %5958 = vmatpush1.msra.mxu0 %v5957
    %5959 = vmatprep.subr.mxu0 0.0
    %v5960 = vand.u32 %v5915, 4294901760
    %5961 = vmatpush1.msra.mxu0 %v5960
    %5962 = vmatprep.subr.mxu0 0.0
    %v5963 = vand.u32 %v5916, 4294901760
    %5964 = vmatpush1.msra.mxu0 %v5963
    %5965 = vmatprep.subr.mxu0 0.0
    %5966 = vmatpush1.msra.mxu0 0.0
    %5967 = vmatprep.subr.mxu0 0.0
    %5968 = vmatpush1.msra.mxu0 0.0
    %5969 = vmatprep.subr.mxu0 0.0
    %5970 = vmatpush1.msra.mxu0 0.0
    %5971 = vmatprep.subr.mxu0 0.0
    %5972 = vmatpush1.msra.mxu0 0.0
    %5973 = vmatprep.subr.mxu0 0.0
    %5974 = vmatpush1.msra.mxu0 0.0
    %5975 = vmatprep.subr.mxu0 0.0
    %5976 = vmatpush1.msra.mxu0 0.0
    %5977 = vmatprep.subr.mxu0 0.0
    %5978 = vmatpush1.msra.mxu0 0.0
    %5979 = vmatprep.subr.mxu0 0.0
    %5980 = vmatpush1.msra.mxu0 0.0
    %5981 = vmatprep.subr.mxu0 0.0
    %5982 = vmatpush1.msra.mxu0 0.0
    %5983 = vmatprep.subr.mxu0 0.0
    %5984 = vmatpush1.msra.mxu0 0.0
    %5985 = vmatprep.subr.mxu0 0.0
    %5986 = vmatpush1.msra.mxu0 0.0
    %5987 = vmatprep.subr.mxu0 0.0
    %5988 = vmatpush1.msra.mxu0 0.0
    %5989 = vmatprep.subr.mxu0 0.0
    %5990 = vmatpush1.msra.mxu0 0.0
    %5991 = vmatprep.subr.mxu0 0.0
    %5992 = vmatpush1.msra.mxu0 0.0
    %5993 = vmatprep.subr.mxu0 0.0
    %5994 = vmatpush1.msra.mxu0 0.0
    %5995 = vmatprep.subr.mxu0 0.0
    %5996 = vmatpush1.msra.mxu0 0.0
    %5997 = vmatprep.mubr.f32.mxu0 0.0
    %v5998 = vand.u32 %v40, 4294901760
    %v5999 = vsub.f32 %v40, %v5998
    %v6000 = vand.u32 %v5999, 4294901760
    %v6001 = vsub.f32 %v5999, %v6000
    %v6002 = vand.u32 %v6001, 4294901760
    %6003 = vmatmul.mubr.f32.gmra.mrb[0].mxu0 %v6002
    %v6004 = vpop.f32.mrb[0].mxu0
    %v6005 = vadd.f32 0.0, %v6004
    %v6006 = vpop.f32.mrb[0].mxu0
    %6007 = vmatprep.mubr.f32.mxu0 0.0
    %v6008 = vand.u32 %v41, 4294901760
    %v6009 = vsub.f32 %v41, %v6008
    %v6010 = vand.u32 %v6009, 4294901760
    %v6011 = vsub.f32 %v6009, %v6010
    %v6012 = vand.u32 %v6011, 4294901760
    %6013 = vmatmul.mubr.f32.gmra.mrb[0].mxu0 %v6012
    %v6014 = vpop.f32.mrb[0].mxu0
    %v6015 = vadd.f32 0.0, %v6014
    %v6016 = vpop.f32.mrb[0].mxu0
    %6017 = vdwg.mxu0
    %6018 = vmatprep.subr.mxu0 0.0
    %v6019 = vand.u32 %v5901, 4294901760
    %v6020 = vsub.f32 %v5901, %v6019
    %v6021 = vand.u32 %v6020, 4294901760
    %v6022 = vsub.f32 %v6020, %v6021
    %v6023 = vand.u32 %v6022, 4294901760
    %6024 = vmatpush1.msra.mxu0 %v6023
    %6025 = vmatprep.subr.mxu0 0.0
    %v6026 = vand.u32 %v5902, 4294901760
    %v6027 = vsub.f32 %v5902, %v6026
    %v6028 = vand.u32 %v6027, 4294901760
    %v6029 = vsub.f32 %v6027, %v6028
    %v6030 = vand.u32 %v6029, 4294901760
    %6031 = vmatpush1.msra.mxu0 %v6030
    %6032 = vmatprep.subr.mxu0 0.0
    %v6033 = vand.u32 %v5903, 4294901760
    %v6034 = vsub.f32 %v5903, %v6033
    %v6035 = vand.u32 %v6034, 4294901760
    %v6036 = vsub.f32 %v6034, %v6035
    %v6037 = vand.u32 %v6036, 4294901760
    %6038 = vmatpush1.msra.mxu0 %v6037
    %6039 = vmatprep.subr.mxu0 0.0
    %v6040 = vand.u32 %v5904, 4294901760
    %v6041 = vsub.f32 %v5904, %v6040
    %v6042 = vand.u32 %v6041, 4294901760
    %v6043 = vsub.f32 %v6041, %v6042
    %v6044 = vand.u32 %v6043, 4294901760
    %6045 = vmatpush1.msra.mxu0 %v6044
    %6046 = vmatprep.subr.mxu0 0.0
    %v6047 = vand.u32 %v5905, 4294901760
    %v6048 = vsub.f32 %v5905, %v6047
    %v6049 = vand.u32 %v6048, 4294901760
    %v6050 = vsub.f32 %v6048, %v6049
    %v6051 = vand.u32 %v6050, 4294901760
    %6052 = vmatpush1.msra.mxu0 %v6051
    %6053 = vmatprep.subr.mxu0 0.0
    %v6054 = vand.u32 %v5906, 4294901760
    %v6055 = vsub.f32 %v5906, %v6054
    %v6056 = vand.u32 %v6055, 4294901760
    %v6057 = vsub.f32 %v6055, %v6056
    %v6058 = vand.u32 %v6057, 4294901760
    %6059 = vmatpush1.msra.mxu0 %v6058
    %6060 = vmatprep.subr.mxu0 0.0
    %v6061 = vand.u32 %v5907, 4294901760
    %v6062 = vsub.f32 %v5907, %v6061
    %v6063 = vand.u32 %v6062, 4294901760
    %v6064 = vsub.f32 %v6062, %v6063
    %v6065 = vand.u32 %v6064, 4294901760
    %6066 = vmatpush1.msra.mxu0 %v6065
    %6067 = vmatprep.subr.mxu0 0.0
    %v6068 = vand.u32 %v5908, 4294901760
    %v6069 = vsub.f32 %v5908, %v6068
    %v6070 = vand.u32 %v6069, 4294901760
    %v6071 = vsub.f32 %v6069, %v6070
    %v6072 = vand.u32 %v6071, 4294901760
    %6073 = vmatpush1.msra.mxu0 %v6072
    %6074 = vmatprep.subr.mxu0 0.0
    %v6075 = vand.u32 %v5909, 4294901760
    %v6076 = vsub.f32 %v5909, %v6075
    %v6077 = vand.u32 %v6076, 4294901760
    %v6078 = vsub.f32 %v6076, %v6077
    %v6079 = vand.u32 %v6078, 4294901760
    %6080 = vmatpush1.msra.mxu0 %v6079
    %6081 = vmatprep.subr.mxu0 0.0
    %v6082 = vand.u32 %v5910, 4294901760
    %v6083 = vsub.f32 %v5910, %v6082
    %v6084 = vand.u32 %v6083, 4294901760
    %v6085 = vsub.f32 %v6083, %v6084
    %v6086 = vand.u32 %v6085, 4294901760
    %6087 = vmatpush1.msra.mxu0 %v6086
    %6088 = vmatprep.subr.mxu0 0.0
    %v6089 = vand.u32 %v5911, 4294901760
    %v6090 = vsub.f32 %v5911, %v6089
    %v6091 = vand.u32 %v6090, 4294901760
    %v6092 = vsub.f32 %v6090, %v6091
    %v6093 = vand.u32 %v6092, 4294901760
    %6094 = vmatpush1.msra.mxu0 %v6093
    %6095 = vmatprep.subr.mxu0 0.0
    %v6096 = vand.u32 %v5912, 4294901760
    %v6097 = vsub.f32 %v5912, %v6096
    %v6098 = vand.u32 %v6097, 4294901760
    %v6099 = vsub.f32 %v6097, %v6098
    %v6100 = vand.u32 %v6099, 4294901760
    %6101 = vmatpush1.msra.mxu0 %v6100
    %6102 = vmatprep.subr.mxu0 0.0
    %v6103 = vand.u32 %v5913, 4294901760
    %v6104 = vsub.f32 %v5913, %v6103
    %v6105 = vand.u32 %v6104, 4294901760
    %v6106 = vsub.f32 %v6104, %v6105
    %v6107 = vand.u32 %v6106, 4294901760
    %6108 = vmatpush1.msra.mxu0 %v6107
    %6109 = vmatprep.subr.mxu0 0.0
    %v6110 = vand.u32 %v5914, 4294901760
    %v6111 = vsub.f32 %v5914, %v6110
    %v6112 = vand.u32 %v6111, 4294901760
    %v6113 = vsub.f32 %v6111, %v6112
    %v6114 = vand.u32 %v6113, 4294901760
    %6115 = vmatpush1.msra.mxu0 %v6114
    %6116 = vmatprep.subr.mxu0 0.0
    %v6117 = vand.u32 %v5915, 4294901760
    %v6118 = vsub.f32 %v5915, %v6117
    %v6119 = vand.u32 %v6118, 4294901760
    %v6120 = vsub.f32 %v6118, %v6119
    %v6121 = vand.u32 %v6120, 4294901760
    %6122 = vmatpush1.msra.mxu0 %v6121
    %6123 = vmatprep.subr.mxu0 0.0
    %v6124 = vand.u32 %v5916, 4294901760
    %v6125 = vsub.f32 %v5916, %v6124
    %v6126 = vand.u32 %v6125, 4294901760
    %v6127 = vsub.f32 %v6125, %v6126
    %v6128 = vand.u32 %v6127, 4294901760
    %6129 = vmatpush1.msra.mxu0 %v6128
    %6130 = vmatprep.subr.mxu0 0.0
    %6131 = vmatpush1.msra.mxu0 0.0
    %6132 = vmatprep.subr.mxu0 0.0
    %6133 = vmatpush1.msra.mxu0 0.0
    %6134 = vmatprep.subr.mxu0 0.0
    %6135 = vmatpush1.msra.mxu0 0.0
    %6136 = vmatprep.subr.mxu0 0.0
    %6137 = vmatpush1.msra.mxu0 0.0
    %6138 = vmatprep.subr.mxu0 0.0
    %6139 = vmatpush1.msra.mxu0 0.0
    %6140 = vmatprep.subr.mxu0 0.0
    %6141 = vmatpush1.msra.mxu0 0.0
    %6142 = vmatprep.subr.mxu0 0.0
    %6143 = vmatpush1.msra.mxu0 0.0
    %6144 = vmatprep.subr.mxu0 0.0
    %6145 = vmatpush1.msra.mxu0 0.0
    %6146 = vmatprep.subr.mxu0 0.0
    %6147 = vmatpush1.msra.mxu0 0.0
    %6148 = vmatprep.subr.mxu0 0.0
    %6149 = vmatpush1.msra.mxu0 0.0
    %6150 = vmatprep.subr.mxu0 0.0
    %6151 = vmatpush1.msra.mxu0 0.0
    %6152 = vmatprep.subr.mxu0 0.0
    %6153 = vmatpush1.msra.mxu0 0.0
    %6154 = vmatprep.subr.mxu0 0.0
    %6155 = vmatpush1.msra.mxu0 0.0
    %6156 = vmatprep.subr.mxu0 0.0
    %6157 = vmatpush1.msra.mxu0 0.0
    %6158 = vmatprep.subr.mxu0 0.0
    %6159 = vmatpush1.msra.mxu0 0.0
    %6160 = vmatprep.subr.mxu0 0.0
    %6161 = vmatpush1.msra.mxu0 0.0
    %6162 = vmatprep.mubr.f32.mxu0 0.0
    %v6163 = vand.u32 %v40, 4294901760
    %6164 = vmatmul.mubr.f32.gmra.mrb[0].mxu0 %v6163
    %v6165 = vpop.f32.mrb[0].mxu0
    %v6166 = vadd.f32 %v6005, %v6165
    %v6167 = vpop.f32.mrb[0].mxu0
    %6168 = vmatprep.mubr.f32.mxu0 0.0
    %v6169 = vand.u32 %v41, 4294901760
    %6170 = vmatmul.mubr.f32.gmra.mrb[0].mxu0 %v6169
    %v6171 = vpop.f32.mrb[0].mxu0
    %v6172 = vadd.f32 %v6015, %v6171
    %v6173 = vpop.f32.mrb[0].mxu0
    %6174 = vdwg.mxu0
    %6175 = vmatprep.subr.mxu0 0.0
    %v6176 = vand.u32 %v5901, 4294901760
    %v6177 = vsub.f32 %v5901, %v6176
    %6178 = vmatpush1.msra.mxu0 %v6177
    %6179 = vmatprep.subr.mxu0 0.0
    %v6180 = vand.u32 %v5902, 4294901760
    %v6181 = vsub.f32 %v5902, %v6180
    %6182 = vmatpush1.msra.mxu0 %v6181
    %6183 = vmatprep.subr.mxu0 0.0
    %v6184 = vand.u32 %v5903, 4294901760
    %v6185 = vsub.f32 %v5903, %v6184
    %6186 = vmatpush1.msra.mxu0 %v6185
    %6187 = vmatprep.subr.mxu0 0.0
    %v6188 = vand.u32 %v5904, 4294901760
    %v6189 = vsub.f32 %v5904, %v6188
    %6190 = vmatpush1.msra.mxu0 %v6189
    %6191 = vmatprep.subr.mxu0 0.0
    %v6192 = vand.u32 %v5905, 4294901760
    %v6193 = vsub.f32 %v5905, %v6192
    %6194 = vmatpush1.msra.mxu0 %v6193
    %6195 = vmatprep.subr.mxu0 0.0
    %v6196 = vand.u32 %v5906, 4294901760
    %v6197 = vsub.f32 %v5906, %v6196
    %6198 = vmatpush1.msra.mxu0 %v6197
    %6199 = vmatprep.subr.mxu0 0.0
    %v6200 = vand.u32 %v5907, 4294901760
    %v6201 = vsub.f32 %v5907, %v6200
    %6202 = vmatpush1.msra.mxu0 %v6201
    %6203 = vmatprep.subr.mxu0 0.0
    %v6204 = vand.u32 %v5908, 4294901760
    %v6205 = vsub.f32 %v5908, %v6204
    %6206 = vmatpush1.msra.mxu0 %v6205
    %6207 = vmatprep.subr.mxu0 0.0
    %v6208 = vand.u32 %v5909, 4294901760
    %v6209 = vsub.f32 %v5909, %v6208
    %6210 = vmatpush1.msra.mxu0 %v6209
    %6211 = vmatprep.subr.mxu0 0.0
    %v6212 = vand.u32 %v5910, 4294901760
    %v6213 = vsub.f32 %v5910, %v6212
    %6214 = vmatpush1.msra.mxu0 %v6213
    %6215 = vmatprep.subr.mxu0 0.0
    %v6216 = vand.u32 %v5911, 4294901760
    %v6217 = vsub.f32 %v5911, %v6216
    %6218 = vmatpush1.msra.mxu0 %v6217
    %6219 = vmatprep.subr.mxu0 0.0
    %v6220 = vand.u32 %v5912, 4294901760
    %v6221 = vsub.f32 %v5912, %v6220
    %6222 = vmatpush1.msra.mxu0 %v6221
    %6223 = vmatprep.subr.mxu0 0.0
    %v6224 = vand.u32 %v5913, 4294901760
    %v6225 = vsub.f32 %v5913, %v6224
    %6226 = vmatpush1.msra.mxu0 %v6225
    %6227 = vmatprep.subr.mxu0 0.0
    %v6228 = vand.u32 %v5914, 4294901760
    %v6229 = vsub.f32 %v5914, %v6228
    %6230 = vmatpush1.msra.mxu0 %v6229
    %6231 = vmatprep.subr.mxu0 0.0
    %v6232 = vand.u32 %v5915, 4294901760
    %v6233 = vsub.f32 %v5915, %v6232
    %6234 = vmatpush1.msra.mxu0 %v6233
    %6235 = vmatprep.subr.mxu0 0.0
    %v6236 = vand.u32 %v5916, 4294901760
    %v6237 = vsub.f32 %v5916, %v6236
    %6238 = vmatpush1.msra.mxu0 %v6237
    %6239 = vmatprep.subr.mxu0 0.0
    %6240 = vmatpush1.msra.mxu0 0.0
    %6241 = vmatprep.subr.mxu0 0.0
    %6242 = vmatpush1.msra.mxu0 0.0
    %6243 = vmatprep.subr.mxu0 0.0
    %6244 = vmatpush1.msra.mxu0 0.0
    %6245 = vmatprep.subr.mxu0 0.0
    %6246 = vmatpush1.msra.mxu0 0.0
    %6247 = vmatprep.subr.mxu0 0.0
    %6248 = vmatpush1.msra.mxu0 0.0
    %6249 = vmatprep.subr.mxu0 0.0
    %6250 = vmatpush1.msra.mxu0 0.0
    %6251 = vmatprep.subr.mxu0 0.0
    %6252 = vmatpush1.msra.mxu0 0.0
    %6253 = vmatprep.subr.mxu0 0.0
    %6254 = vmatpush1.msra.mxu0 0.0
    %6255 = vmatprep.subr.mxu0 0.0
    %6256 = vmatpush1.msra.mxu0 0.0
    %6257 = vmatprep.subr.mxu0 0.0
    %6258 = vmatpush1.msra.mxu0 0.0
    %6259 = vmatprep.subr.mxu0 0.0
    %6260 = vmatpush1.msra.mxu0 0.0
    %6261 = vmatprep.subr.mxu0 0.0
    %6262 = vmatpush1.msra.mxu0 0.0
    %6263 = vmatprep.subr.mxu0 0.0
    %6264 = vmatpush1.msra.mxu0 0.0
    %6265 = vmatprep.subr.mxu0 0.0
    %6266 = vmatpush1.msra.mxu0 0.0
    %6267 = vmatprep.subr.mxu0 0.0
    %6268 = vmatpush1.msra.mxu0 0.0
    %6269 = vmatprep.subr.mxu0 0.0
    %6270 = vmatpush1.msra.mxu0 0.0
    %6271 = vmatprep.mubr.f32.mxu0 0.0
    %v6272 = vand.u32 %v40, 4294901760
    %v6273 = vsub.f32 %v40, %v6272
    %6274 = vmatmul.mubr.f32.gmra.mrb[0].mxu0 %v6273
    %v6275 = vpop.f32.mrb[0].mxu0
    %v6276 = vadd.f32 %v6166, %v6275
    %v6277 = vpop.f32.mrb[0].mxu0
    %6278 = vmatprep.mubr.f32.mxu0 0.0
    %v6279 = vand.u32 %v41, 4294901760
    %v6280 = vsub.f32 %v41, %v6279
    %6281 = vmatmul.mubr.f32.gmra.mrb[0].mxu0 %v6280
    %v6282 = vpop.f32.mrb[0].mxu0
    %v6283 = vadd.f32 %v6172, %v6282
    %v6284 = vpop.f32.mrb[0].mxu0
    %6285 = vdwg.mxu0
    %6286 = vmatprep.subr.mxu0 0.0
    %v6287 = vand.u32 %v5901, 4294901760
    %6288 = vmatpush1.msra.mxu0 %v6287
    %6289 = vmatprep.subr.mxu0 0.0
    %v6290 = vand.u32 %v5902, 4294901760
    %6291 = vmatpush1.msra.mxu0 %v6290
    %6292 = vmatprep.subr.mxu0 0.0
    %v6293 = vand.u32 %v5903, 4294901760
    %6294 = vmatpush1.msra.mxu0 %v6293
    %6295 = vmatprep.subr.mxu0 0.0
    %v6296 = vand.u32 %v5904, 4294901760
    %6297 = vmatpush1.msra.mxu0 %v6296
    %6298 = vmatprep.subr.mxu0 0.0
    %v6299 = vand.u32 %v5905, 4294901760
    %6300 = vmatpush1.msra.mxu0 %v6299
    %6301 = vmatprep.subr.mxu0 0.0
    %v6302 = vand.u32 %v5906, 4294901760
    %6303 = vmatpush1.msra.mxu0 %v6302
    %6304 = vmatprep.subr.mxu0 0.0
    %v6305 = vand.u32 %v5907, 4294901760
    %6306 = vmatpush1.msra.mxu0 %v6305
    %6307 = vmatprep.subr.mxu0 0.0
    %v6308 = vand.u32 %v5908, 4294901760
    %6309 = vmatpush1.msra.mxu0 %v6308
    %6310 = vmatprep.subr.mxu0 0.0
    %v6311 = vand.u32 %v5909, 4294901760
    %6312 = vmatpush1.msra.mxu0 %v6311
    %6313 = vmatprep.subr.mxu0 0.0
    %v6314 = vand.u32 %v5910, 4294901760
    %6315 = vmatpush1.msra.mxu0 %v6314
    %6316 = vmatprep.subr.mxu0 0.0
    %v6317 = vand.u32 %v5911, 4294901760
    %6318 = vmatpush1.msra.mxu0 %v6317
    %6319 = vmatprep.subr.mxu0 0.0
    %v6320 = vand.u32 %v5912, 4294901760
    %6321 = vmatpush1.msra.mxu0 %v6320
    %6322 = vmatprep.subr.mxu0 0.0
    %v6323 = vand.u32 %v5913, 4294901760
    %6324 = vmatpush1.msra.mxu0 %v6323
    %6325 = vmatprep.subr.mxu0 0.0
    %v6326 = vand.u32 %v5914, 4294901760
    %6327 = vmatpush1.msra.mxu0 %v6326
    %6328 = vmatprep.subr.mxu0 0.0
    %v6329 = vand.u32 %v5915, 4294901760
    %6330 = vmatpush1.msra.mxu0 %v6329
    %6331 = vmatprep.subr.mxu0 0.0
    %v6332 = vand.u32 %v5916, 4294901760
    %6333 = vmatpush1.msra.mxu0 %v6332
    %6334 = vmatprep.subr.mxu0 0.0
    %6335 = vmatpush1.msra.mxu0 0.0
    %6336 = vmatprep.subr.mxu0 0.0
    %6337 = vmatpush1.msra.mxu0 0.0
    %6338 = vmatprep.subr.mxu0 0.0
    %6339 = vmatpush1.msra.mxu0 0.0
    %6340 = vmatprep.subr.mxu0 0.0
    %6341 = vmatpush1.msra.mxu0 0.0
    %6342 = vmatprep.subr.mxu0 0.0
    %6343 = vmatpush1.msra.mxu0 0.0
    %6344 = vmatprep.subr.mxu0 0.0
    %6345 = vmatpush1.msra.mxu0 0.0
    %6346 = vmatprep.subr.mxu0 0.0
    %6347 = vmatpush1.msra.mxu0 0.0
    %6348 = vmatprep.subr.mxu0 0.0
    %6349 = vmatpush1.msra.mxu0 0.0
    %6350 = vmatprep.subr.mxu0 0.0
    %6351 = vmatpush1.msra.mxu0 0.0
    %6352 = vmatprep.subr.mxu0 0.0
    %6353 = vmatpush1.msra.mxu0 0.0
    %6354 = vmatprep.subr.mxu0 0.0
    %6355 = vmatpush1.msra.mxu0 0.0
    %6356 = vmatprep.subr.mxu0 0.0
    %6357 = vmatpush1.msra.mxu0 0.0
    %6358 = vmatprep.subr.mxu0 0.0
    %6359 = vmatpush1.msra.mxu0 0.0
    %6360 = vmatprep.subr.mxu0 0.0
    %6361 = vmatpush1.msra.mxu0 0.0
    %6362 = vmatprep.subr.mxu0 0.0
    %6363 = vmatpush1.msra.mxu0 0.0
    %6364 = vmatprep.subr.mxu0 0.0
    %6365 = vmatpush1.msra.mxu0 0.0
    %6366 = vmatprep.mubr.f32.mxu0 0.0
    %v6367 = vand.u32 %v40, 4294901760
    %v6368 = vsub.f32 %v40, %v6367
    %v6369 = vand.u32 %v6368, 4294901760
    %6370 = vmatmul.mubr.f32.gmra.mrb[0].mxu0 %v6369
    %v6371 = vpop.f32.mrb[0].mxu0
    %v6372 = vadd.f32 %v6276, %v6371
    %v6373 = vpop.f32.mrb[0].mxu0
    %6374 = vmatprep.mubr.f32.mxu0 0.0
    %v6375 = vand.u32 %v41, 4294901760
    %v6376 = vsub.f32 %v41, %v6375
    %v6377 = vand.u32 %v6376, 4294901760
    %6378 = vmatmul.mubr.f32.gmra.mrb[0].mxu0 %v6377
    %v6379 = vpop.f32.mrb[0].mxu0
    %v6380 = vadd.f32 %v6283, %v6379
    %v6381 = vpop.f32.mrb[0].mxu0
    %6382 = vdwg.mxu0
    %6383 = vmatprep.subr.mxu0 0.0
    %v6384 = vand.u32 %v5901, 4294901760
    %v6385 = vsub.f32 %v5901, %v6384
    %v6386 = vand.u32 %v6385, 4294901760
    %6387 = vmatpush1.msra.mxu0 %v6386
    %6388 = vmatprep.subr.mxu0 0.0
    %v6389 = vand.u32 %v5902, 4294901760
    %v6390 = vsub.f32 %v5902, %v6389
    %v6391 = vand.u32 %v6390, 4294901760
    %6392 = vmatpush1.msra.mxu0 %v6391
    %6393 = vmatprep.subr.mxu0 0.0
    %v6394 = vand.u32 %v5903, 4294901760
    %v6395 = vsub.f32 %v5903, %v6394
    %v6396 = vand.u32 %v6395, 4294901760
    %6397 = vmatpush1.msra.mxu0 %v6396
    %6398 = vmatprep.subr.mxu0 0.0
    %v6399 = vand.u32 %v5904, 4294901760
    %v6400 = vsub.f32 %v5904, %v6399
    %v6401 = vand.u32 %v6400, 4294901760
    %6402 = vmatpush1.msra.mxu0 %v6401
    %6403 = vmatprep.subr.mxu0 0.0
    %v6404 = vand.u32 %v5905, 4294901760
    %v6405 = vsub.f32 %v5905, %v6404
    %v6406 = vand.u32 %v6405, 4294901760
    %6407 = vmatpush1.msra.mxu0 %v6406
    %6408 = vmatprep.subr.mxu0 0.0
    %v6409 = vand.u32 %v5906, 4294901760
    %v6410 = vsub.f32 %v5906, %v6409
    %v6411 = vand.u32 %v6410, 4294901760
    %6412 = vmatpush1.msra.mxu0 %v6411
    %6413 = vmatprep.subr.mxu0 0.0
    %v6414 = vand.u32 %v5907, 4294901760
    %v6415 = vsub.f32 %v5907, %v6414
    %v6416 = vand.u32 %v6415, 4294901760
    %6417 = vmatpush1.msra.mxu0 %v6416
    %6418 = vmatprep.subr.mxu0 0.0
    %v6419 = vand.u32 %v5908, 4294901760
    %v6420 = vsub.f32 %v5908, %v6419
    %v6421 = vand.u32 %v6420, 4294901760
    %6422 = vmatpush1.msra.mxu0 %v6421
    %6423 = vmatprep.subr.mxu0 0.0
    %v6424 = vand.u32 %v5909, 4294901760
    %v6425 = vsub.f32 %v5909, %v6424
    %v6426 = vand.u32 %v6425, 4294901760
    %6427 = vmatpush1.msra.mxu0 %v6426
    %6428 = vmatprep.subr.mxu0 0.0
    %v6429 = vand.u32 %v5910, 4294901760
    %v6430 = vsub.f32 %v5910, %v6429
    %v6431 = vand.u32 %v6430, 4294901760
    %6432 = vmatpush1.msra.mxu0 %v6431
    %6433 = vmatprep.subr.mxu0 0.0
    %v6434 = vand.u32 %v5911, 4294901760
    %v6435 = vsub.f32 %v5911, %v6434
    %v6436 = vand.u32 %v6435, 4294901760
    %6437 = vmatpush1.msra.mxu0 %v6436
    %6438 = vmatprep.subr.mxu0 0.0
    %v6439 = vand.u32 %v5912, 4294901760
    %v6440 = vsub.f32 %v5912, %v6439
    %v6441 = vand.u32 %v6440, 4294901760
    %6442 = vmatpush1.msra.mxu0 %v6441
    %6443 = vmatprep.subr.mxu0 0.0
    %v6444 = vand.u32 %v5913, 4294901760
    %v6445 = vsub.f32 %v5913, %v6444
    %v6446 = vand.u32 %v6445, 4294901760
    %6447 = vmatpush1.msra.mxu0 %v6446
    %6448 = vmatprep.subr.mxu0 0.0
    %v6449 = vand.u32 %v5914, 4294901760
    %v6450 = vsub.f32 %v5914, %v6449
    %v6451 = vand.u32 %v6450, 4294901760
    %6452 = vmatpush1.msra.mxu0 %v6451
    %6453 = vmatprep.subr.mxu0 0.0
    %v6454 = vand.u32 %v5915, 4294901760
    %v6455 = vsub.f32 %v5915, %v6454
    %v6456 = vand.u32 %v6455, 4294901760
    %6457 = vmatpush1.msra.mxu0 %v6456
    %6458 = vmatprep.subr.mxu0 0.0
    %v6459 = vand.u32 %v5916, 4294901760
    %v6460 = vsub.f32 %v5916, %v6459
    %v6461 = vand.u32 %v6460, 4294901760
    %6462 = vmatpush1.msra.mxu0 %v6461
    %6463 = vmatprep.subr.mxu0 0.0
    %6464 = vmatpush1.msra.mxu0 0.0
    %6465 = vmatprep.subr.mxu0 0.0
    %6466 = vmatpush1.msra.mxu0 0.0
    %6467 = vmatprep.subr.mxu0 0.0
    %6468 = vmatpush1.msra.mxu0 0.0
    %6469 = vmatprep.subr.mxu0 0.0
    %6470 = vmatpush1.msra.mxu0 0.0
    %6471 = vmatprep.subr.mxu0 0.0
    %6472 = vmatpush1.msra.mxu0 0.0
    %6473 = vmatprep.subr.mxu0 0.0
    %6474 = vmatpush1.msra.mxu0 0.0
    %6475 = vmatprep.subr.mxu0 0.0
    %6476 = vmatpush1.msra.mxu0 0.0
    %6477 = vmatprep.subr.mxu0 0.0
    %6478 = vmatpush1.msra.mxu0 0.0
    %6479 = vmatprep.subr.mxu0 0.0
    %6480 = vmatpush1.msra.mxu0 0.0
    %6481 = vmatprep.subr.mxu0 0.0
    %6482 = vmatpush1.msra.mxu0 0.0
    %6483 = vmatprep.subr.mxu0 0.0
    %6484 = vmatpush1.msra.mxu0 0.0
    %6485 = vmatprep.subr.mxu0 0.0
    %6486 = vmatpush1.msra.mxu0 0.0
    %6487 = vmatprep.subr.mxu0 0.0
    %6488 = vmatpush1.msra.mxu0 0.0
    %6489 = vmatprep.subr.mxu0 0.0
    %6490 = vmatpush1.msra.mxu0 0.0
    %6491 = vmatprep.subr.mxu0 0.0
    %6492 = vmatpush1.msra.mxu0 0.0
    %6493 = vmatprep.subr.mxu0 0.0
    %6494 = vmatpush1.msra.mxu0 0.0
    %6495 = vmatprep.mubr.f32.mxu0 0.0
    %v6496 = vand.u32 %v40, 4294901760
    %6497 = vmatmul.mubr.f32.gmra.mrb[0].mxu0 %v6496
    %v6498 = vpop.f32.mrb[0].mxu0
    %v6499 = vadd.f32 %v6372, %v6498
    %v6500 = vpop.f32.mrb[0].mxu0
    %6501 = vmatprep.mubr.f32.mxu0 0.0
    %v6502 = vand.u32 %v41, 4294901760
    %6503 = vmatmul.mubr.f32.gmra.mrb[0].mxu0 %v6502
    %v6504 = vpop.f32.mrb[0].mxu0
    %v6505 = vadd.f32 %v6380, %v6504
    %v6506 = vpop.f32.mrb[0].mxu0
    %6507 = vdwg.mxu0
    %6508 = vmatprep.subr.mxu0 0.0
    %v6509 = vand.u32 %v5901, 4294901760
    %6510 = vmatpush1.msra.mxu0 %v6509
    %6511 = vmatprep.subr.mxu0 0.0
    %v6512 = vand.u32 %v5902, 4294901760
    %6513 = vmatpush1.msra.mxu0 %v6512
    %6514 = vmatprep.subr.mxu0 0.0
    %v6515 = vand.u32 %v5903, 4294901760
    %6516 = vmatpush1.msra.mxu0 %v6515
    %6517 = vmatprep.subr.mxu0 0.0
    %v6518 = vand.u32 %v5904, 4294901760
    %6519 = vmatpush1.msra.mxu0 %v6518
    %6520 = vmatprep.subr.mxu0 0.0
    %v6521 = vand.u32 %v5905, 4294901760
    %6522 = vmatpush1.msra.mxu0 %v6521
    %6523 = vmatprep.subr.mxu0 0.0
    %v6524 = vand.u32 %v5906, 4294901760
    %6525 = vmatpush1.msra.mxu0 %v6524
    %6526 = vmatprep.subr.mxu0 0.0
    %v6527 = vand.u32 %v5907, 4294901760
    %6528 = vmatpush1.msra.mxu0 %v6527
    %6529 = vmatprep.subr.mxu0 0.0
    %v6530 = vand.u32 %v5908, 4294901760
    %6531 = vmatpush1.msra.mxu0 %v6530
    %6532 = vmatprep.subr.mxu0 0.0
    %v6533 = vand.u32 %v5909, 4294901760
    %6534 = vmatpush1.msra.mxu0 %v6533
    %6535 = vmatprep.subr.mxu0 0.0
    %v6536 = vand.u32 %v5910, 4294901760
    %6537 = vmatpush1.msra.mxu0 %v6536
    %6538 = vmatprep.subr.mxu0 0.0
    %v6539 = vand.u32 %v5911, 4294901760
    %6540 = vmatpush1.msra.mxu0 %v6539
    %6541 = vmatprep.subr.mxu0 0.0
    %v6542 = vand.u32 %v5912, 4294901760
    %6543 = vmatpush1.msra.mxu0 %v6542
    %6544 = vmatprep.subr.mxu0 0.0
    %v6545 = vand.u32 %v5913, 4294901760
    %6546 = vmatpush1.msra.mxu0 %v6545
    %6547 = vmatprep.subr.mxu0 0.0
    %v6548 = vand.u32 %v5914, 4294901760
    %6549 = vmatpush1.msra.mxu0 %v6548
    %6550 = vmatprep.subr.mxu0 0.0
    %v6551 = vand.u32 %v5915, 4294901760
    %6552 = vmatpush1.msra.mxu0 %v6551
    %6553 = vmatprep.subr.mxu0 0.0
    %v6554 = vand.u32 %v5916, 4294901760
    %6555 = vmatpush1.msra.mxu0 %v6554
    %6556 = vmatprep.subr.mxu0 0.0
    %6557 = vmatpush1.msra.mxu0 0.0
    %6558 = vmatprep.subr.mxu0 0.0
    %6559 = vmatpush1.msra.mxu0 0.0
    %6560 = vmatprep.subr.mxu0 0.0
    %6561 = vmatpush1.msra.mxu0 0.0
    %6562 = vmatprep.subr.mxu0 0.0
    %6563 = vmatpush1.msra.mxu0 0.0
    %6564 = vmatprep.subr.mxu0 0.0
    %6565 = vmatpush1.msra.mxu0 0.0
    %6566 = vmatprep.subr.mxu0 0.0
    %6567 = vmatpush1.msra.mxu0 0.0
    %6568 = vmatprep.subr.mxu0 0.0
    %6569 = vmatpush1.msra.mxu0 0.0
    %6570 = vmatprep.subr.mxu0 0.0
    %6571 = vmatpush1.msra.mxu0 0.0
    %6572 = vmatprep.subr.mxu0 0.0
    %6573 = vmatpush1.msra.mxu0 0.0
    %6574 = vmatprep.subr.mxu0 0.0
    %6575 = vmatpush1.msra.mxu0 0.0
    %6576 = vmatprep.subr.mxu0 0.0
    %6577 = vmatpush1.msra.mxu0 0.0
    %6578 = vmatprep.subr.mxu0 0.0
    %6579 = vmatpush1.msra.mxu0 0.0
    %6580 = vmatprep.subr.mxu0 0.0
    %6581 = vmatpush1.msra.mxu0 0.0
    %6582 = vmatprep.subr.mxu0 0.0
    %6583 = vmatpush1.msra.mxu0 0.0
    %6584 = vmatprep.subr.mxu0 0.0
    %6585 = vmatpush1.msra.mxu0 0.0
    %6586 = vmatprep.subr.mxu0 0.0
    %6587 = vmatpush1.msra.mxu0 0.0
    %6588 = vmatprep.mubr.f32.mxu0 0.0
    %v6589 = vand.u32 %v40, 4294901760
    %6590 = vmatmul.mubr.f32.gmra.mrb[0].mxu0 %v6589
    %v6591 = vpop.f32.mrb[0].mxu0
    %v6592 = vadd.f32 %v6499, %v6591
    %v6593 = vpop.f32.mrb[0].mxu0
    %6594 = vmatprep.mubr.f32.mxu0 0.0
    %v6595 = vand.u32 %v41, 4294901760
    %6596 = vmatmul.mubr.f32.gmra.mrb[0].mxu0 %v6595
    %v6597 = vpop.f32.mrb[0].mxu0
    %v6598 = vadd.f32 %v6505, %v6597
    %v6599 = vpop.f32.mrb[0].mxu0
    %6600 = vdwg.mxu0
    %s6601 = scalar_lea.vmem [#allocation5], 1152
    %v6602 = vld [vmem:[%s6601] sm:$0xff]
    %v6603 = vld [vmem:[%s6601 + $0x8] sm:$0xff]
    %v6604 = vld [vmem:[%s6601 + $0x10] sm:$0xff]
    %v6605 = vld [vmem:[%s6601 + $0x18] sm:$0xff]
    %v6606 = vld [vmem:[%s6601 + $0x20] sm:$0xff]
    %v6607 = vld [vmem:[%s6601 + $0x28] sm:$0xff]
    %v6608 = vld [vmem:[%s6601 + $0x30] sm:$0xff]
    %v6609 = vld [vmem:[%s6601 + $0x38] sm:$0xff]
    %v6610 = vld [vmem:[%s6601 + $0x40] sm:$0xff]
    %v6611 = vld [vmem:[%s6601 + $0x48] sm:$0xff]
    %v6612 = vld [vmem:[%s6601 + $0x50] sm:$0xff]
    %v6613 = vld [vmem:[%s6601 + $0x58] sm:$0xff]
    %v6614 = vld [vmem:[%s6601 + $0x60] sm:$0xff]
    %v6615 = vld [vmem:[%s6601 + $0x68] sm:$0xff]
    %v6616 = vld [vmem:[%s6601 + $0x70] sm:$0xff]
    %v6617 = vld [vmem:[%s6601 + $0x78] sm:$0xff]
    %6618 = vmatprep.subr.mxu0 0.0
    %v6619 = vand.u32 %v6602, 4294901760
    %6620 = vmatpush1.msra.mxu0 %v6619
    %6621 = vmatprep.subr.mxu0 0.0
    %v6622 = vand.u32 %v6603, 4294901760
    %6623 = vmatpush1.msra.mxu0 %v6622
    %6624 = vmatprep.subr.mxu0 0.0
    %v6625 = vand.u32 %v6604, 4294901760
    %6626 = vmatpush1.msra.mxu0 %v6625
    %6627 = vmatprep.subr.mxu0 0.0
    %v6628 = vand.u32 %v6605, 4294901760
    %6629 = vmatpush1.msra.mxu0 %v6628
    %6630 = vmatprep.subr.mxu0 0.0
    %v6631 = vand.u32 %v6606, 4294901760
    %6632 = vmatpush1.msra.mxu0 %v6631
    %6633 = vmatprep.subr.mxu0 0.0
    %v6634 = vand.u32 %v6607, 4294901760
    %6635 = vmatpush1.msra.mxu0 %v6634
    %6636 = vmatprep.subr.mxu0 0.0
    %v6637 = vand.u32 %v6608, 4294901760
    %6638 = vmatpush1.msra.mxu0 %v6637
    %6639 = vmatprep.subr.mxu0 0.0
    %v6640 = vand.u32 %v6609, 4294901760
    %6641 = vmatpush1.msra.mxu0 %v6640
    %6642 = vmatprep.subr.mxu0 0.0
    %v6643 = vand.u32 %v6610, 4294901760
    %6644 = vmatpush1.msra.mxu0 %v6643
    %6645 = vmatprep.subr.mxu0 0.0
    %v6646 = vand.u32 %v6611, 4294901760
    %6647 = vmatpush1.msra.mxu0 %v6646
    %6648 = vmatprep.subr.mxu0 0.0
    %v6649 = vand.u32 %v6612, 4294901760
    %6650 = vmatpush1.msra.mxu0 %v6649
    %6651 = vmatprep.subr.mxu0 0.0
    %v6652 = vand.u32 %v6613, 4294901760
    %6653 = vmatpush1.msra.mxu0 %v6652
    %6654 = vmatprep.subr.mxu0 0.0
    %v6655 = vand.u32 %v6614, 4294901760
    %6656 = vmatpush1.msra.mxu0 %v6655
    %6657 = vmatprep.subr.mxu0 0.0
    %v6658 = vand.u32 %v6615, 4294901760
    %6659 = vmatpush1.msra.mxu0 %v6658
    %6660 = vmatprep.subr.mxu0 0.0
    %v6661 = vand.u32 %v6616, 4294901760
    %6662 = vmatpush1.msra.mxu0 %v6661
    %6663 = vmatprep.subr.mxu0 0.0
    %v6664 = vand.u32 %v6617, 4294901760
    %6665 = vmatpush1.msra.mxu0 %v6664
    %6666 = vmatprep.subr.mxu0 0.0
    %6667 = vmatpush1.msra.mxu0 0.0
    %6668 = vmatprep.subr.mxu0 0.0
    %6669 = vmatpush1.msra.mxu0 0.0
    %6670 = vmatprep.subr.mxu0 0.0
    %6671 = vmatpush1.msra.mxu0 0.0
    %6672 = vmatprep.subr.mxu0 0.0
    %6673 = vmatpush1.msra.mxu0 0.0
    %6674 = vmatprep.subr.mxu0 0.0
    %6675 = vmatpush1.msra.mxu0 0.0
    %6676 = vmatprep.subr.mxu0 0.0
    %6677 = vmatpush1.msra.mxu0 0.0
    %6678 = vmatprep.subr.mxu0 0.0
    %6679 = vmatpush1.msra.mxu0 0.0
    %6680 = vmatprep.subr.mxu0 0.0
    %6681 = vmatpush1.msra.mxu0 0.0
    %6682 = vmatprep.subr.mxu0 0.0
    %6683 = vmatpush1.msra.mxu0 0.0
    %6684 = vmatprep.subr.mxu0 0.0
    %6685 = vmatpush1.msra.mxu0 0.0
    %6686 = vmatprep.subr.mxu0 0.0
    %6687 = vmatpush1.msra.mxu0 0.0
    %6688 = vmatprep.subr.mxu0 0.0
    %6689 = vmatpush1.msra.mxu0 0.0
    %6690 = vmatprep.subr.mxu0 0.0
    %6691 = vmatpush1.msra.mxu0 0.0
    %6692 = vmatprep.subr.mxu0 0.0
    %6693 = vmatpush1.msra.mxu0 0.0
    %6694 = vmatprep.subr.mxu0 0.0
    %6695 = vmatpush1.msra.mxu0 0.0
    %6696 = vmatprep.subr.mxu0 0.0
    %6697 = vmatpush1.msra.mxu0 0.0
    %6698 = vmatprep.mubr.f32.mxu0 0.0
    %v6699 = vand.u32 %v40, 4294901760
    %v6700 = vsub.f32 %v40, %v6699
    %v6701 = vand.u32 %v6700, 4294901760
    %v6702 = vsub.f32 %v6700, %v6701
    %v6703 = vand.u32 %v6702, 4294901760
    %6704 = vmatmul.mubr.f32.gmra.mrb[0].mxu0 %v6703
    %v6705 = vpop.f32.mrb[0].mxu0
    %v6706 = vadd.f32 0.0, %v6705
    %v6707 = vpop.f32.mrb[0].mxu0
    %6708 = vmatprep.mubr.f32.mxu0 0.0
    %v6709 = vand.u32 %v41, 4294901760
    %v6710 = vsub.f32 %v41, %v6709
    %v6711 = vand.u32 %v6710, 4294901760
    %v6712 = vsub.f32 %v6710, %v6711
    %v6713 = vand.u32 %v6712, 4294901760
    %6714 = vmatmul.mubr.f32.gmra.mrb[0].mxu0 %v6713
    %v6715 = vpop.f32.mrb[0].mxu0
    %v6716 = vadd.f32 0.0, %v6715
    %v6717 = vpop.f32.mrb[0].mxu0
    %6718 = vdwg.mxu0
    %6719 = vmatprep.subr.mxu0 0.0
    %v6720 = vand.u32 %v6602, 4294901760
    %v6721 = vsub.f32 %v6602, %v6720
    %v6722 = vand.u32 %v6721, 4294901760
    %v6723 = vsub.f32 %v6721, %v6722
    %v6724 = vand.u32 %v6723, 4294901760
    %6725 = vmatpush1.msra.mxu0 %v6724
    %6726 = vmatprep.subr.mxu0 0.0
    %v6727 = vand.u32 %v6603, 4294901760
    %v6728 = vsub.f32 %v6603, %v6727
    %v6729 = vand.u32 %v6728, 4294901760
    %v6730 = vsub.f32 %v6728, %v6729
    %v6731 = vand.u32 %v6730, 4294901760
    %6732 = vmatpush1.msra.mxu0 %v6731
    %6733 = vmatprep.subr.mxu0 0.0
    %v6734 = vand.u32 %v6604, 4294901760
    %v6735 = vsub.f32 %v6604, %v6734
    %v6736 = vand.u32 %v6735, 4294901760
    %v6737 = vsub.f32 %v6735, %v6736
    %v6738 = vand.u32 %v6737, 4294901760
    %6739 = vmatpush1.msra.mxu0 %v6738
    %6740 = vmatprep.subr.mxu0 0.0
    %v6741 = vand.u32 %v6605, 4294901760
    %v6742 = vsub.f32 %v6605, %v6741
    %v6743 = vand.u32 %v6742, 4294901760
    %v6744 = vsub.f32 %v6742, %v6743
    %v6745 = vand.u32 %v6744, 4294901760
    %6746 = vmatpush1.msra.mxu0 %v6745
    %6747 = vmatprep.subr.mxu0 0.0
    %v6748 = vand.u32 %v6606, 4294901760
    %v6749 = vsub.f32 %v6606, %v6748
    %v6750 = vand.u32 %v6749, 4294901760
    %v6751 = vsub.f32 %v6749, %v6750
    %v6752 = vand.u32 %v6751, 4294901760
    %6753 = vmatpush1.msra.mxu0 %v6752
    %6754 = vmatprep.subr.mxu0 0.0
    %v6755 = vand.u32 %v6607, 4294901760
    %v6756 = vsub.f32 %v6607, %v6755
    %v6757 = vand.u32 %v6756, 4294901760
    %v6758 = vsub.f32 %v6756, %v6757
    %v6759 = vand.u32 %v6758, 4294901760
    %6760 = vmatpush1.msra.mxu0 %v6759
    %6761 = vmatprep.subr.mxu0 0.0
    %v6762 = vand.u32 %v6608, 4294901760
    %v6763 = vsub.f32 %v6608, %v6762
    %v6764 = vand.u32 %v6763, 4294901760
    %v6765 = vsub.f32 %v6763, %v6764
    %v6766 = vand.u32 %v6765, 4294901760
    %6767 = vmatpush1.msra.mxu0 %v6766
    %6768 = vmatprep.subr.mxu0 0.0
    %v6769 = vand.u32 %v6609, 4294901760
    %v6770 = vsub.f32 %v6609, %v6769
    %v6771 = vand.u32 %v6770, 4294901760
    %v6772 = vsub.f32 %v6770, %v6771
    %v6773 = vand.u32 %v6772, 4294901760
    %6774 = vmatpush1.msra.mxu0 %v6773
    %6775 = vmatprep.subr.mxu0 0.0
    %v6776 = vand.u32 %v6610, 4294901760
    %v6777 = vsub.f32 %v6610, %v6776
    %v6778 = vand.u32 %v6777, 4294901760
    %v6779 = vsub.f32 %v6777, %v6778
    %v6780 = vand.u32 %v6779, 4294901760
    %6781 = vmatpush1.msra.mxu0 %v6780
    %6782 = vmatprep.subr.mxu0 0.0
    %v6783 = vand.u32 %v6611, 4294901760
    %v6784 = vsub.f32 %v6611, %v6783
    %v6785 = vand.u32 %v6784, 4294901760
    %v6786 = vsub.f32 %v6784, %v6785
    %v6787 = vand.u32 %v6786, 4294901760
    %6788 = vmatpush1.msra.mxu0 %v6787
    %6789 = vmatprep.subr.mxu0 0.0
    %v6790 = vand.u32 %v6612, 4294901760
    %v6791 = vsub.f32 %v6612, %v6790
    %v6792 = vand.u32 %v6791, 4294901760
    %v6793 = vsub.f32 %v6791, %v6792
    %v6794 = vand.u32 %v6793, 4294901760
    %6795 = vmatpush1.msra.mxu0 %v6794
    %6796 = vmatprep.subr.mxu0 0.0
    %v6797 = vand.u32 %v6613, 4294901760
    %v6798 = vsub.f32 %v6613, %v6797
    %v6799 = vand.u32 %v6798, 4294901760
    %v6800 = vsub.f32 %v6798, %v6799
    %v6801 = vand.u32 %v6800, 4294901760
    %6802 = vmatpush1.msra.mxu0 %v6801
    %6803 = vmatprep.subr.mxu0 0.0
    %v6804 = vand.u32 %v6614, 4294901760
    %v6805 = vsub.f32 %v6614, %v6804
    %v6806 = vand.u32 %v6805, 4294901760
    %v6807 = vsub.f32 %v6805, %v6806
    %v6808 = vand.u32 %v6807, 4294901760
    %6809 = vmatpush1.msra.mxu0 %v6808
    %6810 = vmatprep.subr.mxu0 0.0
    %v6811 = vand.u32 %v6615, 4294901760
    %v6812 = vsub.f32 %v6615, %v6811
    %v6813 = vand.u32 %v6812, 4294901760
    %v6814 = vsub.f32 %v6812, %v6813
    %v6815 = vand.u32 %v6814, 4294901760
    %6816 = vmatpush1.msra.mxu0 %v6815
    %6817 = vmatprep.subr.mxu0 0.0
    %v6818 = vand.u32 %v6616, 4294901760
    %v6819 = vsub.f32 %v6616, %v6818
    %v6820 = vand.u32 %v6819, 4294901760
    %v6821 = vsub.f32 %v6819, %v6820
    %v6822 = vand.u32 %v6821, 4294901760
    %6823 = vmatpush1.msra.mxu0 %v6822
    %6824 = vmatprep.subr.mxu0 0.0
    %v6825 = vand.u32 %v6617, 4294901760
    %v6826 = vsub.f32 %v6617, %v6825
    %v6827 = vand.u32 %v6826, 4294901760
    %v6828 = vsub.f32 %v6826, %v6827
    %v6829 = vand.u32 %v6828, 4294901760
    %6830 = vmatpush1.msra.mxu0 %v6829
    %6831 = vmatprep.subr.mxu0 0.0
    %6832 = vmatpush1.msra.mxu0 0.0
    %6833 = vmatprep.subr.mxu0 0.0
    %6834 = vmatpush1.msra.mxu0 0.0
    %6835 = vmatprep.subr.mxu0 0.0
    %6836 = vmatpush1.msra.mxu0 0.0
    %6837 = vmatprep.subr.mxu0 0.0
    %6838 = vmatpush1.msra.mxu0 0.0
    %6839 = vmatprep.subr.mxu0 0.0
    %6840 = vmatpush1.msra.mxu0 0.0
    %6841 = vmatprep.subr.mxu0 0.0
    %6842 = vmatpush1.msra.mxu0 0.0
    %6843 = vmatprep.subr.mxu0 0.0
    %6844 = vmatpush1.msra.mxu0 0.0
    %6845 = vmatprep.subr.mxu0 0.0
    %6846 = vmatpush1.msra.mxu0 0.0
    %6847 = vmatprep.subr.mxu0 0.0
    %6848 = vmatpush1.msra.mxu0 0.0
    %6849 = vmatprep.subr.mxu0 0.0
    %6850 = vmatpush1.msra.mxu0 0.0
    %6851 = vmatprep.subr.mxu0 0.0
    %6852 = vmatpush1.msra.mxu0 0.0
    %6853 = vmatprep.subr.mxu0 0.0
    %6854 = vmatpush1.msra.mxu0 0.0
    %6855 = vmatprep.subr.mxu0 0.0
    %6856 = vmatpush1.msra.mxu0 0.0
    %6857 = vmatprep.subr.mxu0 0.0
    %6858 = vmatpush1.msra.mxu0 0.0
    %6859 = vmatprep.subr.mxu0 0.0
    %6860 = vmatpush1.msra.mxu0 0.0
    %6861 = vmatprep.subr.mxu0 0.0
    %6862 = vmatpush1.msra.mxu0 0.0
    %6863 = vmatprep.mubr.f32.mxu0 0.0
    %v6864 = vand.u32 %v40, 4294901760
    %6865 = vmatmul.mubr.f32.gmra.mrb[0].mxu0 %v6864
    %v6866 = vpop.f32.mrb[0].mxu0
    %v6867 = vadd.f32 %v6706, %v6866
    %v6868 = vpop.f32.mrb[0].mxu0
    %6869 = vmatprep.mubr.f32.mxu0 0.0
    %v6870 = vand.u32 %v41, 4294901760
    %6871 = vmatmul.mubr.f32.gmra.mrb[0].mxu0 %v6870
    %v6872 = vpop.f32.mrb[0].mxu0
    %v6873 = vadd.f32 %v6716, %v6872
    %v6874 = vpop.f32.mrb[0].mxu0
    %6875 = vdwg.mxu0
    %6876 = vmatprep.subr.mxu0 0.0
    %v6877 = vand.u32 %v6602, 4294901760
    %v6878 = vsub.f32 %v6602, %v6877
    %6879 = vmatpush1.msra.mxu0 %v6878
    %6880 = vmatprep.subr.mxu0 0.0
    %v6881 = vand.u32 %v6603, 4294901760
    %v6882 = vsub.f32 %v6603, %v6881
    %6883 = vmatpush1.msra.mxu0 %v6882
    %6884 = vmatprep.subr.mxu0 0.0
    %v6885 = vand.u32 %v6604, 4294901760
    %v6886 = vsub.f32 %v6604, %v6885
    %6887 = vmatpush1.msra.mxu0 %v6886
    %6888 = vmatprep.subr.mxu0 0.0
    %v6889 = vand.u32 %v6605, 4294901760
    %v6890 = vsub.f32 %v6605, %v6889
    %6891 = vmatpush1.msra.mxu0 %v6890
    %6892 = vmatprep.subr.mxu0 0.0
    %v6893 = vand.u32 %v6606, 4294901760
    %v6894 = vsub.f32 %v6606, %v6893
    %6895 = vmatpush1.msra.mxu0 %v6894
    %6896 = vmatprep.subr.mxu0 0.0
    %v6897 = vand.u32 %v6607, 4294901760
    %v6898 = vsub.f32 %v6607, %v6897
    %6899 = vmatpush1.msra.mxu0 %v6898
    %6900 = vmatprep.subr.mxu0 0.0
    %v6901 = vand.u32 %v6608, 4294901760
    %v6902 = vsub.f32 %v6608, %v6901
    %6903 = vmatpush1.msra.mxu0 %v6902
    %6904 = vmatprep.subr.mxu0 0.0
    %v6905 = vand.u32 %v6609, 4294901760
    %v6906 = vsub.f32 %v6609, %v6905
    %6907 = vmatpush1.msra.mxu0 %v6906
    %6908 = vmatprep.subr.mxu0 0.0
    %v6909 = vand.u32 %v6610, 4294901760
    %v6910 = vsub.f32 %v6610, %v6909
    %6911 = vmatpush1.msra.mxu0 %v6910
    %6912 = vmatprep.subr.mxu0 0.0
    %v6913 = vand.u32 %v6611, 4294901760
    %v6914 = vsub.f32 %v6611, %v6913
    %6915 = vmatpush1.msra.mxu0 %v6914
    %6916 = vmatprep.subr.mxu0 0.0
    %v6917 = vand.u32 %v6612, 4294901760
    %v6918 = vsub.f32 %v6612, %v6917
    %6919 = vmatpush1.msra.mxu0 %v6918
    %6920 = vmatprep.subr.mxu0 0.0
    %v6921 = vand.u32 %v6613, 4294901760
    %v6922 = vsub.f32 %v6613, %v6921
    %6923 = vmatpush1.msra.mxu0 %v6922
    %6924 = vmatprep.subr.mxu0 0.0
    %v6925 = vand.u32 %v6614, 4294901760
    %v6926 = vsub.f32 %v6614, %v6925
    %6927 = vmatpush1.msra.mxu0 %v6926
    %6928 = vmatprep.subr.mxu0 0.0
    %v6929 = vand.u32 %v6615, 4294901760
    %v6930 = vsub.f32 %v6615, %v6929
    %6931 = vmatpush1.msra.mxu0 %v6930
    %6932 = vmatprep.subr.mxu0 0.0
    %v6933 = vand.u32 %v6616, 4294901760
    %v6934 = vsub.f32 %v6616, %v6933
    %6935 = vmatpush1.msra.mxu0 %v6934
    %6936 = vmatprep.subr.mxu0 0.0
    %v6937 = vand.u32 %v6617, 4294901760
    %v6938 = vsub.f32 %v6617, %v6937
    %6939 = vmatpush1.msra.mxu0 %v6938
    %6940 = vmatprep.subr.mxu0 0.0
    %6941 = vmatpush1.msra.mxu0 0.0
    %6942 = vmatprep.subr.mxu0 0.0
    %6943 = vmatpush1.msra.mxu0 0.0
    %6944 = vmatprep.subr.mxu0 0.0
    %6945 = vmatpush1.msra.mxu0 0.0
    %6946 = vmatprep.subr.mxu0 0.0
    %6947 = vmatpush1.msra.mxu0 0.0
    %6948 = vmatprep.subr.mxu0 0.0
    %6949 = vmatpush1.msra.mxu0 0.0
    %6950 = vmatprep.subr.mxu0 0.0
    %6951 = vmatpush1.msra.mxu0 0.0
    %6952 = vmatprep.subr.mxu0 0.0
    %6953 = vmatpush1.msra.mxu0 0.0
    %6954 = vmatprep.subr.mxu0 0.0
    %6955 = vmatpush1.msra.mxu0 0.0
    %6956 = vmatprep.subr.mxu0 0.0
    %6957 = vmatpush1.msra.mxu0 0.0
    %6958 = vmatprep.subr.mxu0 0.0
    %6959 = vmatpush1.msra.mxu0 0.0
    %6960 = vmatprep.subr.mxu0 0.0
    %6961 = vmatpush1.msra.mxu0 0.0
    %6962 = vmatprep.subr.mxu0 0.0
    %6963 = vmatpush1.msra.mxu0 0.0
    %6964 = vmatprep.subr.mxu0 0.0
    %6965 = vmatpush1.msra.mxu0 0.0
    %6966 = vmatprep.subr.mxu0 0.0
    %6967 = vmatpush1.msra.mxu0 0.0
    %6968 = vmatprep.subr.mxu0 0.0
    %6969 = vmatpush1.msra.mxu0 0.0
    %6970 = vmatprep.subr.mxu0 0.0
    %6971 = vmatpush1.msra.mxu0 0.0
    %6972 = vmatprep.mubr.f32.mxu0 0.0
    %v6973 = vand.u32 %v40, 4294901760
    %v6974 = vsub.f32 %v40, %v6973
    %6975 = vmatmul.mubr.f32.gmra.mrb[0].mxu0 %v6974
    %v6976 = vpop.f32.mrb[0].mxu0
    %v6977 = vadd.f32 %v6867, %v6976
    %v6978 = vpop.f32.mrb[0].mxu0
    %6979 = vmatprep.mubr.f32.mxu0 0.0
    %v6980 = vand.u32 %v41, 4294901760
    %v6981 = vsub.f32 %v41, %v6980
    %6982 = vmatmul.mubr.f32.gmra.mrb[0].mxu0 %v6981
    %v6983 = vpop.f32.mrb[0].mxu0
    %v6984 = vadd.f32 %v6873, %v6983
    %v6985 = vpop.f32.mrb[0].mxu0
    %6986 = vdwg.mxu0
    %6987 = vmatprep.subr.mxu0 0.0
    %v6988 = vand.u32 %v6602, 4294901760
    %6989 = vmatpush1.msra.mxu0 %v6988
    %6990 = vmatprep.subr.mxu0 0.0
    %v6991 = vand.u32 %v6603, 4294901760
    %6992 = vmatpush1.msra.mxu0 %v6991
    %6993 = vmatprep.subr.mxu0 0.0
    %v6994 = vand.u32 %v6604, 4294901760
    %6995 = vmatpush1.msra.mxu0 %v6994
    %6996 = vmatprep.subr.mxu0 0.0
    %v6997 = vand.u32 %v6605, 4294901760
    %6998 = vmatpush1.msra.mxu0 %v6997
    %6999 = vmatprep.subr.mxu0 0.0
    %v7000 = vand.u32 %v6606, 4294901760
    %7001 = vmatpush1.msra.mxu0 %v7000
    %7002 = vmatprep.subr.mxu0 0.0
    %v7003 = vand.u32 %v6607, 4294901760
    %7004 = vmatpush1.msra.mxu0 %v7003
    %7005 = vmatprep.subr.mxu0 0.0
    %v7006 = vand.u32 %v6608, 4294901760
    %7007 = vmatpush1.msra.mxu0 %v7006
    %7008 = vmatprep.subr.mxu0 0.0
    %v7009 = vand.u32 %v6609, 4294901760
    %7010 = vmatpush1.msra.mxu0 %v7009
    %7011 = vmatprep.subr.mxu0 0.0
    %v7012 = vand.u32 %v6610, 4294901760
    %7013 = vmatpush1.msra.mxu0 %v7012
    %7014 = vmatprep.subr.mxu0 0.0
    %v7015 = vand.u32 %v6611, 4294901760
    %7016 = vmatpush1.msra.mxu0 %v7015
    %7017 = vmatprep.subr.mxu0 0.0
    %v7018 = vand.u32 %v6612, 4294901760
    %7019 = vmatpush1.msra.mxu0 %v7018
    %7020 = vmatprep.subr.mxu0 0.0
    %v7021 = vand.u32 %v6613, 4294901760
    %7022 = vmatpush1.msra.mxu0 %v7021
    %7023 = vmatprep.subr.mxu0 0.0
    %v7024 = vand.u32 %v6614, 4294901760
    %7025 = vmatpush1.msra.mxu0 %v7024
    %7026 = vmatprep.subr.mxu0 0.0
    %v7027 = vand.u32 %v6615, 4294901760
    %7028 = vmatpush1.msra.mxu0 %v7027
    %7029 = vmatprep.subr.mxu0 0.0
    %v7030 = vand.u32 %v6616, 4294901760
    %7031 = vmatpush1.msra.mxu0 %v7030
    %7032 = vmatprep.subr.mxu0 0.0
    %v7033 = vand.u32 %v6617, 4294901760
    %7034 = vmatpush1.msra.mxu0 %v7033
    %7035 = vmatprep.subr.mxu0 0.0
    %7036 = vmatpush1.msra.mxu0 0.0
    %7037 = vmatprep.subr.mxu0 0.0
    %7038 = vmatpush1.msra.mxu0 0.0
    %7039 = vmatprep.subr.mxu0 0.0
    %7040 = vmatpush1.msra.mxu0 0.0
    %7041 = vmatprep.subr.mxu0 0.0
    %7042 = vmatpush1.msra.mxu0 0.0
    %7043 = vmatprep.subr.mxu0 0.0
    %7044 = vmatpush1.msra.mxu0 0.0
    %7045 = vmatprep.subr.mxu0 0.0
    %7046 = vmatpush1.msra.mxu0 0.0
    %7047 = vmatprep.subr.mxu0 0.0
    %7048 = vmatpush1.msra.mxu0 0.0
    %7049 = vmatprep.subr.mxu0 0.0
    %7050 = vmatpush1.msra.mxu0 0.0
    %7051 = vmatprep.subr.mxu0 0.0
    %7052 = vmatpush1.msra.mxu0 0.0
    %7053 = vmatprep.subr.mxu0 0.0
    %7054 = vmatpush1.msra.mxu0 0.0
    %7055 = vmatprep.subr.mxu0 0.0
    %7056 = vmatpush1.msra.mxu0 0.0
    %7057 = vmatprep.subr.mxu0 0.0
    %7058 = vmatpush1.msra.mxu0 0.0
    %7059 = vmatprep.subr.mxu0 0.0
    %7060 = vmatpush1.msra.mxu0 0.0
    %7061 = vmatprep.subr.mxu0 0.0
    %7062 = vmatpush1.msra.mxu0 0.0
    %7063 = vmatprep.subr.mxu0 0.0
    %7064 = vmatpush1.msra.mxu0 0.0
    %7065 = vmatprep.subr.mxu0 0.0
    %7066 = vmatpush1.msra.mxu0 0.0
    %7067 = vmatprep.mubr.f32.mxu0 0.0
    %v7068 = vand.u32 %v40, 4294901760
    %v7069 = vsub.f32 %v40, %v7068
    %v7070 = vand.u32 %v7069, 4294901760
    %7071 = vmatmul.mubr.f32.gmra.mrb[0].mxu0 %v7070
    %v7072 = vpop.f32.mrb[0].mxu0
    %v7073 = vadd.f32 %v6977, %v7072
    %v7074 = vpop.f32.mrb[0].mxu0
    %7075 = vmatprep.mubr.f32.mxu0 0.0
    %v7076 = vand.u32 %v41, 4294901760
    %v7077 = vsub.f32 %v41, %v7076
    %v7078 = vand.u32 %v7077, 4294901760
    %7079 = vmatmul.mubr.f32.gmra.mrb[0].mxu0 %v7078
    %v7080 = vpop.f32.mrb[0].mxu0
    %v7081 = vadd.f32 %v6984, %v7080
    %v7082 = vpop.f32.mrb[0].mxu0
    %7083 = vdwg.mxu0
    %7084 = vmatprep.subr.mxu0 0.0
    %v7085 = vand.u32 %v6602, 4294901760
    %v7086 = vsub.f32 %v6602, %v7085
    %v7087 = vand.u32 %v7086, 4294901760
    %7088 = vmatpush1.msra.mxu0 %v7087
    %7089 = vmatprep.subr.mxu0 0.0
    %v7090 = vand.u32 %v6603, 4294901760
    %v7091 = vsub.f32 %v6603, %v7090
    %v7092 = vand.u32 %v7091, 4294901760
    %7093 = vmatpush1.msra.mxu0 %v7092
    %7094 = vmatprep.subr.mxu0 0.0
    %v7095 = vand.u32 %v6604, 4294901760
    %v7096 = vsub.f32 %v6604, %v7095
    %v7097 = vand.u32 %v7096, 4294901760
    %7098 = vmatpush1.msra.mxu0 %v7097
    %7099 = vmatprep.subr.mxu0 0.0
    %v7100 = vand.u32 %v6605, 4294901760
    %v7101 = vsub.f32 %v6605, %v7100
    %v7102 = vand.u32 %v7101, 4294901760
    %7103 = vmatpush1.msra.mxu0 %v7102
    %7104 = vmatprep.subr.mxu0 0.0
    %v7105 = vand.u32 %v6606, 4294901760
    %v7106 = vsub.f32 %v6606, %v7105
    %v7107 = vand.u32 %v7106, 4294901760
    %7108 = vmatpush1.msra.mxu0 %v7107
    %7109 = vmatprep.subr.mxu0 0.0
    %v7110 = vand.u32 %v6607, 4294901760
    %v7111 = vsub.f32 %v6607, %v7110
    %v7112 = vand.u32 %v7111, 4294901760
    %7113 = vmatpush1.msra.mxu0 %v7112
    %7114 = vmatprep.subr.mxu0 0.0
    %v7115 = vand.u32 %v6608, 4294901760
    %v7116 = vsub.f32 %v6608, %v7115
    %v7117 = vand.u32 %v7116, 4294901760
    %7118 = vmatpush1.msra.mxu0 %v7117
    %7119 = vmatprep.subr.mxu0 0.0
    %v7120 = vand.u32 %v6609, 4294901760
    %v7121 = vsub.f32 %v6609, %v7120
    %v7122 = vand.u32 %v7121, 4294901760
    %7123 = vmatpush1.msra.mxu0 %v7122
    %7124 = vmatprep.subr.mxu0 0.0
    %v7125 = vand.u32 %v6610, 4294901760
    %v7126 = vsub.f32 %v6610, %v7125
    %v7127 = vand.u32 %v7126, 4294901760
    %7128 = vmatpush1.msra.mxu0 %v7127
    %7129 = vmatprep.subr.mxu0 0.0
    %v7130 = vand.u32 %v6611, 4294901760
    %v7131 = vsub.f32 %v6611, %v7130
    %v7132 = vand.u32 %v7131, 4294901760
    %7133 = vmatpush1.msra.mxu0 %v7132
    %7134 = vmatprep.subr.mxu0 0.0
    %v7135 = vand.u32 %v6612, 4294901760
    %v7136 = vsub.f32 %v6612, %v7135
    %v7137 = vand.u32 %v7136, 4294901760
    %7138 = vmatpush1.msra.mxu0 %v7137
    %7139 = vmatprep.subr.mxu0 0.0
    %v7140 = vand.u32 %v6613, 4294901760
    %v7141 = vsub.f32 %v6613, %v7140
    %v7142 = vand.u32 %v7141, 4294901760
    %7143 = vmatpush1.msra.mxu0 %v7142
    %7144 = vmatprep.subr.mxu0 0.0
    %v7145 = vand.u32 %v6614, 4294901760
    %v7146 = vsub.f32 %v6614, %v7145
    %v7147 = vand.u32 %v7146, 4294901760
    %7148 = vmatpush1.msra.mxu0 %v7147
    %7149 = vmatprep.subr.mxu0 0.0
    %v7150 = vand.u32 %v6615, 4294901760
    %v7151 = vsub.f32 %v6615, %v7150
    %v7152 = vand.u32 %v7151, 4294901760
    %7153 = vmatpush1.msra.mxu0 %v7152
    %7154 = vmatprep.subr.mxu0 0.0
    %v7155 = vand.u32 %v6616, 4294901760
    %v7156 = vsub.f32 %v6616, %v7155
    %v7157 = vand.u32 %v7156, 4294901760
    %7158 = vmatpush1.msra.mxu0 %v7157
    %7159 = vmatprep.subr.mxu0 0.0
    %v7160 = vand.u32 %v6617, 4294901760
    %v7161 = vsub.f32 %v6617, %v7160
    %v7162 = vand.u32 %v7161, 4294901760
    %7163 = vmatpush1.msra.mxu0 %v7162
    %7164 = vmatprep.subr.mxu0 0.0
    %7165 = vmatpush1.msra.mxu0 0.0
    %7166 = vmatprep.subr.mxu0 0.0
    %7167 = vmatpush1.msra.mxu0 0.0
    %7168 = vmatprep.subr.mxu0 0.0
    %7169 = vmatpush1.msra.mxu0 0.0
    %7170 = vmatprep.subr.mxu0 0.0
    %7171 = vmatpush1.msra.mxu0 0.0
    %7172 = vmatprep.subr.mxu0 0.0
    %7173 = vmatpush1.msra.mxu0 0.0
    %7174 = vmatprep.subr.mxu0 0.0
    %7175 = vmatpush1.msra.mxu0 0.0
    %7176 = vmatprep.subr.mxu0 0.0
    %7177 = vmatpush1.msra.mxu0 0.0
    %7178 = vmatprep.subr.mxu0 0.0
    %7179 = vmatpush1.msra.mxu0 0.0
    %7180 = vmatprep.subr.mxu0 0.0
    %7181 = vmatpush1.msra.mxu0 0.0
    %7182 = vmatprep.subr.mxu0 0.0
    %7183 = vmatpush1.msra.mxu0 0.0
    %7184 = vmatprep.subr.mxu0 0.0
    %7185 = vmatpush1.msra.mxu0 0.0
    %7186 = vmatprep.subr.mxu0 0.0
    %7187 = vmatpush1.msra.mxu0 0.0
    %7188 = vmatprep.subr.mxu0 0.0
    %7189 = vmatpush1.msra.mxu0 0.0
    %7190 = vmatprep.subr.mxu0 0.0
    %7191 = vmatpush1.msra.mxu0 0.0
    %7192 = vmatprep.subr.mxu0 0.0
    %7193 = vmatpush1.msra.mxu0 0.0
    %7194 = vmatprep.subr.mxu0 0.0
    %7195 = vmatpush1.msra.mxu0 0.0
    %7196 = vmatprep.mubr.f32.mxu0 0.0
    %v7197 = vand.u32 %v40, 4294901760
    %7198 = vmatmul.mubr.f32.gmra.mrb[0].mxu0 %v7197
    %v7199 = vpop.f32.mrb[0].mxu0
    %v7200 = vadd.f32 %v7073, %v7199
    %v7201 = vpop.f32.mrb[0].mxu0
    %7202 = vmatprep.mubr.f32.mxu0 0.0
    %v7203 = vand.u32 %v41, 4294901760
    %7204 = vmatmul.mubr.f32.gmra.mrb[0].mxu0 %v7203
    %v7205 = vpop.f32.mrb[0].mxu0
    %v7206 = vadd.f32 %v7081, %v7205
    %v7207 = vpop.f32.mrb[0].mxu0
    %7208 = vdwg.mxu0
    %7209 = vmatprep.subr.mxu0 0.0
    %v7210 = vand.u32 %v6602, 4294901760
    %7211 = vmatpush1.msra.mxu0 %v7210
    %7212 = vmatprep.subr.mxu0 0.0
    %v7213 = vand.u32 %v6603, 4294901760
    %7214 = vmatpush1.msra.mxu0 %v7213
    %7215 = vmatprep.subr.mxu0 0.0
    %v7216 = vand.u32 %v6604, 4294901760
    %7217 = vmatpush1.msra.mxu0 %v7216
    %7218 = vmatprep.subr.mxu0 0.0
    %v7219 = vand.u32 %v6605, 4294901760
    %7220 = vmatpush1.msra.mxu0 %v7219
    %7221 = vmatprep.subr.mxu0 0.0
    %v7222 = vand.u32 %v6606, 4294901760
    %7223 = vmatpush1.msra.mxu0 %v7222
    %7224 = vmatprep.subr.mxu0 0.0
    %v7225 = vand.u32 %v6607, 4294901760
    %7226 = vmatpush1.msra.mxu0 %v7225
    %7227 = vmatprep.subr.mxu0 0.0
    %v7228 = vand.u32 %v6608, 4294901760
    %7229 = vmatpush1.msra.mxu0 %v7228
    %7230 = vmatprep.subr.mxu0 0.0
    %v7231 = vand.u32 %v6609, 4294901760
    %7232 = vmatpush1.msra.mxu0 %v7231
    %7233 = vmatprep.subr.mxu0 0.0
    %v7234 = vand.u32 %v6610, 4294901760
    %7235 = vmatpush1.msra.mxu0 %v7234
    %7236 = vmatprep.subr.mxu0 0.0
    %v7237 = vand.u32 %v6611, 4294901760
    %7238 = vmatpush1.msra.mxu0 %v7237
    %7239 = vmatprep.subr.mxu0 0.0
    %v7240 = vand.u32 %v6612, 4294901760
    %7241 = vmatpush1.msra.mxu0 %v7240
    %7242 = vmatprep.subr.mxu0 0.0
    %v7243 = vand.u32 %v6613, 4294901760
    %7244 = vmatpush1.msra.mxu0 %v7243
    %7245 = vmatprep.subr.mxu0 0.0
    %v7246 = vand.u32 %v6614, 4294901760
    %7247 = vmatpush1.msra.mxu0 %v7246
    %7248 = vmatprep.subr.mxu0 0.0
    %v7249 = vand.u32 %v6615, 4294901760
    %7250 = vmatpush1.msra.mxu0 %v7249
    %7251 = vmatprep.subr.mxu0 0.0
    %v7252 = vand.u32 %v6616, 4294901760
    %7253 = vmatpush1.msra.mxu0 %v7252
    %7254 = vmatprep.subr.mxu0 0.0
    %v7255 = vand.u32 %v6617, 4294901760
    %7256 = vmatpush1.msra.mxu0 %v7255
    %7257 = vmatprep.subr.mxu0 0.0
    %7258 = vmatpush1.msra.mxu0 0.0
    %7259 = vmatprep.subr.mxu0 0.0
    %7260 = vmatpush1.msra.mxu0 0.0
    %7261 = vmatprep.subr.mxu0 0.0
    %7262 = vmatpush1.msra.mxu0 0.0
    %7263 = vmatprep.subr.mxu0 0.0
    %7264 = vmatpush1.msra.mxu0 0.0
    %7265 = vmatprep.subr.mxu0 0.0
    %7266 = vmatpush1.msra.mxu0 0.0
    %7267 = vmatprep.subr.mxu0 0.0
    %7268 = vmatpush1.msra.mxu0 0.0
    %7269 = vmatprep.subr.mxu0 0.0
    %7270 = vmatpush1.msra.mxu0 0.0
    %7271 = vmatprep.subr.mxu0 0.0
    %7272 = vmatpush1.msra.mxu0 0.0
    %7273 = vmatprep.subr.mxu0 0.0
    %7274 = vmatpush1.msra.mxu0 0.0
    %7275 = vmatprep.subr.mxu0 0.0
    %7276 = vmatpush1.msra.mxu0 0.0
    %7277 = vmatprep.subr.mxu0 0.0
    %7278 = vmatpush1.msra.mxu0 0.0
    %7279 = vmatprep.subr.mxu0 0.0
    %7280 = vmatpush1.msra.mxu0 0.0
    %7281 = vmatprep.subr.mxu0 0.0
    %7282 = vmatpush1.msra.mxu0 0.0
    %7283 = vmatprep.subr.mxu0 0.0
    %7284 = vmatpush1.msra.mxu0 0.0
    %7285 = vmatprep.subr.mxu0 0.0
    %7286 = vmatpush1.msra.mxu0 0.0
    %7287 = vmatprep.subr.mxu0 0.0
    %7288 = vmatpush1.msra.mxu0 0.0
    %7289 = vmatprep.mubr.f32.mxu0 0.0
    %v7290 = vand.u32 %v40, 4294901760
    %7291 = vmatmul.mubr.f32.gmra.mrb[0].mxu0 %v7290
    %v7292 = vpop.f32.mrb[0].mxu0
    %v7293 = vadd.f32 %v7200, %v7292
    %v7294 = vpop.f32.mrb[0].mxu0
    %7295 = vmatprep.mubr.f32.mxu0 0.0
    %v7296 = vand.u32 %v41, 4294901760
    %7297 = vmatmul.mubr.f32.gmra.mrb[0].mxu0 %v7296
    %v7298 = vpop.f32.mrb[0].mxu0
    %v7299 = vadd.f32 %v7206, %v7298
    %v7300 = vpop.f32.mrb[0].mxu0
    %7301 = vdwg.mxu0
    %v7302 = vmul.f32 %v1476, %v5890
    %v7303 = vmul.f32 %v1475, %v5891
    %v7304 = vmul.f32 %v1482, %v5896
    %v7305 = vmul.f32 %v1483, %v5897
    %v7306 = vadd.f32 %v7302, %v7304
    %v7307 = vadd.f32 %v7303, %v7305
    %v7308 = vmul.f32 %v5898, %v40
    %v7309 = vmul.f32 %v5899, %v41
    %v7310 = vsub.f32 %v7306, %v7308
    %v7311 = vsub.f32 %v7307, %v7309
    %v7312 = vrot.slane %v6592, 5
    %v7313 = vrot.slane %v6598, 5
    %v7314 = vsel %vm4416, %v7312, %v7313
    %v7315 = vsel %vm4416, %v7313, %v7312
    %v7316 = vmul.f32 %v7314, %v5879
    %v7317 = vmul.f32 %v7315, %v5880
    %v7318 = vrot.slane %v6592, 3
    %v7319 = vrot.slane %v6598, 3
    %v7320 = vsel %vm4409, %v7318, %v7319
    %v7321 = vsel %vm4409, %v7319, %v7318
    %v7322 = vmul.f32 %v7321, %v5885
    %v7323 = vmul.f32 %v7320, %v5886
    %v7324 = vsub.f32 %v7316, %v7322
    %v7325 = vsub.f32 %v7317, %v7323
    %v7326 = vmul.f32 %v7293, %v7310
    %v7327 = vmul.f32 %v7299, %v7311
    %v7328 = vmul.f32 %v7324, %v7324
    %v7329 = vmul.f32 %v7325, %v7325
    %v7330 = vsub.f32 %v7326, %v7328
    %v7331 = vsub.f32 %v7327, %v7329
    %v7332 = vadd.f32 %v5873, %v7330
    %v7333 = vadd.f32 %v5874, %v7331
    %vm7334 = vcmp.lt.s32.totalorder %v44, 4
    %v7335 = vsel %vm2934, 1, 0
    %v7336 = vsel %vm7334, 1, 0
    %v7337 = vcvt.s32.f32 %v7335
    %v7338 = vcvt.s32.f32 %v7336
    %vm7339 = vcmp.ge.s32.totalorder %v43, 12
    %vm7340 = vcmp.ge.s32.totalorder %v44, 12
    %v7341 = vsel %vm7339, 1, 0
    %v7342 = vsel %vm7340, 1, 0
    %v7343 = vcvt.s32.f32 %v7341
    %v7344 = vcvt.s32.f32 %v7342
    %v7345 = vadd.f32 %v2985, %v2991
    %v7346 = vadd.f32 %v2986, %v2992
    %s7347 = scalar_lea.vmem [#allocation5], 1280
    %v7348 = vld [vmem:[%s7347] sm:$0xff]
    %v7349 = vld [vmem:[%s7347 + $0x8] sm:$0xff]
    %v7350 = vld [vmem:[%s7347 + $0x10] sm:$0xff]
    %v7351 = vld [vmem:[%s7347 + $0x18] sm:$0xff]
    %v7352 = vld [vmem:[%s7347 + $0x20] sm:$0xff]
    %v7353 = vld [vmem:[%s7347 + $0x28] sm:$0xff]
    %v7354 = vld [vmem:[%s7347 + $0x30] sm:$0xff]
    %v7355 = vld [vmem:[%s7347 + $0x38] sm:$0xff]
    %v7356 = vld [vmem:[%s7347 + $0x40] sm:$0xff]
    %v7357 = vld [vmem:[%s7347 + $0x48] sm:$0xff]
    %v7358 = vld [vmem:[%s7347 + $0x50] sm:$0xff]
    %v7359 = vld [vmem:[%s7347 + $0x58] sm:$0xff]
    %v7360 = vld [vmem:[%s7347 + $0x60] sm:$0xff]
    %v7361 = vld [vmem:[%s7347 + $0x68] sm:$0xff]
    %v7362 = vld [vmem:[%s7347 + $0x70] sm:$0xff]
    %v7363 = vld [vmem:[%s7347 + $0x78] sm:$0xff]
    %7364 = vmatprep.subr.mxu0 0.0
    %v7365 = vand.u32 %v7348, 4294901760
    %7366 = vmatpush1.msra.mxu0 %v7365
    %7367 = vmatprep.subr.mxu0 0.0
    %v7368 = vand.u32 %v7349, 4294901760
    %7369 = vmatpush1.msra.mxu0 %v7368
    %7370 = vmatprep.subr.mxu0 0.0
    %v7371 = vand.u32 %v7350, 4294901760
    %7372 = vmatpush1.msra.mxu0 %v7371
    %7373 = vmatprep.subr.mxu0 0.0
    %v7374 = vand.u32 %v7351, 4294901760
    %7375 = vmatpush1.msra.mxu0 %v7374
    %7376 = vmatprep.subr.mxu0 0.0
    %v7377 = vand.u32 %v7352, 4294901760
    %7378 = vmatpush1.msra.mxu0 %v7377
    %7379 = vmatprep.subr.mxu0 0.0
    %v7380 = vand.u32 %v7353, 4294901760
    %7381 = vmatpush1.msra.mxu0 %v7380
    %7382 = vmatprep.subr.mxu0 0.0
    %v7383 = vand.u32 %v7354, 4294901760
    %7384 = vmatpush1.msra.mxu0 %v7383
    %7385 = vmatprep.subr.mxu0 0.0
    %v7386 = vand.u32 %v7355, 4294901760
    %7387 = vmatpush1.msra.mxu0 %v7386
    %7388 = vmatprep.subr.mxu0 0.0
    %v7389 = vand.u32 %v7356, 4294901760
    %7390 = vmatpush1.msra.mxu0 %v7389
    %7391 = vmatprep.subr.mxu0 0.0
    %v7392 = vand.u32 %v7357, 4294901760
    %7393 = vmatpush1.msra.mxu0 %v7392
    %7394 = vmatprep.subr.mxu0 0.0
    %v7395 = vand.u32 %v7358, 4294901760
    %7396 = vmatpush1.msra.mxu0 %v7395
    %7397 = vmatprep.subr.mxu0 0.0
    %v7398 = vand.u32 %v7359, 4294901760
    %7399 = vmatpush1.msra.mxu0 %v7398
    %7400 = vmatprep.subr.mxu0 0.0
    %v7401 = vand.u32 %v7360, 4294901760
    %7402 = vmatpush1.msra.mxu0 %v7401
    %7403 = vmatprep.subr.mxu0 0.0
    %v7404 = vand.u32 %v7361, 4294901760
    %7405 = vmatpush1.msra.mxu0 %v7404
    %7406 = vmatprep.subr.mxu0 0.0
    %v7407 = vand.u32 %v7362, 4294901760
    %7408 = vmatpush1.msra.mxu0 %v7407
    %7409 = vmatprep.subr.mxu0 0.0
    %v7410 = vand.u32 %v7363, 4294901760
    %7411 = vmatpush1.msra.mxu0 %v7410
    %7412 = vmatprep.subr.mxu0 0.0
    %7413 = vmatpush1.msra.mxu0 0.0
    %7414 = vmatprep.subr.mxu0 0.0
    %7415 = vmatpush1.msra.mxu0 0.0
    %7416 = vmatprep.subr.mxu0 0.0
    %7417 = vmatpush1.msra.mxu0 0.0
    %7418 = vmatprep.subr.mxu0 0.0
    %7419 = vmatpush1.msra.mxu0 0.0
    %7420 = vmatprep.subr.mxu0 0.0
    %7421 = vmatpush1.msra.mxu0 0.0
    %7422 = vmatprep.subr.mxu0 0.0
    %7423 = vmatpush1.msra.mxu0 0.0
    %7424 = vmatprep.subr.mxu0 0.0
    %7425 = vmatpush1.msra.mxu0 0.0
    %7426 = vmatprep.subr.mxu0 0.0
    %7427 = vmatpush1.msra.mxu0 0.0
    %7428 = vmatprep.subr.mxu0 0.0
    %7429 = vmatpush1.msra.mxu0 0.0
    %7430 = vmatprep.subr.mxu0 0.0
    %7431 = vmatpush1.msra.mxu0 0.0
    %7432 = vmatprep.subr.mxu0 0.0
    %7433 = vmatpush1.msra.mxu0 0.0
    %7434 = vmatprep.subr.mxu0 0.0
    %7435 = vmatpush1.msra.mxu0 0.0
    %7436 = vmatprep.subr.mxu0 0.0
    %7437 = vmatpush1.msra.mxu0 0.0
    %7438 = vmatprep.subr.mxu0 0.0
    %7439 = vmatpush1.msra.mxu0 0.0
    %7440 = vmatprep.subr.mxu0 0.0
    %7441 = vmatpush1.msra.mxu0 0.0
    %7442 = vmatprep.subr.mxu0 0.0
    %7443 = vmatpush1.msra.mxu0 0.0
    %7444 = vmatprep.mubr.f32.mxu0 0.0
    %v7445 = vand.u32 %v40, 4294901760
    %v7446 = vsub.f32 %v40, %v7445
    %v7447 = vand.u32 %v7446, 4294901760
    %v7448 = vsub.f32 %v7446, %v7447
    %v7449 = vand.u32 %v7448, 4294901760
    %7450 = vmatmul.mubr.f32.gmra.mrb[0].mxu0 %v7449
    %v7451 = vpop.f32.mrb[0].mxu0
    %v7452 = vadd.f32 0.0, %v7451
    %v7453 = vpop.f32.mrb[0].mxu0
    %7454 = vmatprep.mubr.f32.mxu0 0.0
    %v7455 = vand.u32 %v41, 4294901760
    %v7456 = vsub.f32 %v41, %v7455
    %v7457 = vand.u32 %v7456, 4294901760
    %v7458 = vsub.f32 %v7456, %v7457
    %v7459 = vand.u32 %v7458, 4294901760
    %7460 = vmatmul.mubr.f32.gmra.mrb[0].mxu0 %v7459
    %v7461 = vpop.f32.mrb[0].mxu0
    %v7462 = vadd.f32 0.0, %v7461
    %v7463 = vpop.f32.mrb[0].mxu0
    %7464 = vdwg.mxu0
    %7465 = vmatprep.subr.mxu0 0.0
    %v7466 = vand.u32 %v7348, 4294901760
    %v7467 = vsub.f32 %v7348, %v7466
    %v7468 = vand.u32 %v7467, 4294901760
    %v7469 = vsub.f32 %v7467, %v7468
    %v7470 = vand.u32 %v7469, 4294901760
    %7471 = vmatpush1.msra.mxu0 %v7470
    %7472 = vmatprep.subr.mxu0 0.0
    %v7473 = vand.u32 %v7349, 4294901760
    %v7474 = vsub.f32 %v7349, %v7473
    %v7475 = vand.u32 %v7474, 4294901760
    %v7476 = vsub.f32 %v7474, %v7475
    %v7477 = vand.u32 %v7476, 4294901760
    %7478 = vmatpush1.msra.mxu0 %v7477
    %7479 = vmatprep.subr.mxu0 0.0
    %v7480 = vand.u32 %v7350, 4294901760
    %v7481 = vsub.f32 %v7350, %v7480
    %v7482 = vand.u32 %v7481, 4294901760
    %v7483 = vsub.f32 %v7481, %v7482
    %v7484 = vand.u32 %v7483, 4294901760
    %7485 = vmatpush1.msra.mxu0 %v7484
    %7486 = vmatprep.subr.mxu0 0.0
    %v7487 = vand.u32 %v7351, 4294901760
    %v7488 = vsub.f32 %v7351, %v7487
    %v7489 = vand.u32 %v7488, 4294901760
    %v7490 = vsub.f32 %v7488, %v7489
    %v7491 = vand.u32 %v7490, 4294901760
    %7492 = vmatpush1.msra.mxu0 %v7491
    %7493 = vmatprep.subr.mxu0 0.0
    %v7494 = vand.u32 %v7352, 4294901760
    %v7495 = vsub.f32 %v7352, %v7494
    %v7496 = vand.u32 %v7495, 4294901760
    %v7497 = vsub.f32 %v7495, %v7496
    %v7498 = vand.u32 %v7497, 4294901760
    %7499 = vmatpush1.msra.mxu0 %v7498
    %7500 = vmatprep.subr.mxu0 0.0
    %v7501 = vand.u32 %v7353, 4294901760
    %v7502 = vsub.f32 %v7353, %v7501
    %v7503 = vand.u32 %v7502, 4294901760
    %v7504 = vsub.f32 %v7502, %v7503
    %v7505 = vand.u32 %v7504, 4294901760
    %7506 = vmatpush1.msra.mxu0 %v7505
    %7507 = vmatprep.subr.mxu0 0.0
    %v7508 = vand.u32 %v7354, 4294901760
    %v7509 = vsub.f32 %v7354, %v7508
    %v7510 = vand.u32 %v7509, 4294901760
    %v7511 = vsub.f32 %v7509, %v7510
    %v7512 = vand.u32 %v7511, 4294901760
    %7513 = vmatpush1.msra.mxu0 %v7512
    %7514 = vmatprep.subr.mxu0 0.0
    %v7515 = vand.u32 %v7355, 4294901760
    %v7516 = vsub.f32 %v7355, %v7515
    %v7517 = vand.u32 %v7516, 4294901760
    %v7518 = vsub.f32 %v7516, %v7517
    %v7519 = vand.u32 %v7518, 4294901760
    %7520 = vmatpush1.msra.mxu0 %v7519
    %7521 = vmatprep.subr.mxu0 0.0
    %v7522 = vand.u32 %v7356, 4294901760
    %v7523 = vsub.f32 %v7356, %v7522
    %v7524 = vand.u32 %v7523, 4294901760
    %v7525 = vsub.f32 %v7523, %v7524
    %v7526 = vand.u32 %v7525, 4294901760
    %7527 = vmatpush1.msra.mxu0 %v7526
    %7528 = vmatprep.subr.mxu0 0.0
    %v7529 = vand.u32 %v7357, 4294901760
    %v7530 = vsub.f32 %v7357, %v7529
    %v7531 = vand.u32 %v7530, 4294901760
    %v7532 = vsub.f32 %v7530, %v7531
    %v7533 = vand.u32 %v7532, 4294901760
    %7534 = vmatpush1.msra.mxu0 %v7533
    %7535 = vmatprep.subr.mxu0 0.0
    %v7536 = vand.u32 %v7358, 4294901760
    %v7537 = vsub.f32 %v7358, %v7536
    %v7538 = vand.u32 %v7537, 4294901760
    %v7539 = vsub.f32 %v7537, %v7538
    %v7540 = vand.u32 %v7539, 4294901760
    %7541 = vmatpush1.msra.mxu0 %v7540
    %7542 = vmatprep.subr.mxu0 0.0
    %v7543 = vand.u32 %v7359, 4294901760
    %v7544 = vsub.f32 %v7359, %v7543
    %v7545 = vand.u32 %v7544, 4294901760
    %v7546 = vsub.f32 %v7544, %v7545
    %v7547 = vand.u32 %v7546, 4294901760
    %7548 = vmatpush1.msra.mxu0 %v7547
    %7549 = vmatprep.subr.mxu0 0.0
    %v7550 = vand.u32 %v7360, 4294901760
    %v7551 = vsub.f32 %v7360, %v7550
    %v7552 = vand.u32 %v7551, 4294901760
    %v7553 = vsub.f32 %v7551, %v7552
    %v7554 = vand.u32 %v7553, 4294901760
    %7555 = vmatpush1.msra.mxu0 %v7554
    %7556 = vmatprep.subr.mxu0 0.0
    %v7557 = vand.u32 %v7361, 4294901760
    %v7558 = vsub.f32 %v7361, %v7557
    %v7559 = vand.u32 %v7558, 4294901760
    %v7560 = vsub.f32 %v7558, %v7559
    %v7561 = vand.u32 %v7560, 4294901760
    %7562 = vmatpush1.msra.mxu0 %v7561
    %7563 = vmatprep.subr.mxu0 0.0
    %v7564 = vand.u32 %v7362, 4294901760
    %v7565 = vsub.f32 %v7362, %v7564
    %v7566 = vand.u32 %v7565, 4294901760
    %v7567 = vsub.f32 %v7565, %v7566
    %v7568 = vand.u32 %v7567, 4294901760
    %7569 = vmatpush1.msra.mxu0 %v7568
    %7570 = vmatprep.subr.mxu0 0.0
    %v7571 = vand.u32 %v7363, 4294901760
    %v7572 = vsub.f32 %v7363, %v7571
    %v7573 = vand.u32 %v7572, 4294901760
    %v7574 = vsub.f32 %v7572, %v7573
    %v7575 = vand.u32 %v7574, 4294901760
    %7576 = vmatpush1.msra.mxu0 %v7575
    %7577 = vmatprep.subr.mxu0 0.0
    %7578 = vmatpush1.msra.mxu0 0.0
    %7579 = vmatprep.subr.mxu0 0.0
    %7580 = vmatpush1.msra.mxu0 0.0
    %7581 = vmatprep.subr.mxu0 0.0
    %7582 = vmatpush1.msra.mxu0 0.0
    %7583 = vmatprep.subr.mxu0 0.0
    %7584 = vmatpush1.msra.mxu0 0.0
    %7585 = vmatprep.subr.mxu0 0.0
    %7586 = vmatpush1.msra.mxu0 0.0
    %7587 = vmatprep.subr.mxu0 0.0
    %7588 = vmatpush1.msra.mxu0 0.0
    %7589 = vmatprep.subr.mxu0 0.0
    %7590 = vmatpush1.msra.mxu0 0.0
    %7591 = vmatprep.subr.mxu0 0.0
    %7592 = vmatpush1.msra.mxu0 0.0
    %7593 = vmatprep.subr.mxu0 0.0
    %7594 = vmatpush1.msra.mxu0 0.0
    %7595 = vmatprep.subr.mxu0 0.0
    %7596 = vmatpush1.msra.mxu0 0.0
    %7597 = vmatprep.subr.mxu0 0.0
    %7598 = vmatpush1.msra.mxu0 0.0
    %7599 = vmatprep.subr.mxu0 0.0
    %7600 = vmatpush1.msra.mxu0 0.0
    %7601 = vmatprep.subr.mxu0 0.0
    %7602 = vmatpush1.msra.mxu0 0.0
    %7603 = vmatprep.subr.mxu0 0.0
    %7604 = vmatpush1.msra.mxu0 0.0
    %7605 = vmatprep.subr.mxu0 0.0
    %7606 = vmatpush1.msra.mxu0 0.0
    %7607 = vmatprep.subr.mxu0 0.0
    %7608 = vmatpush1.msra.mxu0 0.0
    %7609 = vmatprep.mubr.f32.mxu0 0.0
    %v7610 = vand.u32 %v40, 4294901760
    %7611 = vmatmul.mubr.f32.gmra.mrb[0].mxu0 %v7610
    %v7612 = vpop.f32.mrb[0].mxu0
    %v7613 = vadd.f32 %v7452, %v7612
    %v7614 = vpop.f32.mrb[0].mxu0
    %7615 = vmatprep.mubr.f32.mxu0 0.0
    %v7616 = vand.u32 %v41, 4294901760
    %7617 = vmatmul.mubr.f32.gmra.mrb[0].mxu0 %v7616
    %v7618 = vpop.f32.mrb[0].mxu0
    %v7619 = vadd.f32 %v7462, %v7618
    %v7620 = vpop.f32.mrb[0].mxu0
    %7621 = vdwg.mxu0
    %7622 = vmatprep.subr.mxu0 0.0
    %v7623 = vand.u32 %v7348, 4294901760
    %v7624 = vsub.f32 %v7348, %v7623
    %7625 = vmatpush1.msra.mxu0 %v7624
    %7626 = vmatprep.subr.mxu0 0.0
    %v7627 = vand.u32 %v7349, 4294901760
    %v7628 = vsub.f32 %v7349, %v7627
    %7629 = vmatpush1.msra.mxu0 %v7628
    %7630 = vmatprep.subr.mxu0 0.0
    %v7631 = vand.u32 %v7350, 4294901760
    %v7632 = vsub.f32 %v7350, %v7631
    %7633 = vmatpush1.msra.mxu0 %v7632
    %7634 = vmatprep.subr.mxu0 0.0
    %v7635 = vand.u32 %v7351, 4294901760
    %v7636 = vsub.f32 %v7351, %v7635
    %7637 = vmatpush1.msra.mxu0 %v7636
    %7638 = vmatprep.subr.mxu0 0.0
    %v7639 = vand.u32 %v7352, 4294901760
    %v7640 = vsub.f32 %v7352, %v7639
    %7641 = vmatpush1.msra.mxu0 %v7640
    %7642 = vmatprep.subr.mxu0 0.0
    %v7643 = vand.u32 %v7353, 4294901760
    %v7644 = vsub.f32 %v7353, %v7643
    %7645 = vmatpush1.msra.mxu0 %v7644
    %7646 = vmatprep.subr.mxu0 0.0
    %v7647 = vand.u32 %v7354, 4294901760
    %v7648 = vsub.f32 %v7354, %v7647
    %7649 = vmatpush1.msra.mxu0 %v7648
    %7650 = vmatprep.subr.mxu0 0.0
    %v7651 = vand.u32 %v7355, 4294901760
    %v7652 = vsub.f32 %v7355, %v7651
    %7653 = vmatpush1.msra.mxu0 %v7652
    %7654 = vmatprep.subr.mxu0 0.0
    %v7655 = vand.u32 %v7356, 4294901760
    %v7656 = vsub.f32 %v7356, %v7655
    %7657 = vmatpush1.msra.mxu0 %v7656
    %7658 = vmatprep.subr.mxu0 0.0
    %v7659 = vand.u32 %v7357, 4294901760
    %v7660 = vsub.f32 %v7357, %v7659
    %7661 = vmatpush1.msra.mxu0 %v7660
    %7662 = vmatprep.subr.mxu0 0.0
    %v7663 = vand.u32 %v7358, 4294901760
    %v7664 = vsub.f32 %v7358, %v7663
    %7665 = vmatpush1.msra.mxu0 %v7664
    %7666 = vmatprep.subr.mxu0 0.0
    %v7667 = vand.u32 %v7359, 4294901760
    %v7668 = vsub.f32 %v7359, %v7667
    %7669 = vmatpush1.msra.mxu0 %v7668
    %7670 = vmatprep.subr.mxu0 0.0
    %v7671 = vand.u32 %v7360, 4294901760
    %v7672 = vsub.f32 %v7360, %v7671
    %7673 = vmatpush1.msra.mxu0 %v7672
    %7674 = vmatprep.subr.mxu0 0.0
    %v7675 = vand.u32 %v7361, 4294901760
    %v7676 = vsub.f32 %v7361, %v7675
    %7677 = vmatpush1.msra.mxu0 %v7676
    %7678 = vmatprep.subr.mxu0 0.0
    %v7679 = vand.u32 %v7362, 4294901760
    %v7680 = vsub.f32 %v7362, %v7679
    %7681 = vmatpush1.msra.mxu0 %v7680
    %7682 = vmatprep.subr.mxu0 0.0
    %v7683 = vand.u32 %v7363, 4294901760
    %v7684 = vsub.f32 %v7363, %v7683
    %7685 = vmatpush1.msra.mxu0 %v7684
    %7686 = vmatprep.subr.mxu0 0.0
    %7687 = vmatpush1.msra.mxu0 0.0
    %7688 = vmatprep.subr.mxu0 0.0
    %7689 = vmatpush1.msra.mxu0 0.0
    %7690 = vmatprep.subr.mxu0 0.0
    %7691 = vmatpush1.msra.mxu0 0.0
    %7692 = vmatprep.subr.mxu0 0.0
    %7693 = vmatpush1.msra.mxu0 0.0
    %7694 = vmatprep.subr.mxu0 0.0
    %7695 = vmatpush1.msra.mxu0 0.0
    %7696 = vmatprep.subr.mxu0 0.0
    %7697 = vmatpush1.msra.mxu0 0.0
    %7698 = vmatprep.subr.mxu0 0.0
    %7699 = vmatpush1.msra.mxu0 0.0
    %7700 = vmatprep.subr.mxu0 0.0
    %7701 = vmatpush1.msra.mxu0 0.0
    %7702 = vmatprep.subr.mxu0 0.0
    %7703 = vmatpush1.msra.mxu0 0.0
    %7704 = vmatprep.subr.mxu0 0.0
    %7705 = vmatpush1.msra.mxu0 0.0
    %7706 = vmatprep.subr.mxu0 0.0
    %7707 = vmatpush1.msra.mxu0 0.0
    %7708 = vmatprep.subr.mxu0 0.0
    %7709 = vmatpush1.msra.mxu0 0.0
    %7710 = vmatprep.subr.mxu0 0.0
    %7711 = vmatpush1.msra.mxu0 0.0
    %7712 = vmatprep.subr.mxu0 0.0
    %7713 = vmatpush1.msra.mxu0 0.0
    %7714 = vmatprep.subr.mxu0 0.0
    %7715 = vmatpush1.msra.mxu0 0.0
    %7716 = vmatprep.subr.mxu0 0.0
    %7717 = vmatpush1.msra.mxu0 0.0
    %7718 = vmatprep.mubr.f32.mxu0 0.0
    %v7719 = vand.u32 %v40, 4294901760
    %v7720 = vsub.f32 %v40, %v7719
    %7721 = vmatmul.mubr.f32.gmra.mrb[0].mxu0 %v7720
    %v7722 = vpop.f32.mrb[0].mxu0
    %v7723 = vadd.f32 %v7613, %v7722
    %v7724 = vpop.f32.mrb[0].mxu0
    %7725 = vmatprep.mubr.f32.mxu0 0.0
    %v7726 = vand.u32 %v41, 4294901760
    %v7727 = vsub.f32 %v41, %v7726
    %7728 = vmatmul.mubr.f32.gmra.mrb[0].mxu0 %v7727
    %v7729 = vpop.f32.mrb[0].mxu0
    %v7730 = vadd.f32 %v7619, %v7729
    %v7731 = vpop.f32.mrb[0].mxu0
    %7732 = vdwg.mxu0
    %7733 = vmatprep.subr.mxu0 0.0
    %v7734 = vand.u32 %v7348, 4294901760
    %7735 = vmatpush1.msra.mxu0 %v7734
    %7736 = vmatprep.subr.mxu0 0.0
    %v7737 = vand.u32 %v7349, 4294901760
    %7738 = vmatpush1.msra.mxu0 %v7737
    %7739 = vmatprep.subr.mxu0 0.0
    %v7740 = vand.u32 %v7350, 4294901760
    %7741 = vmatpush1.msra.mxu0 %v7740
    %7742 = vmatprep.subr.mxu0 0.0
    %v7743 = vand.u32 %v7351, 4294901760
    %7744 = vmatpush1.msra.mxu0 %v7743
    %7745 = vmatprep.subr.mxu0 0.0
    %v7746 = vand.u32 %v7352, 4294901760
    %7747 = vmatpush1.msra.mxu0 %v7746
    %7748 = vmatprep.subr.mxu0 0.0
    %v7749 = vand.u32 %v7353, 4294901760
    %7750 = vmatpush1.msra.mxu0 %v7749
    %7751 = vmatprep.subr.mxu0 0.0
    %v7752 = vand.u32 %v7354, 4294901760
    %7753 = vmatpush1.msra.mxu0 %v7752
    %7754 = vmatprep.subr.mxu0 0.0
    %v7755 = vand.u32 %v7355, 4294901760
    %7756 = vmatpush1.msra.mxu0 %v7755
    %7757 = vmatprep.subr.mxu0 0.0
    %v7758 = vand.u32 %v7356, 4294901760
    %7759 = vmatpush1.msra.mxu0 %v7758
    %7760 = vmatprep.subr.mxu0 0.0
    %v7761 = vand.u32 %v7357, 4294901760
    %7762 = vmatpush1.msra.mxu0 %v7761
    %7763 = vmatprep.subr.mxu0 0.0
    %v7764 = vand.u32 %v7358, 4294901760
    %7765 = vmatpush1.msra.mxu0 %v7764
    %7766 = vmatprep.subr.mxu0 0.0
    %v7767 = vand.u32 %v7359, 4294901760
    %7768 = vmatpush1.msra.mxu0 %v7767
    %7769 = vmatprep.subr.mxu0 0.0
    %v7770 = vand.u32 %v7360, 4294901760
    %7771 = vmatpush1.msra.mxu0 %v7770
    %7772 = vmatprep.subr.mxu0 0.0
    %v7773 = vand.u32 %v7361, 4294901760
    %7774 = vmatpush1.msra.mxu0 %v7773
    %7775 = vmatprep.subr.mxu0 0.0
    %v7776 = vand.u32 %v7362, 4294901760
    %7777 = vmatpush1.msra.mxu0 %v7776
    %7778 = vmatprep.subr.mxu0 0.0
    %v7779 = vand.u32 %v7363, 4294901760
    %7780 = vmatpush1.msra.mxu0 %v7779
    %7781 = vmatprep.subr.mxu0 0.0
    %7782 = vmatpush1.msra.mxu0 0.0
    %7783 = vmatprep.subr.mxu0 0.0
    %7784 = vmatpush1.msra.mxu0 0.0
    %7785 = vmatprep.subr.mxu0 0.0
    %7786 = vmatpush1.msra.mxu0 0.0
    %7787 = vmatprep.subr.mxu0 0.0
    %7788 = vmatpush1.msra.mxu0 0.0
    %7789 = vmatprep.subr.mxu0 0.0
    %7790 = vmatpush1.msra.mxu0 0.0
    %7791 = vmatprep.subr.mxu0 0.0
    %7792 = vmatpush1.msra.mxu0 0.0
    %7793 = vmatprep.subr.mxu0 0.0
    %7794 = vmatpush1.msra.mxu0 0.0
    %7795 = vmatprep.subr.mxu0 0.0
    %7796 = vmatpush1.msra.mxu0 0.0
    %7797 = vmatprep.subr.mxu0 0.0
    %7798 = vmatpush1.msra.mxu0 0.0
    %7799 = vmatprep.subr.mxu0 0.0
    %7800 = vmatpush1.msra.mxu0 0.0
    %7801 = vmatprep.subr.mxu0 0.0
    %7802 = vmatpush1.msra.mxu0 0.0
    %7803 = vmatprep.subr.mxu0 0.0
    %7804 = vmatpush1.msra.mxu0 0.0
    %7805 = vmatprep.subr.mxu0 0.0
    %7806 = vmatpush1.msra.mxu0 0.0
    %7807 = vmatprep.subr.mxu0 0.0
    %7808 = vmatpush1.msra.mxu0 0.0
    %7809 = vmatprep.subr.mxu0 0.0
    %7810 = vmatpush1.msra.mxu0 0.0
    %7811 = vmatprep.subr.mxu0 0.0
    %7812 = vmatpush1.msra.mxu0 0.0
    %7813 = vmatprep.mubr.f32.mxu0 0.0
    %v7814 = vand.u32 %v40, 4294901760
    %v7815 = vsub.f32 %v40, %v7814
    %v7816 = vand.u32 %v7815, 4294901760
    %7817 = vmatmul.mubr.f32.gmra.mrb[0].mxu0 %v7816
    %v7818 = vpop.f32.mrb[0].mxu0
    %v7819 = vadd.f32 %v7723, %v7818
    %v7820 = vpop.f32.mrb[0].mxu0
    %7821 = vmatprep.mubr.f32.mxu0 0.0
    %v7822 = vand.u32 %v41, 4294901760
    %v7823 = vsub.f32 %v41, %v7822
    %v7824 = vand.u32 %v7823, 4294901760
    %7825 = vmatmul.mubr.f32.gmra.mrb[0].mxu0 %v7824
    %v7826 = vpop.f32.mrb[0].mxu0
    %v7827 = vadd.f32 %v7730, %v7826
    %v7828 = vpop.f32.mrb[0].mxu0
    %7829 = vdwg.mxu0
    %7830 = vmatprep.subr.mxu0 0.0
    %v7831 = vand.u32 %v7348, 4294901760
    %v7832 = vsub.f32 %v7348, %v7831
    %v7833 = vand.u32 %v7832, 4294901760
    %7834 = vmatpush1.msra.mxu0 %v7833
    %7835 = vmatprep.subr.mxu0 0.0
    %v7836 = vand.u32 %v7349, 4294901760
    %v7837 = vsub.f32 %v7349, %v7836
    %v7838 = vand.u32 %v7837, 4294901760
    %7839 = vmatpush1.msra.mxu0 %v7838
    %7840 = vmatprep.subr.mxu0 0.0
    %v7841 = vand.u32 %v7350, 4294901760
    %v7842 = vsub.f32 %v7350, %v7841
    %v7843 = vand.u32 %v7842, 4294901760
    %7844 = vmatpush1.msra.mxu0 %v7843
    %7845 = vmatprep.subr.mxu0 0.0
    %v7846 = vand.u32 %v7351, 4294901760
    %v7847 = vsub.f32 %v7351, %v7846
    %v7848 = vand.u32 %v7847, 4294901760
    %7849 = vmatpush1.msra.mxu0 %v7848
    %7850 = vmatprep.subr.mxu0 0.0
    %v7851 = vand.u32 %v7352, 4294901760
    %v7852 = vsub.f32 %v7352, %v7851
    %v7853 = vand.u32 %v7852, 4294901760
    %7854 = vmatpush1.msra.mxu0 %v7853
    %7855 = vmatprep.subr.mxu0 0.0
    %v7856 = vand.u32 %v7353, 4294901760
    %v7857 = vsub.f32 %v7353, %v7856
    %v7858 = vand.u32 %v7857, 4294901760
    %7859 = vmatpush1.msra.mxu0 %v7858
    %7860 = vmatprep.subr.mxu0 0.0
    %v7861 = vand.u32 %v7354, 4294901760
    %v7862 = vsub.f32 %v7354, %v7861
    %v7863 = vand.u32 %v7862, 4294901760
    %7864 = vmatpush1.msra.mxu0 %v7863
    %7865 = vmatprep.subr.mxu0 0.0
    %v7866 = vand.u32 %v7355, 4294901760
    %v7867 = vsub.f32 %v7355, %v7866
    %v7868 = vand.u32 %v7867, 4294901760
    %7869 = vmatpush1.msra.mxu0 %v7868
    %7870 = vmatprep.subr.mxu0 0.0
    %v7871 = vand.u32 %v7356, 4294901760
    %v7872 = vsub.f32 %v7356, %v7871
    %v7873 = vand.u32 %v7872, 4294901760
    %7874 = vmatpush1.msra.mxu0 %v7873
    %7875 = vmatprep.subr.mxu0 0.0
    %v7876 = vand.u32 %v7357, 4294901760
    %v7877 = vsub.f32 %v7357, %v7876
    %v7878 = vand.u32 %v7877, 4294901760
    %7879 = vmatpush1.msra.mxu0 %v7878
    %7880 = vmatprep.subr.mxu0 0.0
    %v7881 = vand.u32 %v7358, 4294901760
    %v7882 = vsub.f32 %v7358, %v7881
    %v7883 = vand.u32 %v7882, 4294901760
    %7884 = vmatpush1.msra.mxu0 %v7883
    %7885 = vmatprep.subr.mxu0 0.0
    %v7886 = vand.u32 %v7359, 4294901760
    %v7887 = vsub.f32 %v7359, %v7886
    %v7888 = vand.u32 %v7887, 4294901760
    %7889 = vmatpush1.msra.mxu0 %v7888
    %7890 = vmatprep.subr.mxu0 0.0
    %v7891 = vand.u32 %v7360, 4294901760
    %v7892 = vsub.f32 %v7360, %v7891
    %v7893 = vand.u32 %v7892, 4294901760
    %7894 = vmatpush1.msra.mxu0 %v7893
    %7895 = vmatprep.subr.mxu0 0.0
    %v7896 = vand.u32 %v7361, 4294901760
    %v7897 = vsub.f32 %v7361, %v7896
    %v7898 = vand.u32 %v7897, 4294901760
    %7899 = vmatpush1.msra.mxu0 %v7898
    %7900 = vmatprep.subr.mxu0 0.0
    %v7901 = vand.u32 %v7362, 4294901760
    %v7902 = vsub.f32 %v7362, %v7901
    %v7903 = vand.u32 %v7902, 4294901760
    %7904 = vmatpush1.msra.mxu0 %v7903
    %7905 = vmatprep.subr.mxu0 0.0
    %v7906 = vand.u32 %v7363, 4294901760
    %v7907 = vsub.f32 %v7363, %v7906
    %v7908 = vand.u32 %v7907, 4294901760
    %7909 = vmatpush1.msra.mxu0 %v7908
    %7910 = vmatprep.subr.mxu0 0.0
    %7911 = vmatpush1.msra.mxu0 0.0
    %7912 = vmatprep.subr.mxu0 0.0
    %7913 = vmatpush1.msra.mxu0 0.0
    %7914 = vmatprep.subr.mxu0 0.0
    %7915 = vmatpush1.msra.mxu0 0.0
    %7916 = vmatprep.subr.mxu0 0.0
    %7917 = vmatpush1.msra.mxu0 0.0
    %7918 = vmatprep.subr.mxu0 0.0
    %7919 = vmatpush1.msra.mxu0 0.0
    %7920 = vmatprep.subr.mxu0 0.0
    %7921 = vmatpush1.msra.mxu0 0.0
    %7922 = vmatprep.subr.mxu0 0.0
    %7923 = vmatpush1.msra.mxu0 0.0
    %7924 = vmatprep.subr.mxu0 0.0
    %7925 = vmatpush1.msra.mxu0 0.0
    %7926 = vmatprep.subr.mxu0 0.0
    %7927 = vmatpush1.msra.mxu0 0.0
    %7928 = vmatprep.subr.mxu0 0.0
    %7929 = vmatpush1.msra.mxu0 0.0
    %7930 = vmatprep.subr.mxu0 0.0
    %7931 = vmatpush1.msra.mxu0 0.0
    %7932 = vmatprep.subr.mxu0 0.0
    %7933 = vmatpush1.msra.mxu0 0.0
    %7934 = vmatprep.subr.mxu0 0.0
    %7935 = vmatpush1.msra.mxu0 0.0
    %7936 = vmatprep.subr.mxu0 0.0
    %7937 = vmatpush1.msra.mxu0 0.0
    %7938 = vmatprep.subr.mxu0 0.0
    %7939 = vmatpush1.msra.mxu0 0.0
    %7940 = vmatprep.subr.mxu0 0.0
    %7941 = vmatpush1.msra.mxu0 0.0
    %7942 = vmatprep.mubr.f32.mxu0 0.0
    %v7943 = vand.u32 %v40, 4294901760
    %7944 = vmatmul.mubr.f32.gmra.mrb[0].mxu0 %v7943
    %v7945 = vpop.f32.mrb[0].mxu0
    %v7946 = vadd.f32 %v7819, %v7945
    %v7947 = vpop.f32.mrb[0].mxu0
    %7948 = vmatprep.mubr.f32.mxu0 0.0
    %v7949 = vand.u32 %v41, 4294901760
    %7950 = vmatmul.mubr.f32.gmra.mrb[0].mxu0 %v7949
    %v7951 = vpop.f32.mrb[0].mxu0
    %v7952 = vadd.f32 %v7827, %v7951
    %v7953 = vpop.f32.mrb[0].mxu0
    %7954 = vdwg.mxu0
    %7955 = vmatprep.subr.mxu0 0.0
    %v7956 = vand.u32 %v7348, 4294901760
    %7957 = vmatpush1.msra.mxu0 %v7956
    %7958 = vmatprep.subr.mxu0 0.0
    %v7959 = vand.u32 %v7349, 4294901760
    %7960 = vmatpush1.msra.mxu0 %v7959
    %7961 = vmatprep.subr.mxu0 0.0
    %v7962 = vand.u32 %v7350, 4294901760
    %7963 = vmatpush1.msra.mxu0 %v7962
    %7964 = vmatprep.subr.mxu0 0.0
    %v7965 = vand.u32 %v7351, 4294901760
    %7966 = vmatpush1.msra.mxu0 %v7965
    %7967 = vmatprep.subr.mxu0 0.0
    %v7968 = vand.u32 %v7352, 4294901760
    %7969 = vmatpush1.msra.mxu0 %v7968
    %7970 = vmatprep.subr.mxu0 0.0
    %v7971 = vand.u32 %v7353, 4294901760
    %7972 = vmatpush1.msra.mxu0 %v7971
    %7973 = vmatprep.subr.mxu0 0.0
    %v7974 = vand.u32 %v7354, 4294901760
    %7975 = vmatpush1.msra.mxu0 %v7974
    %7976 = vmatprep.subr.mxu0 0.0
    %v7977 = vand.u32 %v7355, 4294901760
    %7978 = vmatpush1.msra.mxu0 %v7977
    %7979 = vmatprep.subr.mxu0 0.0
    %v7980 = vand.u32 %v7356, 4294901760
    %7981 = vmatpush1.msra.mxu0 %v7980
    %7982 = vmatprep.subr.mxu0 0.0
    %v7983 = vand.u32 %v7357, 4294901760
    %7984 = vmatpush1.msra.mxu0 %v7983
    %7985 = vmatprep.subr.mxu0 0.0
    %v7986 = vand.u32 %v7358, 4294901760
    %7987 = vmatpush1.msra.mxu0 %v7986
    %7988 = vmatprep.subr.mxu0 0.0
    %v7989 = vand.u32 %v7359, 4294901760
    %7990 = vmatpush1.msra.mxu0 %v7989
    %7991 = vmatprep.subr.mxu0 0.0
    %v7992 = vand.u32 %v7360, 4294901760
    %7993 = vmatpush1.msra.mxu0 %v7992
    %7994 = vmatprep.subr.mxu0 0.0
    %v7995 = vand.u32 %v7361, 4294901760
    %7996 = vmatpush1.msra.mxu0 %v7995
    %7997 = vmatprep.subr.mxu0 0.0
    %v7998 = vand.u32 %v7362, 4294901760
    %7999 = vmatpush1.msra.mxu0 %v7998
    %8000 = vmatprep.subr.mxu0 0.0
    %v8001 = vand.u32 %v7363, 4294901760
    %8002 = vmatpush1.msra.mxu0 %v8001
    %8003 = vmatprep.subr.mxu0 0.0
    %8004 = vmatpush1.msra.mxu0 0.0
    %8005 = vmatprep.subr.mxu0 0.0
    %8006 = vmatpush1.msra.mxu0 0.0
    %8007 = vmatprep.subr.mxu0 0.0
    %8008 = vmatpush1.msra.mxu0 0.0
    %8009 = vmatprep.subr.mxu0 0.0
    %8010 = vmatpush1.msra.mxu0 0.0
    %8011 = vmatprep.subr.mxu0 0.0
    %8012 = vmatpush1.msra.mxu0 0.0
    %8013 = vmatprep.subr.mxu0 0.0
    %8014 = vmatpush1.msra.mxu0 0.0
    %8015 = vmatprep.subr.mxu0 0.0
    %8016 = vmatpush1.msra.mxu0 0.0
    %8017 = vmatprep.subr.mxu0 0.0
    %8018 = vmatpush1.msra.mxu0 0.0
    %8019 = vmatprep.subr.mxu0 0.0
    %8020 = vmatpush1.msra.mxu0 0.0
    %8021 = vmatprep.subr.mxu0 0.0
    %8022 = vmatpush1.msra.mxu0 0.0
    %8023 = vmatprep.subr.mxu0 0.0
    %8024 = vmatpush1.msra.mxu0 0.0
    %8025 = vmatprep.subr.mxu0 0.0
    %8026 = vmatpush1.msra.mxu0 0.0
    %8027 = vmatprep.subr.mxu0 0.0
    %8028 = vmatpush1.msra.mxu0 0.0
    %8029 = vmatprep.subr.mxu0 0.0
    %8030 = vmatpush1.msra.mxu0 0.0
    %8031 = vmatprep.subr.mxu0 0.0
    %8032 = vmatpush1.msra.mxu0 0.0
    %8033 = vmatprep.subr.mxu0 0.0
    %8034 = vmatpush1.msra.mxu0 0.0
    %8035 = vmatprep.mubr.f32.mxu0 0.0
    %v8036 = vand.u32 %v40, 4294901760
    %8037 = vmatmul.mubr.f32.gmra.mrb[0].mxu0 %v8036
    %v8038 = vpop.f32.mrb[0].mxu0
    %v8039 = vadd.f32 %v7946, %v8038
    %v8040 = vpop.f32.mrb[0].mxu0
    %8041 = vmatprep.mubr.f32.mxu0 0.0
    %v8042 = vand.u32 %v41, 4294901760
    %8043 = vmatmul.mubr.f32.gmra.mrb[0].mxu0 %v8042
    %v8044 = vpop.f32.mrb[0].mxu0
    %v8045 = vadd.f32 %v7952, %v8044
    %v8046 = vpop.f32.mrb[0].mxu0
    %8047 = vdwg.mxu0
    %s8048 = scalar_lea.vmem [#allocation5], 1408
    %v8049 = vld [vmem:[%s8048] sm:$0xff]
    %v8050 = vld [vmem:[%s8048 + $0x8] sm:$0xff]
    %v8051 = vld [vmem:[%s8048 + $0x10] sm:$0xff]
    %v8052 = vld [vmem:[%s8048 + $0x18] sm:$0xff]
    %v8053 = vld [vmem:[%s8048 + $0x20] sm:$0xff]
    %v8054 = vld [vmem:[%s8048 + $0x28] sm:$0xff]
    %v8055 = vld [vmem:[%s8048 + $0x30] sm:$0xff]
    %v8056 = vld [vmem:[%s8048 + $0x38] sm:$0xff]
    %v8057 = vld [vmem:[%s8048 + $0x40] sm:$0xff]
    %v8058 = vld [vmem:[%s8048 + $0x48] sm:$0xff]
    %v8059 = vld [vmem:[%s8048 + $0x50] sm:$0xff]
    %v8060 = vld [vmem:[%s8048 + $0x58] sm:$0xff]
    %v8061 = vld [vmem:[%s8048 + $0x60] sm:$0xff]
    %v8062 = vld [vmem:[%s8048 + $0x68] sm:$0xff]
    %v8063 = vld [vmem:[%s8048 + $0x70] sm:$0xff]
    %v8064 = vld [vmem:[%s8048 + $0x78] sm:$0xff]
    %8065 = vmatprep.subr.mxu0 0.0
    %v8066 = vand.u32 %v8049, 4294901760
    %8067 = vmatpush1.msra.mxu0 %v8066
    %8068 = vmatprep.subr.mxu0 0.0
    %v8069 = vand.u32 %v8050, 4294901760
    %8070 = vmatpush1.msra.mxu0 %v8069
    %8071 = vmatprep.subr.mxu0 0.0
    %v8072 = vand.u32 %v8051, 4294901760
    %8073 = vmatpush1.msra.mxu0 %v8072
    %8074 = vmatprep.subr.mxu0 0.0
    %v8075 = vand.u32 %v8052, 4294901760
    %8076 = vmatpush1.msra.mxu0 %v8075
    %8077 = vmatprep.subr.mxu0 0.0
    %v8078 = vand.u32 %v8053, 4294901760
    %8079 = vmatpush1.msra.mxu0 %v8078
    %8080 = vmatprep.subr.mxu0 0.0
    %v8081 = vand.u32 %v8054, 4294901760
    %8082 = vmatpush1.msra.mxu0 %v8081
    %8083 = vmatprep.subr.mxu0 0.0
    %v8084 = vand.u32 %v8055, 4294901760
    %8085 = vmatpush1.msra.mxu0 %v8084
    %8086 = vmatprep.subr.mxu0 0.0
    %v8087 = vand.u32 %v8056, 4294901760
    %8088 = vmatpush1.msra.mxu0 %v8087
    %8089 = vmatprep.subr.mxu0 0.0
    %v8090 = vand.u32 %v8057, 4294901760
    %8091 = vmatpush1.msra.mxu0 %v8090
    %8092 = vmatprep.subr.mxu0 0.0
    %v8093 = vand.u32 %v8058, 4294901760
    %8094 = vmatpush1.msra.mxu0 %v8093
    %8095 = vmatprep.subr.mxu0 0.0
    %v8096 = vand.u32 %v8059, 4294901760
    %8097 = vmatpush1.msra.mxu0 %v8096
    %8098 = vmatprep.subr.mxu0 0.0
    %v8099 = vand.u32 %v8060, 4294901760
    %8100 = vmatpush1.msra.mxu0 %v8099
    %8101 = vmatprep.subr.mxu0 0.0
    %v8102 = vand.u32 %v8061, 4294901760
    %8103 = vmatpush1.msra.mxu0 %v8102
    %8104 = vmatprep.subr.mxu0 0.0
    %v8105 = vand.u32 %v8062, 4294901760
    %8106 = vmatpush1.msra.mxu0 %v8105
    %8107 = vmatprep.subr.mxu0 0.0
    %v8108 = vand.u32 %v8063, 4294901760
    %8109 = vmatpush1.msra.mxu0 %v8108
    %8110 = vmatprep.subr.mxu0 0.0
    %v8111 = vand.u32 %v8064, 4294901760
    %8112 = vmatpush1.msra.mxu0 %v8111
    %8113 = vmatprep.subr.mxu0 0.0
    %8114 = vmatpush1.msra.mxu0 0.0
    %8115 = vmatprep.subr.mxu0 0.0
    %8116 = vmatpush1.msra.mxu0 0.0
    %8117 = vmatprep.subr.mxu0 0.0
    %8118 = vmatpush1.msra.mxu0 0.0
    %8119 = vmatprep.subr.mxu0 0.0
    %8120 = vmatpush1.msra.mxu0 0.0
    %8121 = vmatprep.subr.mxu0 0.0
    %8122 = vmatpush1.msra.mxu0 0.0
    %8123 = vmatprep.subr.mxu0 0.0
    %8124 = vmatpush1.msra.mxu0 0.0
    %8125 = vmatprep.subr.mxu0 0.0
    %8126 = vmatpush1.msra.mxu0 0.0
    %8127 = vmatprep.subr.mxu0 0.0
    %8128 = vmatpush1.msra.mxu0 0.0
    %8129 = vmatprep.subr.mxu0 0.0
    %8130 = vmatpush1.msra.mxu0 0.0
    %8131 = vmatprep.subr.mxu0 0.0
    %8132 = vmatpush1.msra.mxu0 0.0
    %8133 = vmatprep.subr.mxu0 0.0
    %8134 = vmatpush1.msra.mxu0 0.0
    %8135 = vmatprep.subr.mxu0 0.0
    %8136 = vmatpush1.msra.mxu0 0.0
    %8137 = vmatprep.subr.mxu0 0.0
    %8138 = vmatpush1.msra.mxu0 0.0
    %8139 = vmatprep.subr.mxu0 0.0
    %8140 = vmatpush1.msra.mxu0 0.0
    %8141 = vmatprep.subr.mxu0 0.0
    %8142 = vmatpush1.msra.mxu0 0.0
    %8143 = vmatprep.subr.mxu0 0.0
    %8144 = vmatpush1.msra.mxu0 0.0
    %8145 = vmatprep.mubr.f32.mxu0 0.0
    %v8146 = vand.u32 %v40, 4294901760
    %v8147 = vsub.f32 %v40, %v8146
    %v8148 = vand.u32 %v8147, 4294901760
    %v8149 = vsub.f32 %v8147, %v8148
    %v8150 = vand.u32 %v8149, 4294901760
    %8151 = vmatmul.mubr.f32.gmra.mrb[0].mxu0 %v8150
    %v8152 = vpop.f32.mrb[0].mxu0
    %v8153 = vadd.f32 0.0, %v8152
    %v8154 = vpop.f32.mrb[0].mxu0
    %8155 = vmatprep.mubr.f32.mxu0 0.0
    %v8156 = vand.u32 %v41, 4294901760
    %v8157 = vsub.f32 %v41, %v8156
    %v8158 = vand.u32 %v8157, 4294901760
    %v8159 = vsub.f32 %v8157, %v8158
    %v8160 = vand.u32 %v8159, 4294901760
    %8161 = vmatmul.mubr.f32.gmra.mrb[0].mxu0 %v8160
    %v8162 = vpop.f32.mrb[0].mxu0
    %v8163 = vadd.f32 0.0, %v8162
    %v8164 = vpop.f32.mrb[0].mxu0
    %8165 = vdwg.mxu0
    %8166 = vmatprep.subr.mxu0 0.0
    %v8167 = vand.u32 %v8049, 4294901760
    %v8168 = vsub.f32 %v8049, %v8167
    %v8169 = vand.u32 %v8168, 4294901760
    %v8170 = vsub.f32 %v8168, %v8169
    %v8171 = vand.u32 %v8170, 4294901760
    %8172 = vmatpush1.msra.mxu0 %v8171
    %8173 = vmatprep.subr.mxu0 0.0
    %v8174 = vand.u32 %v8050, 4294901760
    %v8175 = vsub.f32 %v8050, %v8174
    %v8176 = vand.u32 %v8175, 4294901760
    %v8177 = vsub.f32 %v8175, %v8176
    %v8178 = vand.u32 %v8177, 4294901760
    %8179 = vmatpush1.msra.mxu0 %v8178
    %8180 = vmatprep.subr.mxu0 0.0
    %v8181 = vand.u32 %v8051, 4294901760
    %v8182 = vsub.f32 %v8051, %v8181
    %v8183 = vand.u32 %v8182, 4294901760
    %v8184 = vsub.f32 %v8182, %v8183
    %v8185 = vand.u32 %v8184, 4294901760
    %8186 = vmatpush1.msra.mxu0 %v8185
    %8187 = vmatprep.subr.mxu0 0.0
    %v8188 = vand.u32 %v8052, 4294901760
    %v8189 = vsub.f32 %v8052, %v8188
    %v8190 = vand.u32 %v8189, 4294901760
    %v8191 = vsub.f32 %v8189, %v8190
    %v8192 = vand.u32 %v8191, 4294901760
    %8193 = vmatpush1.msra.mxu0 %v8192
    %8194 = vmatprep.subr.mxu0 0.0
    %v8195 = vand.u32 %v8053, 4294901760
    %v8196 = vsub.f32 %v8053, %v8195
    %v8197 = vand.u32 %v8196, 4294901760
    %v8198 = vsub.f32 %v8196, %v8197
    %v8199 = vand.u32 %v8198, 4294901760
    %8200 = vmatpush1.msra.mxu0 %v8199
    %8201 = vmatprep.subr.mxu0 0.0
    %v8202 = vand.u32 %v8054, 4294901760
    %v8203 = vsub.f32 %v8054, %v8202
    %v8204 = vand.u32 %v8203, 4294901760
    %v8205 = vsub.f32 %v8203, %v8204
    %v8206 = vand.u32 %v8205, 4294901760
    %8207 = vmatpush1.msra.mxu0 %v8206
    %8208 = vmatprep.subr.mxu0 0.0
    %v8209 = vand.u32 %v8055, 4294901760
    %v8210 = vsub.f32 %v8055, %v8209
    %v8211 = vand.u32 %v8210, 4294901760
    %v8212 = vsub.f32 %v8210, %v8211
    %v8213 = vand.u32 %v8212, 4294901760
    %8214 = vmatpush1.msra.mxu0 %v8213
    %8215 = vmatprep.subr.mxu0 0.0
    %v8216 = vand.u32 %v8056, 4294901760
    %v8217 = vsub.f32 %v8056, %v8216
    %v8218 = vand.u32 %v8217, 4294901760
    %v8219 = vsub.f32 %v8217, %v8218
    %v8220 = vand.u32 %v8219, 4294901760
    %8221 = vmatpush1.msra.mxu0 %v8220
    %8222 = vmatprep.subr.mxu0 0.0
    %v8223 = vand.u32 %v8057, 4294901760
    %v8224 = vsub.f32 %v8057, %v8223
    %v8225 = vand.u32 %v8224, 4294901760
    %v8226 = vsub.f32 %v8224, %v8225
    %v8227 = vand.u32 %v8226, 4294901760
    %8228 = vmatpush1.msra.mxu0 %v8227
    %8229 = vmatprep.subr.mxu0 0.0
    %v8230 = vand.u32 %v8058, 4294901760
    %v8231 = vsub.f32 %v8058, %v8230
    %v8232 = vand.u32 %v8231, 4294901760
    %v8233 = vsub.f32 %v8231, %v8232
    %v8234 = vand.u32 %v8233, 4294901760
    %8235 = vmatpush1.msra.mxu0 %v8234
    %8236 = vmatprep.subr.mxu0 0.0
    %v8237 = vand.u32 %v8059, 4294901760
    %v8238 = vsub.f32 %v8059, %v8237
    %v8239 = vand.u32 %v8238, 4294901760
    %v8240 = vsub.f32 %v8238, %v8239
    %v8241 = vand.u32 %v8240, 4294901760
    %8242 = vmatpush1.msra.mxu0 %v8241
    %8243 = vmatprep.subr.mxu0 0.0
    %v8244 = vand.u32 %v8060, 4294901760
    %v8245 = vsub.f32 %v8060, %v8244
    %v8246 = vand.u32 %v8245, 4294901760
    %v8247 = vsub.f32 %v8245, %v8246
    %v8248 = vand.u32 %v8247, 4294901760
    %8249 = vmatpush1.msra.mxu0 %v8248
    %8250 = vmatprep.subr.mxu0 0.0
    %v8251 = vand.u32 %v8061, 4294901760
    %v8252 = vsub.f32 %v8061, %v8251
    %v8253 = vand.u32 %v8252, 4294901760
    %v8254 = vsub.f32 %v8252, %v8253
    %v8255 = vand.u32 %v8254, 4294901760
    %8256 = vmatpush1.msra.mxu0 %v8255
    %8257 = vmatprep.subr.mxu0 0.0
    %v8258 = vand.u32 %v8062, 4294901760
    %v8259 = vsub.f32 %v8062, %v8258
    %v8260 = vand.u32 %v8259, 4294901760
    %v8261 = vsub.f32 %v8259, %v8260
    %v8262 = vand.u32 %v8261, 4294901760
    %8263 = vmatpush1.msra.mxu0 %v8262
    %8264 = vmatprep.subr.mxu0 0.0
    %v8265 = vand.u32 %v8063, 4294901760
    %v8266 = vsub.f32 %v8063, %v8265
    %v8267 = vand.u32 %v8266, 4294901760
    %v8268 = vsub.f32 %v8266, %v8267
    %v8269 = vand.u32 %v8268, 4294901760
    %8270 = vmatpush1.msra.mxu0 %v8269
    %8271 = vmatprep.subr.mxu0 0.0
    %v8272 = vand.u32 %v8064, 4294901760
    %v8273 = vsub.f32 %v8064, %v8272
    %v8274 = vand.u32 %v8273, 4294901760
    %v8275 = vsub.f32 %v8273, %v8274
    %v8276 = vand.u32 %v8275, 4294901760
    %8277 = vmatpush1.msra.mxu0 %v8276
    %8278 = vmatprep.subr.mxu0 0.0
    %8279 = vmatpush1.msra.mxu0 0.0
    %8280 = vmatprep.subr.mxu0 0.0
    %8281 = vmatpush1.msra.mxu0 0.0
    %8282 = vmatprep.subr.mxu0 0.0
    %8283 = vmatpush1.msra.mxu0 0.0
    %8284 = vmatprep.subr.mxu0 0.0
    %8285 = vmatpush1.msra.mxu0 0.0
    %8286 = vmatprep.subr.mxu0 0.0
    %8287 = vmatpush1.msra.mxu0 0.0
    %8288 = vmatprep.subr.mxu0 0.0
    %8289 = vmatpush1.msra.mxu0 0.0
    %8290 = vmatprep.subr.mxu0 0.0
    %8291 = vmatpush1.msra.mxu0 0.0
    %8292 = vmatprep.subr.mxu0 0.0
    %8293 = vmatpush1.msra.mxu0 0.0
    %8294 = vmatprep.subr.mxu0 0.0
    %8295 = vmatpush1.msra.mxu0 0.0
    %8296 = vmatprep.subr.mxu0 0.0
    %8297 = vmatpush1.msra.mxu0 0.0
    %8298 = vmatprep.subr.mxu0 0.0
    %8299 = vmatpush1.msra.mxu0 0.0
    %8300 = vmatprep.subr.mxu0 0.0
    %8301 = vmatpush1.msra.mxu0 0.0
    %8302 = vmatprep.subr.mxu0 0.0
    %8303 = vmatpush1.msra.mxu0 0.0
    %8304 = vmatprep.subr.mxu0 0.0
    %8305 = vmatpush1.msra.mxu0 0.0
    %8306 = vmatprep.subr.mxu0 0.0
    %8307 = vmatpush1.msra.mxu0 0.0
    %8308 = vmatprep.subr.mxu0 0.0
    %8309 = vmatpush1.msra.mxu0 0.0
    %8310 = vmatprep.mubr.f32.mxu0 0.0
    %v8311 = vand.u32 %v40, 4294901760
    %8312 = vmatmul.mubr.f32.gmra.mrb[0].mxu0 %v8311
    %v8313 = vpop.f32.mrb[0].mxu0
    %v8314 = vadd.f32 %v8153, %v8313
    %v8315 = vpop.f32.mrb[0].mxu0
    %8316 = vmatprep.mubr.f32.mxu0 0.0
    %v8317 = vand.u32 %v41, 4294901760
    %8318 = vmatmul.mubr.f32.gmra.mrb[0].mxu0 %v8317
    %v8319 = vpop.f32.mrb[0].mxu0
    %v8320 = vadd.f32 %v8163, %v8319
    %v8321 = vpop.f32.mrb[0].mxu0
    %8322 = vdwg.mxu0
    %8323 = vmatprep.subr.mxu0 0.0
    %v8324 = vand.u32 %v8049, 4294901760
    %v8325 = vsub.f32 %v8049, %v8324
    %8326 = vmatpush1.msra.mxu0 %v8325
    %8327 = vmatprep.subr.mxu0 0.0
    %v8328 = vand.u32 %v8050, 4294901760
    %v8329 = vsub.f32 %v8050, %v8328
    %8330 = vmatpush1.msra.mxu0 %v8329
    %8331 = vmatprep.subr.mxu0 0.0
    %v8332 = vand.u32 %v8051, 4294901760
    %v8333 = vsub.f32 %v8051, %v8332
    %8334 = vmatpush1.msra.mxu0 %v8333
    %8335 = vmatprep.subr.mxu0 0.0
    %v8336 = vand.u32 %v8052, 4294901760
    %v8337 = vsub.f32 %v8052, %v8336
    %8338 = vmatpush1.msra.mxu0 %v8337
    %8339 = vmatprep.subr.mxu0 0.0
    %v8340 = vand.u32 %v8053, 4294901760
    %v8341 = vsub.f32 %v8053, %v8340
    %8342 = vmatpush1.msra.mxu0 %v8341
    %8343 = vmatprep.subr.mxu0 0.0
    %v8344 = vand.u32 %v8054, 4294901760
    %v8345 = vsub.f32 %v8054, %v8344
    %8346 = vmatpush1.msra.mxu0 %v8345
    %8347 = vmatprep.subr.mxu0 0.0
    %v8348 = vand.u32 %v8055, 4294901760
    %v8349 = vsub.f32 %v8055, %v8348
    %8350 = vmatpush1.msra.mxu0 %v8349
    %8351 = vmatprep.subr.mxu0 0.0
    %v8352 = vand.u32 %v8056, 4294901760
    %v8353 = vsub.f32 %v8056, %v8352
    %8354 = vmatpush1.msra.mxu0 %v8353
    %8355 = vmatprep.subr.mxu0 0.0
    %v8356 = vand.u32 %v8057, 4294901760
    %v8357 = vsub.f32 %v8057, %v8356
    %8358 = vmatpush1.msra.mxu0 %v8357
    %8359 = vmatprep.subr.mxu0 0.0
    %v8360 = vand.u32 %v8058, 4294901760
    %v8361 = vsub.f32 %v8058, %v8360
    %8362 = vmatpush1.msra.mxu0 %v8361
    %8363 = vmatprep.subr.mxu0 0.0
    %v8364 = vand.u32 %v8059, 4294901760
    %v8365 = vsub.f32 %v8059, %v8364
    %8366 = vmatpush1.msra.mxu0 %v8365
    %8367 = vmatprep.subr.mxu0 0.0
    %v8368 = vand.u32 %v8060, 4294901760
    %v8369 = vsub.f32 %v8060, %v8368
    %8370 = vmatpush1.msra.mxu0 %v8369
    %8371 = vmatprep.subr.mxu0 0.0
    %v8372 = vand.u32 %v8061, 4294901760
    %v8373 = vsub.f32 %v8061, %v8372
    %8374 = vmatpush1.msra.mxu0 %v8373
    %8375 = vmatprep.subr.mxu0 0.0
    %v8376 = vand.u32 %v8062, 4294901760
    %v8377 = vsub.f32 %v8062, %v8376
    %8378 = vmatpush1.msra.mxu0 %v8377
    %8379 = vmatprep.subr.mxu0 0.0
    %v8380 = vand.u32 %v8063, 4294901760
    %v8381 = vsub.f32 %v8063, %v8380
    %8382 = vmatpush1.msra.mxu0 %v8381
    %8383 = vmatprep.subr.mxu0 0.0
    %v8384 = vand.u32 %v8064, 4294901760
    %v8385 = vsub.f32 %v8064, %v8384
    %8386 = vmatpush1.msra.mxu0 %v8385
    %8387 = vmatprep.subr.mxu0 0.0
    %8388 = vmatpush1.msra.mxu0 0.0
    %8389 = vmatprep.subr.mxu0 0.0
    %8390 = vmatpush1.msra.mxu0 0.0
    %8391 = vmatprep.subr.mxu0 0.0
    %8392 = vmatpush1.msra.mxu0 0.0
    %8393 = vmatprep.subr.mxu0 0.0
    %8394 = vmatpush1.msra.mxu0 0.0
    %8395 = vmatprep.subr.mxu0 0.0
    %8396 = vmatpush1.msra.mxu0 0.0
    %8397 = vmatprep.subr.mxu0 0.0
    %8398 = vmatpush1.msra.mxu0 0.0
    %8399 = vmatprep.subr.mxu0 0.0
    %8400 = vmatpush1.msra.mxu0 0.0
    %8401 = vmatprep.subr.mxu0 0.0
    %8402 = vmatpush1.msra.mxu0 0.0
    %8403 = vmatprep.subr.mxu0 0.0
    %8404 = vmatpush1.msra.mxu0 0.0
    %8405 = vmatprep.subr.mxu0 0.0
    %8406 = vmatpush1.msra.mxu0 0.0
    %8407 = vmatprep.subr.mxu0 0.0
    %8408 = vmatpush1.msra.mxu0 0.0
    %8409 = vmatprep.subr.mxu0 0.0
    %8410 = vmatpush1.msra.mxu0 0.0
    %8411 = vmatprep.subr.mxu0 0.0
    %8412 = vmatpush1.msra.mxu0 0.0
    %8413 = vmatprep.subr.mxu0 0.0
    %8414 = vmatpush1.msra.mxu0 0.0
    %8415 = vmatprep.subr.mxu0 0.0
    %8416 = vmatpush1.msra.mxu0 0.0
    %8417 = vmatprep.subr.mxu0 0.0
    %8418 = vmatpush1.msra.mxu0 0.0
    %8419 = vmatprep.mubr.f32.mxu0 0.0
    %v8420 = vand.u32 %v40, 4294901760
    %v8421 = vsub.f32 %v40, %v8420
    %8422 = vmatmul.mubr.f32.gmra.mrb[0].mxu0 %v8421
    %v8423 = vpop.f32.mrb[0].mxu0
    %v8424 = vadd.f32 %v8314, %v8423
    %v8425 = vpop.f32.mrb[0].mxu0
    %8426 = vmatprep.mubr.f32.mxu0 0.0
    %v8427 = vand.u32 %v41, 4294901760
    %v8428 = vsub.f32 %v41, %v8427
    %8429 = vmatmul.mubr.f32.gmra.mrb[0].mxu0 %v8428
    %v8430 = vpop.f32.mrb[0].mxu0
    %v8431 = vadd.f32 %v8320, %v8430
    %v8432 = vpop.f32.mrb[0].mxu0
    %8433 = vdwg.mxu0
    %8434 = vmatprep.subr.mxu0 0.0
    %v8435 = vand.u32 %v8049, 4294901760
    %8436 = vmatpush1.msra.mxu0 %v8435
    %8437 = vmatprep.subr.mxu0 0.0
    %v8438 = vand.u32 %v8050, 4294901760
    %8439 = vmatpush1.msra.mxu0 %v8438
    %8440 = vmatprep.subr.mxu0 0.0
    %v8441 = vand.u32 %v8051, 4294901760
    %8442 = vmatpush1.msra.mxu0 %v8441
    %8443 = vmatprep.subr.mxu0 0.0
    %v8444 = vand.u32 %v8052, 4294901760
    %8445 = vmatpush1.msra.mxu0 %v8444
    %8446 = vmatprep.subr.mxu0 0.0
    %v8447 = vand.u32 %v8053, 4294901760
    %8448 = vmatpush1.msra.mxu0 %v8447
    %8449 = vmatprep.subr.mxu0 0.0
    %v8450 = vand.u32 %v8054, 4294901760
    %8451 = vmatpush1.msra.mxu0 %v8450
    %8452 = vmatprep.subr.mxu0 0.0
    %v8453 = vand.u32 %v8055, 4294901760
    %8454 = vmatpush1.msra.mxu0 %v8453
    %8455 = vmatprep.subr.mxu0 0.0
    %v8456 = vand.u32 %v8056, 4294901760
    %8457 = vmatpush1.msra.mxu0 %v8456
    %8458 = vmatprep.subr.mxu0 0.0
    %v8459 = vand.u32 %v8057, 4294901760
    %8460 = vmatpush1.msra.mxu0 %v8459
    %8461 = vmatprep.subr.mxu0 0.0
    %v8462 = vand.u32 %v8058, 4294901760
    %8463 = vmatpush1.msra.mxu0 %v8462
    %8464 = vmatprep.subr.mxu0 0.0
    %v8465 = vand.u32 %v8059, 4294901760
    %8466 = vmatpush1.msra.mxu0 %v8465
    %8467 = vmatprep.subr.mxu0 0.0
    %v8468 = vand.u32 %v8060, 4294901760
    %8469 = vmatpush1.msra.mxu0 %v8468
    %8470 = vmatprep.subr.mxu0 0.0
    %v8471 = vand.u32 %v8061, 4294901760
    %8472 = vmatpush1.msra.mxu0 %v8471
    %8473 = vmatprep.subr.mxu0 0.0
    %v8474 = vand.u32 %v8062, 4294901760
    %8475 = vmatpush1.msra.mxu0 %v8474
    %8476 = vmatprep.subr.mxu0 0.0
    %v8477 = vand.u32 %v8063, 4294901760
    %8478 = vmatpush1.msra.mxu0 %v8477
    %8479 = vmatprep.subr.mxu0 0.0
    %v8480 = vand.u32 %v8064, 4294901760
    %8481 = vmatpush1.msra.mxu0 %v8480
    %8482 = vmatprep.subr.mxu0 0.0
    %8483 = vmatpush1.msra.mxu0 0.0
    %8484 = vmatprep.subr.mxu0 0.0
    %8485 = vmatpush1.msra.mxu0 0.0
    %8486 = vmatprep.subr.mxu0 0.0
    %8487 = vmatpush1.msra.mxu0 0.0
    %8488 = vmatprep.subr.mxu0 0.0
    %8489 = vmatpush1.msra.mxu0 0.0
    %8490 = vmatprep.subr.mxu0 0.0
    %8491 = vmatpush1.msra.mxu0 0.0
    %8492 = vmatprep.subr.mxu0 0.0
    %8493 = vmatpush1.msra.mxu0 0.0
    %8494 = vmatprep.subr.mxu0 0.0
    %8495 = vmatpush1.msra.mxu0 0.0
    %8496 = vmatprep.subr.mxu0 0.0
    %8497 = vmatpush1.msra.mxu0 0.0
    %8498 = vmatprep.subr.mxu0 0.0
    %8499 = vmatpush1.msra.mxu0 0.0
    %8500 = vmatprep.subr.mxu0 0.0
    %8501 = vmatpush1.msra.mxu0 0.0
    %8502 = vmatprep.subr.mxu0 0.0
    %8503 = vmatpush1.msra.mxu0 0.0
    %8504 = vmatprep.subr.mxu0 0.0
    %8505 = vmatpush1.msra.mxu0 0.0
    %8506 = vmatprep.subr.mxu0 0.0
    %8507 = vmatpush1.msra.mxu0 0.0
    %8508 = vmatprep.subr.mxu0 0.0
    %8509 = vmatpush1.msra.mxu0 0.0
    %8510 = vmatprep.subr.mxu0 0.0
    %8511 = vmatpush1.msra.mxu0 0.0
    %8512 = vmatprep.subr.mxu0 0.0
    %8513 = vmatpush1.msra.mxu0 0.0
    %8514 = vmatprep.mubr.f32.mxu0 0.0
    %v8515 = vand.u32 %v40, 4294901760
    %v8516 = vsub.f32 %v40, %v8515
    %v8517 = vand.u32 %v8516, 4294901760
    %8518 = vmatmul.mubr.f32.gmra.mrb[0].mxu0 %v8517
    %v8519 = vpop.f32.mrb[0].mxu0
    %v8520 = vadd.f32 %v8424, %v8519
    %v8521 = vpop.f32.mrb[0].mxu0
    %8522 = vmatprep.mubr.f32.mxu0 0.0
    %v8523 = vand.u32 %v41, 4294901760
    %v8524 = vsub.f32 %v41, %v8523
    %v8525 = vand.u32 %v8524, 4294901760
    %8526 = vmatmul.mubr.f32.gmra.mrb[0].mxu0 %v8525
    %v8527 = vpop.f32.mrb[0].mxu0
    %v8528 = vadd.f32 %v8431, %v8527
    %v8529 = vpop.f32.mrb[0].mxu0
    %8530 = vdwg.mxu0
    %8531 = vmatprep.subr.mxu0 0.0
    %v8532 = vand.u32 %v8049, 4294901760
    %v8533 = vsub.f32 %v8049, %v8532
    %v8534 = vand.u32 %v8533, 4294901760
    %8535 = vmatpush1.msra.mxu0 %v8534
    %8536 = vmatprep.subr.mxu0 0.0
    %v8537 = vand.u32 %v8050, 4294901760
    %v8538 = vsub.f32 %v8050, %v8537
    %v8539 = vand.u32 %v8538, 4294901760
    %8540 = vmatpush1.msra.mxu0 %v8539
    %8541 = vmatprep.subr.mxu0 0.0
    %v8542 = vand.u32 %v8051, 4294901760
    %v8543 = vsub.f32 %v8051, %v8542
    %v8544 = vand.u32 %v8543, 4294901760
    %8545 = vmatpush1.msra.mxu0 %v8544
    %8546 = vmatprep.subr.mxu0 0.0
    %v8547 = vand.u32 %v8052, 4294901760
    %v8548 = vsub.f32 %v8052, %v8547
    %v8549 = vand.u32 %v8548, 4294901760
    %8550 = vmatpush1.msra.mxu0 %v8549
    %8551 = vmatprep.subr.mxu0 0.0
    %v8552 = vand.u32 %v8053, 4294901760
    %v8553 = vsub.f32 %v8053, %v8552
    %v8554 = vand.u32 %v8553, 4294901760
    %8555 = vmatpush1.msra.mxu0 %v8554
    %8556 = vmatprep.subr.mxu0 0.0
    %v8557 = vand.u32 %v8054, 4294901760
    %v8558 = vsub.f32 %v8054, %v8557
    %v8559 = vand.u32 %v8558, 4294901760
    %8560 = vmatpush1.msra.mxu0 %v8559
    %8561 = vmatprep.subr.mxu0 0.0
    %v8562 = vand.u32 %v8055, 4294901760
    %v8563 = vsub.f32 %v8055, %v8562
    %v8564 = vand.u32 %v8563, 4294901760
    %8565 = vmatpush1.msra.mxu0 %v8564
    %8566 = vmatprep.subr.mxu0 0.0
    %v8567 = vand.u32 %v8056, 4294901760
    %v8568 = vsub.f32 %v8056, %v8567
    %v8569 = vand.u32 %v8568, 4294901760
    %8570 = vmatpush1.msra.mxu0 %v8569
    %8571 = vmatprep.subr.mxu0 0.0
    %v8572 = vand.u32 %v8057, 4294901760
    %v8573 = vsub.f32 %v8057, %v8572
    %v8574 = vand.u32 %v8573, 4294901760
    %8575 = vmatpush1.msra.mxu0 %v8574
    %8576 = vmatprep.subr.mxu0 0.0
    %v8577 = vand.u32 %v8058, 4294901760
    %v8578 = vsub.f32 %v8058, %v8577
    %v8579 = vand.u32 %v8578, 4294901760
    %8580 = vmatpush1.msra.mxu0 %v8579
    %8581 = vmatprep.subr.mxu0 0.0
    %v8582 = vand.u32 %v8059, 4294901760
    %v8583 = vsub.f32 %v8059, %v8582
    %v8584 = vand.u32 %v8583, 4294901760
    %8585 = vmatpush1.msra.mxu0 %v8584
    %8586 = vmatprep.subr.mxu0 0.0
    %v8587 = vand.u32 %v8060, 4294901760
    %v8588 = vsub.f32 %v8060, %v8587
    %v8589 = vand.u32 %v8588, 4294901760
    %8590 = vmatpush1.msra.mxu0 %v8589
    %8591 = vmatprep.subr.mxu0 0.0
    %v8592 = vand.u32 %v8061, 4294901760
    %v8593 = vsub.f32 %v8061, %v8592
    %v8594 = vand.u32 %v8593, 4294901760
    %8595 = vmatpush1.msra.mxu0 %v8594
    %8596 = vmatprep.subr.mxu0 0.0
    %v8597 = vand.u32 %v8062, 4294901760
    %v8598 = vsub.f32 %v8062, %v8597
    %v8599 = vand.u32 %v8598, 4294901760
    %8600 = vmatpush1.msra.mxu0 %v8599
    %8601 = vmatprep.subr.mxu0 0.0
    %v8602 = vand.u32 %v8063, 4294901760
    %v8603 = vsub.f32 %v8063, %v8602
    %v8604 = vand.u32 %v8603, 4294901760
    %8605 = vmatpush1.msra.mxu0 %v8604
    %8606 = vmatprep.subr.mxu0 0.0
    %v8607 = vand.u32 %v8064, 4294901760
    %v8608 = vsub.f32 %v8064, %v8607
    %v8609 = vand.u32 %v8608, 4294901760
    %8610 = vmatpush1.msra.mxu0 %v8609
    %8611 = vmatprep.subr.mxu0 0.0
    %8612 = vmatpush1.msra.mxu0 0.0
    %8613 = vmatprep.subr.mxu0 0.0
    %8614 = vmatpush1.msra.mxu0 0.0
    %8615 = vmatprep.subr.mxu0 0.0
    %8616 = vmatpush1.msra.mxu0 0.0
    %8617 = vmatprep.subr.mxu0 0.0
    %8618 = vmatpush1.msra.mxu0 0.0
    %8619 = vmatprep.subr.mxu0 0.0
    %8620 = vmatpush1.msra.mxu0 0.0
    %8621 = vmatprep.subr.mxu0 0.0
    %8622 = vmatpush1.msra.mxu0 0.0
    %8623 = vmatprep.subr.mxu0 0.0
    %8624 = vmatpush1.msra.mxu0 0.0
    %8625 = vmatprep.subr.mxu0 0.0
    %8626 = vmatpush1.msra.mxu0 0.0
    %8627 = vmatprep.subr.mxu0 0.0
    %8628 = vmatpush1.msra.mxu0 0.0
    %8629 = vmatprep.subr.mxu0 0.0
    %8630 = vmatpush1.msra.mxu0 0.0
    %8631 = vmatprep.subr.mxu0 0.0
    %8632 = vmatpush1.msra.mxu0 0.0
    %8633 = vmatprep.subr.mxu0 0.0
    %8634 = vmatpush1.msra.mxu0 0.0
    %8635 = vmatprep.subr.mxu0 0.0
    %8636 = vmatpush1.msra.mxu0 0.0
    %8637 = vmatprep.subr.mxu0 0.0
    %8638 = vmatpush1.msra.mxu0 0.0
    %8639 = vmatprep.subr.mxu0 0.0
    %8640 = vmatpush1.msra.mxu0 0.0
    %8641 = vmatprep.subr.mxu0 0.0
    %8642 = vmatpush1.msra.mxu0 0.0
    %8643 = vmatprep.mubr.f32.mxu0 0.0
    %v8644 = vand.u32 %v40, 4294901760
    %8645 = vmatmul.mubr.f32.gmra.mrb[0].mxu0 %v8644
    %v8646 = vpop.f32.mrb[0].mxu0
    %v8647 = vadd.f32 %v8520, %v8646
    %v8648 = vpop.f32.mrb[0].mxu0
    %8649 = vmatprep.mubr.f32.mxu0 0.0
    %v8650 = vand.u32 %v41, 4294901760
    %8651 = vmatmul.mubr.f32.gmra.mrb[0].mxu0 %v8650
    %v8652 = vpop.f32.mrb[0].mxu0
    %v8653 = vadd.f32 %v8528, %v8652
    %v8654 = vpop.f32.mrb[0].mxu0
    %8655 = vdwg.mxu0
    %8656 = vmatprep.subr.mxu0 0.0
    %v8657 = vand.u32 %v8049, 4294901760
    %8658 = vmatpush1.msra.mxu0 %v8657
    %8659 = vmatprep.subr.mxu0 0.0
    %v8660 = vand.u32 %v8050, 4294901760
    %8661 = vmatpush1.msra.mxu0 %v8660
    %8662 = vmatprep.subr.mxu0 0.0
    %v8663 = vand.u32 %v8051, 4294901760
    %8664 = vmatpush1.msra.mxu0 %v8663
    %8665 = vmatprep.subr.mxu0 0.0
    %v8666 = vand.u32 %v8052, 4294901760
    %8667 = vmatpush1.msra.mxu0 %v8666
    %8668 = vmatprep.subr.mxu0 0.0
    %v8669 = vand.u32 %v8053, 4294901760
    %8670 = vmatpush1.msra.mxu0 %v8669
    %8671 = vmatprep.subr.mxu0 0.0
    %v8672 = vand.u32 %v8054, 4294901760
    %8673 = vmatpush1.msra.mxu0 %v8672
    %8674 = vmatprep.subr.mxu0 0.0
    %v8675 = vand.u32 %v8055, 4294901760
    %8676 = vmatpush1.msra.mxu0 %v8675
    %8677 = vmatprep.subr.mxu0 0.0
    %v8678 = vand.u32 %v8056, 4294901760
    %8679 = vmatpush1.msra.mxu0 %v8678
    %8680 = vmatprep.subr.mxu0 0.0
    %v8681 = vand.u32 %v8057, 4294901760
    %8682 = vmatpush1.msra.mxu0 %v8681
    %8683 = vmatprep.subr.mxu0 0.0
    %v8684 = vand.u32 %v8058, 4294901760
    %8685 = vmatpush1.msra.mxu0 %v8684
    %8686 = vmatprep.subr.mxu0 0.0
    %v8687 = vand.u32 %v8059, 4294901760
    %8688 = vmatpush1.msra.mxu0 %v8687
    %8689 = vmatprep.subr.mxu0 0.0
    %v8690 = vand.u32 %v8060, 4294901760
    %8691 = vmatpush1.msra.mxu0 %v8690
    %8692 = vmatprep.subr.mxu0 0.0
    %v8693 = vand.u32 %v8061, 4294901760
    %8694 = vmatpush1.msra.mxu0 %v8693
    %8695 = vmatprep.subr.mxu0 0.0
    %v8696 = vand.u32 %v8062, 4294901760
    %8697 = vmatpush1.msra.mxu0 %v8696
    %8698 = vmatprep.subr.mxu0 0.0
    %v8699 = vand.u32 %v8063, 4294901760
    %8700 = vmatpush1.msra.mxu0 %v8699
    %8701 = vmatprep.subr.mxu0 0.0
    %v8702 = vand.u32 %v8064, 4294901760
    %8703 = vmatpush1.msra.mxu0 %v8702
    %8704 = vmatprep.subr.mxu0 0.0
    %8705 = vmatpush1.msra.mxu0 0.0
    %8706 = vmatprep.subr.mxu0 0.0
    %8707 = vmatpush1.msra.mxu0 0.0
    %8708 = vmatprep.subr.mxu0 0.0
    %8709 = vmatpush1.msra.mxu0 0.0
    %8710 = vmatprep.subr.mxu0 0.0
    %8711 = vmatpush1.msra.mxu0 0.0
    %8712 = vmatprep.subr.mxu0 0.0
    %8713 = vmatpush1.msra.mxu0 0.0
    %8714 = vmatprep.subr.mxu0 0.0
    %8715 = vmatpush1.msra.mxu0 0.0
    %8716 = vmatprep.subr.mxu0 0.0
    %8717 = vmatpush1.msra.mxu0 0.0
    %8718 = vmatprep.subr.mxu0 0.0
    %8719 = vmatpush1.msra.mxu0 0.0
    %8720 = vmatprep.subr.mxu0 0.0
    %8721 = vmatpush1.msra.mxu0 0.0
    %8722 = vmatprep.subr.mxu0 0.0
    %8723 = vmatpush1.msra.mxu0 0.0
    %8724 = vmatprep.subr.mxu0 0.0
    %8725 = vmatpush1.msra.mxu0 0.0
    %8726 = vmatprep.subr.mxu0 0.0
    %8727 = vmatpush1.msra.mxu0 0.0
    %8728 = vmatprep.subr.mxu0 0.0
    %8729 = vmatpush1.msra.mxu0 0.0
    %8730 = vmatprep.subr.mxu0 0.0
    %8731 = vmatpush1.msra.mxu0 0.0
    %8732 = vmatprep.subr.mxu0 0.0
    %8733 = vmatpush1.msra.mxu0 0.0
    %8734 = vmatprep.subr.mxu0 0.0
    %8735 = vmatpush1.msra.mxu0 0.0
    %8736 = vmatprep.mubr.f32.mxu0 0.0
    %v8737 = vand.u32 %v40, 4294901760
    %8738 = vmatmul.mubr.f32.gmra.mrb[0].mxu0 %v8737
    %v8739 = vpop.f32.mrb[0].mxu0
    %v8740 = vadd.f32 %v8647, %v8739
    %v8741 = vpop.f32.mrb[0].mxu0
    %8742 = vmatprep.mubr.f32.mxu0 0.0
    %v8743 = vand.u32 %v41, 4294901760
    %8744 = vmatmul.mubr.f32.gmra.mrb[0].mxu0 %v8743
    %v8745 = vpop.f32.mrb[0].mxu0
    %v8746 = vadd.f32 %v8653, %v8745
    %v8747 = vpop.f32.mrb[0].mxu0
    %8748 = vdwg.mxu0
    %v8749 = vmul.f32 %v2936, %v7337
    %v8750 = vmul.f32 %v2935, %v7338
    %v8751 = vmul.f32 %v2935, %v7343
    %v8752 = vmul.f32 %v2936, %v7344
    %v8753 = vadd.f32 %v8749, %v8751
    %v8754 = vadd.f32 %v8750, %v8752
    %v8755 = vmul.f32 %v7345, %v40
    %v8756 = vmul.f32 %v7346, %v41
    %v8757 = vsub.f32 %v8753, %v8755
    %v8758 = vsub.f32 %v8754, %v8756
    %v8759 = vrot.slane %v8039, 6
    %v8760 = vrot.slane %v8045, 6
    %v8761 = vsel %vm1481, %v8759, %v8760
    %v8762 = vsel %vm1481, %v8760, %v8759
    %v8763 = vmul.f32 %v8761, %v2985
    %v8764 = vmul.f32 %v8762, %v2986
    %v8765 = vrot.slane %v8039, 2
    %v8766 = vrot.slane %v8045, 2
    %v8767 = vsel %vm1474, %v8765, %v8766
    %v8768 = vsel %vm1474, %v8766, %v8765
    %v8769 = vmul.f32 %v8768, %v2991
    %v8770 = vmul.f32 %v8767, %v2992
    %v8771 = vsub.f32 %v8763, %v8769
    %v8772 = vsub.f32 %v8764, %v8770
    %v8773 = vmul.f32 %v8740, %v8757
    %v8774 = vmul.f32 %v8746, %v8758
    %v8775 = vmul.f32 %v8771, %v8771
    %v8776 = vmul.f32 %v8772, %v8772
    %v8777 = vsub.f32 %v8773, %v8775
    %v8778 = vsub.f32 %v8774, %v8776
    %v8779 = vadd.f32 %v7332, %v8777
    %v8780 = vadd.f32 %v7333, %v8778
    %8781 = vst [vmem:[#allocation7] sm:$0xff] %v8779
    %8782 = vst [vmem:[#allocation7 + $0x8] sm:$0xff] %v8780
    // Predicated region
    $region18: #{tpu_custom_call.1} parent=1 // pred_check
      _
    $region19: #{tpu_custom_call.1} parent=1 // pred_check_branch
      %8784 = sbr.rel (0) target = $region21
    $region20: #{tpu_custom_call.1} parent=1 // pred_region
      %s8786 = ssub.s32 256, 256
      %8787 = vsyncadd [#allocation4], %s8786
      %s8788 = sshll.u32 [#allocation7], 4
      %s8789 = int_to_ptr.vmem [resolvable:$true] %s8788
      %8794 = dma.vmem_to_hbm [thread:$0]  %s8789, 256, %s2, [#allocation4], 128, 128, 8
    $region21: #{tpu_custom_call.1} parent=1 // pred_fallthru
      _
    // Predicated region
    $region22: #{tpu_custom_call.1} parent=1 // pred_check
      _
    $region23: #{tpu_custom_call.1} parent=1 // pred_check_branch
      %8796 = sbr.rel (0) target = $region25
    $region24: #{tpu_custom_call.1} parent=1 // pred_region
      %8797 = dma.done [#allocation4], 256
    $region25: #{tpu_custom_call.1} parent=1 // pred_fallthru
      _
    %8798 = vsyncpa [#allocation3], 1
    %8799 = vsyncpa [#allocation6], 1
    %8800 = vsyncpa [#allocation4], 1

// kernel: tpu_custom_call.1
$region0: #{tpu_custom_call.1}
  #allocation0 [shape = 'u32[]', space=smem, size = 0x4, offset = 0x4, fixed_abs, tag = 'smem constant byte address 0x4 - core index']
  #allocation1 [shape = 'u32[144,128]{1,0:T(1,128)}', space=vmem, size = 0x12000, scoped, tag = 'internal scratch']
  %s0 = inlined_call_operand.hbm [shape: f32[1,16,128], index: 0, kind: input, shape index: {}]
  %s1 = inlined_call_operand.hbm [shape: f32[12,128,128], index: 1, kind: input, shape index: {}]
  %s2 = inlined_call_operand.hbm [shape: f32[1,16,128], index: 2, kind: output, shape index: {}]
  %s3 = sld [smem:[#allocation0]]
  $region26: #{tpu_custom_call.1} parent=0
    _
  %s5 = ssub.s32 1, %s3
  %s6 = scalar_select 0, %s5, %s3
  $region1: #{tpu_custom_call.1} parent=0
    #allocation2 [shape = 'u8[8192]{0}', space=vmem, size = 0x2000, scoped, tag = 'input window, operand 0, single buffered']
    #allocation3 [shape = 's32[1]{0}', space=sflag, size = 0x4, scoped, tag = 'scoped memory for tpu_custom_call.1']
    #allocation4 [shape = 's32[1]{0}', space=sflag, size = 0x4, scoped, tag = 'scoped memory for tpu_custom_call.1']
    #allocation5 [shape = 'u8[786432]{0}', space=vmem, size = 0xc0000, scoped, tag = 'input window, operand 1, single buffered']
    #allocation6 [shape = 's32[1]{0}', space=sflag, size = 0x4, scoped, tag = 'scoped memory for tpu_custom_call.1']
    #allocation7 [shape = 'u8[8192]{0}', space=vmem, size = 0x2000, scoped, tag = 'output window, operand 0, single buffered']
    %7 = vsyncpa [#allocation3], 0
    %8 = vsyncpa [#allocation6], 0
    %9 = vsyncpa [#allocation4], 0
    // Predicated region
    $region2: #{tpu_custom_call.1} parent=1 // pred_check
      _
    $region3: #{tpu_custom_call.1} parent=1 // pred_check_branch
      %11 = sbr.rel (0) target = $region5
    $region4: #{tpu_custom_call.1} parent=1 // pred_region
      %s13 = ssub.s32 256, 256
      %14 = vsyncadd [#allocation3], %s13
      %s15 = sshll.u32 [#allocation2], 4
      %s16 = int_to_ptr.vmem [resolvable:$true] %s15
      %21 = dma.hbm_to_vmem [thread:$0]  %s0, 256, %s16, [#allocation3], 128, 128, 8
    $region5: #{tpu_custom_call.1} parent=1 // pred_fallthru
      _
    // Predicated region
    $region6: #{tpu_custom_call.1} parent=1 // pred_check
      _
    $region7: #{tpu_custom_call.1} parent=1 // pred_check_branch
      %23 = sbr.rel (0) target = $region9
    $region8: #{tpu_custom_call.1} parent=1 // pred_region
      %s25 = ssub.s32 24576, 24576
      %26 = vsyncadd [#allocation6], %s25
      %s27 = sshll.u32 [#allocation5], 4
      %s28 = int_to_ptr.vmem [resolvable:$true] %s27
      %33 = dma.hbm_to_vmem [thread:$0]  %s1, 24576, %s28, [#allocation6], 128, 128, 8
    $region9: #{tpu_custom_call.1} parent=1 // pred_fallthru
      _
    // Predicated region
    $region10: #{tpu_custom_call.1} parent=1 // pred_check
      _
    $region11: #{tpu_custom_call.1} parent=1 // pred_check_branch
      %35 = sbr.rel (0) target = $region13
    $region12: #{tpu_custom_call.1} parent=1 // pred_region
      %36 = dma.done [#allocation3], 256
    $region13: #{tpu_custom_call.1} parent=1 // pred_fallthru
      _
    // Predicated region
    $region14: #{tpu_custom_call.1} parent=1 // pred_check
      _
    $region15: #{tpu_custom_call.1} parent=1 // pred_check_branch
      %38 = sbr.rel (0) target = $region17
    $region16: #{tpu_custom_call.1} parent=1 // pred_region
      %39 = dma.done [#allocation6], 24576
    $region17: #{tpu_custom_call.1} parent=1 // pred_fallthru
      _
    %v40 = vld [vmem:[#allocation2] sm:$0xff]
    %v41 = vld [vmem:[#allocation2 + $0x8] sm:$0xff]
    %v42 = vlaneseq
    %v43 = vshrl.u32 %v42, 7
    %v44 = vadd.s32 %v43, 8
    %vm45 = vcmp.lt.s32.totalorder %v43, 15
    %vm46 = vcmp.lt.s32.totalorder %v44, 15
    %v47 = vsel %vm45, 1, 0
    %v48 = vsel %vm46, 1, 0
    %v49 = vcvt.s32.f32 %v47
    %v50 = vcvt.s32.f32 %v48
    %vm51 = vcmp.ge.s32.totalorder %v43, 1
    %vm52 = vcmp.ge.s32.totalorder %v44, 1
    %v53 = vsel %vm51, 1, 0
    %v54 = vsel %vm52, 1, 0
    %v55 = vcvt.s32.f32 %v53
    %v56 = vcvt.s32.f32 %v54
    %vm57 = vcmp.lt.s32.totalorder %v43, 14
    %vm58 = vcmp.lt.s32.totalorder %v44, 14
    %v59 = vsel %vm57, 1, 0
    %v60 = vsel %vm58, 1, 0
    %v61 = vcvt.s32.f32 %v59
    %v62 = vcvt.s32.f32 %v60
    %vm63 = vcmp.ge.s32.totalorder %v43, 2
    %vm64 = vcmp.ge.s32.totalorder %v44, 2
    %v65 = vsel %vm63, 1, 0
    %v66 = vsel %vm64, 1, 0
    %v67 = vcvt.s32.f32 %v65
    %v68 = vcvt.s32.f32 %v66
    %v69 = vadd.f32 %v49, %v55
    %v70 = vadd.f32 %v50, %v56
    %v71 = vld [vmem:[#allocation5] sm:$0xff]
    %v72 = vld [vmem:[#allocation5 + $0x8] sm:$0xff]
    %v73 = vld [vmem:[#allocation5 + $0x10] sm:$0xff]
    %v74 = vld [vmem:[#allocation5 + $0x18] sm:$0xff]
    %v75 = vld [vmem:[#allocation5 + $0x20] sm:$0xff]
    %v76 = vld [vmem:[#allocation5 + $0x28] sm:$0xff]
    %v77 = vld [vmem:[#allocation5 + $0x30] sm:$0xff]
    %v78 = vld [vmem:[#allocation5 + $0x38] sm:$0xff]
    %v79 = vld [vmem:[#allocation5 + $0x40] sm:$0xff]
    %v80 = vld [vmem:[#allocation5 + $0x48] sm:$0xff]
    %v81 = vld [vmem:[#allocation5 + $0x50] sm:$0xff]
    %v82 = vld [vmem:[#allocation5 + $0x58] sm:$0xff]
    %v83 = vld [vmem:[#allocation5 + $0x60] sm:$0xff]
    %v84 = vld [vmem:[#allocation5 + $0x68] sm:$0xff]
    %v85 = vld [vmem:[#allocation5 + $0x70] sm:$0xff]
    %v86 = vld [vmem:[#allocation5 + $0x78] sm:$0xff]
    %87 = vmatprep.subr.mxu0 0.0
    %88 = vmatpush1.msra.mxu0 %v71
    %89 = vmatprep.subr.mxu0 0.0
    %90 = vmatpush1.msra.mxu0 %v72
    %91 = vmatprep.subr.mxu0 0.0
    %92 = vmatpush1.msra.mxu0 %v73
    %93 = vmatprep.subr.mxu0 0.0
    %94 = vmatpush1.msra.mxu0 %v74
    %95 = vmatprep.subr.mxu0 0.0
    %96 = vmatpush1.msra.mxu0 %v75
    %97 = vmatprep.subr.mxu0 0.0
    %98 = vmatpush1.msra.mxu0 %v76
    %99 = vmatprep.subr.mxu0 0.0
    %100 = vmatpush1.msra.mxu0 %v77
    %101 = vmatprep.subr.mxu0 0.0
    %102 = vmatpush1.msra.mxu0 %v78
    %103 = vmatprep.subr.mxu0 0.0
    %104 = vmatpush1.msra.mxu0 %v79
    %105 = vmatprep.subr.mxu0 0.0
    %106 = vmatpush1.msra.mxu0 %v80
    %107 = vmatprep.subr.mxu0 0.0
    %108 = vmatpush1.msra.mxu0 %v81
    %109 = vmatprep.subr.mxu0 0.0
    %110 = vmatpush1.msra.mxu0 %v82
    %111 = vmatprep.subr.mxu0 0.0
    %112 = vmatpush1.msra.mxu0 %v83
    %113 = vmatprep.subr.mxu0 0.0
    %114 = vmatpush1.msra.mxu0 %v84
    %115 = vmatprep.subr.mxu0 0.0
    %116 = vmatpush1.msra.mxu0 %v85
    %117 = vmatprep.subr.mxu0 0.0
    %118 = vmatpush1.msra.mxu0 %v86
    %119 = vmatprep.subr.mxu0 0.0
    %120 = vmatpush1.msra.mxu0 0.0
    %121 = vmatprep.subr.mxu0 0.0
    %122 = vmatpush1.msra.mxu0 0.0
    %123 = vmatprep.subr.mxu0 0.0
    %124 = vmatpush1.msra.mxu0 0.0
    %125 = vmatprep.subr.mxu0 0.0
    %126 = vmatpush1.msra.mxu0 0.0
    %127 = vmatprep.subr.mxu0 0.0
    %128 = vmatpush1.msra.mxu0 0.0
    %129 = vmatprep.subr.mxu0 0.0
    %130 = vmatpush1.msra.mxu0 0.0
    %131 = vmatprep.subr.mxu0 0.0
    %132 = vmatpush1.msra.mxu0 0.0
    %133 = vmatprep.subr.mxu0 0.0
    %134 = vmatpush1.msra.mxu0 0.0
    %135 = vmatprep.subr.mxu0 0.0
    %136 = vmatpush1.msra.mxu0 0.0
    %137 = vmatprep.subr.mxu0 0.0
    %138 = vmatpush1.msra.mxu0 0.0
    %139 = vmatprep.subr.mxu0 0.0
    %140 = vmatpush1.msra.mxu0 0.0
    %141 = vmatprep.subr.mxu0 0.0
    %142 = vmatpush1.msra.mxu0 0.0
    %143 = vmatprep.subr.mxu0 0.0
    %144 = vmatpush1.msra.mxu0 0.0
    %145 = vmatprep.subr.mxu0 0.0
    %146 = vmatpush1.msra.mxu0 0.0
    %147 = vmatprep.subr.mxu0 0.0
    %148 = vmatpush1.msra.mxu0 0.0
    %149 = vmatprep.subr.mxu0 0.0
    %150 = vmatpush1.msra.mxu0 0.0
    %151 = vmatprep.mubr.f32.mxu0 0.0
    %152 = vmatmul.mubr.f32.gmra.mrb[0].mxu0 %v40
    %v153 = vpop.f32.mrb[0].mxu0
    %v154 = vadd.f32 0.0, %v153
    %v155 = vpop.f32.mrb[0].mxu0
    %156 = vmatprep.mubr.f32.mxu0 0.0
    %157 = vmatmul.mubr.f32.gmra.mrb[0].mxu0 %v41
    %v158 = vpop.f32.mrb[0].mxu0
    %v159 = vadd.f32 0.0, %v158
    %v160 = vpop.f32.mrb[0].mxu0
    %161 = vdwg.mxu0
    %s162 = scalar_lea.vmem [#allocation5], 128
    %v163 = vld [vmem:[%s162] sm:$0xff]
    %v164 = vld [vmem:[%s162 + $0x8] sm:$0xff]
    %v165 = vld [vmem:[%s162 + $0x10] sm:$0xff]
    %v166 = vld [vmem:[%s162 + $0x18] sm:$0xff]
    %v167 = vld [vmem:[%s162 + $0x20] sm:$0xff]
    %v168 = vld [vmem:[%s162 + $0x28] sm:$0xff]
    %v169 = vld [vmem:[%s162 + $0x30] sm:$0xff]
    %v170 = vld [vmem:[%s162 + $0x38] sm:$0xff]
    %v171 = vld [vmem:[%s162 + $0x40] sm:$0xff]
    %v172 = vld [vmem:[%s162 + $0x48] sm:$0xff]
    %v173 = vld [vmem:[%s162 + $0x50] sm:$0xff]
    %v174 = vld [vmem:[%s162 + $0x58] sm:$0xff]
    %v175 = vld [vmem:[%s162 + $0x60] sm:$0xff]
    %v176 = vld [vmem:[%s162 + $0x68] sm:$0xff]
    %v177 = vld [vmem:[%s162 + $0x70] sm:$0xff]
    %v178 = vld [vmem:[%s162 + $0x78] sm:$0xff]
    %179 = vmatprep.subr.mxu0 0.0
    %180 = vmatpush1.msra.mxu0 %v163
    %181 = vmatprep.subr.mxu0 0.0
    %182 = vmatpush1.msra.mxu0 %v164
    %183 = vmatprep.subr.mxu0 0.0
    %184 = vmatpush1.msra.mxu0 %v165
    %185 = vmatprep.subr.mxu0 0.0
    %186 = vmatpush1.msra.mxu0 %v166
    %187 = vmatprep.subr.mxu0 0.0
    %188 = vmatpush1.msra.mxu0 %v167
    %189 = vmatprep.subr.mxu0 0.0
    %190 = vmatpush1.msra.mxu0 %v168
    %191 = vmatprep.subr.mxu0 0.0
    %192 = vmatpush1.msra.mxu0 %v169
    %193 = vmatprep.subr.mxu0 0.0
    %194 = vmatpush1.msra.mxu0 %v170
    %195 = vmatprep.subr.mxu0 0.0
    %196 = vmatpush1.msra.mxu0 %v171
    %197 = vmatprep.subr.mxu0 0.0
    %198 = vmatpush1.msra.mxu0 %v172
    %199 = vmatprep.subr.mxu0 0.0
    %200 = vmatpush1.msra.mxu0 %v173
    %201 = vmatprep.subr.mxu0 0.0
    %202 = vmatpush1.msra.mxu0 %v174
    %203 = vmatprep.subr.mxu0 0.0
    %204 = vmatpush1.msra.mxu0 %v175
    %205 = vmatprep.subr.mxu0 0.0
    %206 = vmatpush1.msra.mxu0 %v176
    %207 = vmatprep.subr.mxu0 0.0
    %208 = vmatpush1.msra.mxu0 %v177
    %209 = vmatprep.subr.mxu0 0.0
    %210 = vmatpush1.msra.mxu0 %v178
    %211 = vmatprep.subr.mxu0 0.0
    %212 = vmatpush1.msra.mxu0 0.0
    %213 = vmatprep.subr.mxu0 0.0
    %214 = vmatpush1.msra.mxu0 0.0
    %215 = vmatprep.subr.mxu0 0.0
    %216 = vmatpush1.msra.mxu0 0.0
    %217 = vmatprep.subr.mxu0 0.0
    %218 = vmatpush1.msra.mxu0 0.0
    %219 = vmatprep.subr.mxu0 0.0
    %220 = vmatpush1.msra.mxu0 0.0
    %221 = vmatprep.subr.mxu0 0.0
    %222 = vmatpush1.msra.mxu0 0.0
    %223 = vmatprep.subr.mxu0 0.0
    %224 = vmatpush1.msra.mxu0 0.0
    %225 = vmatprep.subr.mxu0 0.0
    %226 = vmatpush1.msra.mxu0 0.0
    %227 = vmatprep.subr.mxu0 0.0
    %228 = vmatpush1.msra.mxu0 0.0
    %229 = vmatprep.subr.mxu0 0.0
    %230 = vmatpush1.msra.mxu0 0.0
    %231 = vmatprep.subr.mxu0 0.0
    %232 = vmatpush1.msra.mxu0 0.0
    %233 = vmatprep.subr.mxu0 0.0
    %234 = vmatpush1.msra.mxu0 0.0
    %235 = vmatprep.subr.mxu0 0.0
    %236 = vmatpush1.msra.mxu0 0.0
    %237 = vmatprep.subr.mxu0 0.0
    %238 = vmatpush1.msra.mxu0 0.0
    %239 = vmatprep.subr.mxu0 0.0
    %240 = vmatpush1.msra.mxu0 0.0
    %241 = vmatprep.subr.mxu0 0.0
    %242 = vmatpush1.msra.mxu0 0.0
    %243 = vmatprep.mubr.f32.mxu0 0.0
    %244 = vmatmul.mubr.f32.gmra.mrb[0].mxu0 %v40
    %v245 = vpop.f32.mrb[0].mxu0
    %v246 = vadd.f32 0.0, %v245
    %v247 = vpop.f32.mrb[0].mxu0
    %248 = vmatprep.mubr.f32.mxu0 0.0
    %249 = vmatmul.mubr.f32.gmra.mrb[0].mxu0 %v41
    %v250 = vpop.f32.mrb[0].mxu0
    %v251 = vadd.f32 0.0, %v250
    %v252 = vpop.f32.mrb[0].mxu0
    %253 = vdwg.mxu0
    %v254 = vrot.slane %v40, 2
    %v255 = vrot.slane %v41, 2
    %vm256 = vcmp.lt.s32.totalorder %v43, 6
    %v257 = vsel %vm256, %v254, %v255
    %v258 = vsel %vm256, %v255, %v254
    %v259 = vmul.f32 %v257, %v61
    %v260 = vmul.f32 %v258, %v62
    %v261 = vrot.slane %v40, 6
    %v262 = vrot.slane %v41, 6
    %vm263 = vcmp.lt.s32.totalorder %v43, 2
    %v264 = vsel %vm263, %v261, %v262
    %v265 = vsel %vm263, %v262, %v261
    %v266 = vmul.f32 %v265, %v67
    %v267 = vmul.f32 %v264, %v68
    %v268 = vadd.f32 %v259, %v266
    %v269 = vadd.f32 %v260, %v267
    %v270 = vmul.f32 %v69, %v40
    %v271 = vmul.f32 %v70, %v41
    %v272 = vsub.f32 %v268, %v270
    %v273 = vsub.f32 %v269, %v271
    %v274 = vrot.slane %v154, 1
    %v275 = vrot.slane %v159, 1
    %vm276 = vcmp.lt.s32.totalorder %v43, 7
    %v277 = vsel %vm276, %v274, %v275
    %v278 = vsel %vm276, %v275, %v274
    %v279 = vmul.f32 %v277, %v49
    %v280 = vmul.f32 %v278, %v50
    %v281 = vrot.slane %v154, 7
    %v282 = vrot.slane %v159, 7
    %vm283 = vcmp.lt.s32.totalorder %v43, 1
    %v284 = vsel %vm283, %v281, %v282
    %v285 = vsel %vm283, %v282, %v281
    %v286 = vmul.f32 %v285, %v55
    %v287 = vmul.f32 %v284, %v56
    %v288 = vsub.f32 %v279, %v286
    %v289 = vsub.f32 %v280, %v287
    %v290 = vmul.f32 %v246, %v272
    %v291 = vmul.f32 %v251, %v273
    %v292 = vmul.f32 %v288, %v288
    %v293 = vmul.f32 %v289, %v289
    %v294 = vsub.f32 %v290, %v292
    %v295 = vsub.f32 %v291, %v293
    %v296 = vadd.f32 %v294, 0.0
    %v297 = vadd.f32 %v295, 0.0
    %vm298 = vcmp.lt.s32.totalorder %v43, 12
    %vm299 = vcmp.lt.s32.totalorder %v44, 12
    %v300 = vsel %vm298, 1, 0
    %v301 = vsel %vm299, 1, 0
    %v302 = vcvt.s32.f32 %v300
    %v303 = vcvt.s32.f32 %v301
    %vm304 = vcmp.ge.s32.totalorder %v43, 4
    %vm305 = vcmp.ge.s32.totalorder %v44, 4
    %v306 = vsel %vm304, 1, 0
    %v307 = vsel %vm305, 1, 0
    %v308 = vcvt.s32.f32 %v306
    %v309 = vcvt.s32.f32 %v307
    %v310 = vadd.f32 %v61, %v67
    %v311 = vadd.f32 %v62, %v68
    %s312 = scalar_lea.vmem [#allocation5], 256
    %v313 = vld [vmem:[%s312] sm:$0xff]
    %v314 = vld [vmem:[%s312 + $0x8] sm:$0xff]
    %v315 = vld [vmem:[%s312 + $0x10] sm:$0xff]
    %v316 = vld [vmem:[%s312 + $0x18] sm:$0xff]
    %v317 = vld [vmem:[%s312 + $0x20] sm:$0xff]
    %v318 = vld [vmem:[%s312 + $0x28] sm:$0xff]
    %v319 = vld [vmem:[%s312 + $0x30] sm:$0xff]
    %v320 = vld [vmem:[%s312 + $0x38] sm:$0xff]
    %v321 = vld [vmem:[%s312 + $0x40] sm:$0xff]
    %v322 = vld [vmem:[%s312 + $0x48] sm:$0xff]
    %v323 = vld [vmem:[%s312 + $0x50] sm:$0xff]
    %v324 = vld [vmem:[%s312 + $0x58] sm:$0xff]
    %v325 = vld [vmem:[%s312 + $0x60] sm:$0xff]
    %v326 = vld [vmem:[%s312 + $0x68] sm:$0xff]
    %v327 = vld [vmem:[%s312 + $0x70] sm:$0xff]
    %v328 = vld [vmem:[%s312 + $0x78] sm:$0xff]
    %329 = vmatprep.subr.mxu0 0.0
    %330 = vmatpush1.msra.mxu0 %v313
    %331 = vmatprep.subr.mxu0 0.0
    %332 = vmatpush1.msra.mxu0 %v314
    %333 = vmatprep.subr.mxu0 0.0
    %334 = vmatpush1.msra.mxu0 %v315
    %335 = vmatprep.subr.mxu0 0.0
    %336 = vmatpush1.msra.mxu0 %v316
    %337 = vmatprep.subr.mxu0 0.0
    %338 = vmatpush1.msra.mxu0 %v317
    %339 = vmatprep.subr.mxu0 0.0
    %340 = vmatpush1.msra.mxu0 %v318
    %341 = vmatprep.subr.mxu0 0.0
    %342 = vmatpush1.msra.mxu0 %v319
    %343 = vmatprep.subr.mxu0 0.0
    %344 = vmatpush1.msra.mxu0 %v320
    %345 = vmatprep.subr.mxu0 0.0
    %346 = vmatpush1.msra.mxu0 %v321
    %347 = vmatprep.subr.mxu0 0.0
    %348 = vmatpush1.msra.mxu0 %v322
    %349 = vmatprep.subr.mxu0 0.0
    %350 = vmatpush1.msra.mxu0 %v323
    %351 = vmatprep.subr.mxu0 0.0
    %352 = vmatpush1.msra.mxu0 %v324
    %353 = vmatprep.subr.mxu0 0.0
    %354 = vmatpush1.msra.mxu0 %v325
    %355 = vmatprep.subr.mxu0 0.0
    %356 = vmatpush1.msra.mxu0 %v326
    %357 = vmatprep.subr.mxu0 0.0
    %358 = vmatpush1.msra.mxu0 %v327
    %359 = vmatprep.subr.mxu0 0.0
    %360 = vmatpush1.msra.mxu0 %v328
    %361 = vmatprep.subr.mxu0 0.0
    %362 = vmatpush1.msra.mxu0 0.0
    %363 = vmatprep.subr.mxu0 0.0
    %364 = vmatpush1.msra.mxu0 0.0
    %365 = vmatprep.subr.mxu0 0.0
    %366 = vmatpush1.msra.mxu0 0.0
    %367 = vmatprep.subr.mxu0 0.0
    %368 = vmatpush1.msra.mxu0 0.0
    %369 = vmatprep.subr.mxu0 0.0
    %370 = vmatpush1.msra.mxu0 0.0
    %371 = vmatprep.subr.mxu0 0.0
    %372 = vmatpush1.msra.mxu0 0.0
    %373 = vmatprep.subr.mxu0 0.0
    %374 = vmatpush1.msra.mxu0 0.0
    %375 = vmatprep.subr.mxu0 0.0
    %376 = vmatpush1.msra.mxu0 0.0
    %377 = vmatprep.subr.mxu0 0.0
    %378 = vmatpush1.msra.mxu0 0.0
    %379 = vmatprep.subr.mxu0 0.0
    %380 = vmatpush1.msra.mxu0 0.0
    %381 = vmatprep.subr.mxu0 0.0
    %382 = vmatpush1.msra.mxu0 0.0
    %383 = vmatprep.subr.mxu0 0.0
    %384 = vmatpush1.msra.mxu0 0.0
    %385 = vmatprep.subr.mxu0 0.0
    %386 = vmatpush1.msra.mxu0 0.0
    %387 = vmatprep.subr.mxu0 0.0
    %388 = vmatpush1.msra.mxu0 0.0
    %389 = vmatprep.subr.mxu0 0.0
    %390 = vmatpush1.msra.mxu0 0.0
    %391 = vmatprep.subr.mxu0 0.0
    %392 = vmatpush1.msra.mxu0 0.0
    %393 = vmatprep.mubr.f32.mxu0 0.0
    %394 = vmatmul.mubr.f32.gmra.mrb[0].mxu0 %v40
    %v395 = vpop.f32.mrb[0].mxu0
    %v396 = vadd.f32 0.0, %v395
    %v397 = vpop.f32.mrb[0].mxu0
    %398 = vmatprep.mubr.f32.mxu0 0.0
    %399 = vmatmul.mubr.f32.gmra.mrb[0].mxu0 %v41
    %v400 = vpop.f32.mrb[0].mxu0
    %v401 = vadd.f32 0.0, %v400
    %v402 = vpop.f32.mrb[0].mxu0
    %403 = vdwg.mxu0
    %s404 = scalar_lea.vmem [#allocation5], 384
    %v405 = vld [vmem:[%s404] sm:$0xff]
    %v406 = vld [vmem:[%s404 + $0x8] sm:$0xff]
    %v407 = vld [vmem:[%s404 + $0x10] sm:$0xff]
    %v408 = vld [vmem:[%s404 + $0x18] sm:$0xff]
    %v409 = vld [vmem:[%s404 + $0x20] sm:$0xff]
    %v410 = vld [vmem:[%s404 + $0x28] sm:$0xff]
    %v411 = vld [vmem:[%s404 + $0x30] sm:$0xff]
    %v412 = vld [vmem:[%s404 + $0x38] sm:$0xff]
    %v413 = vld [vmem:[%s404 + $0x40] sm:$0xff]
    %v414 = vld [vmem:[%s404 + $0x48] sm:$0xff]
    %v415 = vld [vmem:[%s404 + $0x50] sm:$0xff]
    %v416 = vld [vmem:[%s404 + $0x58] sm:$0xff]
    %v417 = vld [vmem:[%s404 + $0x60] sm:$0xff]
    %v418 = vld [vmem:[%s404 + $0x68] sm:$0xff]
    %v419 = vld [vmem:[%s404 + $0x70] sm:$0xff]
    %v420 = vld [vmem:[%s404 + $0x78] sm:$0xff]
    %421 = vmatprep.subr.mxu0 0.0
    %422 = vmatpush1.msra.mxu0 %v405
    %423 = vmatprep.subr.mxu0 0.0
    %424 = vmatpush1.msra.mxu0 %v406
    %425 = vmatprep.subr.mxu0 0.0
    %426 = vmatpush1.msra.mxu0 %v407
    %427 = vmatprep.subr.mxu0 0.0
    %428 = vmatpush1.msra.mxu0 %v408
    %429 = vmatprep.subr.mxu0 0.0
    %430 = vmatpush1.msra.mxu0 %v409
    %431 = vmatprep.subr.mxu0 0.0
    %432 = vmatpush1.msra.mxu0 %v410
    %433 = vmatprep.subr.mxu0 0.0
    %434 = vmatpush1.msra.mxu0 %v411
    %435 = vmatprep.subr.mxu0 0.0
    %436 = vmatpush1.msra.mxu0 %v412
    %437 = vmatprep.subr.mxu0 0.0
    %438 = vmatpush1.msra.mxu0 %v413
    %439 = vmatprep.subr.mxu0 0.0
    %440 = vmatpush1.msra.mxu0 %v414
    %441 = vmatprep.subr.mxu0 0.0
    %442 = vmatpush1.msra.mxu0 %v415
    %443 = vmatprep.subr.mxu0 0.0
    %444 = vmatpush1.msra.mxu0 %v416
    %445 = vmatprep.subr.mxu0 0.0
    %446 = vmatpush1.msra.mxu0 %v417
    %447 = vmatprep.subr.mxu0 0.0
    %448 = vmatpush1.msra.mxu0 %v418
    %449 = vmatprep.subr.mxu0 0.0
    %450 = vmatpush1.msra.mxu0 %v419
    %451 = vmatprep.subr.mxu0 0.0
    %452 = vmatpush1.msra.mxu0 %v420
    %453 = vmatprep.subr.mxu0 0.0
    %454 = vmatpush1.msra.mxu0 0.0
    %455 = vmatprep.subr.mxu0 0.0
    %456 = vmatpush1.msra.mxu0 0.0
    %457 = vmatprep.subr.mxu0 0.0
    %458 = vmatpush1.msra.mxu0 0.0
    %459 = vmatprep.subr.mxu0 0.0
    %460 = vmatpush1.msra.mxu0 0.0
    %461 = vmatprep.subr.mxu0 0.0
    %462 = vmatpush1.msra.mxu0 0.0
    %463 = vmatprep.subr.mxu0 0.0
    %464 = vmatpush1.msra.mxu0 0.0
    %465 = vmatprep.subr.mxu0 0.0
    %466 = vmatpush1.msra.mxu0 0.0
    %467 = vmatprep.subr.mxu0 0.0
    %468 = vmatpush1.msra.mxu0 0.0
    %469 = vmatprep.subr.mxu0 0.0
    %470 = vmatpush1.msra.mxu0 0.0
    %471 = vmatprep.subr.mxu0 0.0
    %472 = vmatpush1.msra.mxu0 0.0
    %473 = vmatprep.subr.mxu0 0.0
    %474 = vmatpush1.msra.mxu0 0.0
    %475 = vmatprep.subr.mxu0 0.0
    %476 = vmatpush1.msra.mxu0 0.0
    %477 = vmatprep.subr.mxu0 0.0
    %478 = vmatpush1.msra.mxu0 0.0
    %479 = vmatprep.subr.mxu0 0.0
    %480 = vmatpush1.msra.mxu0 0.0
    %481 = vmatprep.subr.mxu0 0.0
    %482 = vmatpush1.msra.mxu0 0.0
    %483 = vmatprep.subr.mxu0 0.0
    %484 = vmatpush1.msra.mxu0 0.0
    %485 = vmatprep.mubr.f32.mxu0 0.0
    %486 = vmatmul.mubr.f32.gmra.mrb[0].mxu0 %v40
    %v487 = vpop.f32.mrb[0].mxu0
    %v488 = vadd.f32 0.0, %v487
    %v489 = vpop.f32.mrb[0].mxu0
    %490 = vmatprep.mubr.f32.mxu0 0.0
    %491 = vmatmul.mubr.f32.gmra.mrb[0].mxu0 %v41
    %v492 = vpop.f32.mrb[0].mxu0
    %v493 = vadd.f32 0.0, %v492
    %v494 = vpop.f32.mrb[0].mxu0
    %495 = vdwg.mxu0
    %v496 = vrot.slane %v40, 4
    %v497 = vrot.slane %v41, 4
    %vm498 = vcmp.lt.s32.totalorder %v43, 4
    %v499 = vsel %vm498, %v496, %v497
    %v500 = vsel %vm498, %v497, %v496
    %v501 = vmul.f32 %v499, %v302
    %v502 = vmul.f32 %v500, %v303
    %v503 = vmul.f32 %v500, %v308
    %v504 = vmul.f32 %v499, %v309
    %v505 = vadd.f32 %v501, %v503
    %v506 = vadd.f32 %v502, %v504
    %v507 = vmul.f32 %v310, %v40
    %v508 = vmul.f32 %v311, %v41
    %v509 = vsub.f32 %v505, %v507
    %v510 = vsub.f32 %v506, %v508
    %v511 = vrot.slane %v396, 2
    %v512 = vrot.slane %v401, 2
    %v513 = vsel %vm256, %v511, %v512
    %v514 = vsel %vm256, %v512, %v511
    %v515 = vmul.f32 %v513, %v61
    %v516 = vmul.f32 %v514, %v62
    %v517 = vrot.slane %v396, 6
    %v518 = vrot.slane %v401, 6
    %v519 = vsel %vm263, %v517, %v518
    %v520 = vsel %vm263, %v518, %v517
    %v521 = vmul.f32 %v520, %v67
    %v522 = vmul.f32 %v519, %v68
    %v523 = vsub.f32 %v515, %v521
    %v524 = vsub.f32 %v516, %v522
    %v525 = vmul.f32 %v488, %v509
    %v526 = vmul.f32 %v493, %v510
    %v527 = vmul.f32 %v523, %v523
    %v528 = vmul.f32 %v524, %v524
    %v529 = vsub.f32 %v525, %v527
    %v530 = vsub.f32 %v526, %v528
    %v531 = vadd.f32 %v296, %v529
    %v532 = vadd.f32 %v297, %v530
    %vm533 = vcmp.lt.s32.totalorder %v43, 13
    %vm534 = vcmp.lt.s32.totalorder %v44, 13
    %v535 = vsel %vm533, 1, 0
    %v536 = vsel %vm534, 1, 0
    %v537 = vcvt.s32.f32 %v535
    %v538 = vcvt.s32.f32 %v536
    %vm539 = vcmp.ge.s32.totalorder %v43, 3
    %vm540 = vcmp.ge.s32.totalorder %v44, 3
    %v541 = vsel %vm539, 1, 0
    %v542 = vsel %vm540, 1, 0
    %v543 = vcvt.s32.f32 %v541
    %v544 = vcvt.s32.f32 %v542
    %vm545 = vcmp.lt.s32.totalorder %v43, 10
    %vm546 = vcmp.lt.s32.totalorder %v44, 10
    %v547 = vsel %vm545, 1, 0
    %v548 = vsel %vm546, 1, 0
    %v549 = vcvt.s32.f32 %v547
    %v550 = vcvt.s32.f32 %v548
    %vm551 = vcmp.ge.s32.totalorder %v43, 6
    %vm552 = vcmp.ge.s32.totalorder %v44, 6
    %v553 = vsel %vm551, 1, 0
    %v554 = vsel %vm552, 1, 0
    %v555 = vcvt.s32.f32 %v553
    %v556 = vcvt.s32.f32 %v554
    %v557 = vadd.f32 %v537, %v543
    %v558 = vadd.f32 %v538, %v544
    %s559 = scalar_lea.vmem [#allocation5], 512
    %v560 = vld [vmem:[%s559] sm:$0xff]
    %v561 = vld [vmem:[%s559 + $0x8] sm:$0xff]
    %v562 = vld [vmem:[%s559 + $0x10] sm:$0xff]
    %v563 = vld [vmem:[%s559 + $0x18] sm:$0xff]
    %v564 = vld [vmem:[%s559 + $0x20] sm:$0xff]
    %v565 = vld [vmem:[%s559 + $0x28] sm:$0xff]
    %v566 = vld [vmem:[%s559 + $0x30] sm:$0xff]
    %v567 = vld [vmem:[%s559 + $0x38] sm:$0xff]
    %v568 = vld [vmem:[%s559 + $0x40] sm:$0xff]
    %v569 = vld [vmem:[%s559 + $0x48] sm:$0xff]
    %v570 = vld [vmem:[%s559 + $0x50] sm:$0xff]
    %v571 = vld [vmem:[%s559 + $0x58] sm:$0xff]
    %v572 = vld [vmem:[%s559 + $0x60] sm:$0xff]
    %v573 = vld [vmem:[%s559 + $0x68] sm:$0xff]
    %v574 = vld [vmem:[%s559 + $0x70] sm:$0xff]
    %v575 = vld [vmem:[%s559 + $0x78] sm:$0xff]
    %576 = vmatprep.subr.mxu0 0.0
    %577 = vmatpush1.msra.mxu0 %v560
    %578 = vmatprep.subr.mxu0 0.0
    %579 = vmatpush1.msra.mxu0 %v561
    %580 = vmatprep.subr.mxu0 0.0
    %581 = vmatpush1.msra.mxu0 %v562
    %582 = vmatprep.subr.mxu0 0.0
    %583 = vmatpush1.msra.mxu0 %v563
    %584 = vmatprep.subr.mxu0 0.0
    %585 = vmatpush1.msra.mxu0 %v564
    %586 = vmatprep.subr.mxu0 0.0
    %587 = vmatpush1.msra.mxu0 %v565
    %588 = vmatprep.subr.mxu0 0.0
    %589 = vmatpush1.msra.mxu0 %v566
    %590 = vmatprep.subr.mxu0 0.0
    %591 = vmatpush1.msra.mxu0 %v567
    %592 = vmatprep.subr.mxu0 0.0
    %593 = vmatpush1.msra.mxu0 %v568
    %594 = vmatprep.subr.mxu0 0.0
    %595 = vmatpush1.msra.mxu0 %v569
    %596 = vmatprep.subr.mxu0 0.0
    %597 = vmatpush1.msra.mxu0 %v570
    %598 = vmatprep.subr.mxu0 0.0
    %599 = vmatpush1.msra.mxu0 %v571
    %600 = vmatprep.subr.mxu0 0.0
    %601 = vmatpush1.msra.mxu0 %v572
    %602 = vmatprep.subr.mxu0 0.0
    %603 = vmatpush1.msra.mxu0 %v573
    %604 = vmatprep.subr.mxu0 0.0
    %605 = vmatpush1.msra.mxu0 %v574
    %606 = vmatprep.subr.mxu0 0.0
    %607 = vmatpush1.msra.mxu0 %v575
    %608 = vmatprep.subr.mxu0 0.0
    %609 = vmatpush1.msra.mxu0 0.0
    %610 = vmatprep.subr.mxu0 0.0
    %611 = vmatpush1.msra.mxu0 0.0
    %612 = vmatprep.subr.mxu0 0.0
    %613 = vmatpush1.msra.mxu0 0.0
    %614 = vmatprep.subr.mxu0 0.0
    %615 = vmatpush1.msra.mxu0 0.0
    %616 = vmatprep.subr.mxu0 0.0
    %617 = vmatpush1.msra.mxu0 0.0
    %618 = vmatprep.subr.mxu0 0.0
    %619 = vmatpush1.msra.mxu0 0.0
    %620 = vmatprep.subr.mxu0 0.0
    %621 = vmatpush1.msra.mxu0 0.0
    %622 = vmatprep.subr.mxu0 0.0
    %623 = vmatpush1.msra.mxu0 0.0
    %624 = vmatprep.subr.mxu0 0.0
    %625 = vmatpush1.msra.mxu0 0.0
    %626 = vmatprep.subr.mxu0 0.0
    %627 = vmatpush1.msra.mxu0 0.0
    %628 = vmatprep.subr.mxu0 0.0
    %629 = vmatpush1.msra.mxu0 0.0
    %630 = vmatprep.subr.mxu0 0.0
    %631 = vmatpush1.msra.mxu0 0.0
    %632 = vmatprep.subr.mxu0 0.0
    %633 = vmatpush1.msra.mxu0 0.0
    %634 = vmatprep.subr.mxu0 0.0
    %635 = vmatpush1.msra.mxu0 0.0
    %636 = vmatprep.subr.mxu0 0.0
    %637 = vmatpush1.msra.mxu0 0.0
    %638 = vmatprep.subr.mxu0 0.0
    %639 = vmatpush1.msra.mxu0 0.0
    %640 = vmatprep.mubr.f32.mxu0 0.0
    %641 = vmatmul.mubr.f32.gmra.mrb[0].mxu0 %v40
    %v642 = vpop.f32.mrb[0].mxu0
    %v643 = vadd.f32 0.0, %v642
    %v644 = vpop.f32.mrb[0].mxu0
    %645 = vmatprep.mubr.f32.mxu0 0.0
    %646 = vmatmul.mubr.f32.gmra.mrb[0].mxu0 %v41
    %v647 = vpop.f32.mrb[0].mxu0
    %v648 = vadd.f32 0.0, %v647
    %v649 = vpop.f32.mrb[0].mxu0
    %650 = vdwg.mxu0
    %s651 = scalar_lea.vmem [#allocation5], 640
    %v652 = vld [vmem:[%s651] sm:$0xff]
    %v653 = vld [vmem:[%s651 + $0x8] sm:$0xff]
    %v654 = vld [vmem:[%s651 + $0x10] sm:$0xff]
    %v655 = vld [vmem:[%s651 + $0x18] sm:$0xff]
    %v656 = vld [vmem:[%s651 + $0x20] sm:$0xff]
    %v657 = vld [vmem:[%s651 + $0x28] sm:$0xff]
    %v658 = vld [vmem:[%s651 + $0x30] sm:$0xff]
    %v659 = vld [vmem:[%s651 + $0x38] sm:$0xff]
    %v660 = vld [vmem:[%s651 + $0x40] sm:$0xff]
    %v661 = vld [vmem:[%s651 + $0x48] sm:$0xff]
    %v662 = vld [vmem:[%s651 + $0x50] sm:$0xff]
    %v663 = vld [vmem:[%s651 + $0x58] sm:$0xff]
    %v664 = vld [vmem:[%s651 + $0x60] sm:$0xff]
    %v665 = vld [vmem:[%s651 + $0x68] sm:$0xff]
    %v666 = vld [vmem:[%s651 + $0x70] sm:$0xff]
    %v667 = vld [vmem:[%s651 + $0x78] sm:$0xff]
    %668 = vmatprep.subr.mxu0 0.0
    %669 = vmatpush1.msra.mxu0 %v652
    %670 = vmatprep.subr.mxu0 0.0
    %671 = vmatpush1.msra.mxu0 %v653
    %672 = vmatprep.subr.mxu0 0.0
    %673 = vmatpush1.msra.mxu0 %v654
    %674 = vmatprep.subr.mxu0 0.0
    %675 = vmatpush1.msra.mxu0 %v655
    %676 = vmatprep.subr.mxu0 0.0
    %677 = vmatpush1.msra.mxu0 %v656
    %678 = vmatprep.subr.mxu0 0.0
    %679 = vmatpush1.msra.mxu0 %v657
    %680 = vmatprep.subr.mxu0 0.0
    %681 = vmatpush1.msra.mxu0 %v658
    %682 = vmatprep.subr.mxu0 0.0
    %683 = vmatpush1.msra.mxu0 %v659
    %684 = vmatprep.subr.mxu0 0.0
    %685 = vmatpush1.msra.mxu0 %v660
    %686 = vmatprep.subr.mxu0 0.0
    %687 = vmatpush1.msra.mxu0 %v661
    %688 = vmatprep.subr.mxu0 0.0
    %689 = vmatpush1.msra.mxu0 %v662
    %690 = vmatprep.subr.mxu0 0.0
    %691 = vmatpush1.msra.mxu0 %v663
    %692 = vmatprep.subr.mxu0 0.0
    %693 = vmatpush1.msra.mxu0 %v664
    %694 = vmatprep.subr.mxu0 0.0
    %695 = vmatpush1.msra.mxu0 %v665
    %696 = vmatprep.subr.mxu0 0.0
    %697 = vmatpush1.msra.mxu0 %v666
    %698 = vmatprep.subr.mxu0 0.0
    %699 = vmatpush1.msra.mxu0 %v667
    %700 = vmatprep.subr.mxu0 0.0
    %701 = vmatpush1.msra.mxu0 0.0
    %702 = vmatprep.subr.mxu0 0.0
    %703 = vmatpush1.msra.mxu0 0.0
    %704 = vmatprep.subr.mxu0 0.0
    %705 = vmatpush1.msra.mxu0 0.0
    %706 = vmatprep.subr.mxu0 0.0
    %707 = vmatpush1.msra.mxu0 0.0
    %708 = vmatprep.subr.mxu0 0.0
    %709 = vmatpush1.msra.mxu0 0.0
    %710 = vmatprep.subr.mxu0 0.0
    %711 = vmatpush1.msra.mxu0 0.0
    %712 = vmatprep.subr.mxu0 0.0
    %713 = vmatpush1.msra.mxu0 0.0
    %714 = vmatprep.subr.mxu0 0.0
    %715 = vmatpush1.msra.mxu0 0.0
    %716 = vmatprep.subr.mxu0 0.0
    %717 = vmatpush1.msra.mxu0 0.0
    %718 = vmatprep.subr.mxu0 0.0
    %719 = vmatpush1.msra.mxu0 0.0
    %720 = vmatprep.subr.mxu0 0.0
    %721 = vmatpush1.msra.mxu0 0.0
    %722 = vmatprep.subr.mxu0 0.0
    %723 = vmatpush1.msra.mxu0 0.0
    %724 = vmatprep.subr.mxu0 0.0
    %725 = vmatpush1.msra.mxu0 0.0
    %726 = vmatprep.subr.mxu0 0.0
    %727 = vmatpush1.msra.mxu0 0.0
    %728 = vmatprep.subr.mxu0 0.0
    %729 = vmatpush1.msra.mxu0 0.0
    %730 = vmatprep.subr.mxu0 0.0
    %731 = vmatpush1.msra.mxu0 0.0
    %732 = vmatprep.mubr.f32.mxu0 0.0
    %733 = vmatmul.mubr.f32.gmra.mrb[0].mxu0 %v40
    %v734 = vpop.f32.mrb[0].mxu0
    %v735 = vadd.f32 0.0, %v734
    %v736 = vpop.f32.mrb[0].mxu0
    %737 = vmatprep.mubr.f32.mxu0 0.0
    %738 = vmatmul.mubr.f32.gmra.mrb[0].mxu0 %v41
    %v739 = vpop.f32.mrb[0].mxu0
    %v740 = vadd.f32 0.0, %v739
    %v741 = vpop.f32.mrb[0].mxu0
    %742 = vdwg.mxu0
    %v743 = vmul.f32 %v264, %v549
    %v744 = vmul.f32 %v265, %v550
    %v745 = vmul.f32 %v258, %v555
    %v746 = vmul.f32 %v257, %v556
    %v747 = vadd.f32 %v743, %v745
    %v748 = vadd.f32 %v744, %v746
    %v749 = vmul.f32 %v557, %v40
    %v750 = vmul.f32 %v558, %v41
    %v751 = vsub.f32 %v747, %v749
    %v752 = vsub.f32 %v748, %v750
    %v753 = vrot.slane %v643, 3
    %v754 = vrot.slane %v648, 3
    %vm755 = vcmp.lt.s32.totalorder %v43, 5
    %v756 = vsel %vm755, %v753, %v754
    %v757 = vsel %vm755, %v754, %v753
    %v758 = vmul.f32 %v756, %v537
    %v759 = vmul.f32 %v757, %v538
    %v760 = vrot.slane %v643, 5
    %v761 = vrot.slane %v648, 5
    %vm762 = vcmp.lt.s32.totalorder %v43, 3
    %v763 = vsel %vm762, %v760, %v761
    %v764 = vsel %vm762, %v761, %v760
    %v765 = vmul.f32 %v764, %v543
    %v766 = vmul.f32 %v763, %v544
    %v767 = vsub.f32 %v758, %v765
    %v768 = vsub.f32 %v759, %v766
    %v769 = vmul.f32 %v735, %v751
    %v770 = vmul.f32 %v740, %v752
    %v771 = vmul.f32 %v767, %v767
    %v772 = vmul.f32 %v768, %v768
    %v773 = vsub.f32 %v769, %v771
    %v774 = vsub.f32 %v770, %v772
    %v775 = vadd.f32 %v531, %v773
    %v776 = vadd.f32 %v532, %v774
    %vm777 = vcmp.lt.s32.totalorder %v43, 8
    %vm778 = vcmp.lt.s32.totalorder %v44, 8
    %v779 = vsel %vm777, 1, 0
    %v780 = vsel %vm778, 1, 0
    %v781 = vcvt.s32.f32 %v779
    %v782 = vcvt.s32.f32 %v780
    %vm783 = vcmp.ge.s32.totalorder %v43, 8
    %vm784 = vcmp.ge.s32.totalorder %v44, 8
    %v785 = vsel %vm783, 1, 0
    %v786 = vsel %vm784, 1, 0
    %v787 = vcvt.s32.f32 %v785
    %v788 = vcvt.s32.f32 %v786
    %v789 = vadd.f32 %v302, %v308
    %v790 = vadd.f32 %v303, %v309
    %s791 = scalar_lea.vmem [#allocation5], 768
    %v792 = vld [vmem:[%s791] sm:$0xff]
    %v793 = vld [vmem:[%s791 + $0x8] sm:$0xff]
    %v794 = vld [vmem:[%s791 + $0x10] sm:$0xff]
    %v795 = vld [vmem:[%s791 + $0x18] sm:$0xff]
    %v796 = vld [vmem:[%s791 + $0x20] sm:$0xff]
    %v797 = vld [vmem:[%s791 + $0x28] sm:$0xff]
    %v798 = vld [vmem:[%s791 + $0x30] sm:$0xff]
    %v799 = vld [vmem:[%s791 + $0x38] sm:$0xff]
    %v800 = vld [vmem:[%s791 + $0x40] sm:$0xff]
    %v801 = vld [vmem:[%s791 + $0x48] sm:$0xff]
    %v802 = vld [vmem:[%s791 + $0x50] sm:$0xff]
    %v803 = vld [vmem:[%s791 + $0x58] sm:$0xff]
    %v804 = vld [vmem:[%s791 + $0x60] sm:$0xff]
    %v805 = vld [vmem:[%s791 + $0x68] sm:$0xff]
    %v806 = vld [vmem:[%s791 + $0x70] sm:$0xff]
    %v807 = vld [vmem:[%s791 + $0x78] sm:$0xff]
    %808 = vmatprep.subr.mxu0 0.0
    %809 = vmatpush1.msra.mxu0 %v792
    %810 = vmatprep.subr.mxu0 0.0
    %811 = vmatpush1.msra.mxu0 %v793
    %812 = vmatprep.subr.mxu0 0.0
    %813 = vmatpush1.msra.mxu0 %v794
    %814 = vmatprep.subr.mxu0 0.0
    %815 = vmatpush1.msra.mxu0 %v795
    %816 = vmatprep.subr.mxu0 0.0
    %817 = vmatpush1.msra.mxu0 %v796
    %818 = vmatprep.subr.mxu0 0.0
    %819 = vmatpush1.msra.mxu0 %v797
    %820 = vmatprep.subr.mxu0 0.0
    %821 = vmatpush1.msra.mxu0 %v798
    %822 = vmatprep.subr.mxu0 0.0
    %823 = vmatpush1.msra.mxu0 %v799
    %824 = vmatprep.subr.mxu0 0.0
    %825 = vmatpush1.msra.mxu0 %v800
    %826 = vmatprep.subr.mxu0 0.0
    %827 = vmatpush1.msra.mxu0 %v801
    %828 = vmatprep.subr.mxu0 0.0
    %829 = vmatpush1.msra.mxu0 %v802
    %830 = vmatprep.subr.mxu0 0.0
    %831 = vmatpush1.msra.mxu0 %v803
    %832 = vmatprep.subr.mxu0 0.0
    %833 = vmatpush1.msra.mxu0 %v804
    %834 = vmatprep.subr.mxu0 0.0
    %835 = vmatpush1.msra.mxu0 %v805
    %836 = vmatprep.subr.mxu0 0.0
    %837 = vmatpush1.msra.mxu0 %v806
    %838 = vmatprep.subr.mxu0 0.0
    %839 = vmatpush1.msra.mxu0 %v807
    %840 = vmatprep.subr.mxu0 0.0
    %841 = vmatpush1.msra.mxu0 0.0
    %842 = vmatprep.subr.mxu0 0.0
    %843 = vmatpush1.msra.mxu0 0.0
    %844 = vmatprep.subr.mxu0 0.0
    %845 = vmatpush1.msra.mxu0 0.0
    %846 = vmatprep.subr.mxu0 0.0
    %847 = vmatpush1.msra.mxu0 0.0
    %848 = vmatprep.subr.mxu0 0.0
    %849 = vmatpush1.msra.mxu0 0.0
    %850 = vmatprep.subr.mxu0 0.0
    %851 = vmatpush1.msra.mxu0 0.0
    %852 = vmatprep.subr.mxu0 0.0
    %853 = vmatpush1.msra.mxu0 0.0
    %854 = vmatprep.subr.mxu0 0.0
    %855 = vmatpush1.msra.mxu0 0.0
    %856 = vmatprep.subr.mxu0 0.0
    %857 = vmatpush1.msra.mxu0 0.0
    %858 = vmatprep.subr.mxu0 0.0
    %859 = vmatpush1.msra.mxu0 0.0
    %860 = vmatprep.subr.mxu0 0.0
    %861 = vmatpush1.msra.mxu0 0.0
    %862 = vmatprep.subr.mxu0 0.0
    %863 = vmatpush1.msra.mxu0 0.0
    %864 = vmatprep.subr.mxu0 0.0
    %865 = vmatpush1.msra.mxu0 0.0
    %866 = vmatprep.subr.mxu0 0.0
    %867 = vmatpush1.msra.mxu0 0.0
    %868 = vmatprep.subr.mxu0 0.0
    %869 = vmatpush1.msra.mxu0 0.0
    %870 = vmatprep.subr.mxu0 0.0
    %871 = vmatpush1.msra.mxu0 0.0
    %872 = vmatprep.mubr.f32.mxu0 0.0
    %873 = vmatmul.mubr.f32.gmra.mrb[0].mxu0 %v40
    %v874 = vpop.f32.mrb[0].mxu0
    %v875 = vadd.f32 0.0, %v874
    %v876 = vpop.f32.mrb[0].mxu0
    %877 = vmatprep.mubr.f32.mxu0 0.0
    %878 = vmatmul.mubr.f32.gmra.mrb[0].mxu0 %v41
    %v879 = vpop.f32.mrb[0].mxu0
    %v880 = vadd.f32 0.0, %v879
    %v881 = vpop.f32.mrb[0].mxu0
    %882 = vdwg.mxu0
    %s883 = scalar_lea.vmem [#allocation5], 896
    %v884 = vld [vmem:[%s883] sm:$0xff]
    %v885 = vld [vmem:[%s883 + $0x8] sm:$0xff]
    %v886 = vld [vmem:[%s883 + $0x10] sm:$0xff]
    %v887 = vld [vmem:[%s883 + $0x18] sm:$0xff]
    %v888 = vld [vmem:[%s883 + $0x20] sm:$0xff]
    %v889 = vld [vmem:[%s883 + $0x28] sm:$0xff]
    %v890 = vld [vmem:[%s883 + $0x30] sm:$0xff]
    %v891 = vld [vmem:[%s883 + $0x38] sm:$0xff]
    %v892 = vld [vmem:[%s883 + $0x40] sm:$0xff]
    %v893 = vld [vmem:[%s883 + $0x48] sm:$0xff]
    %v894 = vld [vmem:[%s883 + $0x50] sm:$0xff]
    %v895 = vld [vmem:[%s883 + $0x58] sm:$0xff]
    %v896 = vld [vmem:[%s883 + $0x60] sm:$0xff]
    %v897 = vld [vmem:[%s883 + $0x68] sm:$0xff]
    %v898 = vld [vmem:[%s883 + $0x70] sm:$0xff]
    %v899 = vld [vmem:[%s883 + $0x78] sm:$0xff]
    %900 = vmatprep.subr.mxu0 0.0
    %901 = vmatpush1.msra.mxu0 %v884
    %902 = vmatprep.subr.mxu0 0.0
    %903 = vmatpush1.msra.mxu0 %v885
    %904 = vmatprep.subr.mxu0 0.0
    %905 = vmatpush1.msra.mxu0 %v886
    %906 = vmatprep.subr.mxu0 0.0
    %907 = vmatpush1.msra.mxu0 %v887
    %908 = vmatprep.subr.mxu0 0.0
    %909 = vmatpush1.msra.mxu0 %v888
    %910 = vmatprep.subr.mxu0 0.0
    %911 = vmatpush1.msra.mxu0 %v889
    %912 = vmatprep.subr.mxu0 0.0
    %913 = vmatpush1.msra.mxu0 %v890
    %914 = vmatprep.subr.mxu0 0.0
    %915 = vmatpush1.msra.mxu0 %v891
    %916 = vmatprep.subr.mxu0 0.0
    %917 = vmatpush1.msra.mxu0 %v892
    %918 = vmatprep.subr.mxu0 0.0
    %919 = vmatpush1.msra.mxu0 %v893
    %920 = vmatprep.subr.mxu0 0.0
    %921 = vmatpush1.msra.mxu0 %v894
    %922 = vmatprep.subr.mxu0 0.0
    %923 = vmatpush1.msra.mxu0 %v895
    %924 = vmatprep.subr.mxu0 0.0
    %925 = vmatpush1.msra.mxu0 %v896
    %926 = vmatprep.subr.mxu0 0.0
    %927 = vmatpush1.msra.mxu0 %v897
    %928 = vmatprep.subr.mxu0 0.0
    %929 = vmatpush1.msra.mxu0 %v898
    %930 = vmatprep.subr.mxu0 0.0
    %931 = vmatpush1.msra.mxu0 %v899
    %932 = vmatprep.subr.mxu0 0.0
    %933 = vmatpush1.msra.mxu0 0.0
    %934 = vmatprep.subr.mxu0 0.0
    %935 = vmatpush1.msra.mxu0 0.0
    %936 = vmatprep.subr.mxu0 0.0
    %937 = vmatpush1.msra.mxu0 0.0
    %938 = vmatprep.subr.mxu0 0.0
    %939 = vmatpush1.msra.mxu0 0.0
    %940 = vmatprep.subr.mxu0 0.0
    %941 = vmatpush1.msra.mxu0 0.0
    %942 = vmatprep.subr.mxu0 0.0
    %943 = vmatpush1.msra.mxu0 0.0
    %944 = vmatprep.subr.mxu0 0.0
    %945 = vmatpush1.msra.mxu0 0.0
    %946 = vmatprep.subr.mxu0 0.0
    %947 = vmatpush1.msra.mxu0 0.0
    %948 = vmatprep.subr.mxu0 0.0
    %949 = vmatpush1.msra.mxu0 0.0
    %950 = vmatprep.subr.mxu0 0.0
    %951 = vmatpush1.msra.mxu0 0.0
    %952 = vmatprep.subr.mxu0 0.0
    %953 = vmatpush1.msra.mxu0 0.0
    %954 = vmatprep.subr.mxu0 0.0
    %955 = vmatpush1.msra.mxu0 0.0
    %956 = vmatprep.subr.mxu0 0.0
    %957 = vmatpush1.msra.mxu0 0.0
    %958 = vmatprep.subr.mxu0 0.0
    %959 = vmatpush1.msra.mxu0 0.0
    %960 = vmatprep.subr.mxu0 0.0
    %961 = vmatpush1.msra.mxu0 0.0
    %962 = vmatprep.subr.mxu0 0.0
    %963 = vmatpush1.msra.mxu0 0.0
    %964 = vmatprep.mubr.f32.mxu0 0.0
    %965 = vmatmul.mubr.f32.gmra.mrb[0].mxu0 %v40
    %v966 = vpop.f32.mrb[0].mxu0
    %v967 = vadd.f32 0.0, %v966
    %v968 = vpop.f32.mrb[0].mxu0
    %969 = vmatprep.mubr.f32.mxu0 0.0
    %970 = vmatmul.mubr.f32.gmra.mrb[0].mxu0 %v41
    %v971 = vpop.f32.mrb[0].mxu0
    %v972 = vadd.f32 0.0, %v971
    %v973 = vpop.f32.mrb[0].mxu0
    %974 = vdwg.mxu0
    %v975 = vmul.f32 %v41, %v781
    %v976 = vmul.f32 %v40, %v782
    %v977 = vmul.f32 %v41, %v787
    %v978 = vmul.f32 %v40, %v788
    %v979 = vadd.f32 %v975, %v977
    %v980 = vadd.f32 %v976, %v978
    %v981 = vmul.f32 %v789, %v40
    %v982 = vmul.f32 %v790, %v41
    %v983 = vsub.f32 %v979, %v981
    %v984 = vsub.f32 %v980, %v982
    %v985 = vrot.slane %v875, 4
    %v986 = vrot.slane %v880, 4
    %v987 = vsel %vm498, %v985, %v986
    %v988 = vsel %vm498, %v986, %v985
    %v989 = vmul.f32 %v987, %v302
    %v990 = vmul.f32 %v988, %v303
    %v991 = vmul.f32 %v988, %v308
    %v992 = vmul.f32 %v987, %v309
    %v993 = vsub.f32 %v989, %v991
    %v994 = vsub.f32 %v990, %v992
    %v995 = vmul.f32 %v967, %v983
    %v996 = vmul.f32 %v972, %v984
    %v997 = vmul.f32 %v993, %v993
    %v998 = vmul.f32 %v994, %v994
    %v999 = vsub.f32 %v995, %v997
    %v1000 = vsub.f32 %v996, %v998
    %v1001 = vadd.f32 %v775, %v999
    %v1002 = vadd.f32 %v776, %v1000
    %vm1003 = vcmp.lt.s32.totalorder %v43, 11
    %vm1004 = vcmp.lt.s32.totalorder %v44, 11
    %v1005 = vsel %vm1003, 1, 0
    %v1006 = vsel %vm1004, 1, 0
    %v1007 = vcvt.s32.f32 %v1005
    %v1008 = vcvt.s32.f32 %v1006
    %vm1009 = vcmp.ge.s32.totalorder %v43, 5
    %vm1010 = vcmp.ge.s32.totalorder %v44, 5
    %v1011 = vsel %vm1009, 1, 0
    %v1012 = vsel %vm1010, 1, 0
    %v1013 = vcvt.s32.f32 %v1011
    %v1014 = vcvt.s32.f32 %v1012
    %vm1015 = vcmp.lt.s32.totalorder %v44, 6
    %v1016 = vsel %vm256, 1, 0
    %v1017 = vsel %vm1015, 1, 0
    %v1018 = vcvt.s32.f32 %v1016
    %v1019 = vcvt.s32.f32 %v1017
    %vm1020 = vcmp.ge.s32.totalorder %v43, 10
    %vm1021 = vcmp.ge.s32.totalorder %v44, 10
    %v1022 = vsel %vm1020, 1, 0
    %v1023 = vsel %vm1021, 1, 0
    %v1024 = vcvt.s32.f32 %v1022
    %v1025 = vcvt.s32.f32 %v1023
    %v1026 = vadd.f32 %v1007, %v1013
    %v1027 = vadd.f32 %v1008, %v1014
    %s1028 = scalar_lea.vmem [#allocation5], 1024
    %v1029 = vld [vmem:[%s1028] sm:$0xff]
    %v1030 = vld [vmem:[%s1028 + $0x8] sm:$0xff]
    %v1031 = vld [vmem:[%s1028 + $0x10] sm:$0xff]
    %v1032 = vld [vmem:[%s1028 + $0x18] sm:$0xff]
    %v1033 = vld [vmem:[%s1028 + $0x20] sm:$0xff]
    %v1034 = vld [vmem:[%s1028 + $0x28] sm:$0xff]
    %v1035 = vld [vmem:[%s1028 + $0x30] sm:$0xff]
    %v1036 = vld [vmem:[%s1028 + $0x38] sm:$0xff]
    %v1037 = vld [vmem:[%s1028 + $0x40] sm:$0xff]
    %v1038 = vld [vmem:[%s1028 + $0x48] sm:$0xff]
    %v1039 = vld [vmem:[%s1028 + $0x50] sm:$0xff]
    %v1040 = vld [vmem:[%s1028 + $0x58] sm:$0xff]
    %v1041 = vld [vmem:[%s1028 + $0x60] sm:$0xff]
    %v1042 = vld [vmem:[%s1028 + $0x68] sm:$0xff]
    %v1043 = vld [vmem:[%s1028 + $0x70] sm:$0xff]
    %v1044 = vld [vmem:[%s1028 + $0x78] sm:$0xff]
    %1045 = vmatprep.subr.mxu0 0.0
    %1046 = vmatpush1.msra.mxu0 %v1029
    %1047 = vmatprep.subr.mxu0 0.0
    %1048 = vmatpush1.msra.mxu0 %v1030
    %1049 = vmatprep.subr.mxu0 0.0
    %1050 = vmatpush1.msra.mxu0 %v1031
    %1051 = vmatprep.subr.mxu0 0.0
    %1052 = vmatpush1.msra.mxu0 %v1032
    %1053 = vmatprep.subr.mxu0 0.0
    %1054 = vmatpush1.msra.mxu0 %v1033
    %1055 = vmatprep.subr.mxu0 0.0
    %1056 = vmatpush1.msra.mxu0 %v1034
    %1057 = vmatprep.subr.mxu0 0.0
    %1058 = vmatpush1.msra.mxu0 %v1035
    %1059 = vmatprep.subr.mxu0 0.0
    %1060 = vmatpush1.msra.mxu0 %v1036
    %1061 = vmatprep.subr.mxu0 0.0
    %1062 = vmatpush1.msra.mxu0 %v1037
    %1063 = vmatprep.subr.mxu0 0.0
    %1064 = vmatpush1.msra.mxu0 %v1038
    %1065 = vmatprep.subr.mxu0 0.0
    %1066 = vmatpush1.msra.mxu0 %v1039
    %1067 = vmatprep.subr.mxu0 0.0
    %1068 = vmatpush1.msra.mxu0 %v1040
    %1069 = vmatprep.subr.mxu0 0.0
    %1070 = vmatpush1.msra.mxu0 %v1041
    %1071 = vmatprep.subr.mxu0 0.0
    %1072 = vmatpush1.msra.mxu0 %v1042
    %1073 = vmatprep.subr.mxu0 0.0
    %1074 = vmatpush1.msra.mxu0 %v1043
    %1075 = vmatprep.subr.mxu0 0.0
    %1076 = vmatpush1.msra.mxu0 %v1044
    %1077 = vmatprep.subr.mxu0 0.0
    %1078 = vmatpush1.msra.mxu0 0.0
    %1079 = vmatprep.subr.mxu0 0.0
    %1080 = vmatpush1.msra.mxu0 0.0
    %1081 = vmatprep.subr.mxu0 0.0
    %1082 = vmatpush1.msra.mxu0 0.0
    %1083 = vmatprep.subr.mxu0 0.0
    %1084 = vmatpush1.msra.mxu0 0.0
    %1085 = vmatprep.subr.mxu0 0.0
    %1086 = vmatpush1.msra.mxu0 0.0
    %1087 = vmatprep.subr.mxu0 0.0
    %1088 = vmatpush1.msra.mxu0 0.0
    %1089 = vmatprep.subr.mxu0 0.0
    %1090 = vmatpush1.msra.mxu0 0.0
    %1091 = vmatprep.subr.mxu0 0.0
    %1092 = vmatpush1.msra.mxu0 0.0
    %1093 = vmatprep.subr.mxu0 0.0
    %1094 = vmatpush1.msra.mxu0 0.0
    %1095 = vmatprep.subr.mxu0 0.0
    %1096 = vmatpush1.msra.mxu0 0.0
    %1097 = vmatprep.subr.mxu0 0.0
    %1098 = vmatpush1.msra.mxu0 0.0
    %1099 = vmatprep.subr.mxu0 0.0
    %1100 = vmatpush1.msra.mxu0 0.0
    %1101 = vmatprep.subr.mxu0 0.0
    %1102 = vmatpush1.msra.mxu0 0.0
    %1103 = vmatprep.subr.mxu0 0.0
    %1104 = vmatpush1.msra.mxu0 0.0
    %1105 = vmatprep.subr.mxu0 0.0
    %1106 = vmatpush1.msra.mxu0 0.0
    %1107 = vmatprep.subr.mxu0 0.0
    %1108 = vmatpush1.msra.mxu0 0.0
    %1109 = vmatprep.mubr.f32.mxu0 0.0
    %1110 = vmatmul.mubr.f32.gmra.mrb[0].mxu0 %v40
    %v1111 = vpop.f32.mrb[0].mxu0
    %v1112 = vadd.f32 0.0, %v1111
    %v1113 = vpop.f32.mrb[0].mxu0
    %1114 = vmatprep.mubr.f32.mxu0 0.0
    %1115 = vmatmul.mubr.f32.gmra.mrb[0].mxu0 %v41
    %v1116 = vpop.f32.mrb[0].mxu0
    %v1117 = vadd.f32 0.0, %v1116
    %v1118 = vpop.f32.mrb[0].mxu0
    %1119 = vdwg.mxu0
    %s1120 = scalar_lea.vmem [#allocation5], 1152
    %v1121 = vld [vmem:[%s1120] sm:$0xff]
    %v1122 = vld [vmem:[%s1120 + $0x8] sm:$0xff]
    %v1123 = vld [vmem:[%s1120 + $0x10] sm:$0xff]
    %v1124 = vld [vmem:[%s1120 + $0x18] sm:$0xff]
    %v1125 = vld [vmem:[%s1120 + $0x20] sm:$0xff]
    %v1126 = vld [vmem:[%s1120 + $0x28] sm:$0xff]
    %v1127 = vld [vmem:[%s1120 + $0x30] sm:$0xff]
    %v1128 = vld [vmem:[%s1120 + $0x38] sm:$0xff]
    %v1129 = vld [vmem:[%s1120 + $0x40] sm:$0xff]
    %v1130 = vld [vmem:[%s1120 + $0x48] sm:$0xff]
    %v1131 = vld [vmem:[%s1120 + $0x50] sm:$0xff]
    %v1132 = vld [vmem:[%s1120 + $0x58] sm:$0xff]
    %v1133 = vld [vmem:[%s1120 + $0x60] sm:$0xff]
    %v1134 = vld [vmem:[%s1120 + $0x68] sm:$0xff]
    %v1135 = vld [vmem:[%s1120 + $0x70] sm:$0xff]
    %v1136 = vld [vmem:[%s1120 + $0x78] sm:$0xff]
    %1137 = vmatprep.subr.mxu0 0.0
    %1138 = vmatpush1.msra.mxu0 %v1121
    %1139 = vmatprep.subr.mxu0 0.0
    %1140 = vmatpush1.msra.mxu0 %v1122
    %1141 = vmatprep.subr.mxu0 0.0
    %1142 = vmatpush1.msra.mxu0 %v1123
    %1143 = vmatprep.subr.mxu0 0.0
    %1144 = vmatpush1.msra.mxu0 %v1124
    %1145 = vmatprep.subr.mxu0 0.0
    %1146 = vmatpush1.msra.mxu0 %v1125
    %1147 = vmatprep.subr.mxu0 0.0
    %1148 = vmatpush1.msra.mxu0 %v1126
    %1149 = vmatprep.subr.mxu0 0.0
    %1150 = vmatpush1.msra.mxu0 %v1127
    %1151 = vmatprep.subr.mxu0 0.0
    %1152 = vmatpush1.msra.mxu0 %v1128
    %1153 = vmatprep.subr.mxu0 0.0
    %1154 = vmatpush1.msra.mxu0 %v1129
    %1155 = vmatprep.subr.mxu0 0.0
    %1156 = vmatpush1.msra.mxu0 %v1130
    %1157 = vmatprep.subr.mxu0 0.0
    %1158 = vmatpush1.msra.mxu0 %v1131
    %1159 = vmatprep.subr.mxu0 0.0
    %1160 = vmatpush1.msra.mxu0 %v1132
    %1161 = vmatprep.subr.mxu0 0.0
    %1162 = vmatpush1.msra.mxu0 %v1133
    %1163 = vmatprep.subr.mxu0 0.0
    %1164 = vmatpush1.msra.mxu0 %v1134
    %1165 = vmatprep.subr.mxu0 0.0
    %1166 = vmatpush1.msra.mxu0 %v1135
    %1167 = vmatprep.subr.mxu0 0.0
    %1168 = vmatpush1.msra.mxu0 %v1136
    %1169 = vmatprep.subr.mxu0 0.0
    %1170 = vmatpush1.msra.mxu0 0.0
    %1171 = vmatprep.subr.mxu0 0.0
    %1172 = vmatpush1.msra.mxu0 0.0
    %1173 = vmatprep.subr.mxu0 0.0
    %1174 = vmatpush1.msra.mxu0 0.0
    %1175 = vmatprep.subr.mxu0 0.0
    %1176 = vmatpush1.msra.mxu0 0.0
    %1177 = vmatprep.subr.mxu0 0.0
    %1178 = vmatpush1.msra.mxu0 0.0
    %1179 = vmatprep.subr.mxu0 0.0
    %1180 = vmatpush1.msra.mxu0 0.0
    %1181 = vmatprep.subr.mxu0 0.0
    %1182 = vmatpush1.msra.mxu0 0.0
    %1183 = vmatprep.subr.mxu0 0.0
    %1184 = vmatpush1.msra.mxu0 0.0
    %1185 = vmatprep.subr.mxu0 0.0
    %1186 = vmatpush1.msra.mxu0 0.0
    %1187 = vmatprep.subr.mxu0 0.0
    %1188 = vmatpush1.msra.mxu0 0.0
    %1189 = vmatprep.subr.mxu0 0.0
    %1190 = vmatpush1.msra.mxu0 0.0
    %1191 = vmatprep.subr.mxu0 0.0
    %1192 = vmatpush1.msra.mxu0 0.0
    %1193 = vmatprep.subr.mxu0 0.0
    %1194 = vmatpush1.msra.mxu0 0.0
    %1195 = vmatprep.subr.mxu0 0.0
    %1196 = vmatpush1.msra.mxu0 0.0
    %1197 = vmatprep.subr.mxu0 0.0
    %1198 = vmatpush1.msra.mxu0 0.0
    %1199 = vmatprep.subr.mxu0 0.0
    %1200 = vmatpush1.msra.mxu0 0.0
    %1201 = vmatprep.mubr.f32.mxu0 0.0
    %1202 = vmatmul.mubr.f32.gmra.mrb[0].mxu0 %v40
    %v1203 = vpop.f32.mrb[0].mxu0
    %v1204 = vadd.f32 0.0, %v1203
    %v1205 = vpop.f32.mrb[0].mxu0
    %1206 = vmatprep.mubr.f32.mxu0 0.0
    %1207 = vmatmul.mubr.f32.gmra.mrb[0].mxu0 %v41
    %v1208 = vpop.f32.mrb[0].mxu0
    %v1209 = vadd.f32 0.0, %v1208
    %v1210 = vpop.f32.mrb[0].mxu0
    %1211 = vdwg.mxu0
    %v1212 = vmul.f32 %v258, %v1018
    %v1213 = vmul.f32 %v257, %v1019
    %v1214 = vmul.f32 %v264, %v1024
    %v1215 = vmul.f32 %v265, %v1025
    %v1216 = vadd.f32 %v1212, %v1214
    %v1217 = vadd.f32 %v1213, %v1215
    %v1218 = vmul.f32 %v1026, %v40
    %v1219 = vmul.f32 %v1027, %v41
    %v1220 = vsub.f32 %v1216, %v1218
    %v1221 = vsub.f32 %v1217, %v1219
    %v1222 = vrot.slane %v1112, 5
    %v1223 = vrot.slane %v1117, 5
    %v1224 = vsel %vm762, %v1222, %v1223
    %v1225 = vsel %vm762, %v1223, %v1222
    %v1226 = vmul.f32 %v1224, %v1007
    %v1227 = vmul.f32 %v1225, %v1008
    %v1228 = vrot.slane %v1112, 3
    %v1229 = vrot.slane %v1117, 3
    %v1230 = vsel %vm755, %v1228, %v1229
    %v1231 = vsel %vm755, %v1229, %v1228
    %v1232 = vmul.f32 %v1231, %v1013
    %v1233 = vmul.f32 %v1230, %v1014
    %v1234 = vsub.f32 %v1226, %v1232
    %v1235 = vsub.f32 %v1227, %v1233
    %v1236 = vmul.f32 %v1204, %v1220
    %v1237 = vmul.f32 %v1209, %v1221
    %v1238 = vmul.f32 %v1234, %v1234
    %v1239 = vmul.f32 %v1235, %v1235
    %v1240 = vsub.f32 %v1236, %v1238
    %v1241 = vsub.f32 %v1237, %v1239
    %v1242 = vadd.f32 %v1001, %v1240
    %v1243 = vadd.f32 %v1002, %v1241
    %vm1244 = vcmp.lt.s32.totalorder %v44, 4
    %v1245 = vsel %vm498, 1, 0
    %v1246 = vsel %vm1244, 1, 0
    %v1247 = vcvt.s32.f32 %v1245
    %v1248 = vcvt.s32.f32 %v1246
    %vm1249 = vcmp.ge.s32.totalorder %v43, 12
    %vm1250 = vcmp.ge.s32.totalorder %v44, 12
    %v1251 = vsel %vm1249, 1, 0
    %v1252 = vsel %vm1250, 1, 0
    %v1253 = vcvt.s32.f32 %v1251
    %v1254 = vcvt.s32.f32 %v1252
    %v1255 = vadd.f32 %v549, %v555
    %v1256 = vadd.f32 %v550, %v556
    %s1257 = scalar_lea.vmem [#allocation5], 1280
    %v1258 = vld [vmem:[%s1257] sm:$0xff]
    %v1259 = vld [vmem:[%s1257 + $0x8] sm:$0xff]
    %v1260 = vld [vmem:[%s1257 + $0x10] sm:$0xff]
    %v1261 = vld [vmem:[%s1257 + $0x18] sm:$0xff]
    %v1262 = vld [vmem:[%s1257 + $0x20] sm:$0xff]
    %v1263 = vld [vmem:[%s1257 + $0x28] sm:$0xff]
    %v1264 = vld [vmem:[%s1257 + $0x30] sm:$0xff]
    %v1265 = vld [vmem:[%s1257 + $0x38] sm:$0xff]
    %v1266 = vld [vmem:[%s1257 + $0x40] sm:$0xff]
    %v1267 = vld [vmem:[%s1257 + $0x48] sm:$0xff]
    %v1268 = vld [vmem:[%s1257 + $0x50] sm:$0xff]
    %v1269 = vld [vmem:[%s1257 + $0x58] sm:$0xff]
    %v1270 = vld [vmem:[%s1257 + $0x60] sm:$0xff]
    %v1271 = vld [vmem:[%s1257 + $0x68] sm:$0xff]
    %v1272 = vld [vmem:[%s1257 + $0x70] sm:$0xff]
    %v1273 = vld [vmem:[%s1257 + $0x78] sm:$0xff]
    %1274 = vmatprep.subr.mxu0 0.0
    %1275 = vmatpush1.msra.mxu0 %v1258
    %1276 = vmatprep.subr.mxu0 0.0
    %1277 = vmatpush1.msra.mxu0 %v1259
    %1278 = vmatprep.subr.mxu0 0.0
    %1279 = vmatpush1.msra.mxu0 %v1260
    %1280 = vmatprep.subr.mxu0 0.0
    %1281 = vmatpush1.msra.mxu0 %v1261
    %1282 = vmatprep.subr.mxu0 0.0
    %1283 = vmatpush1.msra.mxu0 %v1262
    %1284 = vmatprep.subr.mxu0 0.0
    %1285 = vmatpush1.msra.mxu0 %v1263
    %1286 = vmatprep.subr.mxu0 0.0
    %1287 = vmatpush1.msra.mxu0 %v1264
    %1288 = vmatprep.subr.mxu0 0.0
    %1289 = vmatpush1.msra.mxu0 %v1265
    %1290 = vmatprep.subr.mxu0 0.0
    %1291 = vmatpush1.msra.mxu0 %v1266
    %1292 = vmatprep.subr.mxu0 0.0
    %1293 = vmatpush1.msra.mxu0 %v1267
    %1294 = vmatprep.subr.mxu0 0.0
    %1295 = vmatpush1.msra.mxu0 %v1268
    %1296 = vmatprep.subr.mxu0 0.0
    %1297 = vmatpush1.msra.mxu0 %v1269
    %1298 = vmatprep.subr.mxu0 0.0
    %1299 = vmatpush1.msra.mxu0 %v1270
    %1300 = vmatprep.subr.mxu0 0.0
    %1301 = vmatpush1.msra.mxu0 %v1271
    %1302 = vmatprep.subr.mxu0 0.0
    %1303 = vmatpush1.msra.mxu0 %v1272
    %1304 = vmatprep.subr.mxu0 0.0
    %1305 = vmatpush1.msra.mxu0 %v1273
    %1306 = vmatprep.subr.mxu0 0.0
    %1307 = vmatpush1.msra.mxu0 0.0
    %1308 = vmatprep.subr.mxu0 0.0
    %1309 = vmatpush1.msra.mxu0 0.0
    %1310 = vmatprep.subr.mxu0 0.0
    %1311 = vmatpush1.msra.mxu0 0.0
    %1312 = vmatprep.subr.mxu0 0.0
    %1313 = vmatpush1.msra.mxu0 0.0
    %1314 = vmatprep.subr.mxu0 0.0
    %1315 = vmatpush1.msra.mxu0 0.0
    %1316 = vmatprep.subr.mxu0 0.0
    %1317 = vmatpush1.msra.mxu0 0.0
    %1318 = vmatprep.subr.mxu0 0.0
    %1319 = vmatpush1.msra.mxu0 0.0
    %1320 = vmatprep.subr.mxu0 0.0
    %1321 = vmatpush1.msra.mxu0 0.0
    %1322 = vmatprep.subr.mxu0 0.0
    %1323 = vmatpush1.msra.mxu0 0.0
    %1324 = vmatprep.subr.mxu0 0.0
    %1325 = vmatpush1.msra.mxu0 0.0
    %1326 = vmatprep.subr.mxu0 0.0
    %1327 = vmatpush1.msra.mxu0 0.0
    %1328 = vmatprep.subr.mxu0 0.0
    %1329 = vmatpush1.msra.mxu0 0.0
    %1330 = vmatprep.subr.mxu0 0.0
    %1331 = vmatpush1.msra.mxu0 0.0
    %1332 = vmatprep.subr.mxu0 0.0
    %1333 = vmatpush1.msra.mxu0 0.0
    %1334 = vmatprep.subr.mxu0 0.0
    %1335 = vmatpush1.msra.mxu0 0.0
    %1336 = vmatprep.subr.mxu0 0.0
    %1337 = vmatpush1.msra.mxu0 0.0
    %1338 = vmatprep.mubr.f32.mxu0 0.0
    %1339 = vmatmul.mubr.f32.gmra.mrb[0].mxu0 %v40
    %v1340 = vpop.f32.mrb[0].mxu0
    %v1341 = vadd.f32 0.0, %v1340
    %v1342 = vpop.f32.mrb[0].mxu0
    %1343 = vmatprep.mubr.f32.mxu0 0.0
    %1344 = vmatmul.mubr.f32.gmra.mrb[0].mxu0 %v41
    %v1345 = vpop.f32.mrb[0].mxu0
    %v1346 = vadd.f32 0.0, %v1345
    %v1347 = vpop.f32.mrb[0].mxu0
    %1348 = vdwg.mxu0
    %s1349 = scalar_lea.vmem [#allocation5], 1408
    %v1350 = vld [vmem:[%s1349] sm:$0xff]
    %v1351 = vld [vmem:[%s1349 + $0x8] sm:$0xff]
    %v1352 = vld [vmem:[%s1349 + $0x10] sm:$0xff]
    %v1353 = vld [vmem:[%s1349 + $0x18] sm:$0xff]
    %v1354 = vld [vmem:[%s1349 + $0x20] sm:$0xff]
    %v1355 = vld [vmem:[%s1349 + $0x28] sm:$0xff]
    %v1356 = vld [vmem:[%s1349 + $0x30] sm:$0xff]
    %v1357 = vld [vmem:[%s1349 + $0x38] sm:$0xff]
    %v1358 = vld [vmem:[%s1349 + $0x40] sm:$0xff]
    %v1359 = vld [vmem:[%s1349 + $0x48] sm:$0xff]
    %v1360 = vld [vmem:[%s1349 + $0x50] sm:$0xff]
    %v1361 = vld [vmem:[%s1349 + $0x58] sm:$0xff]
    %v1362 = vld [vmem:[%s1349 + $0x60] sm:$0xff]
    %v1363 = vld [vmem:[%s1349 + $0x68] sm:$0xff]
    %v1364 = vld [vmem:[%s1349 + $0x70] sm:$0xff]
    %v1365 = vld [vmem:[%s1349 + $0x78] sm:$0xff]
    %1366 = vmatprep.subr.mxu0 0.0
    %1367 = vmatpush1.msra.mxu0 %v1350
    %1368 = vmatprep.subr.mxu0 0.0
    %1369 = vmatpush1.msra.mxu0 %v1351
    %1370 = vmatprep.subr.mxu0 0.0
    %1371 = vmatpush1.msra.mxu0 %v1352
    %1372 = vmatprep.subr.mxu0 0.0
    %1373 = vmatpush1.msra.mxu0 %v1353
    %1374 = vmatprep.subr.mxu0 0.0
    %1375 = vmatpush1.msra.mxu0 %v1354
    %1376 = vmatprep.subr.mxu0 0.0
    %1377 = vmatpush1.msra.mxu0 %v1355
    %1378 = vmatprep.subr.mxu0 0.0
    %1379 = vmatpush1.msra.mxu0 %v1356
    %1380 = vmatprep.subr.mxu0 0.0
    %1381 = vmatpush1.msra.mxu0 %v1357
    %1382 = vmatprep.subr.mxu0 0.0
    %1383 = vmatpush1.msra.mxu0 %v1358
    %1384 = vmatprep.subr.mxu0 0.0
    %1385 = vmatpush1.msra.mxu0 %v1359
    %1386 = vmatprep.subr.mxu0 0.0
    %1387 = vmatpush1.msra.mxu0 %v1360
    %1388 = vmatprep.subr.mxu0 0.0
    %1389 = vmatpush1.msra.mxu0 %v1361
    %1390 = vmatprep.subr.mxu0 0.0
    %1391 = vmatpush1.msra.mxu0 %v1362
    %1392 = vmatprep.subr.mxu0 0.0
    %1393 = vmatpush1.msra.mxu0 %v1363
    %1394 = vmatprep.subr.mxu0 0.0
    %1395 = vmatpush1.msra.mxu0 %v1364
    %1396 = vmatprep.subr.mxu0 0.0
    %1397 = vmatpush1.msra.mxu0 %v1365
    %1398 = vmatprep.subr.mxu0 0.0
    %1399 = vmatpush1.msra.mxu0 0.0
    %1400 = vmatprep.subr.mxu0 0.0
    %1401 = vmatpush1.msra.mxu0 0.0
    %1402 = vmatprep.subr.mxu0 0.0
    %1403 = vmatpush1.msra.mxu0 0.0
    %1404 = vmatprep.subr.mxu0 0.0
    %1405 = vmatpush1.msra.mxu0 0.0
    %1406 = vmatprep.subr.mxu0 0.0
    %1407 = vmatpush1.msra.mxu0 0.0
    %1408 = vmatprep.subr.mxu0 0.0
    %1409 = vmatpush1.msra.mxu0 0.0
    %1410 = vmatprep.subr.mxu0 0.0
    %1411 = vmatpush1.msra.mxu0 0.0
    %1412 = vmatprep.subr.mxu0 0.0
    %1413 = vmatpush1.msra.mxu0 0.0
    %1414 = vmatprep.subr.mxu0 0.0
    %1415 = vmatpush1.msra.mxu0 0.0
    %1416 = vmatprep.subr.mxu0 0.0
    %1417 = vmatpush1.msra.mxu0 0.0
    %1418 = vmatprep.subr.mxu0 0.0
    %1419 = vmatpush1.msra.mxu0 0.0
    %1420 = vmatprep.subr.mxu0 0.0
    %1421 = vmatpush1.msra.mxu0 0.0
    %1422 = vmatprep.subr.mxu0 0.0
    %1423 = vmatpush1.msra.mxu0 0.0
    %1424 = vmatprep.subr.mxu0 0.0
    %1425 = vmatpush1.msra.mxu0 0.0
    %1426 = vmatprep.subr.mxu0 0.0
    %1427 = vmatpush1.msra.mxu0 0.0
    %1428 = vmatprep.subr.mxu0 0.0
    %1429 = vmatpush1.msra.mxu0 0.0
    %1430 = vmatprep.mubr.f32.mxu0 0.0
    %1431 = vmatmul.mubr.f32.gmra.mrb[0].mxu0 %v40
    %v1432 = vpop.f32.mrb[0].mxu0
    %v1433 = vadd.f32 0.0, %v1432
    %v1434 = vpop.f32.mrb[0].mxu0
    %1435 = vmatprep.mubr.f32.mxu0 0.0
    %1436 = vmatmul.mubr.f32.gmra.mrb[0].mxu0 %v41
    %v1437 = vpop.f32.mrb[0].mxu0
    %v1438 = vadd.f32 0.0, %v1437
    %v1439 = vpop.f32.mrb[0].mxu0
    %1440 = vdwg.mxu0
    %v1441 = vmul.f32 %v500, %v1247
    %v1442 = vmul.f32 %v499, %v1248
    %v1443 = vmul.f32 %v499, %v1253
    %v1444 = vmul.f32 %v500, %v1254
    %v1445 = vadd.f32 %v1441, %v1443
    %v1446 = vadd.f32 %v1442, %v1444
    %v1447 = vmul.f32 %v1255, %v40
    %v1448 = vmul.f32 %v1256, %v41
    %v1449 = vsub.f32 %v1445, %v1447
    %v1450 = vsub.f32 %v1446, %v1448
    %v1451 = vrot.slane %v1341, 6
    %v1452 = vrot.slane %v1346, 6
    %v1453 = vsel %vm263, %v1451, %v1452
    %v1454 = vsel %vm263, %v1452, %v1451
    %v1455 = vmul.f32 %v1453, %v549
    %v1456 = vmul.f32 %v1454, %v550
    %v1457 = vrot.slane %v1341, 2
    %v1458 = vrot.slane %v1346, 2
    %v1459 = vsel %vm256, %v1457, %v1458
    %v1460 = vsel %vm256, %v1458, %v1457
    %v1461 = vmul.f32 %v1460, %v555
    %v1462 = vmul.f32 %v1459, %v556
    %v1463 = vsub.f32 %v1455, %v1461
    %v1464 = vsub.f32 %v1456, %v1462
    %v1465 = vmul.f32 %v1433, %v1449
    %v1466 = vmul.f32 %v1438, %v1450
    %v1467 = vmul.f32 %v1463, %v1463
    %v1468 = vmul.f32 %v1464, %v1464
    %v1469 = vsub.f32 %v1465, %v1467
    %v1470 = vsub.f32 %v1466, %v1468
    %v1471 = vadd.f32 %v1242, %v1469
    %v1472 = vadd.f32 %v1243, %v1470
    %1473 = vst [vmem:[#allocation7] sm:$0xff] %v1471
    %1474 = vst [vmem:[#allocation7 + $0x8] sm:$0xff] %v1472
    // Predicated region
    $region18: #{tpu_custom_call.1} parent=1 // pred_check
      _
    $region19: #{tpu_custom_call.1} parent=1 // pred_check_branch
      %1476 = sbr.rel (0) target = $region21
    $region20: #{tpu_custom_call.1} parent=1 // pred_region
      %s1478 = ssub.s32 256, 256
      %1479 = vsyncadd [#allocation4], %s1478
      %s1480 = sshll.u32 [#allocation7], 4
      %s1481 = int_to_ptr.vmem [resolvable:$true] %s1480
      %1486 = dma.vmem_to_hbm [thread:$0]  %s1481, 256, %s2, [#allocation4], 128, 128, 8
    $region21: #{tpu_custom_call.1} parent=1 // pred_fallthru
      _
    // Predicated region
    $region22: #{tpu_custom_call.1} parent=1 // pred_check
      _
    $region23: #{tpu_custom_call.1} parent=1 // pred_check_branch
      %1488 = sbr.rel (0) target = $region25
    $region24: #{tpu_custom_call.1} parent=1 // pred_region
      %1489 = dma.done [#allocation4], 256
    $region25: #{tpu_custom_call.1} parent=1 // pred_fallthru
      _
    %1490 = vsyncpa [#allocation3], 1
    %1491 = vsyncpa [#allocation6], 1
    %1492 = vsyncpa [#allocation4], 1

</llo_original>
